<compile_context>
chip_gen: v6e
topology: v6e:2x2x1
jax: 0.10.0
libtpu: 0.0.40
codegen_flags: <defaults>
</compile_context>

<pallas_src>
import functools

import jax
import jax.numpy as jnp
from jax.experimental import pallas as pl
from jax.experimental.pallas import tpu as pltpu

ENC_TEXT = 256        # text hidden (Conv1d(256, 512, 3) / Conv1d(512, 80, 1))
ENC_HID = 512
MEL_DIM = 80          # mel channels in the module
MEL_PAD = 128         # mel channels padded to a full lane width
MEL_HID = 160         # mel conv1 output channels
MEL_HID_PAD = 256     # padded to 2 lanes


def _round_up(x, m):
    return ((x + m - 1) // m) * m


def _tpu_vmem_capacity():
    try:
        info = pltpu.get_tpu_info()
        cap = getattr(info, "vmem_capacity_bytes", None)
        if cap:
            return int(cap)
    except Exception:
        pass
    return 64 * 1024 * 1024   # conservative (v7x-sized) fallback


_VMEM_CAP = _tpu_vmem_capacity()
# Scoped-VMEM limit with headroom below physical: v5e/v6e (128 MiB) -> 96 MiB,
# v7x (64 MiB) -> 40 MiB, unknown -> 40 MiB.
_VMEM_LIMIT = int(min(96 * 1024 * 1024,
                      max(_VMEM_CAP - 24 * 1024 * 1024, 32 * 1024 * 1024)))


# --------------------------------------------------------------------------
# Kernel 1: text + mel encoders (one batch element per grid step)
# --------------------------------------------------------------------------
def _encoder_kernel(src_len_ref, mel_len_ref,
                    text_ref, mel_ref,
                    w1_ref, b1_ref, w2_ref, b2_ref,
                    m1_ref, mb1_ref, m2_ref, mb2_ref, m3_ref, mb3_ref,
                    temb_ref, memb_ref, *, t_true):
    f32 = jnp.float32
    bf16 = jnp.bfloat16
    b = pl.program_id(0)

    def conv3_im2col(x, w_ref, b_ref):
        # x: (n, Cin) bf16 or f32.  out[t] = x[t-1]@W0 + x[t]@W1 + x[t+1]@W2 + b,
        # zero rows beyond the array ends (Conv1d(k=3, padding=1)).  Taps are
        # aligned with pltpu.roll (XLU) and concatenated on the lane axis ->
        # one deep-K bf16 MXU matmul with f32 accumulation.
        x32 = x.astype(f32)
        n = x32.shape[0]
        row = jax.lax.broadcasted_iota(jnp.int32, (n, 1), 0)
        left = jnp.where(row == 0, 0.0, pltpu.roll(x32, shift=1, axis=0))
        right = jnp.where(row == n - 1, 0.0, pltpu.roll(x32, shift=n - 1, axis=0))
        xcat = jnp.concatenate(
            [left.astype(bf16), x32.astype(bf16), right.astype(bf16)], axis=1)
        return jnp.dot(xcat, w_ref[...], preferred_element_type=f32) + b_ref[...]

    # ---- text encoder: Conv1d(256->512, k=3, p=1) + ReLU + Conv1d(512->80, k=1)
    x = text_ref[0]                                        # (S_pad, 256) bf16
    h = jnp.maximum(conv3_im2col(x, w1_ref, b1_ref), 0.0)  # (S_pad, 512) f32
    te = (jnp.dot(h.astype(bf16), w2_ref[...], preferred_element_type=f32)
          + b2_ref[...])                                   # (S_pad, 128) f32
    srow = jax.lax.broadcasted_iota(jnp.int32, (te.shape[0], 1), 0)
    te = jnp.where(srow < src_len_ref[b], te, 0.0)         # masked_fill(src_mask, 0)
    # stash ||te||^2 in the zero channel 127 (memb ch 127 stays 0 -> no leak
    # into te.me); the align kernel reads it back instead of recomputing.
    te_norm = jnp.sum(te * te, axis=1, keepdims=True)      # ch 80..127 are 0 here
    lane = jax.lax.broadcasted_iota(jnp.int32, te.shape, 1)
    temb_ref[0] = jnp.where(lane == MEL_PAD - 1, te_norm, te)

    # ---- mel encoder: Conv(80->160,k3)+LReLU, Conv(160->80,k3)+LReLU, Conv(80->80,k1)
    #      (channel dims padded 80->128, 160->256 with zero weights/bias)
    m = mel_ref[0]                                         # (T_pad, 128) bf16
    trow = jax.lax.broadcasted_iota(jnp.int32, (m.shape[0], 1), 0)
    g = conv3_im2col(m, m1_ref, mb1_ref)
    g = jnp.where(g > 0, g, 0.01 * g)                      # LeakyReLU(0.01)
    # torch's conv2 sees an array of exactly T rows; zero our padded rows >= T
    # so its implicit boundary padding is reproduced exactly.
    g = jnp.where(trow < t_true, g, 0.0)
    g2 = conv3_im2col(g, m2_ref, mb2_ref)
    g2 = jnp.where(g2 > 0, g2, 0.01 * g2)
    me = (jnp.dot(g2.astype(bf16), m3_ref[...], preferred_element_type=f32)
          + mb3_ref[...])                                  # (T_pad, 128) f32
    memb_ref[0] = jnp.where(trow < mel_len_ref[b], me, 0.0)  # masked_fill(mel_mask, 0)


# --------------------------------------------------------------------------
# Kernel 2: cdist + masked softmax over the text axis, tiled over mel/T
# --------------------------------------------------------------------------
def _align_kernel(src_len_ref, mel_len_ref, temb_ref, memb_ref, out_ref):
    f32 = jnp.float32
    b = pl.program_id(0)
    tj = pl.program_id(1)
    S = out_ref.shape[1]
    tT = out_ref.shape[2]

    te = temb_ref[0]                                       # (S, 128) f32
    me = memb_ref[0]                                       # (tT, 128) f32

    # torch.cdist (euclidean), expanded form kept fully in f32.
    xy = jax.lax.dot_general(te, me, (((1,), (1,)), ((), ())),
                             preferred_element_type=f32)   # (S, tT)
    xn = te[:, MEL_PAD - 1:MEL_PAD]                        # stashed ||te||^2, (S,1)
    ones_row = jnp.ones((1, me.shape[1]), f32)
    yn = jax.lax.dot_general(ones_row, me * me, (((1,), (1,)), ((), ())),
                             preferred_element_type=f32)   # (1, tT)
    dist = jnp.sqrt(jnp.maximum(xn + yn - 2.0 * xy, 0.0))

    # validity from lengths: 1-D sublane / lane compares, broadcast in the math.
    svalid = (jax.lax.broadcasted_iota(jnp.int32, (S, 1), 0)
              < src_len_ref[b])                            # (S, 1) bool
    tvalid = (jax.lax.broadcasted_iota(jnp.int32, (1, tT), 1)
              < (mel_len_ref[b] - tj * tT))                # (1, tT) bool

    # fused masked softmax over the text (sublane) axis.
    neg = -dist
    smax = jnp.max(jnp.where(svalid, neg, -1e30), axis=0, keepdims=True)
    p = jnp.exp(jnp.minimum(neg - smax, 0.0))
    p = p * svalid.astype(f32) * tvalid.astype(f32)
    denom = jnp.sum(p, axis=0, keepdims=True)               # (1, tT)
    inv = 1.0 / jnp.where(denom > 0.0, denom, 1.0)          # exact, tiny
    out_ref[0] = p * inv                                    # masked cols are 0


# --------------------------------------------------------------------------
# Kernel 3: maximum_path (monotonic alignment DP), one batch element per step
# --------------------------------------------------------------------------
def _maxpath_kernel(src_len_ref, mel_len_ref, vt_ref, path_ref, dir_ref):
    f32 = jnp.float32
    b = pl.program_id(0)
    T = vt_ref.shape[1]
    S = vt_ref.shape[2]
    max_neg = jnp.float32(-1e9)
    lane = jax.lax.broadcasted_iota(jnp.int32, (1, S), 1)
    sl = src_len_ref[b]
    ml = mel_len_ref[b]

    # forward DP over mel frames: v[s] = max(v[s], v[s-1]) + value[t, s]
    def fwd(t, v):
        vrow = vt_ref[0, pl.ds(t, 1), :]                          # (1, S)
        v0 = jnp.where(lane == 0, max_neg, pltpu.roll(v, shift=1, axis=1))
        keep = v >= v0                                            # 1 stay, 0 step down
        v_max = jnp.maximum(v, v0)
        v_new = jnp.where(lane <= t, v_max + vrow, max_neg)
        dir_ref[pl.ds(t, 1), :] = jnp.where(t < ml, keep.astype(f32), 1.0)
        return v_new

    jax.lax.fori_loop(0, T, fwd, jnp.zeros((1, S), f32))

    # backward trace: keep the path index as a one-hot lane vector so every
    # step stays fully vectorised (no scalar extraction from vregs).
    col0 = (lane == sl - 1).astype(f32)

    def bwd(i, col):
        t = T - 1 - i
        path_ref[0, pl.ds(t, 1), :] = col
        drow = dir_ref[pl.ds(t, 1), :]
        d = jnp.sum(drow * col, axis=1, keepdims=True)            # (1, 1)
        return jnp.where(d > 0.5, col, pltpu.roll(col, shift=S - 1, axis=1))

    jax.lax.fori_loop(0, T, bwd, col0)


# --------------------------------------------------------------------------
# Host-side weight prep: pad mel channels, flatten k=3 convs to im2col, bf16
# --------------------------------------------------------------------------
def _prep_weights(params):
    w1, b1, w2, b2, m1, mb1, m2, mb2, m3, mb3 = params
    f32, bf16 = jnp.float32, jnp.bfloat16

    w1f = w1.reshape(3 * ENC_TEXT, ENC_HID).astype(bf16)           # (768, 512)
    b1f = b1.astype(f32)                                           # (1, 512)
    w2p = jnp.zeros((ENC_HID, MEL_PAD), f32).at[:, :MEL_DIM].set(w2)
    b2p = jnp.zeros((1, MEL_PAD), f32).at[:, :MEL_DIM].set(b2)

    m1p = jnp.zeros((3, MEL_PAD, MEL_HID_PAD), f32).at[:, :MEL_DIM, :MEL_HID].set(m1)
    mb1p = jnp.zeros((1, MEL_HID_PAD), f32).at[:, :MEL_HID].set(mb1)
    m2p = jnp.zeros((3, MEL_HID_PAD, MEL_PAD), f32).at[:, :MEL_HID, :MEL_DIM].set(m2)
    mb2p = jnp.zeros((1, MEL_PAD), f32).at[:, :MEL_DIM].set(mb2)
    m3p = jnp.zeros((MEL_PAD, MEL_PAD), f32).at[:MEL_DIM, :MEL_DIM].set(m3)
    mb3p = jnp.zeros((1, MEL_PAD), f32).at[:, :MEL_DIM].set(mb3)

    return (w1f, b1f, w2p.astype(bf16), b2p,
            m1p.reshape(3 * MEL_PAD, MEL_HID_PAD).astype(bf16), mb1p,
            m2p.reshape(3 * MEL_HID_PAD, MEL_PAD).astype(bf16), mb2p,
            m3p.astype(bf16), mb3p)


def _run_encoders(text_p, mel_p, src_len, mel_len, wts, t_true):
    B, S_pad, _ = text_p.shape
    T_pad = mel_p.shape[1]
    w1f, b1f, w2p, b2p, m1f, mb1p, m2f, mb2p, m3p, mb3p = wts
    kern = functools.partial(_encoder_kernel, t_true=t_true)
    weights = (w1f, b1f, w2p, b2p, m1f, mb1p, m2f, mb2p, m3p, mb3p)

    def build(weight_buffers):
        def wspec(arr):
            n = arr.ndim
            imap = lambda b, sl, ml, n=n: (0,) * n
            if weight_buffers is not None:
                return pl.BlockSpec(arr.shape, imap,
                                    pipeline_mode=pl.Buffered(weight_buffers))
            return pl.BlockSpec(arr.shape, imap)

        grid_spec = pltpu.PrefetchScalarGridSpec(
            num_scalar_prefetch=2,
            grid=(B,),
            in_specs=[
                pl.BlockSpec((1, S_pad, ENC_TEXT), lambda b, sl, ml: (b, 0, 0)),
                pl.BlockSpec((1, T_pad, MEL_PAD), lambda b, sl, ml: (b, 0, 0)),
            ] + [wspec(w) for w in weights],
            out_specs=[
                pl.BlockSpec((1, S_pad, MEL_PAD), lambda b, sl, ml: (b, 0, 0)),
                pl.BlockSpec((1, T_pad, MEL_PAD), lambda b, sl, ml: (b, 0, 0)),
            ],
        )
        return pl.pallas_call(
            kern,
            out_shape=(jax.ShapeDtypeStruct((B, S_pad, MEL_PAD), jnp.float32),
                       jax.ShapeDtypeStruct((B, T_pad, MEL_PAD), jnp.float32)),
            grid_spec=grid_spec,
            compiler_params=pltpu.CompilerParams(
                dimension_semantics=("parallel",),
                vmem_limit_bytes=_VMEM_LIMIT),
        )

    args = (src_len, mel_len, text_p, mel_p) + weights
    try:
        # grid-invariant blocks: a single pipeline buffer is enough.
        return build(1)(*args)
    except Exception:
        # this Pallas build doesn't accept pipeline_mode / Buffered(1); fall
        # back to default double buffering (correctness unaffected).
        return build(None)(*args)


def _soft_alignment(temb, memb, src_len, mel_len, tT):
    B, S_pad, _ = temb.shape
    T_pad = memb.shape[1]
    grid_spec = pltpu.PrefetchScalarGridSpec(
        num_scalar_prefetch=2,
        grid=(B, T_pad // tT),
        in_specs=[
            pl.BlockSpec((1, S_pad, MEL_PAD), lambda b, t, sl, ml: (b, 0, 0)),
            pl.BlockSpec((1, tT, MEL_PAD), lambda b, t, sl, ml: (b, t, 0)),
        ],
        out_specs=pl.BlockSpec((1, S_pad, tT), lambda b, t, sl, ml: (b, 0, t)),
    )
    return pl.pallas_call(
        _align_kernel,
        out_shape=jax.ShapeDtypeStruct((B, S_pad, T_pad), jnp.float32),
        grid_spec=grid_spec,
        compiler_params=pltpu.CompilerParams(
            dimension_semantics=("parallel", "parallel"),
            vmem_limit_bytes=_VMEM_LIMIT),
    )(src_len, mel_len, temb, memb)


def _maximum_path(soft_pad, src_len, mel_len):
    # soft_pad: (B, S_pad, T_pad), already zero outside the valid (s, t) region.
    B, S_pad, T_pad = soft_pad.shape
    S_lane = _round_up(max(S_pad, 128), 128)
    vt = jnp.transpose(soft_pad, (0, 2, 1))                    # (B, T_pad, S_pad)
    if S_lane > S_pad:
        vt = jnp.pad(vt, ((0, 0), (0, 0), (0, S_lane - S_pad)))
    grid_spec = pltpu.PrefetchScalarGridSpec(
        num_scalar_prefetch=2,
        grid=(B,),
        in_specs=[pl.BlockSpec((1, T_pad, S_lane), lambda b, sl, ml: (b, 0, 0))],
        out_specs=pl.BlockSpec((1, T_pad, S_lane), lambda b, sl, ml: (b, 0, 0)),
        scratch_shapes=[pltpu.VMEM((T_pad, S_lane), jnp.float32)],
    )
    path_t = pl.pallas_call(
        _maxpath_kernel,
        out_shape=jax.ShapeDtypeStruct((B, T_pad, S_lane), jnp.float32),
        grid_spec=grid_spec,
        compiler_params=pltpu.CompilerParams(
            dimension_semantics=("parallel",),
            vmem_limit_bytes=_VMEM_LIMIT),
    )(src_len, mel_len, vt)
    return jnp.transpose(path_t, (0, 2, 1))                    # (B, S_lane, T_pad)


# --------------------------------------------------------------------------
# VarianceAdaptor.forward
# --------------------------------------------------------------------------
def variance_adaptor_forward(params, text_pro, src_mask, src_len, attn_mask,
                             mel_len, mel, mel_mask=None, max_len=None):
    # src_mask / mel_mask / attn_mask / max_len enter the torch forward, but all
    # masking is reproduced in-kernel from src_len / mel_len (scalar prefetch).
    B, S, _ = text_pro.shape
    T = mel.shape[1]
    S_pad = _round_up(max(S, 8), 8)

    # Always pad T up to a multiple of the align tile so the grid never
    # collapses to 128-wide steps; 256 everywhere, 512 on big-VMEM chips for
    # long T (padding waste stays small), 128 only for genuinely short T.
    if T <= 128:
        tT = 128
    elif _VMEM_CAP >= 96 * 1024 * 1024 and T >= 1024:
        tT = 512
    else:
        tT = 256
    T_pad = _round_up(T, tT)

    bf16 = jnp.bfloat16
    text_p = jnp.pad(text_pro, ((0, 0), (0, S_pad - S), (0, 0))).astype(bf16)
    mel_p = jnp.pad(mel, ((0, 0), (0, T_pad - T),
                          (0, MEL_PAD - MEL_DIM))).astype(bf16)
    src_len = src_len.astype(jnp.int32)
    mel_len = mel_len.astype(jnp.int32)

    wts = _prep_weights(params)
    temb, memb = _run_encoders(text_p, mel_p, src_len, mel_len, wts, T)
    soft_pad = _soft_alignment(temb, memb, src_len, mel_len, tT)  # (B, S_pad, T_pad)
    soft_A = soft_pad[:, :S, :T]

    s_valid = jnp.arange(S)[None, :] < src_len[:, None]
    t_valid = jnp.arange(T)[None, :] < mel_len[:, None]
    mask_ST = (s_valid[:, :, None] & t_valid[:, None, :]).astype(jnp.float32)

    hard_pad = _maximum_path(soft_pad, src_len, mel_len)
    hard_A = hard_pad[:, :S, :T] * mask_ST
    duration_target = jnp.sum(hard_A, axis=2)
    perf_mask = mask_ST < 0.5                                     # == mask_ST_rev
    return soft_A, hard_A, perf_mask, duration_target


if __name__ == "__main__":
    key = jax.random.PRNGKey(0)
    B, S, T = 2, 8, 16
    ks = jax.random.split(key, 12)
    scale = 0.05
    params = (
        scale * jax.random.normal(ks[0], (3, ENC_TEXT, ENC_HID), jnp.float32),
        scale * jax.random.normal(ks[1], (1, ENC_HID), jnp.float32),
        scale * jax.random.normal(ks[2], (ENC_HID, MEL_DIM), jnp.float32),
        scale * jax.random.normal(ks[3], (1, MEL_DIM), jnp.float32),
        scale * jax.random.normal(ks[4], (3, MEL_DIM, MEL_HID), jnp.float32),
        scale * jax.random.normal(ks[5], (1, MEL_HID), jnp.float32),
        scale * jax.random.normal(ks[6], (3, MEL_HID, MEL_DIM), jnp.float32),
        scale * jax.random.normal(ks[7], (1, MEL_DIM), jnp.float32),
        scale * jax.random.normal(ks[8], (MEL_DIM, MEL_DIM), jnp.float32),
        scale * jax.random.normal(ks[9], (1, MEL_DIM), jnp.float32),
    )
    text_pro = jax.random.normal(ks[10], (B, S, ENC_TEXT), jnp.float32)
    mel = jax.random.normal(ks[11], (B, T, MEL_DIM), jnp.float32)
    src_len = jnp.array([8, 5], jnp.int32)
    mel_len = jnp.array([16, 11], jnp.int32)
    src_mask = jnp.arange(S)[None, :] >= src_len[:, None]
    mel_mask = jnp.arange(T)[None, :] >= mel_len[:, None]
    attn_mask = src_mask[:, :, None] | mel_mask[:, None, :]   # unused in forward

    outs = variance_adaptor_forward(params, text_pro, src_mask, src_len,
                                    attn_mask, mel_len, mel, mel_mask)
    soft_A, hard_A, perf_mask, duration_target = jax.block_until_ready(outs)

    # sanity: finite soft alignment, valid columns sum to 1, hard path is a
    # per-column one-hot over valid columns, durations sum to mel_len.
    t_valid = (jnp.arange(T)[None, :] < mel_len[:, None]).astype(jnp.float32)
    assert bool(jnp.all(jnp.isfinite(soft_A)))
    assert bool(jnp.allclose(soft_A.sum(axis=1), t_valid, atol=1e-4))
    assert bool(jnp.all((hard_A == 0.0) | (hard_A == 1.0)))
    assert bool(jnp.allclose(hard_A.sum(axis=1), t_valid))
    assert bool(jnp.allclose(duration_target.sum(axis=1),
                             mel_len.astype(jnp.float32)))
    print("KERNEL_OK")
</pallas_src>

<mosaic_0001>
module attributes {stable_mosaic.version = 11 : i64} {
  func.func @_encoder_kernel(%arg0: i32, %arg1: memref<2xi32, #tpu.memory_space<smem>>, %arg2: memref<2xi32, #tpu.memory_space<smem>>, %arg3: memref<1x8x256xbf16, #tpu.memory_space<vmem>>, %arg4: memref<1x128x128xbf16, #tpu.memory_space<vmem>>, %arg5: memref<768x512xbf16, #tpu.memory_space<vmem>>, %arg6: memref<1x512xf32, #tpu.memory_space<vmem>>, %arg7: memref<512x128xbf16, #tpu.memory_space<vmem>>, %arg8: memref<1x128xf32, #tpu.memory_space<vmem>>, %arg9: memref<384x256xbf16, #tpu.memory_space<vmem>>, %arg10: memref<1x256xf32, #tpu.memory_space<vmem>>, %arg11: memref<768x128xbf16, #tpu.memory_space<vmem>>, %arg12: memref<1x128xf32, #tpu.memory_space<vmem>>, %arg13: memref<128x128xbf16, #tpu.memory_space<vmem>>, %arg14: memref<1x128xf32, #tpu.memory_space<vmem>>, %arg15: memref<1x8x128xf32, #tpu.memory_space<vmem>>, %arg16: memref<1x128x128xf32, #tpu.memory_space<vmem>>) attributes {dimension_semantics = [#tpu.dimension_semantics<parallel>], iteration_bounds = array<i64: 2>, scalar_prefetch = 2 : i64, scratch_operands = 0 : i64, tpu.core_type = #tpu.core_type<tc>, window_params = [{transform_indices = @transform_0, window_bounds = array<i64: 1, 8, 256>}, {transform_indices = @transform_1, window_bounds = array<i64: 1, 128, 128>}, {pipeline_mode = #tpu.pipeline_mode<synchronous>, transform_indices = @transform_2, window_bounds = array<i64: 768, 512>}, {pipeline_mode = #tpu.pipeline_mode<synchronous>, transform_indices = @transform_3, window_bounds = array<i64: 1, 512>}, {pipeline_mode = #tpu.pipeline_mode<synchronous>, transform_indices = @transform_4, window_bounds = array<i64: 512, 128>}, {pipeline_mode = #tpu.pipeline_mode<synchronous>, transform_indices = @transform_5, window_bounds = array<i64: 1, 128>}, {pipeline_mode = #tpu.pipeline_mode<synchronous>, transform_indices = @transform_6, window_bounds = array<i64: 384, 256>}, {pipeline_mode = #tpu.pipeline_mode<synchronous>, transform_indices = @transform_7, window_bounds = array<i64: 1, 256>}, {pipeline_mode = #tpu.pipeline_mode<synchronous>, transform_indices = @transform_8, window_bounds = array<i64: 768, 128>}, {pipeline_mode = #tpu.pipeline_mode<synchronous>, transform_indices = @transform_9, window_bounds = array<i64: 1, 128>}, {pipeline_mode = #tpu.pipeline_mode<synchronous>, transform_indices = @transform_10, window_bounds = array<i64: 128, 128>}, {pipeline_mode = #tpu.pipeline_mode<synchronous>, transform_indices = @transform_11, window_bounds = array<i64: 1, 128>}, {transform_indices = @transform_12, window_bounds = array<i64: 1, 8, 128>}, {transform_indices = @transform_13, window_bounds = array<i64: 1, 128, 128>}]} {
    %c0 = arith.constant 0 : index
    %c0_0 = arith.constant 0 : index
    %c0_1 = arith.constant 0 : index
    %0 = vector.load %arg3[%c0, %c0_0, %c0_1] : memref<1x8x256xbf16, #tpu.memory_space<vmem>>, vector<1x8x256xbf16>
    %1 = vector.shape_cast %0 : vector<1x8x256xbf16> to vector<8x256xbf16>
    %2 = arith.extf %1 : vector<8x256xbf16> to vector<8x256xf32>
    %3 = tpu.iota {dimensions = array<i32: 0>} : vector<8x1xi32>
    %c0_i32 = arith.constant 0 : i32
    %4 = vector.broadcast %c0_i32 : i32 to vector<8x1xi32>
    %5 = arith.cmpi eq, %3, %4 : vector<8x1xi32>
    %c1_i32 = arith.constant 1 : i32
    %6 = tpu.dynamic_rotate %2 by %c1_i32 dim 0 : vector<8x256xf32>, i32 -> vector<8x256xf32>
    %cst = arith.constant 0.000000e+00 : f32
    %7 = vector.shape_cast %5 : vector<8x1xi1> to vector<8x1xi1>
    %8 = vector.broadcast %7 : vector<8x1xi1> to vector<8x256xi1>
    %9 = vector.broadcast %cst : f32 to vector<8x256xf32>
    %10 = arith.select %8, %9, %6 : vector<8x256xi1>, vector<8x256xf32>
    %c7_i32 = arith.constant 7 : i32
    %11 = vector.broadcast %c7_i32 : i32 to vector<8x1xi32>
    %12 = arith.cmpi eq, %3, %11 : vector<8x1xi32>
    %c7_i32_2 = arith.constant 7 : i32
    %13 = tpu.dynamic_rotate %2 by %c7_i32_2 dim 0 : vector<8x256xf32>, i32 -> vector<8x256xf32>
    %cst_3 = arith.constant 0.000000e+00 : f32
    %14 = vector.shape_cast %12 : vector<8x1xi1> to vector<8x1xi1>
    %15 = vector.broadcast %14 : vector<8x1xi1> to vector<8x256xi1>
    %16 = vector.broadcast %cst_3 : f32 to vector<8x256xf32>
    %17 = arith.select %15, %16, %13 : vector<8x256xi1>, vector<8x256xf32>
    %18 = arith.truncf %10 : vector<8x256xf32> to vector<8x256xbf16>
    %19 = arith.truncf %2 : vector<8x256xf32> to vector<8x256xbf16>
    %20 = arith.truncf %17 : vector<8x256xf32> to vector<8x256xbf16>
    %21 = tpu.concatenate %18, %19, %20 in 1 : vector<8x256xbf16>, vector<8x256xbf16>, vector<8x256xbf16> -> vector<8x768xbf16>
    %c0_4 = arith.constant 0 : index
    %c0_5 = arith.constant 0 : index
    %22 = vector.load %arg5[%c0_4, %c0_5] : memref<768x512xbf16, #tpu.memory_space<vmem>>, vector<768x512xbf16>
    %cst_6 = arith.constant dense<0.000000e+00> : vector<8x512xf32>
    %23 = tpu.matmul %21, %22, %cst_6 {dimension_numbers = #tpu.dot_dimension_numbers<[1], [0], [0], [1], [0, 0, 1, 1], [], []>} : vector<8x768xbf16>, vector<768x512xbf16>, vector<8x512xf32> -> vector<8x512xf32>
    %c0_7 = arith.constant 0 : index
    %c0_8 = arith.constant 0 : index
    %24 = vector.load %arg6[%c0_7, %c0_8] : memref<1x512xf32, #tpu.memory_space<vmem>>, vector<1x512xf32>
    %25 = vector.broadcast %24 : vector<1x512xf32> to vector<8x512xf32>
    %26 = arith.addf %23, %25 : vector<8x512xf32>
    %cst_9 = arith.constant 0.000000e+00 : f32
    %27 = vector.broadcast %cst_9 : f32 to vector<8x512xf32>
    %28 = arith.maximumf %26, %27 : vector<8x512xf32>
    %29 = arith.truncf %28 : vector<8x512xf32> to vector<8x512xbf16>
    %c0_10 = arith.constant 0 : index
    %c0_11 = arith.constant 0 : index
    %30 = vector.load %arg7[%c0_10, %c0_11] : memref<512x128xbf16, #tpu.memory_space<vmem>>, vector<512x128xbf16>
    %cst_12 = arith.constant dense<0.000000e+00> : vector<8x128xf32>
    %31 = tpu.matmul %29, %30, %cst_12 {dimension_numbers = #tpu.dot_dimension_numbers<[1], [0], [0], [1], [0, 0, 1, 1], [], []>} : vector<8x512xbf16>, vector<512x128xbf16>, vector<8x128xf32> -> vector<8x128xf32>
    %c0_13 = arith.constant 0 : index
    %c0_14 = arith.constant 0 : index
    %32 = vector.load %arg8[%c0_13, %c0_14] : memref<1x128xf32, #tpu.memory_space<vmem>>, vector<1x128xf32>
    %33 = vector.broadcast %32 : vector<1x128xf32> to vector<8x128xf32>
    %34 = arith.addf %31, %33 : vector<8x128xf32>
    %35 = tpu.iota {dimensions = array<i32: 0>} : vector<8x1xi32>
    %36 = arith.index_cast %arg0 : i32 to index
    %37 = memref.load %arg1[%36] : memref<2xi32, #tpu.memory_space<smem>>
    %38 = vector.broadcast %37 : i32 to vector<8x1xi32>
    %39 = arith.cmpi slt, %35, %38 : vector<8x1xi32>
    %cst_15 = arith.constant 0.000000e+00 : f32
    %40 = vector.shape_cast %39 : vector<8x1xi1> to vector<8x1xi1>
    %41 = vector.broadcast %40 : vector<8x1xi1> to vector<8x128xi1>
    %42 = vector.broadcast %cst_15 : f32 to vector<8x128xf32>
    %43 = arith.select %41, %34, %42 : vector<8x128xi1>, vector<8x128xf32>
    %44 = arith.mulf %43, %43 : vector<8x128xf32>
    %cst_16 = arith.constant dense<0.000000e+00> : vector<8xf32>
    %45 = vector.multi_reduction <add>, %44, %cst_16 [1] : vector<8x128xf32> to vector<8xf32>
    %46 = vector.shape_cast %45 : vector<8xf32> to vector<8x1xf32>
    %47 = tpu.iota {dimensions = array<i32: 1>} : vector<8x128xi32>
    %c127_i32 = arith.constant 127 : i32
    %48 = vector.broadcast %c127_i32 : i32 to vector<8x128xi32>
    %49 = arith.cmpi eq, %47, %48 : vector<8x128xi32>
    %50 = vector.shape_cast %46 : vector<8x1xf32> to vector<8x1xf32>
    %51 = vector.broadcast %50 : vector<8x1xf32> to vector<8x128xf32>
    %52 = arith.select %49, %51, %43 : vector<8x128xi1>, vector<8x128xf32>
    %c0_17 = arith.constant 0 : index
    %c0_18 = arith.constant 0 : index
    %c0_19 = arith.constant 0 : index
    %53 = vector.load %arg15[%c0_17, %c0_18, %c0_19] : memref<1x8x128xf32, #tpu.memory_space<vmem>>, vector<1x8x128xf32>
    %54 = vector.shape_cast %53 : vector<1x8x128xf32> to vector<8x128xf32>
    %55 = vector.shape_cast %52 : vector<8x128xf32> to vector<1x8x128xf32>
    tpu.vector_store %arg15[%c0_17, %c0_18, %c0_19], %55 {strides = array<i32>} : memref<1x8x128xf32, #tpu.memory_space<vmem>>, vector<1x8x128xf32>,
    %c0_20 = arith.constant 0 : index
    %c0_21 = arith.constant 0 : index
    %c0_22 = arith.constant 0 : index
    %56 = vector.load %arg4[%c0_20, %c0_21, %c0_22] : memref<1x128x128xbf16, #tpu.memory_space<vmem>>, vector<1x128x128xbf16>
    %57 = vector.shape_cast %56 : vector<1x128x128xbf16> to vector<128x128xbf16>
    %58 = tpu.iota {dimensions = array<i32: 0>} : vector<128x1xi32>
    %59 = arith.extf %57 : vector<128x128xbf16> to vector<128x128xf32>
    %60 = tpu.iota {dimensions = array<i32: 0>} : vector<128x1xi32>
    %c0_i32_23 = arith.constant 0 : i32
    %61 = vector.broadcast %c0_i32_23 : i32 to vector<128x1xi32>
    %62 = arith.cmpi eq, %60, %61 : vector<128x1xi32>
    %c1_i32_24 = arith.constant 1 : i32
    %63 = tpu.dynamic_rotate %59 by %c1_i32_24 dim 0 : vector<128x128xf32>, i32 -> vector<128x128xf32>
    %cst_25 = arith.constant 0.000000e+00 : f32
    %64 = vector.shape_cast %62 : vector<128x1xi1> to vector<128x1xi1>
    %65 = vector.broadcast %64 : vector<128x1xi1> to vector<128x128xi1>
    %66 = vector.broadcast %cst_25 : f32 to vector<128x128xf32>
    %67 = arith.select %65, %66, %63 : vector<128x128xi1>, vector<128x128xf32>
    %c127_i32_26 = arith.constant 127 : i32
    %68 = vector.broadcast %c127_i32_26 : i32 to vector<128x1xi32>
    %69 = arith.cmpi eq, %60, %68 : vector<128x1xi32>
    %c127_i32_27 = arith.constant 127 : i32
    %70 = tpu.dynamic_rotate %59 by %c127_i32_27 dim 0 : vector<128x128xf32>, i32 -> vector<128x128xf32>
    %cst_28 = arith.constant 0.000000e+00 : f32
    %71 = vector.shape_cast %69 : vector<128x1xi1> to vector<128x1xi1>
    %72 = vector.broadcast %71 : vector<128x1xi1> to vector<128x128xi1>
    %73 = vector.broadcast %cst_28 : f32 to vector<128x128xf32>
    %74 = arith.select %72, %73, %70 : vector<128x128xi1>, vector<128x128xf32>
    %75 = arith.truncf %67 : vector<128x128xf32> to vector<128x128xbf16>
    %76 = arith.truncf %59 : vector<128x128xf32> to vector<128x128xbf16>
    %77 = arith.truncf %74 : vector<128x128xf32> to vector<128x128xbf16>
    %78 = tpu.concatenate %75, %76, %77 in 1 : vector<128x128xbf16>, vector<128x128xbf16>, vector<128x128xbf16> -> vector<128x384xbf16>
    %c0_29 = arith.constant 0 : index
    %c0_30 = arith.constant 0 : index
    %79 = vector.load %arg9[%c0_29, %c0_30] : memref<384x256xbf16, #tpu.memory_space<vmem>>, vector<384x256xbf16>
    %cst_31 = arith.constant dense<0.000000e+00> : vector<128x256xf32>
    %80 = tpu.matmul %78, %79, %cst_31 {dimension_numbers = #tpu.dot_dimension_numbers<[1], [0], [0], [1], [0, 0, 1, 1], [], []>} : vector<128x384xbf16>, vector<384x256xbf16>, vector<128x256xf32> -> vector<128x256xf32>
    %c0_32 = arith.constant 0 : index
    %c0_33 = arith.constant 0 : index
    %81 = vector.load %arg10[%c0_32, %c0_33] : memref<1x256xf32, #tpu.memory_space<vmem>>, vector<1x256xf32>
    %82 = vector.broadcast %81 : vector<1x256xf32> to vector<128x256xf32>
    %83 = arith.addf %80, %82 : vector<128x256xf32>
    %cst_34 = arith.constant 0.000000e+00 : f32
    %84 = vector.broadcast %cst_34 : f32 to vector<128x256xf32>
    %85 = arith.cmpf ogt, %83, %84 : vector<128x256xf32>
    %cst_35 = arith.constant 0.00999999977 : f32
    %86 = vector.broadcast %cst_35 : f32 to vector<128x256xf32>
    %87 = arith.mulf %86, %83 : vector<128x256xf32>
    %88 = arith.select %85, %83, %87 : vector<128x256xi1>, vector<128x256xf32>
    %c16_i32 = arith.constant 16 : i32
    %89 = vector.broadcast %c16_i32 : i32 to vector<128x1xi32>
    %90 = arith.cmpi slt, %58, %89 : vector<128x1xi32>
    %cst_36 = arith.constant 0.000000e+00 : f32
    %91 = vector.shape_cast %90 : vector<128x1xi1> to vector<128x1xi1>
    %92 = vector.broadcast %91 : vector<128x1xi1> to vector<128x256xi1>
    %93 = vector.broadcast %cst_36 : f32 to vector<128x256xf32>
    %94 = arith.select %92, %88, %93 : vector<128x256xi1>, vector<128x256xf32>
    %95 = tpu.iota {dimensions = array<i32: 0>} : vector<128x1xi32>
    %c0_i32_37 = arith.constant 0 : i32
    %96 = vector.broadcast %c0_i32_37 : i32 to vector<128x1xi32>
    %97 = arith.cmpi eq, %95, %96 : vector<128x1xi32>
    %c1_i32_38 = arith.constant 1 : i32
    %98 = tpu.dynamic_rotate %94 by %c1_i32_38 dim 0 : vector<128x256xf32>, i32 -> vector<128x256xf32>
    %cst_39 = arith.constant 0.000000e+00 : f32
    %99 = vector.shape_cast %97 : vector<128x1xi1> to vector<128x1xi1>
    %100 = vector.broadcast %99 : vector<128x1xi1> to vector<128x256xi1>
    %101 = vector.broadcast %cst_39 : f32 to vector<128x256xf32>
    %102 = arith.select %100, %101, %98 : vector<128x256xi1>, vector<128x256xf32>
    %c127_i32_40 = arith.constant 127 : i32
    %103 = vector.broadcast %c127_i32_40 : i32 to vector<128x1xi32>
    %104 = arith.cmpi eq, %95, %103 : vector<128x1xi32>
    %c127_i32_41 = arith.constant 127 : i32
    %105 = tpu.dynamic_rotate %94 by %c127_i32_41 dim 0 : vector<128x256xf32>, i32 -> vector<128x256xf32>
    %cst_42 = arith.constant 0.000000e+00 : f32
    %106 = vector.shape_cast %104 : vector<128x1xi1> to vector<128x1xi1>
    %107 = vector.broadcast %106 : vector<128x1xi1> to vector<128x256xi1>
    %108 = vector.broadcast %cst_42 : f32 to vector<128x256xf32>
    %109 = arith.select %107, %108, %105 : vector<128x256xi1>, vector<128x256xf32>
    %110 = arith.truncf %102 : vector<128x256xf32> to vector<128x256xbf16>
    %111 = arith.truncf %94 : vector<128x256xf32> to vector<128x256xbf16>
    %112 = arith.truncf %109 : vector<128x256xf32> to vector<128x256xbf16>
    %113 = tpu.concatenate %110, %111, %112 in 1 : vector<128x256xbf16>, vector<128x256xbf16>, vector<128x256xbf16> -> vector<128x768xbf16>
    %c0_43 = arith.constant 0 : index
    %c0_44 = arith.constant 0 : index
    %114 = vector.load %arg11[%c0_43, %c0_44] : memref<768x128xbf16, #tpu.memory_space<vmem>>, vector<768x128xbf16>
    %cst_45 = arith.constant dense<0.000000e+00> : vector<128x128xf32>
    %115 = tpu.matmul %113, %114, %cst_45 {dimension_numbers = #tpu.dot_dimension_numbers<[1], [0], [0], [1], [0, 0, 1, 1], [], []>} : vector<128x768xbf16>, vector<768x128xbf16>, vector<128x128xf32> -> vector<128x128xf32>
    %c0_46 = arith.constant 0 : index
    %c0_47 = arith.constant 0 : index
    %116 = vector.load %arg12[%c0_46, %c0_47] : memref<1x128xf32, #tpu.memory_space<vmem>>, vector<1x128xf32>
    %117 = vector.broadcast %116 : vector<1x128xf32> to vector<128x128xf32>
    %118 = arith.addf %115, %117 : vector<128x128xf32>
    %cst_48 = arith.constant 0.000000e+00 : f32
    %119 = vector.broadcast %cst_48 : f32 to vector<128x128xf32>
    %120 = arith.cmpf ogt, %118, %119 : vector<128x128xf32>
    %cst_49 = arith.constant 0.00999999977 : f32
    %121 = vector.broadcast %cst_49 : f32 to vector<128x128xf32>
    %122 = arith.mulf %121, %118 : vector<128x128xf32>
    %123 = arith.select %120, %118, %122 : vector<128x128xi1>, vector<128x128xf32>
    %124 = arith.truncf %123 : vector<128x128xf32> to vector<128x128xbf16>
    %c0_50 = arith.constant 0 : index
    %c0_51 = arith.constant 0 : index
    %125 = vector.load %arg13[%c0_50, %c0_51] : memref<128x128xbf16, #tpu.memory_space<vmem>>, vector<128x128xbf16>
    %cst_52 = arith.constant dense<0.000000e+00> : vector<128x128xf32>
    %126 = tpu.matmul %124, %125, %cst_52 {dimension_numbers = #tpu.dot_dimension_numbers<[1], [0], [0], [1], [0, 0, 1, 1], [], []>} : vector<128x128xbf16>, vector<128x128xbf16>, vector<128x128xf32> -> vector<128x128xf32>
    %c0_53 = arith.constant 0 : index
    %c0_54 = arith.constant 0 : index
    %127 = vector.load %arg14[%c0_53, %c0_54] : memref<1x128xf32, #tpu.memory_space<vmem>>, vector<1x128xf32>
    %128 = vector.broadcast %127 : vector<1x128xf32> to vector<128x128xf32>
    %129 = arith.addf %126, %128 : vector<128x128xf32>
    %130 = arith.index_cast %arg0 : i32 to index
    %131 = memref.load %arg2[%130] : memref<2xi32, #tpu.memory_space<smem>>
    %132 = vector.broadcast %131 : i32 to vector<128x1xi32>
    %133 = arith.cmpi slt, %58, %132 : vector<128x1xi32>
    %cst_55 = arith.constant 0.000000e+00 : f32
    %134 = vector.shape_cast %133 : vector<128x1xi1> to vector<128x1xi1>
    %135 = vector.broadcast %134 : vector<128x1xi1> to vector<128x128xi1>
    %136 = vector.broadcast %cst_55 : f32 to vector<128x128xf32>
    %137 = arith.select %135, %129, %136 : vector<128x128xi1>, vector<128x128xf32>
    %c0_56 = arith.constant 0 : index
    %c0_57 = arith.constant 0 : index
    %c0_58 = arith.constant 0 : index
    %138 = vector.load %arg16[%c0_56, %c0_57, %c0_58] : memref<1x128x128xf32, #tpu.memory_space<vmem>>, vector<1x128x128xf32>
    %139 = vector.shape_cast %138 : vector<1x128x128xf32> to vector<128x128xf32>
    %140 = vector.shape_cast %137 : vector<128x128xf32> to vector<1x128x128xf32>
    tpu.vector_store %arg16[%c0_56, %c0_57, %c0_58], %140 {strides = array<i32>} : memref<1x128x128xf32, #tpu.memory_space<vmem>>, vector<1x128x128xf32>,
    return
  }
  func.func @transform_0(%arg0: i32, %arg1: memref<2xi32, #tpu.memory_space<smem>>, %arg2: memref<2xi32, #tpu.memory_space<smem>>) -> (i32, i32, i32) {
    %c0_i32 = arith.constant 0 : i32
    %c0_i32_0 = arith.constant 0 : i32
    %c0_i32_1 = arith.constant 0 : i32
    return %arg0, %c0_i32, %c0_i32_0 : i32, i32, i32
  }
  func.func @transform_1(%arg0: i32, %arg1: memref<2xi32, #tpu.memory_space<smem>>, %arg2: memref<2xi32, #tpu.memory_space<smem>>) -> (i32, i32, i32) {
    %c0_i32 = arith.constant 0 : i32
    %c0_i32_0 = arith.constant 0 : i32
    %c0_i32_1 = arith.constant 0 : i32
    return %arg0, %c0_i32, %c0_i32_0 : i32, i32, i32
  }
  func.func @transform_2(%arg0: i32, %arg1: memref<2xi32, #tpu.memory_space<smem>>, %arg2: memref<2xi32, #tpu.memory_space<smem>>) -> (i32, i32) {
    %c0_i32 = arith.constant 0 : i32
    %c0_i32_0 = arith.constant 0 : i32
    %c0_i32_1 = arith.constant 0 : i32
    return %c0_i32, %c0_i32_0 : i32, i32
  }
  func.func @transform_3(%arg0: i32, %arg1: memref<2xi32, #tpu.memory_space<smem>>, %arg2: memref<2xi32, #tpu.memory_space<smem>>) -> (i32, i32) {
    %c0_i32 = arith.constant 0 : i32
    %c0_i32_0 = arith.constant 0 : i32
    %c0_i32_1 = arith.constant 0 : i32
    return %c0_i32, %c0_i32_0 : i32, i32
  }
  func.func @transform_4(%arg0: i32, %arg1: memref<2xi32, #tpu.memory_space<smem>>, %arg2: memref<2xi32, #tpu.memory_space<smem>>) -> (i32, i32) {
    %c0_i32 = arith.constant 0 : i32
    %c0_i32_0 = arith.constant 0 : i32
    %c0_i32_1 = arith.constant 0 : i32
    return %c0_i32, %c0_i32_0 : i32, i32
  }
  func.func @transform_5(%arg0: i32, %arg1: memref<2xi32, #tpu.memory_space<smem>>, %arg2: memref<2xi32, #tpu.memory_space<smem>>) -> (i32, i32) {
    %c0_i32 = arith.constant 0 : i32
    %c0_i32_0 = arith.constant 0 : i32
    %c0_i32_1 = arith.constant 0 : i32
    return %c0_i32, %c0_i32_0 : i32, i32
  }
  func.func @transform_6(%arg0: i32, %arg1: memref<2xi32, #tpu.memory_space<smem>>, %arg2: memref<2xi32, #tpu.memory_space<smem>>) -> (i32, i32) {
    %c0_i32 = arith.constant 0 : i32
    %c0_i32_0 = arith.constant 0 : i32
    %c0_i32_1 = arith.constant 0 : i32
    return %c0_i32, %c0_i32_0 : i32, i32
  }
  func.func @transform_7(%arg0: i32, %arg1: memref<2xi32, #tpu.memory_space<smem>>, %arg2: memref<2xi32, #tpu.memory_space<smem>>) -> (i32, i32) {
    %c0_i32 = arith.constant 0 : i32
    %c0_i32_0 = arith.constant 0 : i32
    %c0_i32_1 = arith.constant 0 : i32
    return %c0_i32, %c0_i32_0 : i32, i32
  }
  func.func @transform_8(%arg0: i32, %arg1: memref<2xi32, #tpu.memory_space<smem>>, %arg2: memref<2xi32, #tpu.memory_space<smem>>) -> (i32, i32) {
    %c0_i32 = arith.constant 0 : i32
    %c0_i32_0 = arith.constant 0 : i32
    %c0_i32_1 = arith.constant 0 : i32
    return %c0_i32, %c0_i32_0 : i32, i32
  }
  func.func @transform_9(%arg0: i32, %arg1: memref<2xi32, #tpu.memory_space<smem>>, %arg2: memref<2xi32, #tpu.memory_space<smem>>) -> (i32, i32) {
    %c0_i32 = arith.constant 0 : i32
    %c0_i32_0 = arith.constant 0 : i32
    %c0_i32_1 = arith.constant 0 : i32
    return %c0_i32, %c0_i32_0 : i32, i32
  }
  func.func @transform_10(%arg0: i32, %arg1: memref<2xi32, #tpu.memory_space<smem>>, %arg2: memref<2xi32, #tpu.memory_space<smem>>) -> (i32, i32) {
    %c0_i32 = arith.constant 0 : i32
    %c0_i32_0 = arith.constant 0 : i32
    %c0_i32_1 = arith.constant 0 : i32
    return %c0_i32, %c0_i32_0 : i32, i32
  }
  func.func @transform_11(%arg0: i32, %arg1: memref<2xi32, #tpu.memory_space<smem>>, %arg2: memref<2xi32, #tpu.memory_space<smem>>) -> (i32, i32) {
    %c0_i32 = arith.constant 0 : i32
    %c0_i32_0 = arith.constant 0 : i32
    %c0_i32_1 = arith.constant 0 : i32
    return %c0_i32, %c0_i32_0 : i32, i32
  }
  func.func @transform_12(%arg0: i32, %arg1: memref<2xi32, #tpu.memory_space<smem>>, %arg2: memref<2xi32, #tpu.memory_space<smem>>) -> (i32, i32, i32) {
    %c0_i32 = arith.constant 0 : i32
    %c0_i32_0 = arith.constant 0 : i32
    %c0_i32_1 = arith.constant 0 : i32
    return %arg0, %c0_i32, %c0_i32_0 : i32, i32, i32
  }
  func.func @transform_13(%arg0: i32, %arg1: memref<2xi32, #tpu.memory_space<smem>>, %arg2: memref<2xi32, #tpu.memory_space<smem>>) -> (i32, i32, i32) {
    %c0_i32 = arith.constant 0 : i32
    %c0_i32_0 = arith.constant 0 : i32
    %c0_i32_1 = arith.constant 0 : i32
    return %arg0, %c0_i32, %c0_i32_0 : i32, i32, i32
  }
}

module attributes {stable_mosaic.version = 11 : i64} {
  func.func @_encoder_kernel(%arg0: i32, %arg1: memref<2xi32, #tpu.memory_space<smem>>, %arg2: memref<2xi32, #tpu.memory_space<smem>>, %arg3: memref<1x8x256xbf16, #tpu.memory_space<vmem>>, %arg4: memref<1x128x128xbf16, #tpu.memory_space<vmem>>, %arg5: memref<768x512xbf16, #tpu.memory_space<vmem>>, %arg6: memref<1x512xf32, #tpu.memory_space<vmem>>, %arg7: memref<512x128xbf16, #tpu.memory_space<vmem>>, %arg8: memref<1x128xf32, #tpu.memory_space<vmem>>, %arg9: memref<384x256xbf16, #tpu.memory_space<vmem>>, %arg10: memref<1x256xf32, #tpu.memory_space<vmem>>, %arg11: memref<768x128xbf16, #tpu.memory_space<vmem>>, %arg12: memref<1x128xf32, #tpu.memory_space<vmem>>, %arg13: memref<128x128xbf16, #tpu.memory_space<vmem>>, %arg14: memref<1x128xf32, #tpu.memory_space<vmem>>, %arg15: memref<1x8x128xf32, #tpu.memory_space<vmem>>, %arg16: memref<1x128x128xf32, #tpu.memory_space<vmem>>) attributes {dimension_semantics = [#tpu.dimension_semantics<parallel>], iteration_bounds = array<i64: 2>, scalar_prefetch = 2 : i64, scratch_operands = 0 : i64, tpu.core_type = #tpu.core_type<tc>, window_params = [{transform_indices = @transform_0, window_bounds = array<i64: 1, 8, 256>}, {transform_indices = @transform_1, window_bounds = array<i64: 1, 128, 128>}, {pipeline_mode = #tpu.pipeline_mode<synchronous>, transform_indices = @transform_2, window_bounds = array<i64: 768, 512>}, {pipeline_mode = #tpu.pipeline_mode<synchronous>, transform_indices = @transform_3, window_bounds = array<i64: 1, 512>}, {pipeline_mode = #tpu.pipeline_mode<synchronous>, transform_indices = @transform_4, window_bounds = array<i64: 512, 128>}, {pipeline_mode = #tpu.pipeline_mode<synchronous>, transform_indices = @transform_5, window_bounds = array<i64: 1, 128>}, {pipeline_mode = #tpu.pipeline_mode<synchronous>, transform_indices = @transform_6, window_bounds = array<i64: 384, 256>}, {pipeline_mode = #tpu.pipeline_mode<synchronous>, transform_indices = @transform_7, window_bounds = array<i64: 1, 256>}, {pipeline_mode = #tpu.pipeline_mode<synchronous>, transform_indices = @transform_8, window_bounds = array<i64: 768, 128>}, {pipeline_mode = #tpu.pipeline_mode<synchronous>, transform_indices = @transform_9, window_bounds = array<i64: 1, 128>}, {pipeline_mode = #tpu.pipeline_mode<synchronous>, transform_indices = @transform_10, window_bounds = array<i64: 128, 128>}, {pipeline_mode = #tpu.pipeline_mode<synchronous>, transform_indices = @transform_11, window_bounds = array<i64: 1, 128>}, {transform_indices = @transform_12, window_bounds = array<i64: 1, 8, 128>}, {transform_indices = @transform_13, window_bounds = array<i64: 1, 128, 128>}]} {
    %c0 = arith.constant 0 : index
    %c0_0 = arith.constant 0 : index
    %c0_1 = arith.constant 0 : index
    %0 = vector.load %arg3[%c0, %c0_0, %c0_1] : memref<1x8x256xbf16, #tpu.memory_space<vmem>>, vector<1x8x256xbf16>
    %1 = vector.shape_cast %0 : vector<1x8x256xbf16> to vector<8x256xbf16>
    %2 = arith.extf %1 : vector<8x256xbf16> to vector<8x256xf32>
    %3 = tpu.iota {dimensions = array<i32: 0>} : vector<8x1xi32>
    %c0_i32 = arith.constant 0 : i32
    %4 = vector.broadcast %c0_i32 : i32 to vector<8x1xi32>
    %5 = arith.cmpi eq, %3, %4 : vector<8x1xi32>
    %c1_i32 = arith.constant 1 : i32
    %6 = tpu.dynamic_rotate %2 by %c1_i32 dim 0 : vector<8x256xf32>, i32 -> vector<8x256xf32>
    %cst = arith.constant 0.000000e+00 : f32
    %7 = vector.shape_cast %5 : vector<8x1xi1> to vector<8x1xi1>
    %8 = vector.broadcast %7 : vector<8x1xi1> to vector<8x256xi1>
    %9 = vector.broadcast %cst : f32 to vector<8x256xf32>
    %10 = arith.select %8, %9, %6 : vector<8x256xi1>, vector<8x256xf32>
    %c7_i32 = arith.constant 7 : i32
    %11 = vector.broadcast %c7_i32 : i32 to vector<8x1xi32>
    %12 = arith.cmpi eq, %3, %11 : vector<8x1xi32>
    %c7_i32_2 = arith.constant 7 : i32
    %13 = tpu.dynamic_rotate %2 by %c7_i32_2 dim 0 : vector<8x256xf32>, i32 -> vector<8x256xf32>
    %cst_3 = arith.constant 0.000000e+00 : f32
    %14 = vector.shape_cast %12 : vector<8x1xi1> to vector<8x1xi1>
    %15 = vector.broadcast %14 : vector<8x1xi1> to vector<8x256xi1>
    %16 = vector.broadcast %cst_3 : f32 to vector<8x256xf32>
    %17 = arith.select %15, %16, %13 : vector<8x256xi1>, vector<8x256xf32>
    %18 = arith.truncf %10 : vector<8x256xf32> to vector<8x256xbf16>
    %19 = arith.truncf %2 : vector<8x256xf32> to vector<8x256xbf16>
    %20 = arith.truncf %17 : vector<8x256xf32> to vector<8x256xbf16>
    %21 = tpu.concatenate %18, %19, %20 in 1 : vector<8x256xbf16>, vector<8x256xbf16>, vector<8x256xbf16> -> vector<8x768xbf16>
    %c0_4 = arith.constant 0 : index
    %c0_5 = arith.constant 0 : index
    %22 = vector.load %arg5[%c0_4, %c0_5] : memref<768x512xbf16, #tpu.memory_space<vmem>>, vector<768x512xbf16>
    %cst_6 = arith.constant dense<0.000000e+00> : vector<8x512xf32>
    %23 = tpu.matmul %21, %22, %cst_6 {dimension_numbers = #tpu.dot_dimension_numbers<[1], [0], [0], [1], [0, 0, 1, 1], [], []>} : vector<8x768xbf16>, vector<768x512xbf16>, vector<8x512xf32> -> vector<8x512xf32>
    %c0_7 = arith.constant 0 : index
    %c0_8 = arith.constant 0 : index
    %24 = vector.load %arg6[%c0_7, %c0_8] : memref<1x512xf32, #tpu.memory_space<vmem>>, vector<1x512xf32>
    %25 = vector.broadcast %24 : vector<1x512xf32> to vector<8x512xf32>
    %26 = arith.addf %23, %25 : vector<8x512xf32>
    %cst_9 = arith.constant 0.000000e+00 : f32
    %27 = vector.broadcast %cst_9 : f32 to vector<8x512xf32>
    %28 = arith.maximumf %26, %27 : vector<8x512xf32>
    %29 = arith.truncf %28 : vector<8x512xf32> to vector<8x512xbf16>
    %c0_10 = arith.constant 0 : index
    %c0_11 = arith.constant 0 : index
    %30 = vector.load %arg7[%c0_10, %c0_11] : memref<512x128xbf16, #tpu.memory_space<vmem>>, vector<512x128xbf16>
    %cst_12 = arith.constant dense<0.000000e+00> : vector<8x128xf32>
    %31 = tpu.matmul %29, %30, %cst_12 {dimension_numbers = #tpu.dot_dimension_numbers<[1], [0], [0], [1], [0, 0, 1, 1], [], []>} : vector<8x512xbf16>, vector<512x128xbf16>, vector<8x128xf32> -> vector<8x128xf32>
    %c0_13 = arith.constant 0 : index
    %c0_14 = arith.constant 0 : index
    %32 = vector.load %arg8[%c0_13, %c0_14] : memref<1x128xf32, #tpu.memory_space<vmem>>, vector<1x128xf32>
    %33 = vector.broadcast %32 : vector<1x128xf32> to vector<8x128xf32>
    %34 = arith.addf %31, %33 : vector<8x128xf32>
    %35 = tpu.iota {dimensions = array<i32: 0>} : vector<8x1xi32>
    %36 = arith.index_cast %arg0 : i32 to index
    %37 = memref.load %arg1[%36] : memref<2xi32, #tpu.memory_space<smem>>
    %38 = vector.broadcast %37 : i32 to vector<8x1xi32>
    %39 = arith.cmpi slt, %35, %38 : vector<8x1xi32>
    %cst_15 = arith.constant 0.000000e+00 : f32
    %40 = vector.shape_cast %39 : vector<8x1xi1> to vector<8x1xi1>
    %41 = vector.broadcast %40 : vector<8x1xi1> to vector<8x128xi1>
    %42 = vector.broadcast %cst_15 : f32 to vector<8x128xf32>
    %43 = arith.select %41, %34, %42 : vector<8x128xi1>, vector<8x128xf32>
    %44 = arith.mulf %43, %43 : vector<8x128xf32>
    %cst_16 = arith.constant dense<0.000000e+00> : vector<8xf32>
    %45 = vector.multi_reduction <add>, %44, %cst_16 [1] : vector<8x128xf32> to vector<8xf32>
    %46 = vector.shape_cast %45 : vector<8xf32> to vector<8x1xf32>
    %47 = tpu.iota {dimensions = array<i32: 1>} : vector<8x128xi32>
    %c127_i32 = arith.constant 127 : i32
    %48 = vector.broadcast %c127_i32 : i32 to vector<8x128xi32>
    %49 = arith.cmpi eq, %47, %48 : vector<8x128xi32>
    %50 = vector.shape_cast %46 : vector<8x1xf32> to vector<8x1xf32>
    %51 = vector.broadcast %50 : vector<8x1xf32> to vector<8x128xf32>
    %52 = arith.select %49, %51, %43 : vector<8x128xi1>, vector<8x128xf32>
    %c0_17 = arith.constant 0 : index
    %c0_18 = arith.constant 0 : index
    %c0_19 = arith.constant 0 : index
    %53 = vector.load %arg15[%c0_17, %c0_18, %c0_19] : memref<1x8x128xf32, #tpu.memory_space<vmem>>, vector<1x8x128xf32>
    %54 = vector.shape_cast %53 : vector<1x8x128xf32> to vector<8x128xf32>
    %55 = vector.shape_cast %52 : vector<8x128xf32> to vector<1x8x128xf32>
    tpu.vector_store %arg15[%c0_17, %c0_18, %c0_19], %55 {strides = array<i32>} : memref<1x8x128xf32, #tpu.memory_space<vmem>>, vector<1x8x128xf32>,
    %c0_20 = arith.constant 0 : index
    %c0_21 = arith.constant 0 : index
    %c0_22 = arith.constant 0 : index
    %56 = vector.load %arg4[%c0_20, %c0_21, %c0_22] : memref<1x128x128xbf16, #tpu.memory_space<vmem>>, vector<1x128x128xbf16>
    %57 = vector.shape_cast %56 : vector<1x128x128xbf16> to vector<128x128xbf16>
    %58 = tpu.iota {dimensions = array<i32: 0>} : vector<128x1xi32>
    %59 = arith.extf %57 : vector<128x128xbf16> to vector<128x128xf32>
    %60 = tpu.iota {dimensions = array<i32: 0>} : vector<128x1xi32>
    %c0_i32_23 = arith.constant 0 : i32
    %61 = vector.broadcast %c0_i32_23 : i32 to vector<128x1xi32>
    %62 = arith.cmpi eq, %60, %61 : vector<128x1xi32>
    %c1_i32_24 = arith.constant 1 : i32
    %63 = tpu.dynamic_rotate %59 by %c1_i32_24 dim 0 : vector<128x128xf32>, i32 -> vector<128x128xf32>
    %cst_25 = arith.constant 0.000000e+00 : f32
    %64 = vector.shape_cast %62 : vector<128x1xi1> to vector<128x1xi1>
    %65 = vector.broadcast %64 : vector<128x1xi1> to vector<128x128xi1>
    %66 = vector.broadcast %cst_25 : f32 to vector<128x128xf32>
    %67 = arith.select %65, %66, %63 : vector<128x128xi1>, vector<128x128xf32>
    %c127_i32_26 = arith.constant 127 : i32
    %68 = vector.broadcast %c127_i32_26 : i32 to vector<128x1xi32>
    %69 = arith.cmpi eq, %60, %68 : vector<128x1xi32>
    %c127_i32_27 = arith.constant 127 : i32
    %70 = tpu.dynamic_rotate %59 by %c127_i32_27 dim 0 : vector<128x128xf32>, i32 -> vector<128x128xf32>
    %cst_28 = arith.constant 0.000000e+00 : f32
    %71 = vector.shape_cast %69 : vector<128x1xi1> to vector<128x1xi1>
    %72 = vector.broadcast %71 : vector<128x1xi1> to vector<128x128xi1>
    %73 = vector.broadcast %cst_28 : f32 to vector<128x128xf32>
    %74 = arith.select %72, %73, %70 : vector<128x128xi1>, vector<128x128xf32>
    %75 = arith.truncf %67 : vector<128x128xf32> to vector<128x128xbf16>
    %76 = arith.truncf %59 : vector<128x128xf32> to vector<128x128xbf16>
    %77 = arith.truncf %74 : vector<128x128xf32> to vector<128x128xbf16>
    %78 = tpu.concatenate %75, %76, %77 in 1 : vector<128x128xbf16>, vector<128x128xbf16>, vector<128x128xbf16> -> vector<128x384xbf16>
    %c0_29 = arith.constant 0 : index
    %c0_30 = arith.constant 0 : index
    %79 = vector.load %arg9[%c0_29, %c0_30] : memref<384x256xbf16, #tpu.memory_space<vmem>>, vector<384x256xbf16>
    %cst_31 = arith.constant dense<0.000000e+00> : vector<128x256xf32>
    %80 = tpu.matmul %78, %79, %cst_31 {dimension_numbers = #tpu.dot_dimension_numbers<[1], [0], [0], [1], [0, 0, 1, 1], [], []>} : vector<128x384xbf16>, vector<384x256xbf16>, vector<128x256xf32> -> vector<128x256xf32>
    %c0_32 = arith.constant 0 : index
    %c0_33 = arith.constant 0 : index
    %81 = vector.load %arg10[%c0_32, %c0_33] : memref<1x256xf32, #tpu.memory_space<vmem>>, vector<1x256xf32>
    %82 = vector.broadcast %81 : vector<1x256xf32> to vector<128x256xf32>
    %83 = arith.addf %80, %82 : vector<128x256xf32>
    %cst_34 = arith.constant 0.000000e+00 : f32
    %84 = vector.broadcast %cst_34 : f32 to vector<128x256xf32>
    %85 = arith.cmpf ogt, %83, %84 : vector<128x256xf32>
    %cst_35 = arith.constant 0.00999999977 : f32
    %86 = vector.broadcast %cst_35 : f32 to vector<128x256xf32>
    %87 = arith.mulf %86, %83 : vector<128x256xf32>
    %88 = arith.select %85, %83, %87 : vector<128x256xi1>, vector<128x256xf32>
    %c16_i32 = arith.constant 16 : i32
    %89 = vector.broadcast %c16_i32 : i32 to vector<128x1xi32>
    %90 = arith.cmpi slt, %58, %89 : vector<128x1xi32>
    %cst_36 = arith.constant 0.000000e+00 : f32
    %91 = vector.shape_cast %90 : vector<128x1xi1> to vector<128x1xi1>
    %92 = vector.broadcast %91 : vector<128x1xi1> to vector<128x256xi1>
    %93 = vector.broadcast %cst_36 : f32 to vector<128x256xf32>
    %94 = arith.select %92, %88, %93 : vector<128x256xi1>, vector<128x256xf32>
    %95 = tpu.iota {dimensions = array<i32: 0>} : vector<128x1xi32>
    %c0_i32_37 = arith.constant 0 : i32
    %96 = vector.broadcast %c0_i32_37 : i32 to vector<128x1xi32>
    %97 = arith.cmpi eq, %95, %96 : vector<128x1xi32>
    %c1_i32_38 = arith.constant 1 : i32
    %98 = tpu.dynamic_rotate %94 by %c1_i32_38 dim 0 : vector<128x256xf32>, i32 -> vector<128x256xf32>
    %cst_39 = arith.constant 0.000000e+00 : f32
    %99 = vector.shape_cast %97 : vector<128x1xi1> to vector<128x1xi1>
    %100 = vector.broadcast %99 : vector<128x1xi1> to vector<128x256xi1>
    %101 = vector.broadcast %cst_39 : f32 to vector<128x256xf32>
    %102 = arith.select %100, %101, %98 : vector<128x256xi1>, vector<128x256xf32>
    %c127_i32_40 = arith.constant 127 : i32
    %103 = vector.broadcast %c127_i32_40 : i32 to vector<128x1xi32>
    %104 = arith.cmpi eq, %95, %103 : vector<128x1xi32>
    %c127_i32_41 = arith.constant 127 : i32
    %105 = tpu.dynamic_rotate %94 by %c127_i32_41 dim 0 : vector<128x256xf32>, i32 -> vector<128x256xf32>
    %cst_42 = arith.constant 0.000000e+00 : f32
    %106 = vector.shape_cast %104 : vector<128x1xi1> to vector<128x1xi1>
    %107 = vector.broadcast %106 : vector<128x1xi1> to vector<128x256xi1>
    %108 = vector.broadcast %cst_42 : f32 to vector<128x256xf32>
    %109 = arith.select %107, %108, %105 : vector<128x256xi1>, vector<128x256xf32>
    %110 = arith.truncf %102 : vector<128x256xf32> to vector<128x256xbf16>
    %111 = arith.truncf %94 : vector<128x256xf32> to vector<128x256xbf16>
    %112 = arith.truncf %109 : vector<128x256xf32> to vector<128x256xbf16>
    %113 = tpu.concatenate %110, %111, %112 in 1 : vector<128x256xbf16>, vector<128x256xbf16>, vector<128x256xbf16> -> vector<128x768xbf16>
    %c0_43 = arith.constant 0 : index
    %c0_44 = arith.constant 0 : index
    %114 = vector.load %arg11[%c0_43, %c0_44] : memref<768x128xbf16, #tpu.memory_space<vmem>>, vector<768x128xbf16>
    %cst_45 = arith.constant dense<0.000000e+00> : vector<128x128xf32>
    %115 = tpu.matmul %113, %114, %cst_45 {dimension_numbers = #tpu.dot_dimension_numbers<[1], [0], [0], [1], [0, 0, 1, 1], [], []>} : vector<128x768xbf16>, vector<768x128xbf16>, vector<128x128xf32> -> vector<128x128xf32>
    %c0_46 = arith.constant 0 : index
    %c0_47 = arith.constant 0 : index
    %116 = vector.load %arg12[%c0_46, %c0_47] : memref<1x128xf32, #tpu.memory_space<vmem>>, vector<1x128xf32>
    %117 = vector.broadcast %116 : vector<1x128xf32> to vector<128x128xf32>
    %118 = arith.addf %115, %117 : vector<128x128xf32>
    %cst_48 = arith.constant 0.000000e+00 : f32
    %119 = vector.broadcast %cst_48 : f32 to vector<128x128xf32>
    %120 = arith.cmpf ogt, %118, %119 : vector<128x128xf32>
    %cst_49 = arith.constant 0.00999999977 : f32
    %121 = vector.broadcast %cst_49 : f32 to vector<128x128xf32>
    %122 = arith.mulf %121, %118 : vector<128x128xf32>
    %123 = arith.select %120, %118, %122 : vector<128x128xi1>, vector<128x128xf32>
    %124 = arith.truncf %123 : vector<128x128xf32> to vector<128x128xbf16>
    %c0_50 = arith.constant 0 : index
    %c0_51 = arith.constant 0 : index
    %125 = vector.load %arg13[%c0_50, %c0_51] : memref<128x128xbf16, #tpu.memory_space<vmem>>, vector<128x128xbf16>
    %cst_52 = arith.constant dense<0.000000e+00> : vector<128x128xf32>
    %126 = tpu.matmul %124, %125, %cst_52 {dimension_numbers = #tpu.dot_dimension_numbers<[1], [0], [0], [1], [0, 0, 1, 1], [], []>} : vector<128x128xbf16>, vector<128x128xbf16>, vector<128x128xf32> -> vector<128x128xf32>
    %c0_53 = arith.constant 0 : index
    %c0_54 = arith.constant 0 : index
    %127 = vector.load %arg14[%c0_53, %c0_54] : memref<1x128xf32, #tpu.memory_space<vmem>>, vector<1x128xf32>
    %128 = vector.broadcast %127 : vector<1x128xf32> to vector<128x128xf32>
    %129 = arith.addf %126, %128 : vector<128x128xf32>
    %130 = arith.index_cast %arg0 : i32 to index
    %131 = memref.load %arg2[%130] : memref<2xi32, #tpu.memory_space<smem>>
    %132 = vector.broadcast %131 : i32 to vector<128x1xi32>
    %133 = arith.cmpi slt, %58, %132 : vector<128x1xi32>
    %cst_55 = arith.constant 0.000000e+00 : f32
    %134 = vector.shape_cast %133 : vector<128x1xi1> to vector<128x1xi1>
    %135 = vector.broadcast %134 : vector<128x1xi1> to vector<128x128xi1>
    %136 = vector.broadcast %cst_55 : f32 to vector<128x128xf32>
    %137 = arith.select %135, %129, %136 : vector<128x128xi1>, vector<128x128xf32>
    %c0_56 = arith.constant 0 : index
    %c0_57 = arith.constant 0 : index
    %c0_58 = arith.constant 0 : index
    %138 = vector.load %arg16[%c0_56, %c0_57, %c0_58] : memref<1x128x128xf32, #tpu.memory_space<vmem>>, vector<1x128x128xf32>
    %139 = vector.shape_cast %138 : vector<1x128x128xf32> to vector<128x128xf32>
    %140 = vector.shape_cast %137 : vector<128x128xf32> to vector<1x128x128xf32>
    tpu.vector_store %arg16[%c0_56, %c0_57, %c0_58], %140 {strides = array<i32>} : memref<1x128x128xf32, #tpu.memory_space<vmem>>, vector<1x128x128xf32>,
    return
  }
  func.func @transform_0(%arg0: i32, %arg1: memref<2xi32, #tpu.memory_space<smem>>, %arg2: memref<2xi32, #tpu.memory_space<smem>>) -> (i32, i32, i32) {
    %c0_i32 = arith.constant 0 : i32
    %c0_i32_0 = arith.constant 0 : i32
    %c0_i32_1 = arith.constant 0 : i32
    return %arg0, %c0_i32, %c0_i32_0 : i32, i32, i32
  }
  func.func @transform_1(%arg0: i32, %arg1: memref<2xi32, #tpu.memory_space<smem>>, %arg2: memref<2xi32, #tpu.memory_space<smem>>) -> (i32, i32, i32) {
    %c0_i32 = arith.constant 0 : i32
    %c0_i32_0 = arith.constant 0 : i32
    %c0_i32_1 = arith.constant 0 : i32
    return %arg0, %c0_i32, %c0_i32_0 : i32, i32, i32
  }
  func.func @transform_2(%arg0: i32, %arg1: memref<2xi32, #tpu.memory_space<smem>>, %arg2: memref<2xi32, #tpu.memory_space<smem>>) -> (i32, i32) {
    %c0_i32 = arith.constant 0 : i32
    %c0_i32_0 = arith.constant 0 : i32
    %c0_i32_1 = arith.constant 0 : i32
    return %c0_i32, %c0_i32_0 : i32, i32
  }
  func.func @transform_3(%arg0: i32, %arg1: memref<2xi32, #tpu.memory_space<smem>>, %arg2: memref<2xi32, #tpu.memory_space<smem>>) -> (i32, i32) {
    %c0_i32 = arith.constant 0 : i32
    %c0_i32_0 = arith.constant 0 : i32
    %c0_i32_1 = arith.constant 0 : i32
    return %c0_i32, %c0_i32_0 : i32, i32
  }
  func.func @transform_4(%arg0: i32, %arg1: memref<2xi32, #tpu.memory_space<smem>>, %arg2: memref<2xi32, #tpu.memory_space<smem>>) -> (i32, i32) {
    %c0_i32 = arith.constant 0 : i32
    %c0_i32_0 = arith.constant 0 : i32
    %c0_i32_1 = arith.constant 0 : i32
    return %c0_i32, %c0_i32_0 : i32, i32
  }
  func.func @transform_5(%arg0: i32, %arg1: memref<2xi32, #tpu.memory_space<smem>>, %arg2: memref<2xi32, #tpu.memory_space<smem>>) -> (i32, i32) {
    %c0_i32 = arith.constant 0 : i32
    %c0_i32_0 = arith.constant 0 : i32
    %c0_i32_1 = arith.constant 0 : i32
    return %c0_i32, %c0_i32_0 : i32, i32
  }
  func.func @transform_6(%arg0: i32, %arg1: memref<2xi32, #tpu.memory_space<smem>>, %arg2: memref<2xi32, #tpu.memory_space<smem>>) -> (i32, i32) {
    %c0_i32 = arith.constant 0 : i32
    %c0_i32_0 = arith.constant 0 : i32
    %c0_i32_1 = arith.constant 0 : i32
    return %c0_i32, %c0_i32_0 : i32, i32
  }
  func.func @transform_7(%arg0: i32, %arg1: memref<2xi32, #tpu.memory_space<smem>>, %arg2: memref<2xi32, #tpu.memory_space<smem>>) -> (i32, i32) {
    %c0_i32 = arith.constant 0 : i32
    %c0_i32_0 = arith.constant 0 : i32
    %c0_i32_1 = arith.constant 0 : i32
    return %c0_i32, %c0_i32_0 : i32, i32
  }
  func.func @transform_8(%arg0: i32, %arg1: memref<2xi32, #tpu.memory_space<smem>>, %arg2: memref<2xi32, #tpu.memory_space<smem>>) -> (i32, i32) {
    %c0_i32 = arith.constant 0 : i32
    %c0_i32_0 = arith.constant 0 : i32
    %c0_i32_1 = arith.constant 0 : i32
    return %c0_i32, %c0_i32_0 : i32, i32
  }
  func.func @transform_9(%arg0: i32, %arg1: memref<2xi32, #tpu.memory_space<smem>>, %arg2: memref<2xi32, #tpu.memory_space<smem>>) -> (i32, i32) {
    %c0_i32 = arith.constant 0 : i32
    %c0_i32_0 = arith.constant 0 : i32
    %c0_i32_1 = arith.constant 0 : i32
    return %c0_i32, %c0_i32_0 : i32, i32
  }
  func.func @transform_10(%arg0: i32, %arg1: memref<2xi32, #tpu.memory_space<smem>>, %arg2: memref<2xi32, #tpu.memory_space<smem>>) -> (i32, i32) {
    %c0_i32 = arith.constant 0 : i32
    %c0_i32_0 = arith.constant 0 : i32
    %c0_i32_1 = arith.constant 0 : i32
    return %c0_i32, %c0_i32_0 : i32, i32
  }
  func.func @transform_11(%arg0: i32, %arg1: memref<2xi32, #tpu.memory_space<smem>>, %arg2: memref<2xi32, #tpu.memory_space<smem>>) -> (i32, i32) {
    %c0_i32 = arith.constant 0 : i32
    %c0_i32_0 = arith.constant 0 : i32
    %c0_i32_1 = arith.constant 0 : i32
    return %c0_i32, %c0_i32_0 : i32, i32
  }
  func.func @transform_12(%arg0: i32, %arg1: memref<2xi32, #tpu.memory_space<smem>>, %arg2: memref<2xi32, #tpu.memory_space<smem>>) -> (i32, i32, i32) {
    %c0_i32 = arith.constant 0 : i32
    %c0_i32_0 = arith.constant 0 : i32
    %c0_i32_1 = arith.constant 0 : i32
    return %arg0, %c0_i32, %c0_i32_0 : i32, i32, i32
  }
  func.func @transform_13(%arg0: i32, %arg1: memref<2xi32, #tpu.memory_space<smem>>, %arg2: memref<2xi32, #tpu.memory_space<smem>>) -> (i32, i32, i32) {
    %c0_i32 = arith.constant 0 : i32
    %c0_i32_0 = arith.constant 0 : i32
    %c0_i32_1 = arith.constant 0 : i32
    return %arg0, %c0_i32, %c0_i32_0 : i32, i32, i32
  }
}

</mosaic_0001>

<llo_original>
// kernel: tpu_custom_call.1
$region0: #{tpu_custom_call.1}
  #allocation0 [shape = 'u32[]', space=smem, size = 0x4, offset = 0x4, fixed_abs, tag = 'smem constant byte address 0x4 - core index']
  #allocation1 [shape = 'u32[144,128]{1,0:T(1,128)}', space=vmem, size = 0x12000, scoped, tag = 'internal scratch']
  #allocation2 [shape = 's32[1]{0}', space=sflag, size = 0x4, scoped, tag = 'scoped memory for tpu_custom_call.1']
  #allocation3 [shape = 'u8[512]{0}', space=smem, size = 0x200, scoped, tag = 'prefetched SMEM operand 0']
  #allocation4 [shape = 'u8[512]{0}', space=smem, size = 0x200, scoped, tag = 'prefetched SMEM operand 1']
  %s0 = inlined_call_operand.hbm [shape: s32[2], index: 0, kind: input, shape index: {}]
  %s1 = inlined_call_operand.vmem [shape: s32[2], index: 1, kind: input, shape index: {}]
  %s2 = inlined_call_operand.hbm [shape: bf16[2,8,256], index: 2, kind: input, shape index: {}]
  %s3 = inlined_call_operand.hbm [shape: bf16[2,128,128], index: 3, kind: input, shape index: {}]
  %s4 = inlined_call_operand.hbm [shape: bf16[768,512], index: 4, kind: input, shape index: {}]
  %s5 = inlined_call_operand.vmem [shape: f32[1,512], index: 5, kind: input, shape index: {}]
  %s6 = inlined_call_operand.hbm [shape: bf16[512,128], index: 6, kind: input, shape index: {}]
  %s7 = inlined_call_operand.vmem [shape: f32[1,128], index: 7, kind: input, shape index: {}]
  %s8 = inlined_call_operand.hbm [shape: bf16[384,256], index: 8, kind: input, shape index: {}]
  %s9 = inlined_call_operand.vmem [shape: f32[1,256], index: 9, kind: input, shape index: {}]
  %s10 = inlined_call_operand.hbm [shape: bf16[768,128], index: 10, kind: input, shape index: {}]
  %s11 = inlined_call_operand.vmem [shape: f32[1,128], index: 11, kind: input, shape index: {}]
  %s12 = inlined_call_operand.hbm [shape: bf16[128,128], index: 12, kind: input, shape index: {}]
  %s13 = inlined_call_operand.vmem [shape: f32[1,128], index: 13, kind: input, shape index: {}]
  %s14 = inlined_call_operand.hbm [shape: f32[2,8,128], index: 14, kind: output, shape index: {0}]
  %s15 = inlined_call_operand.hbm [shape: f32[2,128,128], index: 15, kind: output, shape index: {1}]
  %16 = xla_tuple %s14, %s15
  %s17 = sld [smem:[#allocation0]]
  $region117: #{tpu_custom_call.1} parent=0
    _
  %s19 = ssub.s32 1, %s17
  %s20 = scalar_select 0, %s19, %s17
  %22 = dma.hbm_to_smem %s0, 16, [#allocation3], [#allocation2]
  %s23 = sshll.u32 %s1, 4
  %s24 = int_to_ptr.vmem [resolvable:$true] %s23
  %26 = dma.vmem_to_smem %s24, 16, [#allocation4], [#allocation2]
  %27 = dma.done [#allocation2], 32
  %28 = sfence
  $region1: #{tpu_custom_call.1} parent=0
    #allocation5 [shape = 'u8[8192]{0}', space=vmem, size = 0x2000, scoped, tag = 'input window, operand 2']
    #allocation6 [shape = 's32[2]{0}', space=sflag, size = 0x8, scoped, tag = 'scoped memory for tpu_custom_call.1']
    #allocation7 [shape = 's32[2]{0}', space=sflag, size = 0x8, scoped, tag = 'scoped memory for tpu_custom_call.1']
    #allocation8 [shape = 'u8[65536]{0}', space=vmem, size = 0x10000, scoped, tag = 'input window, operand 3']
    #allocation9 [shape = 's32[2]{0}', space=sflag, size = 0x8, scoped, tag = 'scoped memory for tpu_custom_call.1']
    #allocation10 [shape = 'u8[786432]{0}', space=vmem, size = 0xc0000, scoped, tag = 'input window, operand 4, single buffered']
    #allocation11 [shape = 'u8[131072]{0}', space=vmem, size = 0x20000, scoped, tag = 'input window, operand 6, single buffered']
    #allocation12 [shape = 's32[1]{0}', space=sflag, size = 0x4, scoped, tag = 'scoped memory for tpu_custom_call.1']
    #allocation13 [shape = 'u8[196608]{0}', space=vmem, size = 0x30000, scoped, tag = 'input window, operand 8, single buffered']
    #allocation14 [shape = 'u8[196608]{0}', space=vmem, size = 0x30000, scoped, tag = 'input window, operand 10, single buffered']
    #allocation15 [shape = 's32[1]{0}', space=sflag, size = 0x4, scoped, tag = 'scoped memory for tpu_custom_call.1']
    #allocation16 [shape = 'u8[32768]{0}', space=vmem, size = 0x8000, scoped, tag = 'input window, operand 12, single buffered']
    #allocation17 [shape = 'u8[8192]{0}', space=vmem, size = 0x2000, scoped, tag = 'output window, operand 0']
    #allocation18 [shape = 'u8[131072]{0}', space=vmem, size = 0x20000, scoped, tag = 'output window, operand 1']
    #allocation19 [shape = 's32[2]{0}', space=sflag, size = 0x8, scoped, tag = 'scoped memory for tpu_custom_call.1']
    %29 = vsyncpa [#allocation6], 0
    %s30 = scalar_lea.sflag [#allocation6], 1
    %31 = vsyncpa %s30, 0
    %32 = vsyncpa [#allocation9], 0
    %s33 = scalar_lea.sflag [#allocation9], 1
    %34 = vsyncpa %s33, 0
    %35 = vsyncpa [#allocation12], 0
    %36 = vsyncpa [#allocation15], 0
    %37 = vsyncpa [#allocation7], 0
    %s38 = scalar_lea.sflag [#allocation7], 1
    %39 = vsyncpa %s38, 0
    %40 = vsyncpa [#allocation19], 0
    %s41 = scalar_lea.sflag [#allocation19], 1
    %42 = vsyncpa %s41, 0
    loop: start=0, step=1, limit=4
    $region2: #{tpu_custom_call.1} parent=1 // loop_pre_header
      _
    $region3: #{tpu_custom_call.1} parent=1 // loop_header
      %s44 = sphi 0, %s48
      %p45 = scmp.ge.s32.totalorder %s44, 4
      %s54 = sphi 0, %s56
      %s57 = sphi 0, %s54
      %s58 = sphi 0, %s57
      %s74 = sphi 0, %s58
      %s80 = sphi 0, %s82
      %s83 = sphi 0, %s80
      %s84 = sphi 0, %s83
      %s100 = sphi 0, %s84
      %s104 = sphi 0, %s104
      %s106 = sphi 0, %s104
      %s107 = sphi 0, %s106
      %s121 = sphi 0, %s107
      %s125 = sphi 0, %s125
      %s127 = sphi 0, %s125
      %s128 = sphi 0, %s127
      %s142 = sphi 0, %s128
      %s146 = sphi 0, %s146
      %s148 = sphi 0, %s146
      %s149 = sphi 0, %s148
      %s163 = sphi 0, %s149
      %s167 = sphi 0, %s167
      %s169 = sphi 0, %s167
      %s170 = sphi 0, %s169
      %s184 = sphi 0, %s170
      %s188 = sphi 0, %s188
      %s190 = sphi 0, %s188
      %s191 = sphi 0, %s190
      %s205 = sphi 0, %s191
      %s209 = sphi 0, %s209
      %s211 = sphi 0, %s209
      %s212 = sphi 0, %s211
      %s226 = sphi 0, %s212
      %s230 = sphi 0, %s230
      %s232 = sphi 0, %s230
      %s233 = sphi 0, %s232
      %s247 = sphi 0, %s233
      %s251 = sphi 0, %s251
      %s253 = sphi 0, %s251
      %s254 = sphi 0, %s253
      %s268 = sphi 0, %s254
      %s272 = sphi 0, %s272
      %s274 = sphi 0, %s272
      %s275 = sphi 0, %s274
      %s289 = sphi 0, %s275
      %s293 = sphi 0, %s293
      %s295 = sphi 0, %s293
      %s296 = sphi 0, %s295
      %s310 = sphi 0, %s296
      %s316 = sphi 0, %s318
      %s319 = sphi 0, %s316
      %s320 = sphi 0, %s319
      %s336 = sphi 0, %s320
      %s342 = sphi 0, %s344
      %s345 = sphi 0, %s342
      %s346 = sphi 0, %s345
      %s362 = sphi 0, %s346
    $region4: #{tpu_custom_call.1} parent=1 // loop_header_branch
      %47 = sbr.rel (%p45) target = $region8
    $region5: #{tpu_custom_call.1} parent=1 // loop_body
      %s49 = ssub.s32 %s44, 1
      %s50 = ssub.s32 %s44, 2
      %s51 = sadd.s32 %s44, 1
      %s52 = ssub.s32 %s44, %s51
      %p53 = scmp.eq.s32.totalorder %s52, 0
      %s55 = sadd.s32 %s54, 1
      %s56 = scalar_select %p53, %s54, %s55
      %p59 = pneg %p53
      %p60 = scmp.eq.s32.totalorder %s44, 1
      %p61 = por %p59, %p60
      %p62 = scmp.ne.s32.totalorder %s54, %s57
      %p63 = scmp.eq.s32.totalorder %s44, 0
      %p64 = por %p62, %p63
      %p65 = scmp.ne.s32.totalorder %s54, %s57
      %p66 = scmp.eq.s32.totalorder %s49, 1
      %p67 = por %p65, %p66
      %p68 = scmp.ne.s32.totalorder %s57, %s58
      %p69 = scmp.eq.s32.totalorder %s49, 0
      %p70 = por %p68, %p69
      %p71 = scmp.ne.s32.totalorder %s57, %s58
      %p72 = scmp.eq.s32.totalorder %s50, 1
      %p73 = por %p71, %p72
      %p75 = scmp.ne.s32.totalorder %s58, %s74
      %p76 = scmp.eq.s32.totalorder %s50, 0
      %p77 = por %p75, %p76
      %s78 = ssub.s32 %s44, %s51
      %p79 = scmp.eq.s32.totalorder %s78, 0
      %s81 = sadd.s32 %s80, 1
      %s82 = scalar_select %p79, %s80, %s81
      %p85 = pneg %p79
      %p86 = scmp.eq.s32.totalorder %s44, 1
      %p87 = por %p85, %p86
      %p88 = scmp.ne.s32.totalorder %s80, %s83
      %p89 = scmp.eq.s32.totalorder %s44, 0
      %p90 = por %p88, %p89
      %p91 = scmp.ne.s32.totalorder %s80, %s83
      %p92 = scmp.eq.s32.totalorder %s49, 1
      %p93 = por %p91, %p92
      %p94 = scmp.ne.s32.totalorder %s83, %s84
      %p95 = scmp.eq.s32.totalorder %s49, 0
      %p96 = por %p94, %p95
      %p97 = scmp.ne.s32.totalorder %s83, %s84
      %p98 = scmp.eq.s32.totalorder %s50, 1
      %p99 = por %p97, %p98
      %p101 = scmp.ne.s32.totalorder %s84, %s100
      %p102 = scmp.eq.s32.totalorder %s50, 0
      %p103 = por %p101, %p102
      %s105 = sadd.s32 %s104, 1
      %p108 = scmp.eq.s32.totalorder %s44, 1
      %p109 = scmp.ne.s32.totalorder %s104, %s106
      %p110 = scmp.eq.s32.totalorder %s44, 0
      %p111 = por %p109, %p110
      %p112 = scmp.ne.s32.totalorder %s104, %s106
      %p113 = scmp.eq.s32.totalorder %s49, 1
      %p114 = por %p112, %p113
      %p115 = scmp.ne.s32.totalorder %s106, %s107
      %p116 = scmp.eq.s32.totalorder %s49, 0
      %p117 = por %p115, %p116
      %p118 = scmp.ne.s32.totalorder %s106, %s107
      %p119 = scmp.eq.s32.totalorder %s50, 1
      %p120 = por %p118, %p119
      %p122 = scmp.ne.s32.totalorder %s107, %s121
      %p123 = scmp.eq.s32.totalorder %s50, 0
      %p124 = por %p122, %p123
      %s126 = sadd.s32 %s125, 1
      %p129 = scmp.eq.s32.totalorder %s44, 1
      %p130 = scmp.ne.s32.totalorder %s125, %s127
      %p131 = scmp.eq.s32.totalorder %s44, 0
      %p132 = por %p130, %p131
      %p133 = scmp.ne.s32.totalorder %s125, %s127
      %p134 = scmp.eq.s32.totalorder %s49, 1
      %p135 = por %p133, %p134
      %p136 = scmp.ne.s32.totalorder %s127, %s128
      %p137 = scmp.eq.s32.totalorder %s49, 0
      %p138 = por %p136, %p137
      %p139 = scmp.ne.s32.totalorder %s127, %s128
      %p140 = scmp.eq.s32.totalorder %s50, 1
      %p141 = por %p139, %p140
      %p143 = scmp.ne.s32.totalorder %s128, %s142
      %p144 = scmp.eq.s32.totalorder %s50, 0
      %p145 = por %p143, %p144
      %s147 = sadd.s32 %s146, 1
      %p150 = scmp.eq.s32.totalorder %s44, 1
      %p151 = scmp.ne.s32.totalorder %s146, %s148
      %p152 = scmp.eq.s32.totalorder %s44, 0
      %p153 = por %p151, %p152
      %p154 = scmp.ne.s32.totalorder %s146, %s148
      %p155 = scmp.eq.s32.totalorder %s49, 1
      %p156 = por %p154, %p155
      %p157 = scmp.ne.s32.totalorder %s148, %s149
      %p158 = scmp.eq.s32.totalorder %s49, 0
      %p159 = por %p157, %p158
      %p160 = scmp.ne.s32.totalorder %s148, %s149
      %p161 = scmp.eq.s32.totalorder %s50, 1
      %p162 = por %p160, %p161
      %p164 = scmp.ne.s32.totalorder %s149, %s163
      %p165 = scmp.eq.s32.totalorder %s50, 0
      %p166 = por %p164, %p165
      %s168 = sadd.s32 %s167, 1
      %p171 = scmp.eq.s32.totalorder %s44, 1
      %p172 = scmp.ne.s32.totalorder %s167, %s169
      %p173 = scmp.eq.s32.totalorder %s44, 0
      %p174 = por %p172, %p173
      %p175 = scmp.ne.s32.totalorder %s167, %s169
      %p176 = scmp.eq.s32.totalorder %s49, 1
      %p177 = por %p175, %p176
      %p178 = scmp.ne.s32.totalorder %s169, %s170
      %p179 = scmp.eq.s32.totalorder %s49, 0
      %p180 = por %p178, %p179
      %p181 = scmp.ne.s32.totalorder %s169, %s170
      %p182 = scmp.eq.s32.totalorder %s50, 1
      %p183 = por %p181, %p182
      %p185 = scmp.ne.s32.totalorder %s170, %s184
      %p186 = scmp.eq.s32.totalorder %s50, 0
      %p187 = por %p185, %p186
      %s189 = sadd.s32 %s188, 1
      %p192 = scmp.eq.s32.totalorder %s44, 1
      %p193 = scmp.ne.s32.totalorder %s188, %s190
      %p194 = scmp.eq.s32.totalorder %s44, 0
      %p195 = por %p193, %p194
      %p196 = scmp.ne.s32.totalorder %s188, %s190
      %p197 = scmp.eq.s32.totalorder %s49, 1
      %p198 = por %p196, %p197
      %p199 = scmp.ne.s32.totalorder %s190, %s191
      %p200 = scmp.eq.s32.totalorder %s49, 0
      %p201 = por %p199, %p200
      %p202 = scmp.ne.s32.totalorder %s190, %s191
      %p203 = scmp.eq.s32.totalorder %s50, 1
      %p204 = por %p202, %p203
      %p206 = scmp.ne.s32.totalorder %s191, %s205
      %p207 = scmp.eq.s32.totalorder %s50, 0
      %p208 = por %p206, %p207
      %s210 = sadd.s32 %s209, 1
      %p213 = scmp.eq.s32.totalorder %s44, 1
      %p214 = scmp.ne.s32.totalorder %s209, %s211
      %p215 = scmp.eq.s32.totalorder %s44, 0
      %p216 = por %p214, %p215
      %p217 = scmp.ne.s32.totalorder %s209, %s211
      %p218 = scmp.eq.s32.totalorder %s49, 1
      %p219 = por %p217, %p218
      %p220 = scmp.ne.s32.totalorder %s211, %s212
      %p221 = scmp.eq.s32.totalorder %s49, 0
      %p222 = por %p220, %p221
      %p223 = scmp.ne.s32.totalorder %s211, %s212
      %p224 = scmp.eq.s32.totalorder %s50, 1
      %p225 = por %p223, %p224
      %p227 = scmp.ne.s32.totalorder %s212, %s226
      %p228 = scmp.eq.s32.totalorder %s50, 0
      %p229 = por %p227, %p228
      %s231 = sadd.s32 %s230, 1
      %p234 = scmp.eq.s32.totalorder %s44, 1
      %p235 = scmp.ne.s32.totalorder %s230, %s232
      %p236 = scmp.eq.s32.totalorder %s44, 0
      %p237 = por %p235, %p236
      %p238 = scmp.ne.s32.totalorder %s230, %s232
      %p239 = scmp.eq.s32.totalorder %s49, 1
      %p240 = por %p238, %p239
      %p241 = scmp.ne.s32.totalorder %s232, %s233
      %p242 = scmp.eq.s32.totalorder %s49, 0
      %p243 = por %p241, %p242
      %p244 = scmp.ne.s32.totalorder %s232, %s233
      %p245 = scmp.eq.s32.totalorder %s50, 1
      %p246 = por %p244, %p245
      %p248 = scmp.ne.s32.totalorder %s233, %s247
      %p249 = scmp.eq.s32.totalorder %s50, 0
      %p250 = por %p248, %p249
      %s252 = sadd.s32 %s251, 1
      %p255 = scmp.eq.s32.totalorder %s44, 1
      %p256 = scmp.ne.s32.totalorder %s251, %s253
      %p257 = scmp.eq.s32.totalorder %s44, 0
      %p258 = por %p256, %p257
      %p259 = scmp.ne.s32.totalorder %s251, %s253
      %p260 = scmp.eq.s32.totalorder %s49, 1
      %p261 = por %p259, %p260
      %p262 = scmp.ne.s32.totalorder %s253, %s254
      %p263 = scmp.eq.s32.totalorder %s49, 0
      %p264 = por %p262, %p263
      %p265 = scmp.ne.s32.totalorder %s253, %s254
      %p266 = scmp.eq.s32.totalorder %s50, 1
      %p267 = por %p265, %p266
      %p269 = scmp.ne.s32.totalorder %s254, %s268
      %p270 = scmp.eq.s32.totalorder %s50, 0
      %p271 = por %p269, %p270
      %s273 = sadd.s32 %s272, 1
      %p276 = scmp.eq.s32.totalorder %s44, 1
      %p277 = scmp.ne.s32.totalorder %s272, %s274
      %p278 = scmp.eq.s32.totalorder %s44, 0
      %p279 = por %p277, %p278
      %p280 = scmp.ne.s32.totalorder %s272, %s274
      %p281 = scmp.eq.s32.totalorder %s49, 1
      %p282 = por %p280, %p281
      %p283 = scmp.ne.s32.totalorder %s274, %s275
      %p284 = scmp.eq.s32.totalorder %s49, 0
      %p285 = por %p283, %p284
      %p286 = scmp.ne.s32.totalorder %s274, %s275
      %p287 = scmp.eq.s32.totalorder %s50, 1
      %p288 = por %p286, %p287
      %p290 = scmp.ne.s32.totalorder %s275, %s289
      %p291 = scmp.eq.s32.totalorder %s50, 0
      %p292 = por %p290, %p291
      %s294 = sadd.s32 %s293, 1
      %p297 = scmp.eq.s32.totalorder %s44, 1
      %p298 = scmp.ne.s32.totalorder %s293, %s295
      %p299 = scmp.eq.s32.totalorder %s44, 0
      %p300 = por %p298, %p299
      %p301 = scmp.ne.s32.totalorder %s293, %s295
      %p302 = scmp.eq.s32.totalorder %s49, 1
      %p303 = por %p301, %p302
      %p304 = scmp.ne.s32.totalorder %s295, %s296
      %p305 = scmp.eq.s32.totalorder %s49, 0
      %p306 = por %p304, %p305
      %p307 = scmp.ne.s32.totalorder %s295, %s296
      %p308 = scmp.eq.s32.totalorder %s50, 1
      %p309 = por %p307, %p308
      %p311 = scmp.ne.s32.totalorder %s296, %s310
      %p312 = scmp.eq.s32.totalorder %s50, 0
      %p313 = por %p311, %p312
      %s314 = ssub.s32 %s44, %s51
      %p315 = scmp.eq.s32.totalorder %s314, 0
      %s317 = sadd.s32 %s316, 1
      %s318 = scalar_select %p315, %s316, %s317
      %p321 = pneg %p315
      %p322 = scmp.eq.s32.totalorder %s44, 1
      %p323 = por %p321, %p322
      %p324 = scmp.ne.s32.totalorder %s316, %s319
      %p325 = scmp.eq.s32.totalorder %s44, 0
      %p326 = por %p324, %p325
      %p327 = scmp.ne.s32.totalorder %s316, %s319
      %p328 = scmp.eq.s32.totalorder %s49, 1
      %p329 = por %p327, %p328
      %p330 = scmp.ne.s32.totalorder %s319, %s320
      %p331 = scmp.eq.s32.totalorder %s49, 0
      %p332 = por %p330, %p331
      %p333 = scmp.ne.s32.totalorder %s319, %s320
      %p334 = scmp.eq.s32.totalorder %s50, 1
      %p335 = por %p333, %p334
      %p337 = scmp.ne.s32.totalorder %s320, %s336
      %p338 = scmp.eq.s32.totalorder %s50, 0
      %p339 = por %p337, %p338
      %s340 = ssub.s32 %s44, %s51
      %p341 = scmp.eq.s32.totalorder %s340, 0
      %s343 = sadd.s32 %s342, 1
      %s344 = scalar_select %p341, %s342, %s343
      %p347 = pneg %p341
      %p348 = scmp.eq.s32.totalorder %s44, 1
      %p349 = por %p347, %p348
      %p350 = scmp.ne.s32.totalorder %s342, %s345
      %p351 = scmp.eq.s32.totalorder %s44, 0
      %p352 = por %p350, %p351
      %p353 = scmp.ne.s32.totalorder %s342, %s345
      %p354 = scmp.eq.s32.totalorder %s49, 1
      %p355 = por %p353, %p354
      %p356 = scmp.ne.s32.totalorder %s345, %s346
      %p357 = scmp.eq.s32.totalorder %s49, 0
      %p358 = por %p356, %p357
      %p359 = scmp.ne.s32.totalorder %s345, %s346
      %p360 = scmp.eq.s32.totalorder %s50, 1
      %p361 = por %p359, %p360
      %p363 = scmp.ne.s32.totalorder %s346, %s362
      %p364 = scmp.eq.s32.totalorder %s50, 0
      %p365 = por %p363, %p364
      %p366 = scmp.le.s32.totalorder 1, %s44
      %p367 = scmp.lt.s32.totalorder %s44, 3
      %p368 = pnand %p366, %p367
      %p369 = pneg %p368
      // Predicated region
      $region9: #{tpu_custom_call.1} parent=5 // pred_check
        _
      $region10: #{tpu_custom_call.1} parent=5 // pred_check_branch
        %371 = sbr.rel (%p368) target = $region12
      $region11: #{tpu_custom_call.1} parent=5 // pred_region
        %s372 = ssub.s32 %s44, 1
        // Predicated region
        $region13: #{tpu_custom_call.1} parent=11 // pred_check
          %p373 = pneg %p117
        $region14: #{tpu_custom_call.1} parent=11 // pred_check_branch
          %375 = sbr.rel (%p373) target = $region16
        $region15: #{tpu_custom_call.1} parent=11 // pred_region
          %s377 = ssub.s32 24576, 24576
          %378 = vsyncadd [#allocation9], %s377
          %s379 = sshll.u32 [#allocation10], 4
          %s380 = int_to_ptr.vmem [resolvable:$true] %s379
          %385 = dma.hbm_to_vmem [thread:$0]  %s4, 24576, %s380, [#allocation9], 256, 256, 16
        $region16: #{tpu_custom_call.1} parent=11 // pred_fallthru
          _
        // Predicated region
        $region17: #{tpu_custom_call.1} parent=11 // pred_check
          %p386 = pneg %p138
        $region18: #{tpu_custom_call.1} parent=11 // pred_check_branch
          %388 = sbr.rel (%p386) target = $region20
        $region19: #{tpu_custom_call.1} parent=11 // pred_region
          _
        $region20: #{tpu_custom_call.1} parent=11 // pred_fallthru
          _
        // Predicated region
        $region21: #{tpu_custom_call.1} parent=11 // pred_check
          %p389 = pneg %p159
        $region22: #{tpu_custom_call.1} parent=11 // pred_check_branch
          %391 = sbr.rel (%p389) target = $region24
        $region23: #{tpu_custom_call.1} parent=11 // pred_region
          %s393 = ssub.s32 4096, 4096
          %394 = vsyncadd [#allocation12], %s393
          %s395 = sshll.u32 [#allocation11], 4
          %s396 = int_to_ptr.vmem [resolvable:$true] %s395
          %401 = dma.hbm_to_vmem [thread:$0]  %s6, 4096, %s396, [#allocation12], 64, 64, 4
        $region24: #{tpu_custom_call.1} parent=11 // pred_fallthru
          _
        // Predicated region
        $region25: #{tpu_custom_call.1} parent=11 // pred_check
          %p402 = pneg %p180
        $region26: #{tpu_custom_call.1} parent=11 // pred_check_branch
          %404 = sbr.rel (%p402) target = $region28
        $region27: #{tpu_custom_call.1} parent=11 // pred_region
          _
        $region28: #{tpu_custom_call.1} parent=11 // pred_fallthru
          _
        // Predicated region
        $region29: #{tpu_custom_call.1} parent=11 // pred_check
          %p405 = pneg %p201
        $region30: #{tpu_custom_call.1} parent=11 // pred_check_branch
          %407 = sbr.rel (%p405) target = $region32
        $region31: #{tpu_custom_call.1} parent=11 // pred_region
          %s409 = ssub.s32 6144, 6144
          %410 = vsyncadd [#allocation12], %s409
          %s411 = sshll.u32 [#allocation13], 4
          %s412 = int_to_ptr.vmem [resolvable:$true] %s411
          %417 = dma.hbm_to_vmem [thread:$0]  %s8, 6144, %s412, [#allocation12], 128, 128, 8
        $region32: #{tpu_custom_call.1} parent=11 // pred_fallthru
          _
        // Predicated region
        $region33: #{tpu_custom_call.1} parent=11 // pred_check
          %p418 = pneg %p222
        $region34: #{tpu_custom_call.1} parent=11 // pred_check_branch
          %420 = sbr.rel (%p418) target = $region36
        $region35: #{tpu_custom_call.1} parent=11 // pred_region
          _
        $region36: #{tpu_custom_call.1} parent=11 // pred_fallthru
          _
        // Predicated region
        $region37: #{tpu_custom_call.1} parent=11 // pred_check
          %p421 = pneg %p243
        $region38: #{tpu_custom_call.1} parent=11 // pred_check_branch
          %423 = sbr.rel (%p421) target = $region40
        $region39: #{tpu_custom_call.1} parent=11 // pred_region
          %s425 = ssub.s32 6144, 6144
          %426 = vsyncadd [#allocation15], %s425
          %s427 = sshll.u32 [#allocation14], 4
          %s428 = int_to_ptr.vmem [resolvable:$true] %s427
          %433 = dma.hbm_to_vmem [thread:$0]  %s10, 6144, %s428, [#allocation15], 64, 64, 4
        $region40: #{tpu_custom_call.1} parent=11 // pred_fallthru
          _
        // Predicated region
        $region41: #{tpu_custom_call.1} parent=11 // pred_check
          %p434 = pneg %p264
        $region42: #{tpu_custom_call.1} parent=11 // pred_check_branch
          %436 = sbr.rel (%p434) target = $region44
        $region43: #{tpu_custom_call.1} parent=11 // pred_region
          _
        $region44: #{tpu_custom_call.1} parent=11 // pred_fallthru
          _
        // Predicated region
        $region45: #{tpu_custom_call.1} parent=11 // pred_check
          %p437 = pneg %p285
        $region46: #{tpu_custom_call.1} parent=11 // pred_check_branch
          %439 = sbr.rel (%p437) target = $region48
        $region47: #{tpu_custom_call.1} parent=11 // pred_region
          %s441 = ssub.s32 1024, 1024
          %442 = vsyncadd [#allocation15], %s441
          %s443 = sshll.u32 [#allocation16], 4
          %s444 = int_to_ptr.vmem [resolvable:$true] %s443
          %449 = dma.hbm_to_vmem [thread:$0]  %s12, 1024, %s444, [#allocation15], 64, 64, 4
        $region48: #{tpu_custom_call.1} parent=11 // pred_fallthru
          _
        // Predicated region
        $region49: #{tpu_custom_call.1} parent=11 // pred_check
          %p450 = pneg %p306
        $region50: #{tpu_custom_call.1} parent=11 // pred_check_branch
          %452 = sbr.rel (%p450) target = $region52
        $region51: #{tpu_custom_call.1} parent=11 // pred_region
          _
        $region52: #{tpu_custom_call.1} parent=11 // pred_fallthru
          _
      $region12: #{tpu_custom_call.1} parent=5 // pred_fallthru
        _
      %p453 = scmp.lt.s32.totalorder %s44, 2
      // Predicated region
      $region53: #{tpu_custom_call.1} parent=5 // pred_check
        %p454 = pneg %p453
      $region54: #{tpu_custom_call.1} parent=5 // pred_check_branch
        %456 = sbr.rel (%p454) target = $region56
      $region55: #{tpu_custom_call.1} parent=5 // pred_region
        // Predicated region
        $region57: #{tpu_custom_call.1} parent=55 // pred_check
          %p457 = pneg %p64
        $region58: #{tpu_custom_call.1} parent=55 // pred_check_branch
          %459 = sbr.rel (%p457) target = $region60
        $region59: #{tpu_custom_call.1} parent=55 // pred_region
          %s460 = sand.u32 %s54, 1
          %s461 = scalar_lea.sflag [#allocation6], %s460
          %s462 = sand.u32 %s54, 1
          %s463 = smul.addr %s462, 8
          %s464 = scalar_lea.vmem [#allocation5], %s463
          %s466 = ssub.s32 128, 128
          %467 = vsyncadd %s461, %s466
          %s468 = smul.addr %s44, 2
          %s469 = smul.addr %s468, 64
          %s470 = scalar_lea.hbm %s2, %s469
          %s472 = sshll.u32 %s464, 4
          %s473 = int_to_ptr.vmem [resolvable:$true] %s472
          %475 = dma.hbm_to_vmem [thread:$0]  %s470, 128, %s473, %s461
        $region60: #{tpu_custom_call.1} parent=55 // pred_fallthru
          _
        // Predicated region
        $region61: #{tpu_custom_call.1} parent=55 // pred_check
          %p476 = pneg %p90
        $region62: #{tpu_custom_call.1} parent=55 // pred_check_branch
          %478 = sbr.rel (%p476) target = $region64
        $region63: #{tpu_custom_call.1} parent=55 // pred_region
          %s479 = sand.u32 %s44, 1
          %s480 = scalar_lea.sflag [#allocation9], %s479
          %s481 = sand.u32 %s80, 1
          %s482 = smul.addr %s481, 64
          %s483 = scalar_lea.vmem [#allocation8], %s482
          %s485 = ssub.s32 1024, 1024
          %486 = vsyncadd %s480, %s485
          %s487 = smul.addr %s44, 16
          %s488 = smul.addr %s487, 64
          %s489 = scalar_lea.hbm %s3, %s488
          %s490 = sshll.u32 %s483, 4
          %s491 = int_to_ptr.vmem [resolvable:$true] %s490
          %496 = dma.hbm_to_vmem [thread:$0]  %s489, 1024, %s491, %s480, 64, 64, 4
        $region64: #{tpu_custom_call.1} parent=55 // pred_fallthru
          _
      $region56: #{tpu_custom_call.1} parent=5 // pred_fallthru
        _
      %p497 = scmp.le.s32.totalorder 1, %s44
      %p498 = scmp.lt.s32.totalorder %s44, 3
      %p499 = pnand %p497, %p498
      %p500 = pneg %p499
      // Predicated region
      $region65: #{tpu_custom_call.1} parent=5 // pred_check
        _
      $region66: #{tpu_custom_call.1} parent=5 // pred_check_branch
        %502 = sbr.rel (%p499) target = $region68
      $region67: #{tpu_custom_call.1} parent=5 // pred_region
        %s503 = ssub.s32 %s44, 1
        %s504 = sand.u32 %s57, 1
        %s505 = scalar_lea.sflag [#allocation6], %s504
        %s506 = sand.u32 %s57, 1
        %s507 = smul.addr %s506, 8
        %s508 = scalar_lea.vmem [#allocation5], %s507
        // Predicated region
        $region69: #{tpu_custom_call.1} parent=67 // pred_check
          %p509 = pneg %p70
        $region70: #{tpu_custom_call.1} parent=67 // pred_check_branch
          %511 = sbr.rel (%p509) target = $region72
        $region71: #{tpu_custom_call.1} parent=67 // pred_region
          %512 = dma.done %s505, 128
        $region72: #{tpu_custom_call.1} parent=67 // pred_fallthru
          _
        %s513 = sand.u32 %s49, 1
        %s514 = scalar_lea.sflag [#allocation9], %s513
        %s515 = sand.u32 %s83, 1
        %s516 = smul.addr %s515, 64
        %s517 = scalar_lea.vmem [#allocation8], %s516
        // Predicated region
        $region73: #{tpu_custom_call.1} parent=67 // pred_check
          %p518 = pneg %p96
        $region74: #{tpu_custom_call.1} parent=67 // pred_check_branch
          %520 = sbr.rel (%p518) target = $region76
        $region75: #{tpu_custom_call.1} parent=67 // pred_region
          %521 = dma.done %s514, 1024
        $region76: #{tpu_custom_call.1} parent=67 // pred_fallthru
          _
        // Predicated region
        $region77: #{tpu_custom_call.1} parent=67 // pred_check
          %p522 = pneg %p117
        $region78: #{tpu_custom_call.1} parent=67 // pred_check_branch
          %524 = sbr.rel (%p522) target = $region80
        $region79: #{tpu_custom_call.1} parent=67 // pred_region
          %525 = dma.done [#allocation9], 24576
        $region80: #{tpu_custom_call.1} parent=67 // pred_fallthru
          _
        // Predicated region
        $region81: #{tpu_custom_call.1} parent=67 // pred_check
          %p526 = pneg %p159
        $region82: #{tpu_custom_call.1} parent=67 // pred_check_branch
          %528 = sbr.rel (%p526) target = $region84
        $region83: #{tpu_custom_call.1} parent=67 // pred_region
          %529 = dma.done [#allocation12], 4096
        $region84: #{tpu_custom_call.1} parent=67 // pred_fallthru
          _
        // Predicated region
        $region85: #{tpu_custom_call.1} parent=67 // pred_check
          %p530 = pneg %p201
        $region86: #{tpu_custom_call.1} parent=67 // pred_check_branch
          %532 = sbr.rel (%p530) target = $region88
        $region87: #{tpu_custom_call.1} parent=67 // pred_region
          %533 = dma.done [#allocation12], 6144
        $region88: #{tpu_custom_call.1} parent=67 // pred_fallthru
          _
        // Predicated region
        $region89: #{tpu_custom_call.1} parent=67 // pred_check
          %p534 = pneg %p243
        $region90: #{tpu_custom_call.1} parent=67 // pred_check_branch
          %536 = sbr.rel (%p534) target = $region92
        $region91: #{tpu_custom_call.1} parent=67 // pred_region
          %537 = dma.done [#allocation15], 6144
        $region92: #{tpu_custom_call.1} parent=67 // pred_fallthru
          _
        // Predicated region
        $region93: #{tpu_custom_call.1} parent=67 // pred_check
          %p538 = pneg %p285
        $region94: #{tpu_custom_call.1} parent=67 // pred_check_branch
          %540 = sbr.rel (%p538) target = $region96
        $region95: #{tpu_custom_call.1} parent=67 // pred_region
          %541 = dma.done [#allocation15], 1024
        $region96: #{tpu_custom_call.1} parent=67 // pred_fallthru
          _
        %s542 = sand.u32 %s57, 1
        %s543 = scalar_lea.sflag [#allocation6], %s542
        %s544 = sand.u32 %s57, 1
        %s545 = smul.addr %s544, 8
        %s546 = scalar_lea.vmem [#allocation5], %s545
        %p547 = pneg %p70
        %p548 = pneg %p67
        %s549 = sand.u32 %s49, 1
        %s550 = scalar_lea.sflag [#allocation9], %s549
        %s551 = sand.u32 %s83, 1
        %s552 = smul.addr %s551, 64
        %s553 = scalar_lea.vmem [#allocation8], %s552
        %p554 = pneg %p96
        %p555 = pneg %p93
        %p556 = pneg %p117
        %p557 = pneg %p114
        %p558 = pneg %p138
        %p559 = pneg %p135
        %p560 = pneg %p159
        %p561 = pneg %p156
        %p562 = pneg %p180
        %p563 = pneg %p177
        %p564 = pneg %p201
        %p565 = pneg %p198
        %p566 = pneg %p222
        %p567 = pneg %p219
        %p568 = pneg %p243
        %p569 = pneg %p240
        %p570 = pneg %p264
        %p571 = pneg %p261
        %p572 = pneg %p285
        %p573 = pneg %p282
        %p574 = pneg %p306
        %p575 = pneg %p303
        %p576 = pneg %p332
        %p577 = pneg %p329
        %s578 = sand.u32 %s319, 1
        %s579 = scalar_lea.sflag [#allocation7], %s578
        %s580 = sand.u32 %s319, 1
        %s581 = smul.addr %s580, 8
        %s582 = scalar_lea.vmem [#allocation17], %s581
        %p583 = pneg %p358
        %p584 = pneg %p355
        %s585 = sand.u32 %s345, 1
        %s586 = scalar_lea.sflag [#allocation19], %s585
        %s587 = sand.u32 %s345, 1
        %s588 = smul.addr %s587, 128
        %s589 = scalar_lea.vmem [#allocation18], %s588
        %v591 = vld [vmem:[%s508] sm:$0xff]
        %v592 = vunpack.c.l.bf16 %v591
        %v593 = vunpack.c.h.bf16 %v591
        %v594 = vlaneseq
        %v595 = vshrl.u32 %v594, 7
        %vm596 = vcmp.eq.s32.totalorder %v595, 0
        %v597 = vrot.slane %v592, 7
        %v598 = vrot.slane %v593, 7
        %v599 = vsel %vm596, 1, 0
        %vm600 = vcmp.eq.s32.totalorder %v599, 1
        %v601 = vsel %vm600, 0.0, %v597
        %v602 = vsel %vm600, 0.0, %v598
        %vm603 = vcmp.eq.s32.totalorder %v595, 7
        %v604 = vrot.slane %v592, 1
        %v605 = vrot.slane %v593, 1
        %v606 = vsel %vm603, 1, 0
        %vm607 = vcmp.eq.s32.totalorder %v606, 1
        %v608 = vsel %vm607, 0.0, %v604
        %v609 = vsel %vm607, 0.0, %v605
        %v610 = vpack.c.bf16 %v601, %v601
        %v611 = vpack.c.bf16 %v602, %v602
        %v612 = vpack.c.bf16 %v608, %v608
        %v613 = vpack.c.bf16 %v609, %v609
        %v615 = vunpack.c.l.b16 %v591
        %v616 = vunpack.c.h.b16 %v591
        %v617 = vpack.c.b16 %v615, %v615
        %v618 = vpack.c.b16 %v616, %v616
        %v621 = vld [vmem:[#allocation10] sm:$0xff]
        %v622 = vld [vmem:[#allocation10 + $0x8] sm:$0xff]
        %v623 = vld [vmem:[#allocation10 + $0x10] sm:$0xff]
        %v624 = vld [vmem:[#allocation10 + $0x18] sm:$0xff]
        %v625 = vld [vmem:[#allocation10 + $0x20] sm:$0xff]
        %v626 = vld [vmem:[#allocation10 + $0x28] sm:$0xff]
        %v627 = vld [vmem:[#allocation10 + $0x30] sm:$0xff]
        %v628 = vld [vmem:[#allocation10 + $0x38] sm:$0xff]
        %v629 = vld [vmem:[#allocation10 + $0x40] sm:$0xff]
        %v630 = vld [vmem:[#allocation10 + $0x48] sm:$0xff]
        %v631 = vld [vmem:[#allocation10 + $0x50] sm:$0xff]
        %v632 = vld [vmem:[#allocation10 + $0x58] sm:$0xff]
        %v633 = vld [vmem:[#allocation10 + $0x60] sm:$0xff]
        %v634 = vld [vmem:[#allocation10 + $0x68] sm:$0xff]
        %v635 = vld [vmem:[#allocation10 + $0x70] sm:$0xff]
        %v636 = vld [vmem:[#allocation10 + $0x78] sm:$0xff]
        %v637 = vld [vmem:[#allocation10 + $0x80] sm:$0xff]
        %v638 = vld [vmem:[#allocation10 + $0x88] sm:$0xff]
        %v639 = vld [vmem:[#allocation10 + $0x90] sm:$0xff]
        %v640 = vld [vmem:[#allocation10 + $0x98] sm:$0xff]
        %v641 = vld [vmem:[#allocation10 + $0xa0] sm:$0xff]
        %v642 = vld [vmem:[#allocation10 + $0xa8] sm:$0xff]
        %v643 = vld [vmem:[#allocation10 + $0xb0] sm:$0xff]
        %v644 = vld [vmem:[#allocation10 + $0xb8] sm:$0xff]
        %v645 = vld [vmem:[#allocation10 + $0xc0] sm:$0xff]
        %v646 = vld [vmem:[#allocation10 + $0xc8] sm:$0xff]
        %v647 = vld [vmem:[#allocation10 + $0xd0] sm:$0xff]
        %v648 = vld [vmem:[#allocation10 + $0xd8] sm:$0xff]
        %v649 = vld [vmem:[#allocation10 + $0xe0] sm:$0xff]
        %v650 = vld [vmem:[#allocation10 + $0xe8] sm:$0xff]
        %v651 = vld [vmem:[#allocation10 + $0xf0] sm:$0xff]
        %v652 = vld [vmem:[#allocation10 + $0xf8] sm:$0xff]
        %v653 = vld [vmem:[#allocation10 + $0x100] sm:$0xff]
        %v654 = vld [vmem:[#allocation10 + $0x108] sm:$0xff]
        %v655 = vld [vmem:[#allocation10 + $0x110] sm:$0xff]
        %v656 = vld [vmem:[#allocation10 + $0x118] sm:$0xff]
        %v657 = vld [vmem:[#allocation10 + $0x120] sm:$0xff]
        %v658 = vld [vmem:[#allocation10 + $0x128] sm:$0xff]
        %v659 = vld [vmem:[#allocation10 + $0x130] sm:$0xff]
        %v660 = vld [vmem:[#allocation10 + $0x138] sm:$0xff]
        %v661 = vld [vmem:[#allocation10 + $0x140] sm:$0xff]
        %v662 = vld [vmem:[#allocation10 + $0x148] sm:$0xff]
        %v663 = vld [vmem:[#allocation10 + $0x150] sm:$0xff]
        %v664 = vld [vmem:[#allocation10 + $0x158] sm:$0xff]
        %v665 = vld [vmem:[#allocation10 + $0x160] sm:$0xff]
        %v666 = vld [vmem:[#allocation10 + $0x168] sm:$0xff]
        %v667 = vld [vmem:[#allocation10 + $0x170] sm:$0xff]
        %v668 = vld [vmem:[#allocation10 + $0x178] sm:$0xff]
        %v669 = vld [vmem:[#allocation10 + $0x180] sm:$0xff]
        %v670 = vld [vmem:[#allocation10 + $0x188] sm:$0xff]
        %v671 = vld [vmem:[#allocation10 + $0x190] sm:$0xff]
        %v672 = vld [vmem:[#allocation10 + $0x198] sm:$0xff]
        %v673 = vld [vmem:[#allocation10 + $0x1a0] sm:$0xff]
        %v674 = vld [vmem:[#allocation10 + $0x1a8] sm:$0xff]
        %v675 = vld [vmem:[#allocation10 + $0x1b0] sm:$0xff]
        %v676 = vld [vmem:[#allocation10 + $0x1b8] sm:$0xff]
        %v677 = vld [vmem:[#allocation10 + $0x1c0] sm:$0xff]
        %v678 = vld [vmem:[#allocation10 + $0x1c8] sm:$0xff]
        %v679 = vld [vmem:[#allocation10 + $0x1d0] sm:$0xff]
        %v680 = vld [vmem:[#allocation10 + $0x1d8] sm:$0xff]
        %v681 = vld [vmem:[#allocation10 + $0x1e0] sm:$0xff]
        %v682 = vld [vmem:[#allocation10 + $0x1e8] sm:$0xff]
        %v683 = vld [vmem:[#allocation10 + $0x1f0] sm:$0xff]
        %v684 = vld [vmem:[#allocation10 + $0x1f8] sm:$0xff]
        %v685 = vld [vmem:[#allocation10 + $0x200] sm:$0xff]
        %v686 = vld [vmem:[#allocation10 + $0x208] sm:$0xff]
        %v687 = vld [vmem:[#allocation10 + $0x210] sm:$0xff]
        %v688 = vld [vmem:[#allocation10 + $0x218] sm:$0xff]
        %v689 = vld [vmem:[#allocation10 + $0x220] sm:$0xff]
        %v690 = vld [vmem:[#allocation10 + $0x228] sm:$0xff]
        %v691 = vld [vmem:[#allocation10 + $0x230] sm:$0xff]
        %v692 = vld [vmem:[#allocation10 + $0x238] sm:$0xff]
        %v693 = vld [vmem:[#allocation10 + $0x240] sm:$0xff]
        %v694 = vld [vmem:[#allocation10 + $0x248] sm:$0xff]
        %v695 = vld [vmem:[#allocation10 + $0x250] sm:$0xff]
        %v696 = vld [vmem:[#allocation10 + $0x258] sm:$0xff]
        %v697 = vld [vmem:[#allocation10 + $0x260] sm:$0xff]
        %v698 = vld [vmem:[#allocation10 + $0x268] sm:$0xff]
        %v699 = vld [vmem:[#allocation10 + $0x270] sm:$0xff]
        %v700 = vld [vmem:[#allocation10 + $0x278] sm:$0xff]
        %v701 = vld [vmem:[#allocation10 + $0x280] sm:$0xff]
        %v702 = vld [vmem:[#allocation10 + $0x288] sm:$0xff]
        %v703 = vld [vmem:[#allocation10 + $0x290] sm:$0xff]
        %v704 = vld [vmem:[#allocation10 + $0x298] sm:$0xff]
        %v705 = vld [vmem:[#allocation10 + $0x2a0] sm:$0xff]
        %v706 = vld [vmem:[#allocation10 + $0x2a8] sm:$0xff]
        %v707 = vld [vmem:[#allocation10 + $0x2b0] sm:$0xff]
        %v708 = vld [vmem:[#allocation10 + $0x2b8] sm:$0xff]
        %v709 = vld [vmem:[#allocation10 + $0x2c0] sm:$0xff]
        %v710 = vld [vmem:[#allocation10 + $0x2c8] sm:$0xff]
        %v711 = vld [vmem:[#allocation10 + $0x2d0] sm:$0xff]
        %v712 = vld [vmem:[#allocation10 + $0x2d8] sm:$0xff]
        %v713 = vld [vmem:[#allocation10 + $0x2e0] sm:$0xff]
        %v714 = vld [vmem:[#allocation10 + $0x2e8] sm:$0xff]
        %v715 = vld [vmem:[#allocation10 + $0x2f0] sm:$0xff]
        %v716 = vld [vmem:[#allocation10 + $0x2f8] sm:$0xff]
        %v717 = vld [vmem:[#allocation10 + $0x300] sm:$0xff]
        %v718 = vld [vmem:[#allocation10 + $0x308] sm:$0xff]
        %v719 = vld [vmem:[#allocation10 + $0x310] sm:$0xff]
        %v720 = vld [vmem:[#allocation10 + $0x318] sm:$0xff]
        %v721 = vld [vmem:[#allocation10 + $0x320] sm:$0xff]
        %v722 = vld [vmem:[#allocation10 + $0x328] sm:$0xff]
        %v723 = vld [vmem:[#allocation10 + $0x330] sm:$0xff]
        %v724 = vld [vmem:[#allocation10 + $0x338] sm:$0xff]
        %v725 = vld [vmem:[#allocation10 + $0x340] sm:$0xff]
        %v726 = vld [vmem:[#allocation10 + $0x348] sm:$0xff]
        %v727 = vld [vmem:[#allocation10 + $0x350] sm:$0xff]
        %v728 = vld [vmem:[#allocation10 + $0x358] sm:$0xff]
        %v729 = vld [vmem:[#allocation10 + $0x360] sm:$0xff]
        %v730 = vld [vmem:[#allocation10 + $0x368] sm:$0xff]
        %v731 = vld [vmem:[#allocation10 + $0x370] sm:$0xff]
        %v732 = vld [vmem:[#allocation10 + $0x378] sm:$0xff]
        %v733 = vld [vmem:[#allocation10 + $0x380] sm:$0xff]
        %v734 = vld [vmem:[#allocation10 + $0x388] sm:$0xff]
        %v735 = vld [vmem:[#allocation10 + $0x390] sm:$0xff]
        %v736 = vld [vmem:[#allocation10 + $0x398] sm:$0xff]
        %v737 = vld [vmem:[#allocation10 + $0x3a0] sm:$0xff]
        %v738 = vld [vmem:[#allocation10 + $0x3a8] sm:$0xff]
        %v739 = vld [vmem:[#allocation10 + $0x3b0] sm:$0xff]
        %v740 = vld [vmem:[#allocation10 + $0x3b8] sm:$0xff]
        %v741 = vld [vmem:[#allocation10 + $0x3c0] sm:$0xff]
        %v742 = vld [vmem:[#allocation10 + $0x3c8] sm:$0xff]
        %v743 = vld [vmem:[#allocation10 + $0x3d0] sm:$0xff]
        %v744 = vld [vmem:[#allocation10 + $0x3d8] sm:$0xff]
        %v745 = vld [vmem:[#allocation10 + $0x3e0] sm:$0xff]
        %v746 = vld [vmem:[#allocation10 + $0x3e8] sm:$0xff]
        %v747 = vld [vmem:[#allocation10 + $0x3f0] sm:$0xff]
        %v748 = vld [vmem:[#allocation10 + $0x3f8] sm:$0xff]
        %v749 = vld [vmem:[#allocation10 + $0x400] sm:$0xff]
        %v750 = vld [vmem:[#allocation10 + $0x408] sm:$0xff]
        %v751 = vld [vmem:[#allocation10 + $0x410] sm:$0xff]
        %v752 = vld [vmem:[#allocation10 + $0x418] sm:$0xff]
        %v753 = vld [vmem:[#allocation10 + $0x420] sm:$0xff]
        %v754 = vld [vmem:[#allocation10 + $0x428] sm:$0xff]
        %v755 = vld [vmem:[#allocation10 + $0x430] sm:$0xff]
        %v756 = vld [vmem:[#allocation10 + $0x438] sm:$0xff]
        %v757 = vld [vmem:[#allocation10 + $0x440] sm:$0xff]
        %v758 = vld [vmem:[#allocation10 + $0x448] sm:$0xff]
        %v759 = vld [vmem:[#allocation10 + $0x450] sm:$0xff]
        %v760 = vld [vmem:[#allocation10 + $0x458] sm:$0xff]
        %v761 = vld [vmem:[#allocation10 + $0x460] sm:$0xff]
        %v762 = vld [vmem:[#allocation10 + $0x468] sm:$0xff]
        %v763 = vld [vmem:[#allocation10 + $0x470] sm:$0xff]
        %v764 = vld [vmem:[#allocation10 + $0x478] sm:$0xff]
        %v765 = vld [vmem:[#allocation10 + $0x480] sm:$0xff]
        %v766 = vld [vmem:[#allocation10 + $0x488] sm:$0xff]
        %v767 = vld [vmem:[#allocation10 + $0x490] sm:$0xff]
        %v768 = vld [vmem:[#allocation10 + $0x498] sm:$0xff]
        %v769 = vld [vmem:[#allocation10 + $0x4a0] sm:$0xff]
        %v770 = vld [vmem:[#allocation10 + $0x4a8] sm:$0xff]
        %v771 = vld [vmem:[#allocation10 + $0x4b0] sm:$0xff]
        %v772 = vld [vmem:[#allocation10 + $0x4b8] sm:$0xff]
        %v773 = vld [vmem:[#allocation10 + $0x4c0] sm:$0xff]
        %v774 = vld [vmem:[#allocation10 + $0x4c8] sm:$0xff]
        %v775 = vld [vmem:[#allocation10 + $0x4d0] sm:$0xff]
        %v776 = vld [vmem:[#allocation10 + $0x4d8] sm:$0xff]
        %v777 = vld [vmem:[#allocation10 + $0x4e0] sm:$0xff]
        %v778 = vld [vmem:[#allocation10 + $0x4e8] sm:$0xff]
        %v779 = vld [vmem:[#allocation10 + $0x4f0] sm:$0xff]
        %v780 = vld [vmem:[#allocation10 + $0x4f8] sm:$0xff]
        %v781 = vld [vmem:[#allocation10 + $0x500] sm:$0xff]
        %v782 = vld [vmem:[#allocation10 + $0x508] sm:$0xff]
        %v783 = vld [vmem:[#allocation10 + $0x510] sm:$0xff]
        %v784 = vld [vmem:[#allocation10 + $0x518] sm:$0xff]
        %v785 = vld [vmem:[#allocation10 + $0x520] sm:$0xff]
        %v786 = vld [vmem:[#allocation10 + $0x528] sm:$0xff]
        %v787 = vld [vmem:[#allocation10 + $0x530] sm:$0xff]
        %v788 = vld [vmem:[#allocation10 + $0x538] sm:$0xff]
        %v789 = vld [vmem:[#allocation10 + $0x540] sm:$0xff]
        %v790 = vld [vmem:[#allocation10 + $0x548] sm:$0xff]
        %v791 = vld [vmem:[#allocation10 + $0x550] sm:$0xff]
        %v792 = vld [vmem:[#allocation10 + $0x558] sm:$0xff]
        %v793 = vld [vmem:[#allocation10 + $0x560] sm:$0xff]
        %v794 = vld [vmem:[#allocation10 + $0x568] sm:$0xff]
        %v795 = vld [vmem:[#allocation10 + $0x570] sm:$0xff]
        %v796 = vld [vmem:[#allocation10 + $0x578] sm:$0xff]
        %v797 = vld [vmem:[#allocation10 + $0x580] sm:$0xff]
        %v798 = vld [vmem:[#allocation10 + $0x588] sm:$0xff]
        %v799 = vld [vmem:[#allocation10 + $0x590] sm:$0xff]
        %v800 = vld [vmem:[#allocation10 + $0x598] sm:$0xff]
        %v801 = vld [vmem:[#allocation10 + $0x5a0] sm:$0xff]
        %v802 = vld [vmem:[#allocation10 + $0x5a8] sm:$0xff]
        %v803 = vld [vmem:[#allocation10 + $0x5b0] sm:$0xff]
        %v804 = vld [vmem:[#allocation10 + $0x5b8] sm:$0xff]
        %v805 = vld [vmem:[#allocation10 + $0x5c0] sm:$0xff]
        %v806 = vld [vmem:[#allocation10 + $0x5c8] sm:$0xff]
        %v807 = vld [vmem:[#allocation10 + $0x5d0] sm:$0xff]
        %v808 = vld [vmem:[#allocation10 + $0x5d8] sm:$0xff]
        %v809 = vld [vmem:[#allocation10 + $0x5e0] sm:$0xff]
        %v810 = vld [vmem:[#allocation10 + $0x5e8] sm:$0xff]
        %v811 = vld [vmem:[#allocation10 + $0x5f0] sm:$0xff]
        %v812 = vld [vmem:[#allocation10 + $0x5f8] sm:$0xff]
        %v813 = vld [vmem:[%s5] sm:$0xf]
        %v815 = vlaneseq
        %v816 = vshrl.u32 %v815, 7
        %v817 = vsub.s32 0, %v816
        %v818 = vrot.slane %v813, %v817
        %v819 = vlaneseq
        %v820 = vshrl.u32 %v819, 7
        %v821 = vsub.s32 1, %v820
        %v822 = vrot.slane %v813, %v821
        %v823 = vlaneseq
        %v824 = vshrl.u32 %v823, 7
        %v825 = vsub.s32 2, %v824
        %v826 = vrot.slane %v813, %v825
        %v827 = vlaneseq
        %v828 = vshrl.u32 %v827, 7
        %v829 = vsub.s32 3, %v828
        %v830 = vrot.slane %v813, %v829
        %v1027 = vunpack.c.l.b16 %v621
        %v1028 = vunpack.c.h.b16 %v621
        %v1029 = vunpack.c.l.b16 %v622
        %v1030 = vunpack.c.h.b16 %v622
        %v1031 = vunpack.c.l.b16 %v623
        %v1032 = vunpack.c.h.b16 %v623
        %v1033 = vunpack.c.l.b16 %v624
        %v1034 = vunpack.c.h.b16 %v624
        %v1035 = vunpack.c.l.b16 %v625
        %v1036 = vunpack.c.h.b16 %v625
        %v1037 = vunpack.c.l.b16 %v626
        %v1038 = vunpack.c.h.b16 %v626
        %v1039 = vunpack.c.l.b16 %v627
        %v1040 = vunpack.c.h.b16 %v627
        %v1041 = vunpack.c.l.b16 %v628
        %v1042 = vunpack.c.h.b16 %v628
        %v1043 = vunpack.c.l.b16 %v629
        %v1044 = vunpack.c.h.b16 %v629
        %v1045 = vunpack.c.l.b16 %v630
        %v1046 = vunpack.c.h.b16 %v630
        %v1047 = vunpack.c.l.b16 %v631
        %v1048 = vunpack.c.h.b16 %v631
        %v1049 = vunpack.c.l.b16 %v632
        %v1050 = vunpack.c.h.b16 %v632
        %v1051 = vunpack.c.l.b16 %v633
        %v1052 = vunpack.c.h.b16 %v633
        %v1053 = vunpack.c.l.b16 %v634
        %v1054 = vunpack.c.h.b16 %v634
        %v1055 = vunpack.c.l.b16 %v635
        %v1056 = vunpack.c.h.b16 %v635
        %v1057 = vunpack.c.l.b16 %v636
        %v1058 = vunpack.c.h.b16 %v636
        %v1059 = vunpack.c.l.b16 %v637
        %v1060 = vunpack.c.h.b16 %v637
        %v1061 = vunpack.c.l.b16 %v638
        %v1062 = vunpack.c.h.b16 %v638
        %v1063 = vunpack.c.l.b16 %v639
        %v1064 = vunpack.c.h.b16 %v639
        %v1065 = vunpack.c.l.b16 %v640
        %v1066 = vunpack.c.h.b16 %v640
        %v1067 = vunpack.c.l.b16 %v641
        %v1068 = vunpack.c.h.b16 %v641
        %v1069 = vunpack.c.l.b16 %v642
        %v1070 = vunpack.c.h.b16 %v642
        %v1071 = vunpack.c.l.b16 %v643
        %v1072 = vunpack.c.h.b16 %v643
        %v1073 = vunpack.c.l.b16 %v644
        %v1074 = vunpack.c.h.b16 %v644
        %v1075 = vunpack.c.l.b16 %v645
        %v1076 = vunpack.c.h.b16 %v645
        %v1077 = vunpack.c.l.b16 %v646
        %v1078 = vunpack.c.h.b16 %v646
        %v1079 = vunpack.c.l.b16 %v647
        %v1080 = vunpack.c.h.b16 %v647
        %v1081 = vunpack.c.l.b16 %v648
        %v1082 = vunpack.c.h.b16 %v648
        %v1083 = vunpack.c.l.b16 %v649
        %v1084 = vunpack.c.h.b16 %v649
        %v1085 = vunpack.c.l.b16 %v650
        %v1086 = vunpack.c.h.b16 %v650
        %v1087 = vunpack.c.l.b16 %v651
        %v1088 = vunpack.c.h.b16 %v651
        %v1089 = vunpack.c.l.b16 %v652
        %v1090 = vunpack.c.h.b16 %v652
        %v1091 = vunpack.c.l.b16 %v653
        %v1092 = vunpack.c.h.b16 %v653
        %v1093 = vunpack.c.l.b16 %v654
        %v1094 = vunpack.c.h.b16 %v654
        %v1095 = vunpack.c.l.b16 %v655
        %v1096 = vunpack.c.h.b16 %v655
        %v1097 = vunpack.c.l.b16 %v656
        %v1098 = vunpack.c.h.b16 %v656
        %v1099 = vunpack.c.l.b16 %v657
        %v1100 = vunpack.c.h.b16 %v657
        %v1101 = vunpack.c.l.b16 %v658
        %v1102 = vunpack.c.h.b16 %v658
        %v1103 = vunpack.c.l.b16 %v659
        %v1104 = vunpack.c.h.b16 %v659
        %v1105 = vunpack.c.l.b16 %v660
        %v1106 = vunpack.c.h.b16 %v660
        %v1107 = vunpack.c.l.b16 %v661
        %v1108 = vunpack.c.h.b16 %v661
        %v1109 = vunpack.c.l.b16 %v662
        %v1110 = vunpack.c.h.b16 %v662
        %v1111 = vunpack.c.l.b16 %v663
        %v1112 = vunpack.c.h.b16 %v663
        %v1113 = vunpack.c.l.b16 %v664
        %v1114 = vunpack.c.h.b16 %v664
        %v1115 = vunpack.c.l.b16 %v665
        %v1116 = vunpack.c.h.b16 %v665
        %v1117 = vunpack.c.l.b16 %v666
        %v1118 = vunpack.c.h.b16 %v666
        %v1119 = vunpack.c.l.b16 %v667
        %v1120 = vunpack.c.h.b16 %v667
        %v1121 = vunpack.c.l.b16 %v668
        %v1122 = vunpack.c.h.b16 %v668
        %v1123 = vunpack.c.l.b16 %v669
        %v1124 = vunpack.c.h.b16 %v669
        %v1125 = vunpack.c.l.b16 %v670
        %v1126 = vunpack.c.h.b16 %v670
        %v1127 = vunpack.c.l.b16 %v671
        %v1128 = vunpack.c.h.b16 %v671
        %v1129 = vunpack.c.l.b16 %v672
        %v1130 = vunpack.c.h.b16 %v672
        %v1131 = vunpack.c.l.b16 %v673
        %v1132 = vunpack.c.h.b16 %v673
        %v1133 = vunpack.c.l.b16 %v674
        %v1134 = vunpack.c.h.b16 %v674
        %v1135 = vunpack.c.l.b16 %v675
        %v1136 = vunpack.c.h.b16 %v675
        %v1137 = vunpack.c.l.b16 %v676
        %v1138 = vunpack.c.h.b16 %v676
        %v1139 = vunpack.c.l.b16 %v677
        %v1140 = vunpack.c.h.b16 %v677
        %v1141 = vunpack.c.l.b16 %v678
        %v1142 = vunpack.c.h.b16 %v678
        %v1143 = vunpack.c.l.b16 %v679
        %v1144 = vunpack.c.h.b16 %v679
        %v1145 = vunpack.c.l.b16 %v680
        %v1146 = vunpack.c.h.b16 %v680
        %v1147 = vunpack.c.l.b16 %v681
        %v1148 = vunpack.c.h.b16 %v681
        %v1149 = vunpack.c.l.b16 %v682
        %v1150 = vunpack.c.h.b16 %v682
        %v1151 = vunpack.c.l.b16 %v683
        %v1152 = vunpack.c.h.b16 %v683
        %v1153 = vunpack.c.l.b16 %v684
        %v1154 = vunpack.c.h.b16 %v684
        %v1155 = vunpack.c.l.b16 %v685
        %v1156 = vunpack.c.h.b16 %v685
        %v1157 = vunpack.c.l.b16 %v686
        %v1158 = vunpack.c.h.b16 %v686
        %v1159 = vunpack.c.l.b16 %v687
        %v1160 = vunpack.c.h.b16 %v687
        %v1161 = vunpack.c.l.b16 %v688
        %v1162 = vunpack.c.h.b16 %v688
        %v1163 = vunpack.c.l.b16 %v689
        %v1164 = vunpack.c.h.b16 %v689
        %v1165 = vunpack.c.l.b16 %v690
        %v1166 = vunpack.c.h.b16 %v690
        %v1167 = vunpack.c.l.b16 %v691
        %v1168 = vunpack.c.h.b16 %v691
        %v1169 = vunpack.c.l.b16 %v692
        %v1170 = vunpack.c.h.b16 %v692
        %v1171 = vunpack.c.l.b16 %v693
        %v1172 = vunpack.c.h.b16 %v693
        %v1173 = vunpack.c.l.b16 %v694
        %v1174 = vunpack.c.h.b16 %v694
        %v1175 = vunpack.c.l.b16 %v695
        %v1176 = vunpack.c.h.b16 %v695
        %v1177 = vunpack.c.l.b16 %v696
        %v1178 = vunpack.c.h.b16 %v696
        %v1179 = vunpack.c.l.b16 %v697
        %v1180 = vunpack.c.h.b16 %v697
        %v1181 = vunpack.c.l.b16 %v698
        %v1182 = vunpack.c.h.b16 %v698
        %v1183 = vunpack.c.l.b16 %v699
        %v1184 = vunpack.c.h.b16 %v699
        %v1185 = vunpack.c.l.b16 %v700
        %v1186 = vunpack.c.h.b16 %v700
        %v1187 = vunpack.c.l.b16 %v701
        %v1188 = vunpack.c.h.b16 %v701
        %v1189 = vunpack.c.l.b16 %v702
        %v1190 = vunpack.c.h.b16 %v702
        %v1191 = vunpack.c.l.b16 %v703
        %v1192 = vunpack.c.h.b16 %v703
        %v1193 = vunpack.c.l.b16 %v704
        %v1194 = vunpack.c.h.b16 %v704
        %v1195 = vunpack.c.l.b16 %v705
        %v1196 = vunpack.c.h.b16 %v705
        %v1197 = vunpack.c.l.b16 %v706
        %v1198 = vunpack.c.h.b16 %v706
        %v1199 = vunpack.c.l.b16 %v707
        %v1200 = vunpack.c.h.b16 %v707
        %v1201 = vunpack.c.l.b16 %v708
        %v1202 = vunpack.c.h.b16 %v708
        %v1203 = vunpack.c.l.b16 %v709
        %v1204 = vunpack.c.h.b16 %v709
        %v1205 = vunpack.c.l.b16 %v710
        %v1206 = vunpack.c.h.b16 %v710
        %v1207 = vunpack.c.l.b16 %v711
        %v1208 = vunpack.c.h.b16 %v711
        %v1209 = vunpack.c.l.b16 %v712
        %v1210 = vunpack.c.h.b16 %v712
        %v1211 = vunpack.c.l.b16 %v713
        %v1212 = vunpack.c.h.b16 %v713
        %v1213 = vunpack.c.l.b16 %v714
        %v1214 = vunpack.c.h.b16 %v714
        %v1215 = vunpack.c.l.b16 %v715
        %v1216 = vunpack.c.h.b16 %v715
        %v1217 = vunpack.c.l.b16 %v716
        %v1218 = vunpack.c.h.b16 %v716
        %v1219 = vunpack.c.l.b16 %v717
        %v1220 = vunpack.c.h.b16 %v717
        %v1221 = vunpack.c.l.b16 %v718
        %v1222 = vunpack.c.h.b16 %v718
        %v1223 = vunpack.c.l.b16 %v719
        %v1224 = vunpack.c.h.b16 %v719
        %v1225 = vunpack.c.l.b16 %v720
        %v1226 = vunpack.c.h.b16 %v720
        %v1227 = vunpack.c.l.b16 %v721
        %v1228 = vunpack.c.h.b16 %v721
        %v1229 = vunpack.c.l.b16 %v722
        %v1230 = vunpack.c.h.b16 %v722
        %v1231 = vunpack.c.l.b16 %v723
        %v1232 = vunpack.c.h.b16 %v723
        %v1233 = vunpack.c.l.b16 %v724
        %v1234 = vunpack.c.h.b16 %v724
        %v1235 = vunpack.c.l.b16 %v725
        %v1236 = vunpack.c.h.b16 %v725
        %v1237 = vunpack.c.l.b16 %v726
        %v1238 = vunpack.c.h.b16 %v726
        %v1239 = vunpack.c.l.b16 %v727
        %v1240 = vunpack.c.h.b16 %v727
        %v1241 = vunpack.c.l.b16 %v728
        %v1242 = vunpack.c.h.b16 %v728
        %v1243 = vunpack.c.l.b16 %v729
        %v1244 = vunpack.c.h.b16 %v729
        %v1245 = vunpack.c.l.b16 %v730
        %v1246 = vunpack.c.h.b16 %v730
        %v1247 = vunpack.c.l.b16 %v731
        %v1248 = vunpack.c.h.b16 %v731
        %v1249 = vunpack.c.l.b16 %v732
        %v1250 = vunpack.c.h.b16 %v732
        %v1251 = vunpack.c.l.b16 %v733
        %v1252 = vunpack.c.h.b16 %v733
        %v1253 = vunpack.c.l.b16 %v734
        %v1254 = vunpack.c.h.b16 %v734
        %v1255 = vunpack.c.l.b16 %v735
        %v1256 = vunpack.c.h.b16 %v735
        %v1257 = vunpack.c.l.b16 %v736
        %v1258 = vunpack.c.h.b16 %v736
        %v1259 = vunpack.c.l.b16 %v737
        %v1260 = vunpack.c.h.b16 %v737
        %v1261 = vunpack.c.l.b16 %v738
        %v1262 = vunpack.c.h.b16 %v738
        %v1263 = vunpack.c.l.b16 %v739
        %v1264 = vunpack.c.h.b16 %v739
        %v1265 = vunpack.c.l.b16 %v740
        %v1266 = vunpack.c.h.b16 %v740
        %v1267 = vunpack.c.l.b16 %v741
        %v1268 = vunpack.c.h.b16 %v741
        %v1269 = vunpack.c.l.b16 %v742
        %v1270 = vunpack.c.h.b16 %v742
        %v1271 = vunpack.c.l.b16 %v743
        %v1272 = vunpack.c.h.b16 %v743
        %v1273 = vunpack.c.l.b16 %v744
        %v1274 = vunpack.c.h.b16 %v744
        %v1275 = vunpack.c.l.b16 %v745
        %v1276 = vunpack.c.h.b16 %v745
        %v1277 = vunpack.c.l.b16 %v746
        %v1278 = vunpack.c.h.b16 %v746
        %v1279 = vunpack.c.l.b16 %v747
        %v1280 = vunpack.c.h.b16 %v747
        %v1281 = vunpack.c.l.b16 %v748
        %v1282 = vunpack.c.h.b16 %v748
        %v1283 = vunpack.c.l.b16 %v749
        %v1284 = vunpack.c.h.b16 %v749
        %v1285 = vunpack.c.l.b16 %v750
        %v1286 = vunpack.c.h.b16 %v750
        %v1287 = vunpack.c.l.b16 %v751
        %v1288 = vunpack.c.h.b16 %v751
        %v1289 = vunpack.c.l.b16 %v752
        %v1290 = vunpack.c.h.b16 %v752
        %v1291 = vunpack.c.l.b16 %v753
        %v1292 = vunpack.c.h.b16 %v753
        %v1293 = vunpack.c.l.b16 %v754
        %v1294 = vunpack.c.h.b16 %v754
        %v1295 = vunpack.c.l.b16 %v755
        %v1296 = vunpack.c.h.b16 %v755
        %v1297 = vunpack.c.l.b16 %v756
        %v1298 = vunpack.c.h.b16 %v756
        %v1299 = vunpack.c.l.b16 %v757
        %v1300 = vunpack.c.h.b16 %v757
        %v1301 = vunpack.c.l.b16 %v758
        %v1302 = vunpack.c.h.b16 %v758
        %v1303 = vunpack.c.l.b16 %v759
        %v1304 = vunpack.c.h.b16 %v759
        %v1305 = vunpack.c.l.b16 %v760
        %v1306 = vunpack.c.h.b16 %v760
        %v1307 = vunpack.c.l.b16 %v761
        %v1308 = vunpack.c.h.b16 %v761
        %v1309 = vunpack.c.l.b16 %v762
        %v1310 = vunpack.c.h.b16 %v762
        %v1311 = vunpack.c.l.b16 %v763
        %v1312 = vunpack.c.h.b16 %v763
        %v1313 = vunpack.c.l.b16 %v764
        %v1314 = vunpack.c.h.b16 %v764
        %v1315 = vunpack.c.l.b16 %v765
        %v1316 = vunpack.c.h.b16 %v765
        %v1317 = vunpack.c.l.b16 %v766
        %v1318 = vunpack.c.h.b16 %v766
        %v1319 = vunpack.c.l.b16 %v767
        %v1320 = vunpack.c.h.b16 %v767
        %v1321 = vunpack.c.l.b16 %v768
        %v1322 = vunpack.c.h.b16 %v768
        %v1323 = vunpack.c.l.b16 %v769
        %v1324 = vunpack.c.h.b16 %v769
        %v1325 = vunpack.c.l.b16 %v770
        %v1326 = vunpack.c.h.b16 %v770
        %v1327 = vunpack.c.l.b16 %v771
        %v1328 = vunpack.c.h.b16 %v771
        %v1329 = vunpack.c.l.b16 %v772
        %v1330 = vunpack.c.h.b16 %v772
        %v1331 = vunpack.c.l.b16 %v773
        %v1332 = vunpack.c.h.b16 %v773
        %v1333 = vunpack.c.l.b16 %v774
        %v1334 = vunpack.c.h.b16 %v774
        %v1335 = vunpack.c.l.b16 %v775
        %v1336 = vunpack.c.h.b16 %v775
        %v1337 = vunpack.c.l.b16 %v776
        %v1338 = vunpack.c.h.b16 %v776
        %v1339 = vunpack.c.l.b16 %v777
        %v1340 = vunpack.c.h.b16 %v777
        %v1341 = vunpack.c.l.b16 %v778
        %v1342 = vunpack.c.h.b16 %v778
        %v1343 = vunpack.c.l.b16 %v779
        %v1344 = vunpack.c.h.b16 %v779
        %v1345 = vunpack.c.l.b16 %v780
        %v1346 = vunpack.c.h.b16 %v780
        %v1347 = vunpack.c.l.b16 %v781
        %v1348 = vunpack.c.h.b16 %v781
        %v1349 = vunpack.c.l.b16 %v782
        %v1350 = vunpack.c.h.b16 %v782
        %v1351 = vunpack.c.l.b16 %v783
        %v1352 = vunpack.c.h.b16 %v783
        %v1353 = vunpack.c.l.b16 %v784
        %v1354 = vunpack.c.h.b16 %v784
        %v1355 = vunpack.c.l.b16 %v785
        %v1356 = vunpack.c.h.b16 %v785
        %v1357 = vunpack.c.l.b16 %v786
        %v1358 = vunpack.c.h.b16 %v786
        %v1359 = vunpack.c.l.b16 %v787
        %v1360 = vunpack.c.h.b16 %v787
        %v1361 = vunpack.c.l.b16 %v788
        %v1362 = vunpack.c.h.b16 %v788
        %v1363 = vunpack.c.l.b16 %v789
        %v1364 = vunpack.c.h.b16 %v789
        %v1365 = vunpack.c.l.b16 %v790
        %v1366 = vunpack.c.h.b16 %v790
        %v1367 = vunpack.c.l.b16 %v791
        %v1368 = vunpack.c.h.b16 %v791
        %v1369 = vunpack.c.l.b16 %v792
        %v1370 = vunpack.c.h.b16 %v792
        %v1371 = vunpack.c.l.b16 %v793
        %v1372 = vunpack.c.h.b16 %v793
        %v1373 = vunpack.c.l.b16 %v794
        %v1374 = vunpack.c.h.b16 %v794
        %v1375 = vunpack.c.l.b16 %v795
        %v1376 = vunpack.c.h.b16 %v795
        %v1377 = vunpack.c.l.b16 %v796
        %v1378 = vunpack.c.h.b16 %v796
        %v1379 = vunpack.c.l.b16 %v797
        %v1380 = vunpack.c.h.b16 %v797
        %v1381 = vunpack.c.l.b16 %v798
        %v1382 = vunpack.c.h.b16 %v798
        %v1383 = vunpack.c.l.b16 %v799
        %v1384 = vunpack.c.h.b16 %v799
        %v1385 = vunpack.c.l.b16 %v800
        %v1386 = vunpack.c.h.b16 %v800
        %v1387 = vunpack.c.l.b16 %v801
        %v1388 = vunpack.c.h.b16 %v801
        %v1389 = vunpack.c.l.b16 %v802
        %v1390 = vunpack.c.h.b16 %v802
        %v1391 = vunpack.c.l.b16 %v803
        %v1392 = vunpack.c.h.b16 %v803
        %v1393 = vunpack.c.l.b16 %v804
        %v1394 = vunpack.c.h.b16 %v804
        %v1395 = vunpack.c.l.b16 %v805
        %v1396 = vunpack.c.h.b16 %v805
        %v1397 = vunpack.c.l.b16 %v806
        %v1398 = vunpack.c.h.b16 %v806
        %v1399 = vunpack.c.l.b16 %v807
        %v1400 = vunpack.c.h.b16 %v807
        %v1401 = vunpack.c.l.b16 %v808
        %v1402 = vunpack.c.h.b16 %v808
        %v1403 = vunpack.c.l.b16 %v809
        %v1404 = vunpack.c.h.b16 %v809
        %v1405 = vunpack.c.l.b16 %v810
        %v1406 = vunpack.c.h.b16 %v810
        %v1407 = vunpack.c.l.b16 %v811
        %v1408 = vunpack.c.h.b16 %v811
        %v1409 = vunpack.c.l.b16 %v812
        %v1410 = vunpack.c.h.b16 %v812
        %v1411 = vpack.c.b16 %v1031, %v1027
        %v1412 = vpack.c.b16 %v1032, %v1028
        %v1413 = vpack.c.b16 %v1033, %v1029
        %v1414 = vpack.c.b16 %v1034, %v1030
        %v1415 = vpack.c.b16 %v1039, %v1035
        %v1416 = vpack.c.b16 %v1040, %v1036
        %v1417 = vpack.c.b16 %v1041, %v1037
        %v1418 = vpack.c.b16 %v1042, %v1038
        %v1419 = vpack.c.b16 %v1047, %v1043
        %v1420 = vpack.c.b16 %v1048, %v1044
        %v1421 = vpack.c.b16 %v1049, %v1045
        %v1422 = vpack.c.b16 %v1050, %v1046
        %v1423 = vpack.c.b16 %v1055, %v1051
        %v1424 = vpack.c.b16 %v1056, %v1052
        %v1425 = vpack.c.b16 %v1057, %v1053
        %v1426 = vpack.c.b16 %v1058, %v1054
        %v1427 = vpack.c.b16 %v1063, %v1059
        %v1428 = vpack.c.b16 %v1064, %v1060
        %v1429 = vpack.c.b16 %v1065, %v1061
        %v1430 = vpack.c.b16 %v1066, %v1062
        %v1431 = vpack.c.b16 %v1071, %v1067
        %v1432 = vpack.c.b16 %v1072, %v1068
        %v1433 = vpack.c.b16 %v1073, %v1069
        %v1434 = vpack.c.b16 %v1074, %v1070
        %v1435 = vpack.c.b16 %v1079, %v1075
        %v1436 = vpack.c.b16 %v1080, %v1076
        %v1437 = vpack.c.b16 %v1081, %v1077
        %v1438 = vpack.c.b16 %v1082, %v1078
        %v1439 = vpack.c.b16 %v1087, %v1083
        %v1440 = vpack.c.b16 %v1088, %v1084
        %v1441 = vpack.c.b16 %v1089, %v1085
        %v1442 = vpack.c.b16 %v1090, %v1086
        %v1443 = vpack.c.b16 %v1095, %v1091
        %v1444 = vpack.c.b16 %v1096, %v1092
        %v1445 = vpack.c.b16 %v1097, %v1093
        %v1446 = vpack.c.b16 %v1098, %v1094
        %v1447 = vpack.c.b16 %v1103, %v1099
        %v1448 = vpack.c.b16 %v1104, %v1100
        %v1449 = vpack.c.b16 %v1105, %v1101
        %v1450 = vpack.c.b16 %v1106, %v1102
        %v1451 = vpack.c.b16 %v1111, %v1107
        %v1452 = vpack.c.b16 %v1112, %v1108
        %v1453 = vpack.c.b16 %v1113, %v1109
        %v1454 = vpack.c.b16 %v1114, %v1110
        %v1455 = vpack.c.b16 %v1119, %v1115
        %v1456 = vpack.c.b16 %v1120, %v1116
        %v1457 = vpack.c.b16 %v1121, %v1117
        %v1458 = vpack.c.b16 %v1122, %v1118
        %v1459 = vpack.c.b16 %v1127, %v1123
        %v1460 = vpack.c.b16 %v1128, %v1124
        %v1461 = vpack.c.b16 %v1129, %v1125
        %v1462 = vpack.c.b16 %v1130, %v1126
        %v1463 = vpack.c.b16 %v1135, %v1131
        %v1464 = vpack.c.b16 %v1136, %v1132
        %v1465 = vpack.c.b16 %v1137, %v1133
        %v1466 = vpack.c.b16 %v1138, %v1134
        %v1467 = vpack.c.b16 %v1143, %v1139
        %v1468 = vpack.c.b16 %v1144, %v1140
        %v1469 = vpack.c.b16 %v1145, %v1141
        %v1470 = vpack.c.b16 %v1146, %v1142
        %v1471 = vpack.c.b16 %v1151, %v1147
        %v1472 = vpack.c.b16 %v1152, %v1148
        %v1473 = vpack.c.b16 %v1153, %v1149
        %v1474 = vpack.c.b16 %v1154, %v1150
        %v1475 = vpack.c.b16 %v1159, %v1155
        %v1476 = vpack.c.b16 %v1160, %v1156
        %v1477 = vpack.c.b16 %v1161, %v1157
        %v1478 = vpack.c.b16 %v1162, %v1158
        %v1479 = vpack.c.b16 %v1167, %v1163
        %v1480 = vpack.c.b16 %v1168, %v1164
        %v1481 = vpack.c.b16 %v1169, %v1165
        %v1482 = vpack.c.b16 %v1170, %v1166
        %v1483 = vpack.c.b16 %v1175, %v1171
        %v1484 = vpack.c.b16 %v1176, %v1172
        %v1485 = vpack.c.b16 %v1177, %v1173
        %v1486 = vpack.c.b16 %v1178, %v1174
        %v1487 = vpack.c.b16 %v1183, %v1179
        %v1488 = vpack.c.b16 %v1184, %v1180
        %v1489 = vpack.c.b16 %v1185, %v1181
        %v1490 = vpack.c.b16 %v1186, %v1182
        %v1491 = vpack.c.b16 %v1191, %v1187
        %v1492 = vpack.c.b16 %v1192, %v1188
        %v1493 = vpack.c.b16 %v1193, %v1189
        %v1494 = vpack.c.b16 %v1194, %v1190
        %v1495 = vpack.c.b16 %v1199, %v1195
        %v1496 = vpack.c.b16 %v1200, %v1196
        %v1497 = vpack.c.b16 %v1201, %v1197
        %v1498 = vpack.c.b16 %v1202, %v1198
        %v1499 = vpack.c.b16 %v1207, %v1203
        %v1500 = vpack.c.b16 %v1208, %v1204
        %v1501 = vpack.c.b16 %v1209, %v1205
        %v1502 = vpack.c.b16 %v1210, %v1206
        %v1503 = vpack.c.b16 %v1215, %v1211
        %v1504 = vpack.c.b16 %v1216, %v1212
        %v1505 = vpack.c.b16 %v1217, %v1213
        %v1506 = vpack.c.b16 %v1218, %v1214
        %v1507 = vpack.c.b16 %v1223, %v1219
        %v1508 = vpack.c.b16 %v1224, %v1220
        %v1509 = vpack.c.b16 %v1225, %v1221
        %v1510 = vpack.c.b16 %v1226, %v1222
        %v1511 = vpack.c.b16 %v1231, %v1227
        %v1512 = vpack.c.b16 %v1232, %v1228
        %v1513 = vpack.c.b16 %v1233, %v1229
        %v1514 = vpack.c.b16 %v1234, %v1230
        %v1515 = vpack.c.b16 %v1239, %v1235
        %v1516 = vpack.c.b16 %v1240, %v1236
        %v1517 = vpack.c.b16 %v1241, %v1237
        %v1518 = vpack.c.b16 %v1242, %v1238
        %v1519 = vpack.c.b16 %v1247, %v1243
        %v1520 = vpack.c.b16 %v1248, %v1244
        %v1521 = vpack.c.b16 %v1249, %v1245
        %v1522 = vpack.c.b16 %v1250, %v1246
        %v1523 = vpack.c.b16 %v1255, %v1251
        %v1524 = vpack.c.b16 %v1256, %v1252
        %v1525 = vpack.c.b16 %v1257, %v1253
        %v1526 = vpack.c.b16 %v1258, %v1254
        %v1527 = vpack.c.b16 %v1263, %v1259
        %v1528 = vpack.c.b16 %v1264, %v1260
        %v1529 = vpack.c.b16 %v1265, %v1261
        %v1530 = vpack.c.b16 %v1266, %v1262
        %v1531 = vpack.c.b16 %v1271, %v1267
        %v1532 = vpack.c.b16 %v1272, %v1268
        %v1533 = vpack.c.b16 %v1273, %v1269
        %v1534 = vpack.c.b16 %v1274, %v1270
        %v1535 = vpack.c.b16 %v1279, %v1275
        %v1536 = vpack.c.b16 %v1280, %v1276
        %v1537 = vpack.c.b16 %v1281, %v1277
        %v1538 = vpack.c.b16 %v1282, %v1278
        %v1539 = vpack.c.b16 %v1287, %v1283
        %v1540 = vpack.c.b16 %v1288, %v1284
        %v1541 = vpack.c.b16 %v1289, %v1285
        %v1542 = vpack.c.b16 %v1290, %v1286
        %v1543 = vpack.c.b16 %v1295, %v1291
        %v1544 = vpack.c.b16 %v1296, %v1292
        %v1545 = vpack.c.b16 %v1297, %v1293
        %v1546 = vpack.c.b16 %v1298, %v1294
        %v1547 = vpack.c.b16 %v1303, %v1299
        %v1548 = vpack.c.b16 %v1304, %v1300
        %v1549 = vpack.c.b16 %v1305, %v1301
        %v1550 = vpack.c.b16 %v1306, %v1302
        %v1551 = vpack.c.b16 %v1311, %v1307
        %v1552 = vpack.c.b16 %v1312, %v1308
        %v1553 = vpack.c.b16 %v1313, %v1309
        %v1554 = vpack.c.b16 %v1314, %v1310
        %v1555 = vpack.c.b16 %v1319, %v1315
        %v1556 = vpack.c.b16 %v1320, %v1316
        %v1557 = vpack.c.b16 %v1321, %v1317
        %v1558 = vpack.c.b16 %v1322, %v1318
        %v1559 = vpack.c.b16 %v1327, %v1323
        %v1560 = vpack.c.b16 %v1328, %v1324
        %v1561 = vpack.c.b16 %v1329, %v1325
        %v1562 = vpack.c.b16 %v1330, %v1326
        %v1563 = vpack.c.b16 %v1335, %v1331
        %v1564 = vpack.c.b16 %v1336, %v1332
        %v1565 = vpack.c.b16 %v1337, %v1333
        %v1566 = vpack.c.b16 %v1338, %v1334
        %v1567 = vpack.c.b16 %v1343, %v1339
        %v1568 = vpack.c.b16 %v1344, %v1340
        %v1569 = vpack.c.b16 %v1345, %v1341
        %v1570 = vpack.c.b16 %v1346, %v1342
        %v1571 = vpack.c.b16 %v1351, %v1347
        %v1572 = vpack.c.b16 %v1352, %v1348
        %v1573 = vpack.c.b16 %v1353, %v1349
        %v1574 = vpack.c.b16 %v1354, %v1350
        %v1575 = vpack.c.b16 %v1359, %v1355
        %v1576 = vpack.c.b16 %v1360, %v1356
        %v1577 = vpack.c.b16 %v1361, %v1357
        %v1578 = vpack.c.b16 %v1362, %v1358
        %v1579 = vpack.c.b16 %v1367, %v1363
        %v1580 = vpack.c.b16 %v1368, %v1364
        %v1581 = vpack.c.b16 %v1369, %v1365
        %v1582 = vpack.c.b16 %v1370, %v1366
        %v1583 = vpack.c.b16 %v1375, %v1371
        %v1584 = vpack.c.b16 %v1376, %v1372
        %v1585 = vpack.c.b16 %v1377, %v1373
        %v1586 = vpack.c.b16 %v1378, %v1374
        %v1587 = vpack.c.b16 %v1383, %v1379
        %v1588 = vpack.c.b16 %v1384, %v1380
        %v1589 = vpack.c.b16 %v1385, %v1381
        %v1590 = vpack.c.b16 %v1386, %v1382
        %v1591 = vpack.c.b16 %v1391, %v1387
        %v1592 = vpack.c.b16 %v1392, %v1388
        %v1593 = vpack.c.b16 %v1393, %v1389
        %v1594 = vpack.c.b16 %v1394, %v1390
        %v1595 = vpack.c.b16 %v1399, %v1395
        %v1596 = vpack.c.b16 %v1400, %v1396
        %v1597 = vpack.c.b16 %v1401, %v1397
        %v1598 = vpack.c.b16 %v1402, %v1398
        %v1599 = vpack.c.b16 %v1407, %v1403
        %v1600 = vpack.c.b16 %v1408, %v1404
        %v1601 = vpack.c.b16 %v1409, %v1405
        %v1602 = vpack.c.b16 %v1410, %v1406
        %1795 = vmatprep.subr.bf16.mxu0 %v1440
        %1796 = vmatpush1.bf16.msra.mxu0 %v1439
        %1797 = vmatprep.subr.bf16.mxu0 %v1436
        %1798 = vmatpush1.bf16.msra.mxu0 %v1435
        %1799 = vmatprep.subr.bf16.mxu0 %v1432
        %1800 = vmatpush1.bf16.msra.mxu0 %v1431
        %1801 = vmatprep.subr.bf16.mxu0 %v1428
        %1802 = vmatpush1.bf16.msra.mxu0 %v1427
        %1803 = vmatprep.subr.bf16.mxu0 %v1424
        %1804 = vmatpush1.bf16.msra.mxu0 %v1423
        %1805 = vmatprep.subr.bf16.mxu0 %v1420
        %1806 = vmatpush1.bf16.msra.mxu0 %v1419
        %1807 = vmatprep.subr.bf16.mxu0 %v1416
        %1808 = vmatpush1.bf16.msra.mxu0 %v1415
        %1809 = vmatprep.subr.bf16.mxu0 %v1412
        %1810 = vmatpush1.bf16.msra.mxu0 %v1411
        %1811 = vmatprep.subr.bf16.mxu0 %v1472
        %1812 = vmatpush2.bf16.msra.mxu0 %v1471
        %1813 = vmatprep.subr.bf16.mxu0 %v1468
        %1814 = vmatpush2.bf16.msra.mxu0 %v1467
        %1815 = vmatprep.subr.bf16.mxu0 %v1464
        %1816 = vmatpush2.bf16.msra.mxu0 %v1463
        %1817 = vmatprep.subr.bf16.mxu0 %v1460
        %1818 = vmatpush2.bf16.msra.mxu0 %v1459
        %1819 = vmatprep.subr.bf16.mxu0 %v1456
        %1820 = vmatpush2.bf16.msra.mxu0 %v1455
        %1821 = vmatprep.subr.bf16.mxu0 %v1452
        %1822 = vmatpush2.bf16.msra.mxu0 %v1451
        %1823 = vmatprep.subr.bf16.mxu0 %v1448
        %1824 = vmatpush2.bf16.msra.mxu0 %v1447
        %1825 = vmatprep.subr.bf16.mxu0 %v1444
        %1826 = vmatpush2.bf16.msra.mxu0 %v1443
        %1827 = vmatprep.mubr.bf16.mxu0 %v611
        %1828 = vmatmul.mubr.bf16.gmra.mxu0 %v610
        %v1829 = vpop.f32.mrf.mxu0
        %v1830 = vadd.f32 %v818, %v1829
        %v1831 = vpop.f32.mrf.mxu0
        %v1832 = vadd.f32 %v822, %v1831
        %v1833 = vpop.f32.mrf.mxu0
        %v1834 = vpop.f32.mrf.mxu0
        %1835 = vdwg.mxu0
        %1836 = vmatprep.subr.bf16.mxu0 %v1504
        %1837 = vmatpush1.bf16.msra.mxu0 %v1503
        %1838 = vmatprep.subr.bf16.mxu0 %v1500
        %1839 = vmatpush1.bf16.msra.mxu0 %v1499
        %1840 = vmatprep.subr.bf16.mxu0 %v1496
        %1841 = vmatpush1.bf16.msra.mxu0 %v1495
        %1842 = vmatprep.subr.bf16.mxu0 %v1492
        %1843 = vmatpush1.bf16.msra.mxu0 %v1491
        %1844 = vmatprep.subr.bf16.mxu0 %v1488
        %1845 = vmatpush1.bf16.msra.mxu0 %v1487
        %1846 = vmatprep.subr.bf16.mxu0 %v1484
        %1847 = vmatpush1.bf16.msra.mxu0 %v1483
        %1848 = vmatprep.subr.bf16.mxu0 %v1480
        %1849 = vmatpush1.bf16.msra.mxu0 %v1479
        %1850 = vmatprep.subr.bf16.mxu0 %v1476
        %1851 = vmatpush1.bf16.msra.mxu0 %v1475
        %1852 = vmatprep.subr.bf16.mxu0 %v1536
        %1853 = vmatpush2.bf16.msra.mxu0 %v1535
        %1854 = vmatprep.subr.bf16.mxu0 %v1532
        %1855 = vmatpush2.bf16.msra.mxu0 %v1531
        %1856 = vmatprep.subr.bf16.mxu0 %v1528
        %1857 = vmatpush2.bf16.msra.mxu0 %v1527
        %1858 = vmatprep.subr.bf16.mxu0 %v1524
        %1859 = vmatpush2.bf16.msra.mxu0 %v1523
        %1860 = vmatprep.subr.bf16.mxu0 %v1520
        %1861 = vmatpush2.bf16.msra.mxu0 %v1519
        %1862 = vmatprep.subr.bf16.mxu0 %v1516
        %1863 = vmatpush2.bf16.msra.mxu0 %v1515
        %1864 = vmatprep.subr.bf16.mxu0 %v1512
        %1865 = vmatpush2.bf16.msra.mxu0 %v1511
        %1866 = vmatprep.subr.bf16.mxu0 %v1508
        %1867 = vmatpush2.bf16.msra.mxu0 %v1507
        %1868 = vmatprep.mubr.bf16.mxu0 %v618
        %1869 = vmatmul.mubr.bf16.gmra.mxu0 %v617
        %v1870 = vpop.f32.mrf.mxu0
        %v1871 = vadd.f32 %v1830, %v1870
        %v1872 = vpop.f32.mrf.mxu0
        %v1873 = vadd.f32 %v1832, %v1872
        %v1874 = vpop.f32.mrf.mxu0
        %v1875 = vpop.f32.mrf.mxu0
        %1876 = vdwg.mxu0
        %1877 = vmatprep.subr.bf16.mxu0 %v1568
        %1878 = vmatpush1.bf16.msra.mxu0 %v1567
        %1879 = vmatprep.subr.bf16.mxu0 %v1564
        %1880 = vmatpush1.bf16.msra.mxu0 %v1563
        %1881 = vmatprep.subr.bf16.mxu0 %v1560
        %1882 = vmatpush1.bf16.msra.mxu0 %v1559
        %1883 = vmatprep.subr.bf16.mxu0 %v1556
        %1884 = vmatpush1.bf16.msra.mxu0 %v1555
        %1885 = vmatprep.subr.bf16.mxu0 %v1552
        %1886 = vmatpush1.bf16.msra.mxu0 %v1551
        %1887 = vmatprep.subr.bf16.mxu0 %v1548
        %1888 = vmatpush1.bf16.msra.mxu0 %v1547
        %1889 = vmatprep.subr.bf16.mxu0 %v1544
        %1890 = vmatpush1.bf16.msra.mxu0 %v1543
        %1891 = vmatprep.subr.bf16.mxu0 %v1540
        %1892 = vmatpush1.bf16.msra.mxu0 %v1539
        %1893 = vmatprep.subr.bf16.mxu0 %v1600
        %1894 = vmatpush2.bf16.msra.mxu0 %v1599
        %1895 = vmatprep.subr.bf16.mxu0 %v1596
        %1896 = vmatpush2.bf16.msra.mxu0 %v1595
        %1897 = vmatprep.subr.bf16.mxu0 %v1592
        %1898 = vmatpush2.bf16.msra.mxu0 %v1591
        %1899 = vmatprep.subr.bf16.mxu0 %v1588
        %1900 = vmatpush2.bf16.msra.mxu0 %v1587
        %1901 = vmatprep.subr.bf16.mxu0 %v1584
        %1902 = vmatpush2.bf16.msra.mxu0 %v1583
        %1903 = vmatprep.subr.bf16.mxu0 %v1580
        %1904 = vmatpush2.bf16.msra.mxu0 %v1579
        %1905 = vmatprep.subr.bf16.mxu0 %v1576
        %1906 = vmatpush2.bf16.msra.mxu0 %v1575
        %1907 = vmatprep.subr.bf16.mxu0 %v1572
        %1908 = vmatpush2.bf16.msra.mxu0 %v1571
        %1909 = vmatprep.mubr.bf16.mxu0 %v613
        %1910 = vmatmul.mubr.bf16.gmra.mxu0 %v612
        %v1911 = vpop.f32.mrf.mxu0
        %v1912 = vadd.f32 %v1871, %v1911
        %v1913 = vpop.f32.mrf.mxu0
        %v1914 = vadd.f32 %v1873, %v1913
        %v1915 = vpop.f32.mrf.mxu0
        %v1916 = vpop.f32.mrf.mxu0
        %1917 = vdwg.mxu0
        %1918 = vmatprep.subr.bf16.mxu0 %v1442
        %1919 = vmatpush1.bf16.msra.mxu0 %v1441
        %1920 = vmatprep.subr.bf16.mxu0 %v1438
        %1921 = vmatpush1.bf16.msra.mxu0 %v1437
        %1922 = vmatprep.subr.bf16.mxu0 %v1434
        %1923 = vmatpush1.bf16.msra.mxu0 %v1433
        %1924 = vmatprep.subr.bf16.mxu0 %v1430
        %1925 = vmatpush1.bf16.msra.mxu0 %v1429
        %1926 = vmatprep.subr.bf16.mxu0 %v1426
        %1927 = vmatpush1.bf16.msra.mxu0 %v1425
        %1928 = vmatprep.subr.bf16.mxu0 %v1422
        %1929 = vmatpush1.bf16.msra.mxu0 %v1421
        %1930 = vmatprep.subr.bf16.mxu0 %v1418
        %1931 = vmatpush1.bf16.msra.mxu0 %v1417
        %1932 = vmatprep.subr.bf16.mxu0 %v1414
        %1933 = vmatpush1.bf16.msra.mxu0 %v1413
        %1934 = vmatprep.subr.bf16.mxu0 %v1474
        %1935 = vmatpush2.bf16.msra.mxu0 %v1473
        %1936 = vmatprep.subr.bf16.mxu0 %v1470
        %1937 = vmatpush2.bf16.msra.mxu0 %v1469
        %1938 = vmatprep.subr.bf16.mxu0 %v1466
        %1939 = vmatpush2.bf16.msra.mxu0 %v1465
        %1940 = vmatprep.subr.bf16.mxu0 %v1462
        %1941 = vmatpush2.bf16.msra.mxu0 %v1461
        %1942 = vmatprep.subr.bf16.mxu0 %v1458
        %1943 = vmatpush2.bf16.msra.mxu0 %v1457
        %1944 = vmatprep.subr.bf16.mxu0 %v1454
        %1945 = vmatpush2.bf16.msra.mxu0 %v1453
        %1946 = vmatprep.subr.bf16.mxu0 %v1450
        %1947 = vmatpush2.bf16.msra.mxu0 %v1449
        %1948 = vmatprep.subr.bf16.mxu0 %v1446
        %1949 = vmatpush2.bf16.msra.mxu0 %v1445
        %1950 = vmatprep.mubr.bf16.mxu0 %v611
        %1951 = vmatmul.mubr.bf16.gmra.mxu0 %v610
        %v1952 = vpop.f32.mrf.mxu0
        %v1953 = vadd.f32 %v826, %v1952
        %v1954 = vpop.f32.mrf.mxu0
        %v1955 = vadd.f32 %v830, %v1954
        %v1956 = vpop.f32.mrf.mxu0
        %v1957 = vpop.f32.mrf.mxu0
        %1958 = vdwg.mxu0
        %1959 = vmatprep.subr.bf16.mxu0 %v1506
        %1960 = vmatpush1.bf16.msra.mxu0 %v1505
        %1961 = vmatprep.subr.bf16.mxu0 %v1502
        %1962 = vmatpush1.bf16.msra.mxu0 %v1501
        %1963 = vmatprep.subr.bf16.mxu0 %v1498
        %1964 = vmatpush1.bf16.msra.mxu0 %v1497
        %1965 = vmatprep.subr.bf16.mxu0 %v1494
        %1966 = vmatpush1.bf16.msra.mxu0 %v1493
        %1967 = vmatprep.subr.bf16.mxu0 %v1490
        %1968 = vmatpush1.bf16.msra.mxu0 %v1489
        %1969 = vmatprep.subr.bf16.mxu0 %v1486
        %1970 = vmatpush1.bf16.msra.mxu0 %v1485
        %1971 = vmatprep.subr.bf16.mxu0 %v1482
        %1972 = vmatpush1.bf16.msra.mxu0 %v1481
        %1973 = vmatprep.subr.bf16.mxu0 %v1478
        %1974 = vmatpush1.bf16.msra.mxu0 %v1477
        %1975 = vmatprep.subr.bf16.mxu0 %v1538
        %1976 = vmatpush2.bf16.msra.mxu0 %v1537
        %1977 = vmatprep.subr.bf16.mxu0 %v1534
        %1978 = vmatpush2.bf16.msra.mxu0 %v1533
        %1979 = vmatprep.subr.bf16.mxu0 %v1530
        %1980 = vmatpush2.bf16.msra.mxu0 %v1529
        %1981 = vmatprep.subr.bf16.mxu0 %v1526
        %1982 = vmatpush2.bf16.msra.mxu0 %v1525
        %1983 = vmatprep.subr.bf16.mxu0 %v1522
        %1984 = vmatpush2.bf16.msra.mxu0 %v1521
        %1985 = vmatprep.subr.bf16.mxu0 %v1518
        %1986 = vmatpush2.bf16.msra.mxu0 %v1517
        %1987 = vmatprep.subr.bf16.mxu0 %v1514
        %1988 = vmatpush2.bf16.msra.mxu0 %v1513
        %1989 = vmatprep.subr.bf16.mxu0 %v1510
        %1990 = vmatpush2.bf16.msra.mxu0 %v1509
        %1991 = vmatprep.mubr.bf16.mxu0 %v618
        %1992 = vmatmul.mubr.bf16.gmra.mxu0 %v617
        %v1993 = vpop.f32.mrf.mxu0
        %v1994 = vadd.f32 %v1953, %v1993
        %v1995 = vpop.f32.mrf.mxu0
        %v1996 = vadd.f32 %v1955, %v1995
        %v1997 = vpop.f32.mrf.mxu0
        %v1998 = vpop.f32.mrf.mxu0
        %1999 = vdwg.mxu0
        %2000 = vmatprep.subr.bf16.mxu0 %v1570
        %2001 = vmatpush1.bf16.msra.mxu0 %v1569
        %2002 = vmatprep.subr.bf16.mxu0 %v1566
        %2003 = vmatpush1.bf16.msra.mxu0 %v1565
        %2004 = vmatprep.subr.bf16.mxu0 %v1562
        %2005 = vmatpush1.bf16.msra.mxu0 %v1561
        %2006 = vmatprep.subr.bf16.mxu0 %v1558
        %2007 = vmatpush1.bf16.msra.mxu0 %v1557
        %2008 = vmatprep.subr.bf16.mxu0 %v1554
        %2009 = vmatpush1.bf16.msra.mxu0 %v1553
        %2010 = vmatprep.subr.bf16.mxu0 %v1550
        %2011 = vmatpush1.bf16.msra.mxu0 %v1549
        %2012 = vmatprep.subr.bf16.mxu0 %v1546
        %2013 = vmatpush1.bf16.msra.mxu0 %v1545
        %2014 = vmatprep.subr.bf16.mxu0 %v1542
        %2015 = vmatpush1.bf16.msra.mxu0 %v1541
        %2016 = vmatprep.subr.bf16.mxu0 %v1602
        %2017 = vmatpush2.bf16.msra.mxu0 %v1601
        %2018 = vmatprep.subr.bf16.mxu0 %v1598
        %2019 = vmatpush2.bf16.msra.mxu0 %v1597
        %2020 = vmatprep.subr.bf16.mxu0 %v1594
        %2021 = vmatpush2.bf16.msra.mxu0 %v1593
        %2022 = vmatprep.subr.bf16.mxu0 %v1590
        %2023 = vmatpush2.bf16.msra.mxu0 %v1589
        %2024 = vmatprep.subr.bf16.mxu0 %v1586
        %2025 = vmatpush2.bf16.msra.mxu0 %v1585
        %2026 = vmatprep.subr.bf16.mxu0 %v1582
        %2027 = vmatpush2.bf16.msra.mxu0 %v1581
        %2028 = vmatprep.subr.bf16.mxu0 %v1578
        %2029 = vmatpush2.bf16.msra.mxu0 %v1577
        %2030 = vmatprep.subr.bf16.mxu0 %v1574
        %2031 = vmatpush2.bf16.msra.mxu0 %v1573
        %2032 = vmatprep.mubr.bf16.mxu0 %v613
        %2033 = vmatmul.mubr.bf16.gmra.mxu0 %v612
        %v2034 = vpop.f32.mrf.mxu0
        %v2035 = vadd.f32 %v1994, %v2034
        %v2036 = vpop.f32.mrf.mxu0
        %v2037 = vadd.f32 %v1996, %v2036
        %v2038 = vpop.f32.mrf.mxu0
        %v2039 = vpop.f32.mrf.mxu0
        %2040 = vdwg.mxu0
        %v2041 = vmax.f32 %v1912, 0.0
        %v2042 = vmax.f32 %v1914, 0.0
        %v2043 = vmax.f32 %v2035, 0.0
        %v2044 = vmax.f32 %v2037, 0.0
        %v2045 = vpack.c.bf16 %v2041, %v2041
        %v2046 = vpack.c.bf16 %v2042, %v2042
        %v2047 = vpack.c.bf16 %v2043, %v2043
        %v2048 = vpack.c.bf16 %v2044, %v2044
        %v2049 = vld [vmem:[#allocation11] sm:$0xf]
        %v2050 = vld [vmem:[#allocation11 + $0x4] sm:$0xf]
        %v2051 = vld [vmem:[#allocation11 + $0x8] sm:$0xf]
        %v2052 = vld [vmem:[#allocation11 + $0xc] sm:$0xf]
        %v2053 = vld [vmem:[#allocation11 + $0x10] sm:$0xf]
        %v2054 = vld [vmem:[#allocation11 + $0x14] sm:$0xf]
        %v2055 = vld [vmem:[#allocation11 + $0x18] sm:$0xf]
        %v2056 = vld [vmem:[#allocation11 + $0x1c] sm:$0xf]
        %v2057 = vld [vmem:[#allocation11 + $0x20] sm:$0xf]
        %v2058 = vld [vmem:[#allocation11 + $0x24] sm:$0xf]
        %v2059 = vld [vmem:[#allocation11 + $0x28] sm:$0xf]
        %v2060 = vld [vmem:[#allocation11 + $0x2c] sm:$0xf]
        %v2061 = vld [vmem:[#allocation11 + $0x30] sm:$0xf]
        %v2062 = vld [vmem:[#allocation11 + $0x34] sm:$0xf]
        %v2063 = vld [vmem:[#allocation11 + $0x38] sm:$0xf]
        %v2064 = vld [vmem:[#allocation11 + $0x3c] sm:$0xf]
        %v2065 = vld [vmem:[#allocation11 + $0x40] sm:$0xf]
        %v2066 = vld [vmem:[#allocation11 + $0x44] sm:$0xf]
        %v2067 = vld [vmem:[#allocation11 + $0x48] sm:$0xf]
        %v2068 = vld [vmem:[#allocation11 + $0x4c] sm:$0xf]
        %v2069 = vld [vmem:[#allocation11 + $0x50] sm:$0xf]
        %v2070 = vld [vmem:[#allocation11 + $0x54] sm:$0xf]
        %v2071 = vld [vmem:[#allocation11 + $0x58] sm:$0xf]
        %v2072 = vld [vmem:[#allocation11 + $0x5c] sm:$0xf]
        %v2073 = vld [vmem:[#allocation11 + $0x60] sm:$0xf]
        %v2074 = vld [vmem:[#allocation11 + $0x64] sm:$0xf]
        %v2075 = vld [vmem:[#allocation11 + $0x68] sm:$0xf]
        %v2076 = vld [vmem:[#allocation11 + $0x6c] sm:$0xf]
        %v2077 = vld [vmem:[#allocation11 + $0x70] sm:$0xf]
        %v2078 = vld [vmem:[#allocation11 + $0x74] sm:$0xf]
        %v2079 = vld [vmem:[#allocation11 + $0x78] sm:$0xf]
        %v2080 = vld [vmem:[#allocation11 + $0x7c] sm:$0xf]
        %v2081 = vld [vmem:[#allocation11 + $0x80] sm:$0xf]
        %v2082 = vld [vmem:[#allocation11 + $0x84] sm:$0xf]
        %v2083 = vld [vmem:[#allocation11 + $0x88] sm:$0xf]
        %v2084 = vld [vmem:[#allocation11 + $0x8c] sm:$0xf]
        %v2085 = vld [vmem:[#allocation11 + $0x90] sm:$0xf]
        %v2086 = vld [vmem:[#allocation11 + $0x94] sm:$0xf]
        %v2087 = vld [vmem:[#allocation11 + $0x98] sm:$0xf]
        %v2088 = vld [vmem:[#allocation11 + $0x9c] sm:$0xf]
        %v2089 = vld [vmem:[#allocation11 + $0xa0] sm:$0xf]
        %v2090 = vld [vmem:[#allocation11 + $0xa4] sm:$0xf]
        %v2091 = vld [vmem:[#allocation11 + $0xa8] sm:$0xf]
        %v2092 = vld [vmem:[#allocation11 + $0xac] sm:$0xf]
        %v2093 = vld [vmem:[#allocation11 + $0xb0] sm:$0xf]
        %v2094 = vld [vmem:[#allocation11 + $0xb4] sm:$0xf]
        %v2095 = vld [vmem:[#allocation11 + $0xb8] sm:$0xf]
        %v2096 = vld [vmem:[#allocation11 + $0xbc] sm:$0xf]
        %v2097 = vld [vmem:[#allocation11 + $0xc0] sm:$0xf]
        %v2098 = vld [vmem:[#allocation11 + $0xc4] sm:$0xf]
        %v2099 = vld [vmem:[#allocation11 + $0xc8] sm:$0xf]
        %v2100 = vld [vmem:[#allocation11 + $0xcc] sm:$0xf]
        %v2101 = vld [vmem:[#allocation11 + $0xd0] sm:$0xf]
        %v2102 = vld [vmem:[#allocation11 + $0xd4] sm:$0xf]
        %v2103 = vld [vmem:[#allocation11 + $0xd8] sm:$0xf]
        %v2104 = vld [vmem:[#allocation11 + $0xdc] sm:$0xf]
        %v2105 = vld [vmem:[#allocation11 + $0xe0] sm:$0xf]
        %v2106 = vld [vmem:[#allocation11 + $0xe4] sm:$0xf]
        %v2107 = vld [vmem:[#allocation11 + $0xe8] sm:$0xf]
        %v2108 = vld [vmem:[#allocation11 + $0xec] sm:$0xf]
        %v2109 = vld [vmem:[#allocation11 + $0xf0] sm:$0xf]
        %v2110 = vld [vmem:[#allocation11 + $0xf4] sm:$0xf]
        %v2111 = vld [vmem:[#allocation11 + $0xf8] sm:$0xf]
        %v2112 = vld [vmem:[#allocation11 + $0xfc] sm:$0xf]
        %v2113 = vld [vmem:[%s7] sm:$0x1]
        %v2115 = vlaneseq
        %v2116 = vshrl.u32 %v2115, 7
        %v2117 = vsub.s32 0, %v2116
        %v2118 = vrot.slane %v2113, %v2117
        %v2184 = vunpack.c.l.b16 %v2049
        %v2185 = vunpack.c.l.b16 %v2050
        %v2186 = vunpack.c.l.b16 %v2051
        %v2187 = vunpack.c.l.b16 %v2052
        %v2188 = vunpack.c.l.b16 %v2053
        %v2189 = vunpack.c.l.b16 %v2054
        %v2190 = vunpack.c.l.b16 %v2055
        %v2191 = vunpack.c.l.b16 %v2056
        %v2192 = vunpack.c.l.b16 %v2057
        %v2193 = vunpack.c.l.b16 %v2058
        %v2194 = vunpack.c.l.b16 %v2059
        %v2195 = vunpack.c.l.b16 %v2060
        %v2196 = vunpack.c.l.b16 %v2061
        %v2197 = vunpack.c.l.b16 %v2062
        %v2198 = vunpack.c.l.b16 %v2063
        %v2199 = vunpack.c.l.b16 %v2064
        %v2200 = vunpack.c.l.b16 %v2065
        %v2201 = vunpack.c.l.b16 %v2066
        %v2202 = vunpack.c.l.b16 %v2067
        %v2203 = vunpack.c.l.b16 %v2068
        %v2204 = vunpack.c.l.b16 %v2069
        %v2205 = vunpack.c.l.b16 %v2070
        %v2206 = vunpack.c.l.b16 %v2071
        %v2207 = vunpack.c.l.b16 %v2072
        %v2208 = vunpack.c.l.b16 %v2073
        %v2209 = vunpack.c.l.b16 %v2074
        %v2210 = vunpack.c.l.b16 %v2075
        %v2211 = vunpack.c.l.b16 %v2076
        %v2212 = vunpack.c.l.b16 %v2077
        %v2213 = vunpack.c.l.b16 %v2078
        %v2214 = vunpack.c.l.b16 %v2079
        %v2215 = vunpack.c.l.b16 %v2080
        %v2216 = vunpack.c.l.b16 %v2081
        %v2217 = vunpack.c.l.b16 %v2082
        %v2218 = vunpack.c.l.b16 %v2083
        %v2219 = vunpack.c.l.b16 %v2084
        %v2220 = vunpack.c.l.b16 %v2085
        %v2221 = vunpack.c.l.b16 %v2086
        %v2222 = vunpack.c.l.b16 %v2087
        %v2223 = vunpack.c.l.b16 %v2088
        %v2224 = vunpack.c.l.b16 %v2089
        %v2225 = vunpack.c.l.b16 %v2090
        %v2226 = vunpack.c.l.b16 %v2091
        %v2227 = vunpack.c.l.b16 %v2092
        %v2228 = vunpack.c.l.b16 %v2093
        %v2229 = vunpack.c.l.b16 %v2094
        %v2230 = vunpack.c.l.b16 %v2095
        %v2231 = vunpack.c.l.b16 %v2096
        %v2232 = vunpack.c.l.b16 %v2097
        %v2233 = vunpack.c.l.b16 %v2098
        %v2234 = vunpack.c.l.b16 %v2099
        %v2235 = vunpack.c.l.b16 %v2100
        %v2236 = vunpack.c.l.b16 %v2101
        %v2237 = vunpack.c.l.b16 %v2102
        %v2238 = vunpack.c.l.b16 %v2103
        %v2239 = vunpack.c.l.b16 %v2104
        %v2240 = vunpack.c.l.b16 %v2105
        %v2241 = vunpack.c.l.b16 %v2106
        %v2242 = vunpack.c.l.b16 %v2107
        %v2243 = vunpack.c.l.b16 %v2108
        %v2244 = vunpack.c.l.b16 %v2109
        %v2245 = vunpack.c.l.b16 %v2110
        %v2246 = vunpack.c.l.b16 %v2111
        %v2247 = vunpack.c.l.b16 %v2112
        %v2248 = vpack.c.b16 %v2185, %v2184
        %v2249 = vpack.c.b16 %v2187, %v2186
        %v2250 = vpack.c.b16 %v2189, %v2188
        %v2251 = vpack.c.b16 %v2191, %v2190
        %v2252 = vpack.c.b16 %v2193, %v2192
        %v2253 = vpack.c.b16 %v2195, %v2194
        %v2254 = vpack.c.b16 %v2197, %v2196
        %v2255 = vpack.c.b16 %v2199, %v2198
        %v2256 = vpack.c.b16 %v2201, %v2200
        %v2257 = vpack.c.b16 %v2203, %v2202
        %v2258 = vpack.c.b16 %v2205, %v2204
        %v2259 = vpack.c.b16 %v2207, %v2206
        %v2260 = vpack.c.b16 %v2209, %v2208
        %v2261 = vpack.c.b16 %v2211, %v2210
        %v2262 = vpack.c.b16 %v2213, %v2212
        %v2263 = vpack.c.b16 %v2215, %v2214
        %v2264 = vpack.c.b16 %v2217, %v2216
        %v2265 = vpack.c.b16 %v2219, %v2218
        %v2266 = vpack.c.b16 %v2221, %v2220
        %v2267 = vpack.c.b16 %v2223, %v2222
        %v2268 = vpack.c.b16 %v2225, %v2224
        %v2269 = vpack.c.b16 %v2227, %v2226
        %v2270 = vpack.c.b16 %v2229, %v2228
        %v2271 = vpack.c.b16 %v2231, %v2230
        %v2272 = vpack.c.b16 %v2233, %v2232
        %v2273 = vpack.c.b16 %v2235, %v2234
        %v2274 = vpack.c.b16 %v2237, %v2236
        %v2275 = vpack.c.b16 %v2239, %v2238
        %v2276 = vpack.c.b16 %v2241, %v2240
        %v2277 = vpack.c.b16 %v2243, %v2242
        %v2278 = vpack.c.b16 %v2245, %v2244
        %v2279 = vpack.c.b16 %v2247, %v2246
        %2312 = vmatprep.subr.bf16.mxu0 0
        %2313 = vmatpush1.bf16.msra.mxu0 %v2255
        %2314 = vmatprep.subr.bf16.mxu0 0
        %2315 = vmatpush1.bf16.msra.mxu0 %v2254
        %2316 = vmatprep.subr.bf16.mxu0 0
        %2317 = vmatpush1.bf16.msra.mxu0 %v2253
        %2318 = vmatprep.subr.bf16.mxu0 0
        %2319 = vmatpush1.bf16.msra.mxu0 %v2252
        %2320 = vmatprep.subr.bf16.mxu0 0
        %2321 = vmatpush1.bf16.msra.mxu0 %v2251
        %2322 = vmatprep.subr.bf16.mxu0 0
        %2323 = vmatpush1.bf16.msra.mxu0 %v2250
        %2324 = vmatprep.subr.bf16.mxu0 0
        %2325 = vmatpush1.bf16.msra.mxu0 %v2249
        %2326 = vmatprep.subr.bf16.mxu0 0
        %2327 = vmatpush1.bf16.msra.mxu0 %v2248
        %2328 = vmatprep.subr.bf16.mxu0 0
        %2329 = vmatpush2.bf16.msra.mxu0 %v2263
        %2330 = vmatprep.subr.bf16.mxu0 0
        %2331 = vmatpush2.bf16.msra.mxu0 %v2262
        %2332 = vmatprep.subr.bf16.mxu0 0
        %2333 = vmatpush2.bf16.msra.mxu0 %v2261
        %2334 = vmatprep.subr.bf16.mxu0 0
        %2335 = vmatpush2.bf16.msra.mxu0 %v2260
        %2336 = vmatprep.subr.bf16.mxu0 0
        %2337 = vmatpush2.bf16.msra.mxu0 %v2259
        %2338 = vmatprep.subr.bf16.mxu0 0
        %2339 = vmatpush2.bf16.msra.mxu0 %v2258
        %2340 = vmatprep.subr.bf16.mxu0 0
        %2341 = vmatpush2.bf16.msra.mxu0 %v2257
        %2342 = vmatprep.subr.bf16.mxu0 0
        %2343 = vmatpush2.bf16.msra.mxu0 %v2256
        %2344 = vmatprep.mubr.bf16.mxu0 %v2046
        %2345 = vmatmul.mubr.bf16.gmra.mxu0 %v2045
        %v2346 = vpop.f32.mrf.mxu0
        %v2347 = vadd.f32 %v2118, %v2346
        %v2348 = vpop.f32.mrf.mxu0
        %v2349 = vpop.f32.mrf.mxu0
        %v2350 = vpop.f32.mrf.mxu0
        %2351 = vdwg.mxu0
        %2352 = vmatprep.subr.bf16.mxu0 0
        %2353 = vmatpush1.bf16.msra.mxu0 %v2271
        %2354 = vmatprep.subr.bf16.mxu0 0
        %2355 = vmatpush1.bf16.msra.mxu0 %v2270
        %2356 = vmatprep.subr.bf16.mxu0 0
        %2357 = vmatpush1.bf16.msra.mxu0 %v2269
        %2358 = vmatprep.subr.bf16.mxu0 0
        %2359 = vmatpush1.bf16.msra.mxu0 %v2268
        %2360 = vmatprep.subr.bf16.mxu0 0
        %2361 = vmatpush1.bf16.msra.mxu0 %v2267
        %2362 = vmatprep.subr.bf16.mxu0 0
        %2363 = vmatpush1.bf16.msra.mxu0 %v2266
        %2364 = vmatprep.subr.bf16.mxu0 0
        %2365 = vmatpush1.bf16.msra.mxu0 %v2265
        %2366 = vmatprep.subr.bf16.mxu0 0
        %2367 = vmatpush1.bf16.msra.mxu0 %v2264
        %2368 = vmatprep.subr.bf16.mxu0 0
        %2369 = vmatpush2.bf16.msra.mxu0 %v2279
        %2370 = vmatprep.subr.bf16.mxu0 0
        %2371 = vmatpush2.bf16.msra.mxu0 %v2278
        %2372 = vmatprep.subr.bf16.mxu0 0
        %2373 = vmatpush2.bf16.msra.mxu0 %v2277
        %2374 = vmatprep.subr.bf16.mxu0 0
        %2375 = vmatpush2.bf16.msra.mxu0 %v2276
        %2376 = vmatprep.subr.bf16.mxu0 0
        %2377 = vmatpush2.bf16.msra.mxu0 %v2275
        %2378 = vmatprep.subr.bf16.mxu0 0
        %2379 = vmatpush2.bf16.msra.mxu0 %v2274
        %2380 = vmatprep.subr.bf16.mxu0 0
        %2381 = vmatpush2.bf16.msra.mxu0 %v2273
        %2382 = vmatprep.subr.bf16.mxu0 0
        %2383 = vmatpush2.bf16.msra.mxu0 %v2272
        %2384 = vmatprep.mubr.bf16.mxu0 %v2048
        %2385 = vmatmul.mubr.bf16.gmra.mxu0 %v2047
        %v2386 = vpop.f32.mrf.mxu0
        %v2387 = vadd.f32 %v2347, %v2386
        %v2388 = vpop.f32.mrf.mxu0
        %v2389 = vpop.f32.mrf.mxu0
        %v2390 = vpop.f32.mrf.mxu0
        %2391 = vdwg.mxu0
        %s2392 = sld [smem:[#allocation3 + %s49]]
        %v2393 = vstv %s2392
        %vm2394 = vcmp.lt.s32.totalorder %v595, %v2393
        %v2395 = vsel %vm2394, 1, 0
        %vm2396 = vcmp.eq.s32.totalorder %v2395, 1
        %v2397 = vsel %vm2396, %v2387, 0.0
        %v2398 = vmul.f32 %v2397, %v2397
        %2399 = vadd.xlane.f32.xlu0 %v2398
        %v2400 = vpop.xlane.xlu0 %2399
        %v2401 = vlaneseq
        %v2402 = vand.u32 %v2401, 127
        %vm2403 = vcmp.eq.s32.totalorder %v2402, 127
        %v2404 = vsel %vm2403, %v2400, %v2397
        %2405 = vst [vmem:[%s582] sm:$0xff] %v2404
        %v2406 = vld [vmem:[%s517] sm:$0xf]
        %v2407 = vld [vmem:[%s517 + $0x4] sm:$0xf]
        %v2408 = vld [vmem:[%s517 + $0x8] sm:$0xf]
        %v2409 = vld [vmem:[%s517 + $0xc] sm:$0xf]
        %v2410 = vld [vmem:[%s517 + $0x10] sm:$0xf]
        %v2411 = vld [vmem:[%s517 + $0x14] sm:$0xf]
        %v2412 = vld [vmem:[%s517 + $0x18] sm:$0xf]
        %v2413 = vld [vmem:[%s517 + $0x1c] sm:$0xf]
        %v2414 = vld [vmem:[%s517 + $0x20] sm:$0xf]
        %v2415 = vld [vmem:[%s517 + $0x24] sm:$0xf]
        %v2416 = vld [vmem:[%s517 + $0x28] sm:$0xf]
        %v2417 = vld [vmem:[%s517 + $0x2c] sm:$0xf]
        %v2418 = vld [vmem:[%s517 + $0x30] sm:$0xf]
        %v2419 = vld [vmem:[%s517 + $0x34] sm:$0xf]
        %v2420 = vld [vmem:[%s517 + $0x38] sm:$0xf]
        %v2421 = vld [vmem:[%s517 + $0x3c] sm:$0xf]
        %v2422 = vadd.s32 %v595, 8
        %v2423 = vadd.s32 %v595, 16
        %v2424 = vadd.s32 %v595, 24
        %v2425 = vadd.s32 %v595, 32
        %v2426 = vadd.s32 %v595, 40
        %v2427 = vadd.s32 %v595, 48
        %v2428 = vadd.s32 %v595, 56
        %v2429 = vadd.s32 %v595, 64
        %v2430 = vadd.s32 %v595, 72
        %v2431 = vadd.s32 %v595, 80
        %v2432 = vadd.s32 %v595, 88
        %v2433 = vadd.s32 %v595, 96
        %v2434 = vadd.s32 %v595, 104
        %v2435 = vadd.s32 %v595, 112
        %v2436 = vadd.s32 %v595, 120
        %v2437 = vunpack.c.l.bf16 %v2406
        %v2438 = vunpack.c.l.bf16 %v2407
        %v2439 = vunpack.c.l.bf16 %v2408
        %v2440 = vunpack.c.l.bf16 %v2409
        %v2441 = vunpack.c.l.bf16 %v2410
        %v2442 = vunpack.c.l.bf16 %v2411
        %v2443 = vunpack.c.l.bf16 %v2412
        %v2444 = vunpack.c.l.bf16 %v2413
        %v2445 = vunpack.c.l.bf16 %v2414
        %v2446 = vunpack.c.l.bf16 %v2415
        %v2447 = vunpack.c.l.bf16 %v2416
        %v2448 = vunpack.c.l.bf16 %v2417
        %v2449 = vunpack.c.l.bf16 %v2418
        %v2450 = vunpack.c.l.bf16 %v2419
        %v2451 = vunpack.c.l.bf16 %v2420
        %v2452 = vunpack.c.l.bf16 %v2421
        %vm2453 = vcmp.eq.s32.totalorder %v2422, 0
        %vm2454 = vcmp.eq.s32.totalorder %v2423, 0
        %vm2455 = vcmp.eq.s32.totalorder %v2424, 0
        %vm2456 = vcmp.eq.s32.totalorder %v2425, 0
        %vm2457 = vcmp.eq.s32.totalorder %v2426, 0
        %vm2458 = vcmp.eq.s32.totalorder %v2427, 0
        %vm2459 = vcmp.eq.s32.totalorder %v2428, 0
        %vm2460 = vcmp.eq.s32.totalorder %v2429, 0
        %vm2461 = vcmp.eq.s32.totalorder %v2430, 0
        %vm2462 = vcmp.eq.s32.totalorder %v2431, 0
        %vm2463 = vcmp.eq.s32.totalorder %v2432, 0
        %vm2464 = vcmp.eq.s32.totalorder %v2433, 0
        %vm2465 = vcmp.eq.s32.totalorder %v2434, 0
        %vm2466 = vcmp.eq.s32.totalorder %v2435, 0
        %vm2467 = vcmp.eq.s32.totalorder %v2436, 0
        %v2468 = vrot.slane %v2437, 7
        %v2469 = vrot.slane %v2438, 7
        %v2470 = vrot.slane %v2439, 7
        %v2471 = vrot.slane %v2440, 7
        %v2472 = vrot.slane %v2441, 7
        %v2473 = vrot.slane %v2442, 7
        %v2474 = vrot.slane %v2443, 7
        %v2475 = vrot.slane %v2444, 7
        %v2476 = vrot.slane %v2445, 7
        %v2477 = vrot.slane %v2446, 7
        %v2478 = vrot.slane %v2447, 7
        %v2479 = vrot.slane %v2448, 7
        %v2480 = vrot.slane %v2449, 7
        %v2481 = vrot.slane %v2450, 7
        %v2482 = vrot.slane %v2451, 7
        %v2483 = vrot.slane %v2452, 7
        %vm2484 = vcmp.lt.s32.totalorder %v595, 1
        %v2485 = vsel %vm2484, %v2482, %v2483
        %v2486 = vsel %vm2484, %v2481, %v2482
        %v2487 = vsel %vm2484, %v2480, %v2481
        %v2488 = vsel %vm2484, %v2479, %v2480
        %v2489 = vsel %vm2484, %v2478, %v2479
        %v2490 = vsel %vm2484, %v2477, %v2478
        %v2491 = vsel %vm2484, %v2476, %v2477
        %v2492 = vsel %vm2484, %v2475, %v2476
        %v2493 = vsel %vm2484, %v2474, %v2475
        %v2494 = vsel %vm2484, %v2473, %v2474
        %v2495 = vsel %vm2484, %v2472, %v2473
        %v2496 = vsel %vm2484, %v2471, %v2472
        %v2497 = vsel %vm2484, %v2470, %v2471
        %v2498 = vsel %vm2484, %v2469, %v2470
        %v2499 = vsel %vm2484, %v2468, %v2469
        %v2500 = vsel %vm2484, %v2483, %v2468
        %v2501 = vsel %vm2453, 1, 0
        %v2502 = vsel %vm2454, 1, 0
        %v2503 = vsel %vm2455, 1, 0
        %v2504 = vsel %vm2456, 1, 0
        %v2505 = vsel %vm2457, 1, 0
        %v2506 = vsel %vm2458, 1, 0
        %v2507 = vsel %vm2459, 1, 0
        %v2508 = vsel %vm2460, 1, 0
        %v2509 = vsel %vm2461, 1, 0
        %v2510 = vsel %vm2462, 1, 0
        %v2511 = vsel %vm2463, 1, 0
        %v2512 = vsel %vm2464, 1, 0
        %v2513 = vsel %vm2465, 1, 0
        %v2514 = vsel %vm2466, 1, 0
        %v2515 = vsel %vm2467, 1, 0
        %vm2516 = vcmp.eq.s32.totalorder %v2501, 1
        %vm2517 = vcmp.eq.s32.totalorder %v2502, 1
        %vm2518 = vcmp.eq.s32.totalorder %v2503, 1
        %vm2519 = vcmp.eq.s32.totalorder %v2504, 1
        %vm2520 = vcmp.eq.s32.totalorder %v2505, 1
        %vm2521 = vcmp.eq.s32.totalorder %v2506, 1
        %vm2522 = vcmp.eq.s32.totalorder %v2507, 1
        %vm2523 = vcmp.eq.s32.totalorder %v2508, 1
        %vm2524 = vcmp.eq.s32.totalorder %v2509, 1
        %vm2525 = vcmp.eq.s32.totalorder %v2510, 1
        %vm2526 = vcmp.eq.s32.totalorder %v2511, 1
        %vm2527 = vcmp.eq.s32.totalorder %v2512, 1
        %vm2528 = vcmp.eq.s32.totalorder %v2513, 1
        %vm2529 = vcmp.eq.s32.totalorder %v2514, 1
        %vm2530 = vcmp.eq.s32.totalorder %v2515, 1
        %v2531 = vsel %vm600, 0.0, %v2500
        %v2532 = vsel %vm2516, 0.0, %v2499
        %v2533 = vsel %vm2517, 0.0, %v2498
        %v2534 = vsel %vm2518, 0.0, %v2497
        %v2535 = vsel %vm2519, 0.0, %v2496
        %v2536 = vsel %vm2520, 0.0, %v2495
        %v2537 = vsel %vm2521, 0.0, %v2494
        %v2538 = vsel %vm2522, 0.0, %v2493
        %v2539 = vsel %vm2523, 0.0, %v2492
        %v2540 = vsel %vm2524, 0.0, %v2491
        %v2541 = vsel %vm2525, 0.0, %v2490
        %v2542 = vsel %vm2526, 0.0, %v2489
        %v2543 = vsel %vm2527, 0.0, %v2488
        %v2544 = vsel %vm2528, 0.0, %v2487
        %v2545 = vsel %vm2529, 0.0, %v2486
        %v2546 = vsel %vm2530, 0.0, %v2485
        %vm2547 = vcmp.eq.s32.totalorder %v595, 127
        %vm2548 = vcmp.eq.s32.totalorder %v2422, 127
        %vm2549 = vcmp.eq.s32.totalorder %v2423, 127
        %vm2550 = vcmp.eq.s32.totalorder %v2424, 127
        %vm2551 = vcmp.eq.s32.totalorder %v2425, 127
        %vm2552 = vcmp.eq.s32.totalorder %v2426, 127
        %vm2553 = vcmp.eq.s32.totalorder %v2427, 127
        %vm2554 = vcmp.eq.s32.totalorder %v2428, 127
        %vm2555 = vcmp.eq.s32.totalorder %v2429, 127
        %vm2556 = vcmp.eq.s32.totalorder %v2430, 127
        %vm2557 = vcmp.eq.s32.totalorder %v2431, 127
        %vm2558 = vcmp.eq.s32.totalorder %v2432, 127
        %vm2559 = vcmp.eq.s32.totalorder %v2433, 127
        %vm2560 = vcmp.eq.s32.totalorder %v2434, 127
        %vm2561 = vcmp.eq.s32.totalorder %v2435, 127
        %vm2562 = vcmp.eq.s32.totalorder %v2436, 127
        %v2563 = vrot.slane %v2437, 1
        %v2564 = vrot.slane %v2438, 1
        %v2565 = vrot.slane %v2439, 1
        %v2566 = vrot.slane %v2440, 1
        %v2567 = vrot.slane %v2441, 1
        %v2568 = vrot.slane %v2442, 1
        %v2569 = vrot.slane %v2443, 1
        %v2570 = vrot.slane %v2444, 1
        %v2571 = vrot.slane %v2445, 1
        %v2572 = vrot.slane %v2446, 1
        %v2573 = vrot.slane %v2447, 1
        %v2574 = vrot.slane %v2448, 1
        %v2575 = vrot.slane %v2449, 1
        %v2576 = vrot.slane %v2450, 1
        %v2577 = vrot.slane %v2451, 1
        %v2578 = vrot.slane %v2452, 1
        %vm2579 = vcmp.lt.s32.totalorder %v595, 7
        %v2580 = vsel %vm2579, %v2577, %v2578
        %v2581 = vsel %vm2579, %v2576, %v2577
        %v2582 = vsel %vm2579, %v2575, %v2576
        %v2583 = vsel %vm2579, %v2574, %v2575
        %v2584 = vsel %vm2579, %v2573, %v2574
        %v2585 = vsel %vm2579, %v2572, %v2573
        %v2586 = vsel %vm2579, %v2571, %v2572
        %v2587 = vsel %vm2579, %v2570, %v2571
        %v2588 = vsel %vm2579, %v2569, %v2570
        %v2589 = vsel %vm2579, %v2568, %v2569
        %v2590 = vsel %vm2579, %v2567, %v2568
        %v2591 = vsel %vm2579, %v2566, %v2567
        %v2592 = vsel %vm2579, %v2565, %v2566
        %v2593 = vsel %vm2579, %v2564, %v2565
        %v2594 = vsel %vm2579, %v2563, %v2564
        %v2595 = vsel %vm2579, %v2578, %v2563
        %v2596 = vsel %vm2547, 1, 0
        %v2597 = vsel %vm2548, 1, 0
        %v2598 = vsel %vm2549, 1, 0
        %v2599 = vsel %vm2550, 1, 0
        %v2600 = vsel %vm2551, 1, 0
        %v2601 = vsel %vm2552, 1, 0
        %v2602 = vsel %vm2553, 1, 0
        %v2603 = vsel %vm2554, 1, 0
        %v2604 = vsel %vm2555, 1, 0
        %v2605 = vsel %vm2556, 1, 0
        %v2606 = vsel %vm2557, 1, 0
        %v2607 = vsel %vm2558, 1, 0
        %v2608 = vsel %vm2559, 1, 0
        %v2609 = vsel %vm2560, 1, 0
        %v2610 = vsel %vm2561, 1, 0
        %v2611 = vsel %vm2562, 1, 0
        %vm2612 = vcmp.eq.s32.totalorder %v2596, 1
        %vm2613 = vcmp.eq.s32.totalorder %v2597, 1
        %vm2614 = vcmp.eq.s32.totalorder %v2598, 1
        %vm2615 = vcmp.eq.s32.totalorder %v2599, 1
        %vm2616 = vcmp.eq.s32.totalorder %v2600, 1
        %vm2617 = vcmp.eq.s32.totalorder %v2601, 1
        %vm2618 = vcmp.eq.s32.totalorder %v2602, 1
        %vm2619 = vcmp.eq.s32.totalorder %v2603, 1
        %vm2620 = vcmp.eq.s32.totalorder %v2604, 1
        %vm2621 = vcmp.eq.s32.totalorder %v2605, 1
        %vm2622 = vcmp.eq.s32.totalorder %v2606, 1
        %vm2623 = vcmp.eq.s32.totalorder %v2607, 1
        %vm2624 = vcmp.eq.s32.totalorder %v2608, 1
        %vm2625 = vcmp.eq.s32.totalorder %v2609, 1
        %vm2626 = vcmp.eq.s32.totalorder %v2610, 1
        %vm2627 = vcmp.eq.s32.totalorder %v2611, 1
        %v2628 = vsel %vm2612, 0.0, %v2594
        %v2629 = vsel %vm2613, 0.0, %v2593
        %v2630 = vsel %vm2614, 0.0, %v2592
        %v2631 = vsel %vm2615, 0.0, %v2591
        %v2632 = vsel %vm2616, 0.0, %v2590
        %v2633 = vsel %vm2617, 0.0, %v2589
        %v2634 = vsel %vm2618, 0.0, %v2588
        %v2635 = vsel %vm2619, 0.0, %v2587
        %v2636 = vsel %vm2620, 0.0, %v2586
        %v2637 = vsel %vm2621, 0.0, %v2585
        %v2638 = vsel %vm2622, 0.0, %v2584
        %v2639 = vsel %vm2623, 0.0, %v2583
        %v2640 = vsel %vm2624, 0.0, %v2582
        %v2641 = vsel %vm2625, 0.0, %v2581
        %v2642 = vsel %vm2626, 0.0, %v2580
        %v2643 = vsel %vm2627, 0.0, %v2595
        %v2644 = vpack.c.bf16 %v2532, %v2531
        %v2645 = vpack.c.bf16 %v2534, %v2533
        %v2646 = vpack.c.bf16 %v2536, %v2535
        %v2647 = vpack.c.bf16 %v2538, %v2537
        %v2648 = vpack.c.bf16 %v2540, %v2539
        %v2649 = vpack.c.bf16 %v2542, %v2541
        %v2650 = vpack.c.bf16 %v2544, %v2543
        %v2651 = vpack.c.bf16 %v2546, %v2545
        %v2652 = vpack.c.bf16 %v2629, %v2628
        %v2653 = vpack.c.bf16 %v2631, %v2630
        %v2654 = vpack.c.bf16 %v2633, %v2632
        %v2655 = vpack.c.bf16 %v2635, %v2634
        %v2656 = vpack.c.bf16 %v2637, %v2636
        %v2657 = vpack.c.bf16 %v2639, %v2638
        %v2658 = vpack.c.bf16 %v2641, %v2640
        %v2659 = vpack.c.bf16 %v2643, %v2642
        %v2676 = vunpack.c.l.b16 %v2406
        %v2677 = vunpack.c.l.b16 %v2407
        %v2678 = vunpack.c.l.b16 %v2408
        %v2679 = vunpack.c.l.b16 %v2409
        %v2680 = vunpack.c.l.b16 %v2410
        %v2681 = vunpack.c.l.b16 %v2411
        %v2682 = vunpack.c.l.b16 %v2412
        %v2683 = vunpack.c.l.b16 %v2413
        %v2684 = vunpack.c.l.b16 %v2414
        %v2685 = vunpack.c.l.b16 %v2415
        %v2686 = vunpack.c.l.b16 %v2416
        %v2687 = vunpack.c.l.b16 %v2417
        %v2688 = vunpack.c.l.b16 %v2418
        %v2689 = vunpack.c.l.b16 %v2419
        %v2690 = vunpack.c.l.b16 %v2420
        %v2691 = vunpack.c.l.b16 %v2421
        %v2692 = vpack.c.b16 %v2677, %v2676
        %v2693 = vpack.c.b16 %v2679, %v2678
        %v2694 = vpack.c.b16 %v2681, %v2680
        %v2695 = vpack.c.b16 %v2683, %v2682
        %v2696 = vpack.c.b16 %v2685, %v2684
        %v2697 = vpack.c.b16 %v2687, %v2686
        %v2698 = vpack.c.b16 %v2689, %v2688
        %v2699 = vpack.c.b16 %v2691, %v2690
        %v2708 = vld [vmem:[#allocation13] sm:$0xff]
        %v2709 = vld [vmem:[#allocation13 + $0x8] sm:$0xff]
        %v2710 = vld [vmem:[#allocation13 + $0x10] sm:$0xff]
        %v2711 = vld [vmem:[#allocation13 + $0x18] sm:$0xff]
        %v2712 = vld [vmem:[#allocation13 + $0x20] sm:$0xff]
        %v2713 = vld [vmem:[#allocation13 + $0x28] sm:$0xff]
        %v2714 = vld [vmem:[#allocation13 + $0x30] sm:$0xff]
        %v2715 = vld [vmem:[#allocation13 + $0x38] sm:$0xff]
        %v2716 = vld [vmem:[#allocation13 + $0x40] sm:$0xff]
        %v2717 = vld [vmem:[#allocation13 + $0x48] sm:$0xff]
        %v2718 = vld [vmem:[#allocation13 + $0x50] sm:$0xff]
        %v2719 = vld [vmem:[#allocation13 + $0x58] sm:$0xff]
        %v2720 = vld [vmem:[#allocation13 + $0x60] sm:$0xff]
        %v2721 = vld [vmem:[#allocation13 + $0x68] sm:$0xff]
        %v2722 = vld [vmem:[#allocation13 + $0x70] sm:$0xff]
        %v2723 = vld [vmem:[#allocation13 + $0x78] sm:$0xff]
        %v2724 = vld [vmem:[#allocation13 + $0x80] sm:$0xff]
        %v2725 = vld [vmem:[#allocation13 + $0x88] sm:$0xff]
        %v2726 = vld [vmem:[#allocation13 + $0x90] sm:$0xff]
        %v2727 = vld [vmem:[#allocation13 + $0x98] sm:$0xff]
        %v2728 = vld [vmem:[#allocation13 + $0xa0] sm:$0xff]
        %v2729 = vld [vmem:[#allocation13 + $0xa8] sm:$0xff]
        %v2730 = vld [vmem:[#allocation13 + $0xb0] sm:$0xff]
        %v2731 = vld [vmem:[#allocation13 + $0xb8] sm:$0xff]
        %v2732 = vld [vmem:[#allocation13 + $0xc0] sm:$0xff]
        %v2733 = vld [vmem:[#allocation13 + $0xc8] sm:$0xff]
        %v2734 = vld [vmem:[#allocation13 + $0xd0] sm:$0xff]
        %v2735 = vld [vmem:[#allocation13 + $0xd8] sm:$0xff]
        %v2736 = vld [vmem:[#allocation13 + $0xe0] sm:$0xff]
        %v2737 = vld [vmem:[#allocation13 + $0xe8] sm:$0xff]
        %v2738 = vld [vmem:[#allocation13 + $0xf0] sm:$0xff]
        %v2739 = vld [vmem:[#allocation13 + $0xf8] sm:$0xff]
        %v2740 = vld [vmem:[#allocation13 + $0x100] sm:$0xff]
        %v2741 = vld [vmem:[#allocation13 + $0x108] sm:$0xff]
        %v2742 = vld [vmem:[#allocation13 + $0x110] sm:$0xff]
        %v2743 = vld [vmem:[#allocation13 + $0x118] sm:$0xff]
        %v2744 = vld [vmem:[#allocation13 + $0x120] sm:$0xff]
        %v2745 = vld [vmem:[#allocation13 + $0x128] sm:$0xff]
        %v2746 = vld [vmem:[#allocation13 + $0x130] sm:$0xff]
        %v2747 = vld [vmem:[#allocation13 + $0x138] sm:$0xff]
        %v2748 = vld [vmem:[#allocation13 + $0x140] sm:$0xff]
        %v2749 = vld [vmem:[#allocation13 + $0x148] sm:$0xff]
        %v2750 = vld [vmem:[#allocation13 + $0x150] sm:$0xff]
        %v2751 = vld [vmem:[#allocation13 + $0x158] sm:$0xff]
        %v2752 = vld [vmem:[#allocation13 + $0x160] sm:$0xff]
        %v2753 = vld [vmem:[#allocation13 + $0x168] sm:$0xff]
        %v2754 = vld [vmem:[#allocation13 + $0x170] sm:$0xff]
        %v2755 = vld [vmem:[#allocation13 + $0x178] sm:$0xff]
        %v2756 = vld [vmem:[%s9] sm:$0x3]
        %v2758 = vlaneseq
        %v2759 = vshrl.u32 %v2758, 7
        %v2760 = vsub.s32 0, %v2759
        %v2761 = vrot.slane %v2756, %v2760
        %v2762 = vlaneseq
        %v2763 = vshrl.u32 %v2762, 7
        %v2764 = vsub.s32 1, %v2763
        %v2765 = vrot.slane %v2756, %v2764
        %v2816 = vunpack.c.l.b16 %v2708
        %v2817 = vunpack.c.h.b16 %v2708
        %v2818 = vunpack.c.l.b16 %v2709
        %v2819 = vunpack.c.h.b16 %v2709
        %v2820 = vunpack.c.l.b16 %v2710
        %v2821 = vunpack.c.h.b16 %v2710
        %v2822 = vunpack.c.l.b16 %v2711
        %v2823 = vunpack.c.h.b16 %v2711
        %v2824 = vunpack.c.l.b16 %v2712
        %v2825 = vunpack.c.h.b16 %v2712
        %v2826 = vunpack.c.l.b16 %v2713
        %v2827 = vunpack.c.h.b16 %v2713
        %v2828 = vunpack.c.l.b16 %v2714
        %v2829 = vunpack.c.h.b16 %v2714
        %v2830 = vunpack.c.l.b16 %v2715
        %v2831 = vunpack.c.h.b16 %v2715
        %v2832 = vunpack.c.l.b16 %v2716
        %v2833 = vunpack.c.h.b16 %v2716
        %v2834 = vunpack.c.l.b16 %v2717
        %v2835 = vunpack.c.h.b16 %v2717
        %v2836 = vunpack.c.l.b16 %v2718
        %v2837 = vunpack.c.h.b16 %v2718
        %v2838 = vunpack.c.l.b16 %v2719
        %v2839 = vunpack.c.h.b16 %v2719
        %v2840 = vunpack.c.l.b16 %v2720
        %v2841 = vunpack.c.h.b16 %v2720
        %v2842 = vunpack.c.l.b16 %v2721
        %v2843 = vunpack.c.h.b16 %v2721
        %v2844 = vunpack.c.l.b16 %v2722
        %v2845 = vunpack.c.h.b16 %v2722
        %v2846 = vunpack.c.l.b16 %v2723
        %v2847 = vunpack.c.h.b16 %v2723
        %v2848 = vunpack.c.l.b16 %v2724
        %v2849 = vunpack.c.h.b16 %v2724
        %v2850 = vunpack.c.l.b16 %v2725
        %v2851 = vunpack.c.h.b16 %v2725
        %v2852 = vunpack.c.l.b16 %v2726
        %v2853 = vunpack.c.h.b16 %v2726
        %v2854 = vunpack.c.l.b16 %v2727
        %v2855 = vunpack.c.h.b16 %v2727
        %v2856 = vunpack.c.l.b16 %v2728
        %v2857 = vunpack.c.h.b16 %v2728
        %v2858 = vunpack.c.l.b16 %v2729
        %v2859 = vunpack.c.h.b16 %v2729
        %v2860 = vunpack.c.l.b16 %v2730
        %v2861 = vunpack.c.h.b16 %v2730
        %v2862 = vunpack.c.l.b16 %v2731
        %v2863 = vunpack.c.h.b16 %v2731
        %v2864 = vunpack.c.l.b16 %v2732
        %v2865 = vunpack.c.h.b16 %v2732
        %v2866 = vunpack.c.l.b16 %v2733
        %v2867 = vunpack.c.h.b16 %v2733
        %v2868 = vunpack.c.l.b16 %v2734
        %v2869 = vunpack.c.h.b16 %v2734
        %v2870 = vunpack.c.l.b16 %v2735
        %v2871 = vunpack.c.h.b16 %v2735
        %v2872 = vunpack.c.l.b16 %v2736
        %v2873 = vunpack.c.h.b16 %v2736
        %v2874 = vunpack.c.l.b16 %v2737
        %v2875 = vunpack.c.h.b16 %v2737
        %v2876 = vunpack.c.l.b16 %v2738
        %v2877 = vunpack.c.h.b16 %v2738
        %v2878 = vunpack.c.l.b16 %v2739
        %v2879 = vunpack.c.h.b16 %v2739
        %v2880 = vunpack.c.l.b16 %v2740
        %v2881 = vunpack.c.h.b16 %v2740
        %v2882 = vunpack.c.l.b16 %v2741
        %v2883 = vunpack.c.h.b16 %v2741
        %v2884 = vunpack.c.l.b16 %v2742
        %v2885 = vunpack.c.h.b16 %v2742
        %v2886 = vunpack.c.l.b16 %v2743
        %v2887 = vunpack.c.h.b16 %v2743
        %v2888 = vunpack.c.l.b16 %v2744
        %v2889 = vunpack.c.h.b16 %v2744
        %v2890 = vunpack.c.l.b16 %v2745
        %v2891 = vunpack.c.h.b16 %v2745
        %v2892 = vunpack.c.l.b16 %v2746
        %v2893 = vunpack.c.h.b16 %v2746
        %v2894 = vunpack.c.l.b16 %v2747
        %v2895 = vunpack.c.h.b16 %v2747
        %v2896 = vunpack.c.l.b16 %v2748
        %v2897 = vunpack.c.h.b16 %v2748
        %v2898 = vunpack.c.l.b16 %v2749
        %v2899 = vunpack.c.h.b16 %v2749
        %v2900 = vunpack.c.l.b16 %v2750
        %v2901 = vunpack.c.h.b16 %v2750
        %v2902 = vunpack.c.l.b16 %v2751
        %v2903 = vunpack.c.h.b16 %v2751
        %v2904 = vunpack.c.l.b16 %v2752
        %v2905 = vunpack.c.h.b16 %v2752
        %v2906 = vunpack.c.l.b16 %v2753
        %v2907 = vunpack.c.h.b16 %v2753
        %v2908 = vunpack.c.l.b16 %v2754
        %v2909 = vunpack.c.h.b16 %v2754
        %v2910 = vunpack.c.l.b16 %v2755
        %v2911 = vunpack.c.h.b16 %v2755
        %v2912 = vpack.c.b16 %v2818, %v2816
        %v2913 = vpack.c.b16 %v2819, %v2817
        %v2914 = vpack.c.b16 %v2822, %v2820
        %v2915 = vpack.c.b16 %v2823, %v2821
        %v2916 = vpack.c.b16 %v2826, %v2824
        %v2917 = vpack.c.b16 %v2827, %v2825
        %v2918 = vpack.c.b16 %v2830, %v2828
        %v2919 = vpack.c.b16 %v2831, %v2829
        %v2920 = vpack.c.b16 %v2834, %v2832
        %v2921 = vpack.c.b16 %v2835, %v2833
        %v2922 = vpack.c.b16 %v2838, %v2836
        %v2923 = vpack.c.b16 %v2839, %v2837
        %v2924 = vpack.c.b16 %v2842, %v2840
        %v2925 = vpack.c.b16 %v2843, %v2841
        %v2926 = vpack.c.b16 %v2846, %v2844
        %v2927 = vpack.c.b16 %v2847, %v2845
        %v2928 = vpack.c.b16 %v2850, %v2848
        %v2929 = vpack.c.b16 %v2851, %v2849
        %v2930 = vpack.c.b16 %v2854, %v2852
        %v2931 = vpack.c.b16 %v2855, %v2853
        %v2932 = vpack.c.b16 %v2858, %v2856
        %v2933 = vpack.c.b16 %v2859, %v2857
        %v2934 = vpack.c.b16 %v2862, %v2860
        %v2935 = vpack.c.b16 %v2863, %v2861
        %v2936 = vpack.c.b16 %v2866, %v2864
        %v2937 = vpack.c.b16 %v2867, %v2865
        %v2938 = vpack.c.b16 %v2870, %v2868
        %v2939 = vpack.c.b16 %v2871, %v2869
        %v2940 = vpack.c.b16 %v2874, %v2872
        %v2941 = vpack.c.b16 %v2875, %v2873
        %v2942 = vpack.c.b16 %v2878, %v2876
        %v2943 = vpack.c.b16 %v2879, %v2877
        %v2944 = vpack.c.b16 %v2882, %v2880
        %v2945 = vpack.c.b16 %v2883, %v2881
        %v2946 = vpack.c.b16 %v2886, %v2884
        %v2947 = vpack.c.b16 %v2887, %v2885
        %v2948 = vpack.c.b16 %v2890, %v2888
        %v2949 = vpack.c.b16 %v2891, %v2889
        %v2950 = vpack.c.b16 %v2894, %v2892
        %v2951 = vpack.c.b16 %v2895, %v2893
        %v2952 = vpack.c.b16 %v2898, %v2896
        %v2953 = vpack.c.b16 %v2899, %v2897
        %v2954 = vpack.c.b16 %v2902, %v2900
        %v2955 = vpack.c.b16 %v2903, %v2901
        %v2956 = vpack.c.b16 %v2906, %v2904
        %v2957 = vpack.c.b16 %v2907, %v2905
        %v2958 = vpack.c.b16 %v2910, %v2908
        %v2959 = vpack.c.b16 %v2911, %v2909
        %3008 = vmatprep.subr.bf16.mxu0 %v2927
        %3009 = vmatpush1.bf16.msra.mxu0 %v2926
        %3010 = vmatprep.subr.bf16.mxu0 %v2925
        %3011 = vmatpush1.bf16.msra.mxu0 %v2924
        %3012 = vmatprep.subr.bf16.mxu0 %v2923
        %3013 = vmatpush1.bf16.msra.mxu0 %v2922
        %3014 = vmatprep.subr.bf16.mxu0 %v2921
        %3015 = vmatpush1.bf16.msra.mxu0 %v2920
        %3016 = vmatprep.subr.bf16.mxu0 %v2919
        %3017 = vmatpush1.bf16.msra.mxu0 %v2918
        %3018 = vmatprep.subr.bf16.mxu0 %v2917
        %3019 = vmatpush1.bf16.msra.mxu0 %v2916
        %3020 = vmatprep.subr.bf16.mxu0 %v2915
        %3021 = vmatpush1.bf16.msra.mxu0 %v2914
        %3022 = vmatprep.subr.bf16.mxu0 %v2913
        %3023 = vmatpush1.bf16.msra.mxu0 %v2912
        %3024 = vmatprep.subr.bf16.mxu0 %v2943
        %3025 = vmatpush2.bf16.msra.mxu0 %v2942
        %3026 = vmatprep.subr.bf16.mxu0 %v2941
        %3027 = vmatpush2.bf16.msra.mxu0 %v2940
        %3028 = vmatprep.subr.bf16.mxu0 %v2939
        %3029 = vmatpush2.bf16.msra.mxu0 %v2938
        %3030 = vmatprep.subr.bf16.mxu0 %v2937
        %3031 = vmatpush2.bf16.msra.mxu0 %v2936
        %3032 = vmatprep.subr.bf16.mxu0 %v2935
        %3033 = vmatpush2.bf16.msra.mxu0 %v2934
        %3034 = vmatprep.subr.bf16.mxu0 %v2933
        %3035 = vmatpush2.bf16.msra.mxu0 %v2932
        %3036 = vmatprep.subr.bf16.mxu0 %v2931
        %3037 = vmatpush2.bf16.msra.mxu0 %v2930
        %3038 = vmatprep.subr.bf16.mxu0 %v2929
        %3039 = vmatpush2.bf16.msra.mxu0 %v2928
        %3040 = vmatprep.mubr.bf16.mxu0 %v2692
        %3041 = vmatmul.mubr.bf16.gmra.mxu0 %v2644
        %v3042 = vpop.f32.mrf.mxu0
        %v3043 = vadd.f32 %v2761, %v3042
        %v3044 = vpop.f32.mrf.mxu0
        %v3045 = vadd.f32 %v2765, %v3044
        %v3046 = vpop.f32.mrf.mxu0
        %v3047 = vadd.f32 %v2761, %v3046
        %v3048 = vpop.f32.mrf.mxu0
        %v3049 = vadd.f32 %v2765, %v3048
        %3050 = vmatprep.mubr.bf16.mxu0 %v2693
        %3051 = vmatmul.mubr.bf16.gmra.mxu0 %v2645
        %v3052 = vpop.f32.mrf.mxu0
        %v3053 = vadd.f32 %v2761, %v3052
        %v3054 = vpop.f32.mrf.mxu0
        %v3055 = vadd.f32 %v2765, %v3054
        %v3056 = vpop.f32.mrf.mxu0
        %v3057 = vadd.f32 %v2761, %v3056
        %v3058 = vpop.f32.mrf.mxu0
        %v3059 = vadd.f32 %v2765, %v3058
        %3060 = vmatprep.mubr.bf16.mxu0 %v2694
        %3061 = vmatmul.mubr.bf16.gmra.mxu0 %v2646
        %v3062 = vpop.f32.mrf.mxu0
        %v3063 = vadd.f32 %v2761, %v3062
        %v3064 = vpop.f32.mrf.mxu0
        %v3065 = vadd.f32 %v2765, %v3064
        %v3066 = vpop.f32.mrf.mxu0
        %v3067 = vadd.f32 %v2761, %v3066
        %v3068 = vpop.f32.mrf.mxu0
        %v3069 = vadd.f32 %v2765, %v3068
        %3070 = vmatprep.mubr.bf16.mxu0 %v2695
        %3071 = vmatmul.mubr.bf16.gmra.mxu0 %v2647
        %v3072 = vpop.f32.mrf.mxu0
        %v3073 = vadd.f32 %v2761, %v3072
        %v3074 = vpop.f32.mrf.mxu0
        %v3075 = vadd.f32 %v2765, %v3074
        %v3076 = vpop.f32.mrf.mxu0
        %v3077 = vadd.f32 %v2761, %v3076
        %v3078 = vpop.f32.mrf.mxu0
        %v3079 = vadd.f32 %v2765, %v3078
        %3080 = vmatprep.mubr.bf16.mxu0 %v2696
        %3081 = vmatmul.mubr.bf16.gmra.mxu0 %v2648
        %v3082 = vpop.f32.mrf.mxu0
        %v3083 = vadd.f32 %v2761, %v3082
        %v3084 = vpop.f32.mrf.mxu0
        %v3085 = vadd.f32 %v2765, %v3084
        %v3086 = vpop.f32.mrf.mxu0
        %v3087 = vadd.f32 %v2761, %v3086
        %v3088 = vpop.f32.mrf.mxu0
        %v3089 = vadd.f32 %v2765, %v3088
        %3090 = vmatprep.mubr.bf16.mxu0 %v2697
        %3091 = vmatmul.mubr.bf16.gmra.mxu0 %v2649
        %v3092 = vpop.f32.mrf.mxu0
        %v3093 = vadd.f32 %v2761, %v3092
        %v3094 = vpop.f32.mrf.mxu0
        %v3095 = vadd.f32 %v2765, %v3094
        %v3096 = vpop.f32.mrf.mxu0
        %v3097 = vadd.f32 %v2761, %v3096
        %v3098 = vpop.f32.mrf.mxu0
        %v3099 = vadd.f32 %v2765, %v3098
        %3100 = vmatprep.mubr.bf16.mxu0 %v2698
        %3101 = vmatmul.mubr.bf16.gmra.mxu0 %v2650
        %v3102 = vpop.f32.mrf.mxu0
        %v3103 = vadd.f32 %v2761, %v3102
        %v3104 = vpop.f32.mrf.mxu0
        %v3105 = vadd.f32 %v2765, %v3104
        %v3106 = vpop.f32.mrf.mxu0
        %v3107 = vadd.f32 %v2761, %v3106
        %v3108 = vpop.f32.mrf.mxu0
        %v3109 = vadd.f32 %v2765, %v3108
        %3110 = vmatprep.mubr.bf16.mxu0 %v2699
        %3111 = vmatmul.mubr.bf16.gmra.mxu0 %v2651
        %v3112 = vpop.f32.mrf.mxu0
        %v3113 = vadd.f32 %v2761, %v3112
        %v3114 = vpop.f32.mrf.mxu0
        %v3115 = vadd.f32 %v2765, %v3114
        %v3116 = vpop.f32.mrf.mxu0
        %v3117 = vadd.f32 %v2761, %v3116
        %v3118 = vpop.f32.mrf.mxu0
        %v3119 = vadd.f32 %v2765, %v3118
        %3120 = vdwg.mxu0
        %3121 = vmatprep.subr.bf16.mxu0 %v2959
        %3122 = vmatpush1.bf16.msra.mxu0 %v2958
        %3123 = vmatprep.subr.bf16.mxu0 %v2957
        %3124 = vmatpush1.bf16.msra.mxu0 %v2956
        %3125 = vmatprep.subr.bf16.mxu0 %v2955
        %3126 = vmatpush1.bf16.msra.mxu0 %v2954
        %3127 = vmatprep.subr.bf16.mxu0 %v2953
        %3128 = vmatpush1.bf16.msra.mxu0 %v2952
        %3129 = vmatprep.subr.bf16.mxu0 %v2951
        %3130 = vmatpush1.bf16.msra.mxu0 %v2950
        %3131 = vmatprep.subr.bf16.mxu0 %v2949
        %3132 = vmatpush1.bf16.msra.mxu0 %v2948
        %3133 = vmatprep.subr.bf16.mxu0 %v2947
        %3134 = vmatpush1.bf16.msra.mxu0 %v2946
        %3135 = vmatprep.subr.bf16.mxu0 %v2945
        %3136 = vmatpush1.bf16.msra.mxu0 %v2944
        %3137 = vmatprep.subr.bf16.mxu0 0
        %3138 = vmatpush2.bf16.msra.mxu0 0
        %3139 = vmatprep.subr.bf16.mxu0 0
        %3140 = vmatpush2.bf16.msra.mxu0 0
        %3141 = vmatprep.subr.bf16.mxu0 0
        %3142 = vmatpush2.bf16.msra.mxu0 0
        %3143 = vmatprep.subr.bf16.mxu0 0
        %3144 = vmatpush2.bf16.msra.mxu0 0
        %3145 = vmatprep.subr.bf16.mxu0 0
        %3146 = vmatpush2.bf16.msra.mxu0 0
        %3147 = vmatprep.subr.bf16.mxu0 0
        %3148 = vmatpush2.bf16.msra.mxu0 0
        %3149 = vmatprep.subr.bf16.mxu0 0
        %3150 = vmatpush2.bf16.msra.mxu0 0
        %3151 = vmatprep.subr.bf16.mxu0 0
        %3152 = vmatpush2.bf16.msra.mxu0 0
        %3153 = vmatprep.mubr.bf16.mxu0 0
        %3154 = vmatmul.mubr.bf16.gmra.mxu0 %v2652
        %v3155 = vpop.f32.mrf.mxu0
        %v3156 = vadd.f32 %v3043, %v3155
        %v3157 = vpop.f32.mrf.mxu0
        %v3158 = vadd.f32 %v3045, %v3157
        %v3159 = vpop.f32.mrf.mxu0
        %v3160 = vadd.f32 %v3047, %v3159
        %v3161 = vpop.f32.mrf.mxu0
        %v3162 = vadd.f32 %v3049, %v3161
        %3163 = vmatprep.mubr.bf16.mxu0 0
        %3164 = vmatmul.mubr.bf16.gmra.mxu0 %v2653
        %v3165 = vpop.f32.mrf.mxu0
        %v3166 = vadd.f32 %v3053, %v3165
        %v3167 = vpop.f32.mrf.mxu0
        %v3168 = vadd.f32 %v3055, %v3167
        %v3169 = vpop.f32.mrf.mxu0
        %v3170 = vadd.f32 %v3057, %v3169
        %v3171 = vpop.f32.mrf.mxu0
        %v3172 = vadd.f32 %v3059, %v3171
        %3173 = vmatprep.mubr.bf16.mxu0 0
        %3174 = vmatmul.mubr.bf16.gmra.mxu0 %v2654
        %v3175 = vpop.f32.mrf.mxu0
        %v3176 = vadd.f32 %v3063, %v3175
        %v3177 = vpop.f32.mrf.mxu0
        %v3178 = vadd.f32 %v3065, %v3177
        %v3179 = vpop.f32.mrf.mxu0
        %v3180 = vadd.f32 %v3067, %v3179
        %v3181 = vpop.f32.mrf.mxu0
        %v3182 = vadd.f32 %v3069, %v3181
        %3183 = vmatprep.mubr.bf16.mxu0 0
        %3184 = vmatmul.mubr.bf16.gmra.mxu0 %v2655
        %v3185 = vpop.f32.mrf.mxu0
        %v3186 = vadd.f32 %v3073, %v3185
        %v3187 = vpop.f32.mrf.mxu0
        %v3188 = vadd.f32 %v3075, %v3187
        %v3189 = vpop.f32.mrf.mxu0
        %v3190 = vadd.f32 %v3077, %v3189
        %v3191 = vpop.f32.mrf.mxu0
        %v3192 = vadd.f32 %v3079, %v3191
        %3193 = vmatprep.mubr.bf16.mxu0 0
        %3194 = vmatmul.mubr.bf16.gmra.mxu0 %v2656
        %v3195 = vpop.f32.mrf.mxu0
        %v3196 = vadd.f32 %v3083, %v3195
        %v3197 = vpop.f32.mrf.mxu0
        %v3198 = vadd.f32 %v3085, %v3197
        %v3199 = vpop.f32.mrf.mxu0
        %v3200 = vadd.f32 %v3087, %v3199
        %v3201 = vpop.f32.mrf.mxu0
        %v3202 = vadd.f32 %v3089, %v3201
        %3203 = vmatprep.mubr.bf16.mxu0 0
        %3204 = vmatmul.mubr.bf16.gmra.mxu0 %v2657
        %v3205 = vpop.f32.mrf.mxu0
        %v3206 = vadd.f32 %v3093, %v3205
        %v3207 = vpop.f32.mrf.mxu0
        %v3208 = vadd.f32 %v3095, %v3207
        %v3209 = vpop.f32.mrf.mxu0
        %v3210 = vadd.f32 %v3097, %v3209
        %v3211 = vpop.f32.mrf.mxu0
        %v3212 = vadd.f32 %v3099, %v3211
        %3213 = vmatprep.mubr.bf16.mxu0 0
        %3214 = vmatmul.mubr.bf16.gmra.mxu0 %v2658
        %v3215 = vpop.f32.mrf.mxu0
        %v3216 = vadd.f32 %v3103, %v3215
        %v3217 = vpop.f32.mrf.mxu0
        %v3218 = vadd.f32 %v3105, %v3217
        %v3219 = vpop.f32.mrf.mxu0
        %v3220 = vadd.f32 %v3107, %v3219
        %v3221 = vpop.f32.mrf.mxu0
        %v3222 = vadd.f32 %v3109, %v3221
        %3223 = vmatprep.mubr.bf16.mxu0 0
        %3224 = vmatmul.mubr.bf16.gmra.mxu0 %v2659
        %v3225 = vpop.f32.mrf.mxu0
        %v3226 = vadd.f32 %v3113, %v3225
        %v3227 = vpop.f32.mrf.mxu0
        %v3228 = vadd.f32 %v3115, %v3227
        %v3229 = vpop.f32.mrf.mxu0
        %v3230 = vadd.f32 %v3117, %v3229
        %v3231 = vpop.f32.mrf.mxu0
        %v3232 = vadd.f32 %v3119, %v3231
        %3233 = vdwg.mxu0
        %vm3234 = vcmp.gt.f32.partialorder %v3156, 0.0
        %vm3235 = vcmp.gt.f32.partialorder %v3158, 0.0
        %vm3236 = vcmp.gt.f32.partialorder %v3160, 0.0
        %vm3237 = vcmp.gt.f32.partialorder %v3162, 0.0
        %vm3238 = vcmp.gt.f32.partialorder %v3166, 0.0
        %vm3239 = vcmp.gt.f32.partialorder %v3168, 0.0
        %vm3240 = vcmp.gt.f32.partialorder %v3170, 0.0
        %vm3241 = vcmp.gt.f32.partialorder %v3172, 0.0
        %vm3242 = vcmp.gt.f32.partialorder %v3176, 0.0
        %vm3243 = vcmp.gt.f32.partialorder %v3178, 0.0
        %vm3244 = vcmp.gt.f32.partialorder %v3180, 0.0
        %vm3245 = vcmp.gt.f32.partialorder %v3182, 0.0
        %vm3246 = vcmp.gt.f32.partialorder %v3186, 0.0
        %vm3247 = vcmp.gt.f32.partialorder %v3188, 0.0
        %vm3248 = vcmp.gt.f32.partialorder %v3190, 0.0
        %vm3249 = vcmp.gt.f32.partialorder %v3192, 0.0
        %vm3250 = vcmp.gt.f32.partialorder %v3196, 0.0
        %vm3251 = vcmp.gt.f32.partialorder %v3198, 0.0
        %vm3252 = vcmp.gt.f32.partialorder %v3200, 0.0
        %vm3253 = vcmp.gt.f32.partialorder %v3202, 0.0
        %vm3254 = vcmp.gt.f32.partialorder %v3206, 0.0
        %vm3255 = vcmp.gt.f32.partialorder %v3208, 0.0
        %vm3256 = vcmp.gt.f32.partialorder %v3210, 0.0
        %vm3257 = vcmp.gt.f32.partialorder %v3212, 0.0
        %vm3258 = vcmp.gt.f32.partialorder %v3216, 0.0
        %vm3259 = vcmp.gt.f32.partialorder %v3218, 0.0
        %vm3260 = vcmp.gt.f32.partialorder %v3220, 0.0
        %vm3261 = vcmp.gt.f32.partialorder %v3222, 0.0
        %vm3262 = vcmp.gt.f32.partialorder %v3226, 0.0
        %vm3263 = vcmp.gt.f32.partialorder %v3228, 0.0
        %vm3264 = vcmp.gt.f32.partialorder %v3230, 0.0
        %vm3265 = vcmp.gt.f32.partialorder %v3232, 0.0
        %v3266 = vmul.f32 %v3156, 0.01
        %v3267 = vmul.f32 %v3158, 0.01
        %v3268 = vmul.f32 %v3160, 0.01
        %v3269 = vmul.f32 %v3162, 0.01
        %v3270 = vmul.f32 %v3166, 0.01
        %v3271 = vmul.f32 %v3168, 0.01
        %v3272 = vmul.f32 %v3170, 0.01
        %v3273 = vmul.f32 %v3172, 0.01
        %v3274 = vmul.f32 %v3176, 0.01
        %v3275 = vmul.f32 %v3178, 0.01
        %v3276 = vmul.f32 %v3180, 0.01
        %v3277 = vmul.f32 %v3182, 0.01
        %v3278 = vmul.f32 %v3186, 0.01
        %v3279 = vmul.f32 %v3188, 0.01
        %v3280 = vmul.f32 %v3190, 0.01
        %v3281 = vmul.f32 %v3192, 0.01
        %v3282 = vmul.f32 %v3196, 0.01
        %v3283 = vmul.f32 %v3198, 0.01
        %v3284 = vmul.f32 %v3200, 0.01
        %v3285 = vmul.f32 %v3202, 0.01
        %v3286 = vmul.f32 %v3206, 0.01
        %v3287 = vmul.f32 %v3208, 0.01
        %v3288 = vmul.f32 %v3210, 0.01
        %v3289 = vmul.f32 %v3212, 0.01
        %v3290 = vmul.f32 %v3216, 0.01
        %v3291 = vmul.f32 %v3218, 0.01
        %v3292 = vmul.f32 %v3220, 0.01
        %v3293 = vmul.f32 %v3222, 0.01
        %v3294 = vmul.f32 %v3226, 0.01
        %v3295 = vmul.f32 %v3228, 0.01
        %v3296 = vmul.f32 %v3230, 0.01
        %v3297 = vmul.f32 %v3232, 0.01
        %v3298 = vsel %vm3234, %v3156, %v3266
        %v3299 = vsel %vm3235, %v3158, %v3267
        %v3300 = vsel %vm3236, %v3160, %v3268
        %v3301 = vsel %vm3237, %v3162, %v3269
        %v3302 = vsel %vm3238, %v3166, %v3270
        %v3303 = vsel %vm3239, %v3168, %v3271
        %v3304 = vsel %vm3240, %v3170, %v3272
        %v3305 = vsel %vm3241, %v3172, %v3273
        %v3306 = vsel %vm3242, %v3176, %v3274
        %v3307 = vsel %vm3243, %v3178, %v3275
        %v3308 = vsel %vm3244, %v3180, %v3276
        %v3309 = vsel %vm3245, %v3182, %v3277
        %v3310 = vsel %vm3246, %v3186, %v3278
        %v3311 = vsel %vm3247, %v3188, %v3279
        %v3312 = vsel %vm3248, %v3190, %v3280
        %v3313 = vsel %vm3249, %v3192, %v3281
        %v3314 = vsel %vm3250, %v3196, %v3282
        %v3315 = vsel %vm3251, %v3198, %v3283
        %v3316 = vsel %vm3252, %v3200, %v3284
        %v3317 = vsel %vm3253, %v3202, %v3285
        %v3318 = vsel %vm3254, %v3206, %v3286
        %v3319 = vsel %vm3255, %v3208, %v3287
        %v3320 = vsel %vm3256, %v3210, %v3288
        %v3321 = vsel %vm3257, %v3212, %v3289
        %v3322 = vsel %vm3258, %v3216, %v3290
        %v3323 = vsel %vm3259, %v3218, %v3291
        %v3324 = vsel %vm3260, %v3220, %v3292
        %v3325 = vsel %vm3261, %v3222, %v3293
        %v3326 = vsel %vm3262, %v3226, %v3294
        %v3327 = vsel %vm3263, %v3228, %v3295
        %v3328 = vsel %vm3264, %v3230, %v3296
        %v3329 = vsel %vm3265, %v3232, %v3297
        %vm3330 = vcmp.lt.s32.totalorder %v595, 16
        %vm3331 = vcmp.lt.s32.totalorder %v2422, 16
        %vm3332 = vcmp.lt.s32.totalorder %v2423, 16
        %vm3333 = vcmp.lt.s32.totalorder %v2424, 16
        %vm3334 = vcmp.lt.s32.totalorder %v2425, 16
        %vm3335 = vcmp.lt.s32.totalorder %v2426, 16
        %vm3336 = vcmp.lt.s32.totalorder %v2427, 16
        %vm3337 = vcmp.lt.s32.totalorder %v2428, 16
        %vm3338 = vcmp.lt.s32.totalorder %v2429, 16
        %vm3339 = vcmp.lt.s32.totalorder %v2430, 16
        %vm3340 = vcmp.lt.s32.totalorder %v2431, 16
        %vm3341 = vcmp.lt.s32.totalorder %v2432, 16
        %vm3342 = vcmp.lt.s32.totalorder %v2433, 16
        %vm3343 = vcmp.lt.s32.totalorder %v2434, 16
        %vm3344 = vcmp.lt.s32.totalorder %v2435, 16
        %vm3345 = vcmp.lt.s32.totalorder %v2436, 16
        %v3346 = vsel %vm3330, 1, 0
        %v3347 = vsel %vm3331, 1, 0
        %v3348 = vsel %vm3332, 1, 0
        %v3349 = vsel %vm3333, 1, 0
        %v3350 = vsel %vm3334, 1, 0
        %v3351 = vsel %vm3335, 1, 0
        %v3352 = vsel %vm3336, 1, 0
        %v3353 = vsel %vm3337, 1, 0
        %v3354 = vsel %vm3338, 1, 0
        %v3355 = vsel %vm3339, 1, 0
        %v3356 = vsel %vm3340, 1, 0
        %v3357 = vsel %vm3341, 1, 0
        %v3358 = vsel %vm3342, 1, 0
        %v3359 = vsel %vm3343, 1, 0
        %v3360 = vsel %vm3344, 1, 0
        %v3361 = vsel %vm3345, 1, 0
        %vm3362 = vcmp.eq.s32.totalorder %v3346, 1
        %vm3363 = vcmp.eq.s32.totalorder %v3347, 1
        %vm3364 = vcmp.eq.s32.totalorder %v3348, 1
        %vm3365 = vcmp.eq.s32.totalorder %v3349, 1
        %vm3366 = vcmp.eq.s32.totalorder %v3350, 1
        %vm3367 = vcmp.eq.s32.totalorder %v3351, 1
        %vm3368 = vcmp.eq.s32.totalorder %v3352, 1
        %vm3369 = vcmp.eq.s32.totalorder %v3353, 1
        %vm3370 = vcmp.eq.s32.totalorder %v3354, 1
        %vm3371 = vcmp.eq.s32.totalorder %v3355, 1
        %vm3372 = vcmp.eq.s32.totalorder %v3356, 1
        %vm3373 = vcmp.eq.s32.totalorder %v3357, 1
        %vm3374 = vcmp.eq.s32.totalorder %v3358, 1
        %vm3375 = vcmp.eq.s32.totalorder %v3359, 1
        %vm3376 = vcmp.eq.s32.totalorder %v3360, 1
        %vm3377 = vcmp.eq.s32.totalorder %v3361, 1
        %v3378 = vsel %vm3362, %v3298, 0.0
        %v3379 = vsel %vm3362, %v3299, 0.0
        %v3380 = vsel %vm3363, %v3300, 0.0
        %v3381 = vsel %vm3363, %v3301, 0.0
        %v3382 = vsel %vm3364, %v3302, 0.0
        %v3383 = vsel %vm3364, %v3303, 0.0
        %v3384 = vsel %vm3365, %v3304, 0.0
        %v3385 = vsel %vm3365, %v3305, 0.0
        %v3386 = vsel %vm3366, %v3306, 0.0
        %v3387 = vsel %vm3366, %v3307, 0.0
        %v3388 = vsel %vm3367, %v3308, 0.0
        %v3389 = vsel %vm3367, %v3309, 0.0
        %v3390 = vsel %vm3368, %v3310, 0.0
        %v3391 = vsel %vm3368, %v3311, 0.0
        %v3392 = vsel %vm3369, %v3312, 0.0
        %v3393 = vsel %vm3369, %v3313, 0.0
        %v3394 = vsel %vm3370, %v3314, 0.0
        %v3395 = vsel %vm3370, %v3315, 0.0
        %v3396 = vsel %vm3371, %v3316, 0.0
        %v3397 = vsel %vm3371, %v3317, 0.0
        %v3398 = vsel %vm3372, %v3318, 0.0
        %v3399 = vsel %vm3372, %v3319, 0.0
        %v3400 = vsel %vm3373, %v3320, 0.0
        %v3401 = vsel %vm3373, %v3321, 0.0
        %v3402 = vsel %vm3374, %v3322, 0.0
        %v3403 = vsel %vm3374, %v3323, 0.0
        %v3404 = vsel %vm3375, %v3324, 0.0
        %v3405 = vsel %vm3375, %v3325, 0.0
        %v3406 = vsel %vm3376, %v3326, 0.0
        %v3407 = vsel %vm3376, %v3327, 0.0
        %v3408 = vsel %vm3377, %v3328, 0.0
        %v3409 = vsel %vm3377, %v3329, 0.0
        %v3410 = vrot.slane %v3378, 7
        %v3411 = vrot.slane %v3379, 7
        %v3412 = vrot.slane %v3380, 7
        %v3413 = vrot.slane %v3381, 7
        %v3414 = vrot.slane %v3382, 7
        %v3415 = vrot.slane %v3383, 7
        %v3416 = vrot.slane %v3384, 7
        %v3417 = vrot.slane %v3385, 7
        %v3418 = vrot.slane %v3386, 7
        %v3419 = vrot.slane %v3387, 7
        %v3420 = vrot.slane %v3388, 7
        %v3421 = vrot.slane %v3389, 7
        %v3422 = vrot.slane %v3390, 7
        %v3423 = vrot.slane %v3391, 7
        %v3424 = vrot.slane %v3392, 7
        %v3425 = vrot.slane %v3393, 7
        %v3426 = vrot.slane %v3394, 7
        %v3427 = vrot.slane %v3395, 7
        %v3428 = vrot.slane %v3396, 7
        %v3429 = vrot.slane %v3397, 7
        %v3430 = vrot.slane %v3398, 7
        %v3431 = vrot.slane %v3399, 7
        %v3432 = vrot.slane %v3400, 7
        %v3433 = vrot.slane %v3401, 7
        %v3434 = vrot.slane %v3402, 7
        %v3435 = vrot.slane %v3403, 7
        %v3436 = vrot.slane %v3404, 7
        %v3437 = vrot.slane %v3405, 7
        %v3438 = vrot.slane %v3406, 7
        %v3439 = vrot.slane %v3407, 7
        %v3440 = vrot.slane %v3408, 7
        %v3441 = vrot.slane %v3409, 7
        %v3442 = vsel %vm2484, %v3438, %v3440
        %v3443 = vsel %vm2484, %v3439, %v3441
        %v3444 = vsel %vm2484, %v3436, %v3438
        %v3445 = vsel %vm2484, %v3437, %v3439
        %v3446 = vsel %vm2484, %v3434, %v3436
        %v3447 = vsel %vm2484, %v3435, %v3437
        %v3448 = vsel %vm2484, %v3432, %v3434
        %v3449 = vsel %vm2484, %v3433, %v3435
        %v3450 = vsel %vm2484, %v3430, %v3432
        %v3451 = vsel %vm2484, %v3431, %v3433
        %v3452 = vsel %vm2484, %v3428, %v3430
        %v3453 = vsel %vm2484, %v3429, %v3431
        %v3454 = vsel %vm2484, %v3426, %v3428
        %v3455 = vsel %vm2484, %v3427, %v3429
        %v3456 = vsel %vm2484, %v3424, %v3426
        %v3457 = vsel %vm2484, %v3425, %v3427
        %v3458 = vsel %vm2484, %v3422, %v3424
        %v3459 = vsel %vm2484, %v3423, %v3425
        %v3460 = vsel %vm2484, %v3420, %v3422
        %v3461 = vsel %vm2484, %v3421, %v3423
        %v3462 = vsel %vm2484, %v3418, %v3420
        %v3463 = vsel %vm2484, %v3419, %v3421
        %v3464 = vsel %vm2484, %v3416, %v3418
        %v3465 = vsel %vm2484, %v3417, %v3419
        %v3466 = vsel %vm2484, %v3414, %v3416
        %v3467 = vsel %vm2484, %v3415, %v3417
        %v3468 = vsel %vm2484, %v3412, %v3414
        %v3469 = vsel %vm2484, %v3413, %v3415
        %v3470 = vsel %vm2484, %v3410, %v3412
        %v3471 = vsel %vm2484, %v3411, %v3413
        %v3472 = vsel %vm2484, %v3440, %v3410
        %v3473 = vsel %vm2484, %v3441, %v3411
        %v3474 = vsel %vm600, 0.0, %v3472
        %v3475 = vsel %vm600, 0.0, %v3473
        %v3476 = vsel %vm2516, 0.0, %v3470
        %v3477 = vsel %vm2516, 0.0, %v3471
        %v3478 = vsel %vm2517, 0.0, %v3468
        %v3479 = vsel %vm2517, 0.0, %v3469
        %v3480 = vsel %vm2518, 0.0, %v3466
        %v3481 = vsel %vm2518, 0.0, %v3467
        %v3482 = vsel %vm2519, 0.0, %v3464
        %v3483 = vsel %vm2519, 0.0, %v3465
        %v3484 = vsel %vm2520, 0.0, %v3462
        %v3485 = vsel %vm2520, 0.0, %v3463
        %v3486 = vsel %vm2521, 0.0, %v3460
        %v3487 = vsel %vm2521, 0.0, %v3461
        %v3488 = vsel %vm2522, 0.0, %v3458
        %v3489 = vsel %vm2522, 0.0, %v3459
        %v3490 = vsel %vm2523, 0.0, %v3456
        %v3491 = vsel %vm2523, 0.0, %v3457
        %v3492 = vsel %vm2524, 0.0, %v3454
        %v3493 = vsel %vm2524, 0.0, %v3455
        %v3494 = vsel %vm2525, 0.0, %v3452
        %v3495 = vsel %vm2525, 0.0, %v3453
        %v3496 = vsel %vm2526, 0.0, %v3450
        %v3497 = vsel %vm2526, 0.0, %v3451
        %v3498 = vsel %vm2527, 0.0, %v3448
        %v3499 = vsel %vm2527, 0.0, %v3449
        %v3500 = vsel %vm2528, 0.0, %v3446
        %v3501 = vsel %vm2528, 0.0, %v3447
        %v3502 = vsel %vm2529, 0.0, %v3444
        %v3503 = vsel %vm2529, 0.0, %v3445
        %v3504 = vsel %vm2530, 0.0, %v3442
        %v3505 = vsel %vm2530, 0.0, %v3443
        %v3506 = vrot.slane %v3378, 1
        %v3507 = vrot.slane %v3379, 1
        %v3508 = vrot.slane %v3380, 1
        %v3509 = vrot.slane %v3381, 1
        %v3510 = vrot.slane %v3382, 1
        %v3511 = vrot.slane %v3383, 1
        %v3512 = vrot.slane %v3384, 1
        %v3513 = vrot.slane %v3385, 1
        %v3514 = vrot.slane %v3386, 1
        %v3515 = vrot.slane %v3387, 1
        %v3516 = vrot.slane %v3388, 1
        %v3517 = vrot.slane %v3389, 1
        %v3518 = vrot.slane %v3390, 1
        %v3519 = vrot.slane %v3391, 1
        %v3520 = vrot.slane %v3392, 1
        %v3521 = vrot.slane %v3393, 1
        %v3522 = vrot.slane %v3394, 1
        %v3523 = vrot.slane %v3395, 1
        %v3524 = vrot.slane %v3396, 1
        %v3525 = vrot.slane %v3397, 1
        %v3526 = vrot.slane %v3398, 1
        %v3527 = vrot.slane %v3399, 1
        %v3528 = vrot.slane %v3400, 1
        %v3529 = vrot.slane %v3401, 1
        %v3530 = vrot.slane %v3402, 1
        %v3531 = vrot.slane %v3403, 1
        %v3532 = vrot.slane %v3404, 1
        %v3533 = vrot.slane %v3405, 1
        %v3534 = vrot.slane %v3406, 1
        %v3535 = vrot.slane %v3407, 1
        %v3536 = vrot.slane %v3408, 1
        %v3537 = vrot.slane %v3409, 1
        %v3538 = vsel %vm2579, %v3534, %v3536
        %v3539 = vsel %vm2579, %v3535, %v3537
        %v3540 = vsel %vm2579, %v3532, %v3534
        %v3541 = vsel %vm2579, %v3533, %v3535
        %v3542 = vsel %vm2579, %v3530, %v3532
        %v3543 = vsel %vm2579, %v3531, %v3533
        %v3544 = vsel %vm2579, %v3528, %v3530
        %v3545 = vsel %vm2579, %v3529, %v3531
        %v3546 = vsel %vm2579, %v3526, %v3528
        %v3547 = vsel %vm2579, %v3527, %v3529
        %v3548 = vsel %vm2579, %v3524, %v3526
        %v3549 = vsel %vm2579, %v3525, %v3527
        %v3550 = vsel %vm2579, %v3522, %v3524
        %v3551 = vsel %vm2579, %v3523, %v3525
        %v3552 = vsel %vm2579, %v3520, %v3522
        %v3553 = vsel %vm2579, %v3521, %v3523
        %v3554 = vsel %vm2579, %v3518, %v3520
        %v3555 = vsel %vm2579, %v3519, %v3521
        %v3556 = vsel %vm2579, %v3516, %v3518
        %v3557 = vsel %vm2579, %v3517, %v3519
        %v3558 = vsel %vm2579, %v3514, %v3516
        %v3559 = vsel %vm2579, %v3515, %v3517
        %v3560 = vsel %vm2579, %v3512, %v3514
        %v3561 = vsel %vm2579, %v3513, %v3515
        %v3562 = vsel %vm2579, %v3510, %v3512
        %v3563 = vsel %vm2579, %v3511, %v3513
        %v3564 = vsel %vm2579, %v3508, %v3510
        %v3565 = vsel %vm2579, %v3509, %v3511
        %v3566 = vsel %vm2579, %v3506, %v3508
        %v3567 = vsel %vm2579, %v3507, %v3509
        %v3568 = vsel %vm2579, %v3536, %v3506
        %v3569 = vsel %vm2579, %v3537, %v3507
        %v3570 = vsel %vm2612, 0.0, %v3566
        %v3571 = vsel %vm2612, 0.0, %v3567
        %v3572 = vsel %vm2613, 0.0, %v3564
        %v3573 = vsel %vm2613, 0.0, %v3565
        %v3574 = vsel %vm2614, 0.0, %v3562
        %v3575 = vsel %vm2614, 0.0, %v3563
        %v3576 = vsel %vm2615, 0.0, %v3560
        %v3577 = vsel %vm2615, 0.0, %v3561
        %v3578 = vsel %vm2616, 0.0, %v3558
        %v3579 = vsel %vm2616, 0.0, %v3559
        %v3580 = vsel %vm2617, 0.0, %v3556
        %v3581 = vsel %vm2617, 0.0, %v3557
        %v3582 = vsel %vm2618, 0.0, %v3554
        %v3583 = vsel %vm2618, 0.0, %v3555
        %v3584 = vsel %vm2619, 0.0, %v3552
        %v3585 = vsel %vm2619, 0.0, %v3553
        %v3586 = vsel %vm2620, 0.0, %v3550
        %v3587 = vsel %vm2620, 0.0, %v3551
        %v3588 = vsel %vm2621, 0.0, %v3548
        %v3589 = vsel %vm2621, 0.0, %v3549
        %v3590 = vsel %vm2622, 0.0, %v3546
        %v3591 = vsel %vm2622, 0.0, %v3547
        %v3592 = vsel %vm2623, 0.0, %v3544
        %v3593 = vsel %vm2623, 0.0, %v3545
        %v3594 = vsel %vm2624, 0.0, %v3542
        %v3595 = vsel %vm2624, 0.0, %v3543
        %v3596 = vsel %vm2625, 0.0, %v3540
        %v3597 = vsel %vm2625, 0.0, %v3541
        %v3598 = vsel %vm2626, 0.0, %v3538
        %v3599 = vsel %vm2626, 0.0, %v3539
        %v3600 = vsel %vm2627, 0.0, %v3568
        %v3601 = vsel %vm2627, 0.0, %v3569
        %v3602 = vpack.c.bf16 %v3476, %v3474
        %v3603 = vpack.c.bf16 %v3477, %v3475
        %v3604 = vpack.c.bf16 %v3480, %v3478
        %v3605 = vpack.c.bf16 %v3481, %v3479
        %v3606 = vpack.c.bf16 %v3484, %v3482
        %v3607 = vpack.c.bf16 %v3485, %v3483
        %v3608 = vpack.c.bf16 %v3488, %v3486
        %v3609 = vpack.c.bf16 %v3489, %v3487
        %v3610 = vpack.c.bf16 %v3492, %v3490
        %v3611 = vpack.c.bf16 %v3493, %v3491
        %v3612 = vpack.c.bf16 %v3496, %v3494
        %v3613 = vpack.c.bf16 %v3497, %v3495
        %v3614 = vpack.c.bf16 %v3500, %v3498
        %v3615 = vpack.c.bf16 %v3501, %v3499
        %v3616 = vpack.c.bf16 %v3504, %v3502
        %v3617 = vpack.c.bf16 %v3505, %v3503
        %v3618 = vpack.c.bf16 %v3380, %v3378
        %v3619 = vpack.c.bf16 %v3381, %v3379
        %v3620 = vpack.c.bf16 %v3384, %v3382
        %v3621 = vpack.c.bf16 %v3385, %v3383
        %v3622 = vpack.c.bf16 %v3388, %v3386
        %v3623 = vpack.c.bf16 %v3389, %v3387
        %v3624 = vpack.c.bf16 %v3392, %v3390
        %v3625 = vpack.c.bf16 %v3393, %v3391
        %v3626 = vpack.c.bf16 %v3396, %v3394
        %v3627 = vpack.c.bf16 %v3397, %v3395
        %v3628 = vpack.c.bf16 %v3400, %v3398
        %v3629 = vpack.c.bf16 %v3401, %v3399
        %v3630 = vpack.c.bf16 %v3404, %v3402
        %v3631 = vpack.c.bf16 %v3405, %v3403
        %v3632 = vpack.c.bf16 %v3408, %v3406
        %v3633 = vpack.c.bf16 %v3409, %v3407
        %v3634 = vpack.c.bf16 %v3572, %v3570
        %v3635 = vpack.c.bf16 %v3573, %v3571
        %v3636 = vpack.c.bf16 %v3576, %v3574
        %v3637 = vpack.c.bf16 %v3577, %v3575
        %v3638 = vpack.c.bf16 %v3580, %v3578
        %v3639 = vpack.c.bf16 %v3581, %v3579
        %v3640 = vpack.c.bf16 %v3584, %v3582
        %v3641 = vpack.c.bf16 %v3585, %v3583
        %v3642 = vpack.c.bf16 %v3588, %v3586
        %v3643 = vpack.c.bf16 %v3589, %v3587
        %v3644 = vpack.c.bf16 %v3592, %v3590
        %v3645 = vpack.c.bf16 %v3593, %v3591
        %v3646 = vpack.c.bf16 %v3596, %v3594
        %v3647 = vpack.c.bf16 %v3597, %v3595
        %v3648 = vpack.c.bf16 %v3600, %v3598
        %v3649 = vpack.c.bf16 %v3601, %v3599
        %v3650 = vld [vmem:[#allocation14] sm:$0xf]
        %v3651 = vld [vmem:[#allocation14 + $0x4] sm:$0xf]
        %v3652 = vld [vmem:[#allocation14 + $0x8] sm:$0xf]
        %v3653 = vld [vmem:[#allocation14 + $0xc] sm:$0xf]
        %v3654 = vld [vmem:[#allocation14 + $0x10] sm:$0xf]
        %v3655 = vld [vmem:[#allocation14 + $0x14] sm:$0xf]
        %v3656 = vld [vmem:[#allocation14 + $0x18] sm:$0xf]
        %v3657 = vld [vmem:[#allocation14 + $0x1c] sm:$0xf]
        %v3658 = vld [vmem:[#allocation14 + $0x20] sm:$0xf]
        %v3659 = vld [vmem:[#allocation14 + $0x24] sm:$0xf]
        %v3660 = vld [vmem:[#allocation14 + $0x28] sm:$0xf]
        %v3661 = vld [vmem:[#allocation14 + $0x2c] sm:$0xf]
        %v3662 = vld [vmem:[#allocation14 + $0x30] sm:$0xf]
        %v3663 = vld [vmem:[#allocation14 + $0x34] sm:$0xf]
        %v3664 = vld [vmem:[#allocation14 + $0x38] sm:$0xf]
        %v3665 = vld [vmem:[#allocation14 + $0x3c] sm:$0xf]
        %v3666 = vld [vmem:[#allocation14 + $0x40] sm:$0xf]
        %v3667 = vld [vmem:[#allocation14 + $0x44] sm:$0xf]
        %v3668 = vld [vmem:[#allocation14 + $0x48] sm:$0xf]
        %v3669 = vld [vmem:[#allocation14 + $0x4c] sm:$0xf]
        %v3670 = vld [vmem:[#allocation14 + $0x50] sm:$0xf]
        %v3671 = vld [vmem:[#allocation14 + $0x54] sm:$0xf]
        %v3672 = vld [vmem:[#allocation14 + $0x58] sm:$0xf]
        %v3673 = vld [vmem:[#allocation14 + $0x5c] sm:$0xf]
        %v3674 = vld [vmem:[#allocation14 + $0x60] sm:$0xf]
        %v3675 = vld [vmem:[#allocation14 + $0x64] sm:$0xf]
        %v3676 = vld [vmem:[#allocation14 + $0x68] sm:$0xf]
        %v3677 = vld [vmem:[#allocation14 + $0x6c] sm:$0xf]
        %v3678 = vld [vmem:[#allocation14 + $0x70] sm:$0xf]
        %v3679 = vld [vmem:[#allocation14 + $0x74] sm:$0xf]
        %v3680 = vld [vmem:[#allocation14 + $0x78] sm:$0xf]
        %v3681 = vld [vmem:[#allocation14 + $0x7c] sm:$0xf]
        %v3682 = vld [vmem:[#allocation14 + $0x80] sm:$0xf]
        %v3683 = vld [vmem:[#allocation14 + $0x84] sm:$0xf]
        %v3684 = vld [vmem:[#allocation14 + $0x88] sm:$0xf]
        %v3685 = vld [vmem:[#allocation14 + $0x8c] sm:$0xf]
        %v3686 = vld [vmem:[#allocation14 + $0x90] sm:$0xf]
        %v3687 = vld [vmem:[#allocation14 + $0x94] sm:$0xf]
        %v3688 = vld [vmem:[#allocation14 + $0x98] sm:$0xf]
        %v3689 = vld [vmem:[#allocation14 + $0x9c] sm:$0xf]
        %v3690 = vld [vmem:[#allocation14 + $0xa0] sm:$0xf]
        %v3691 = vld [vmem:[#allocation14 + $0xa4] sm:$0xf]
        %v3692 = vld [vmem:[#allocation14 + $0xa8] sm:$0xf]
        %v3693 = vld [vmem:[#allocation14 + $0xac] sm:$0xf]
        %v3694 = vld [vmem:[#allocation14 + $0xb0] sm:$0xf]
        %v3695 = vld [vmem:[#allocation14 + $0xb4] sm:$0xf]
        %v3696 = vld [vmem:[#allocation14 + $0xb8] sm:$0xf]
        %v3697 = vld [vmem:[#allocation14 + $0xbc] sm:$0xf]
        %v3698 = vld [vmem:[#allocation14 + $0xc0] sm:$0xf]
        %v3699 = vld [vmem:[#allocation14 + $0xc4] sm:$0xf]
        %v3700 = vld [vmem:[#allocation14 + $0xc8] sm:$0xf]
        %v3701 = vld [vmem:[#allocation14 + $0xcc] sm:$0xf]
        %v3702 = vld [vmem:[#allocation14 + $0xd0] sm:$0xf]
        %v3703 = vld [vmem:[#allocation14 + $0xd4] sm:$0xf]
        %v3704 = vld [vmem:[#allocation14 + $0xd8] sm:$0xf]
        %v3705 = vld [vmem:[#allocation14 + $0xdc] sm:$0xf]
        %v3706 = vld [vmem:[#allocation14 + $0xe0] sm:$0xf]
        %v3707 = vld [vmem:[#allocation14 + $0xe4] sm:$0xf]
        %v3708 = vld [vmem:[#allocation14 + $0xe8] sm:$0xf]
        %v3709 = vld [vmem:[#allocation14 + $0xec] sm:$0xf]
        %v3710 = vld [vmem:[#allocation14 + $0xf0] sm:$0xf]
        %v3711 = vld [vmem:[#allocation14 + $0xf4] sm:$0xf]
        %v3712 = vld [vmem:[#allocation14 + $0xf8] sm:$0xf]
        %v3713 = vld [vmem:[#allocation14 + $0xfc] sm:$0xf]
        %v3714 = vld [vmem:[#allocation14 + $0x100] sm:$0xf]
        %v3715 = vld [vmem:[#allocation14 + $0x104] sm:$0xf]
        %v3716 = vld [vmem:[#allocation14 + $0x108] sm:$0xf]
        %v3717 = vld [vmem:[#allocation14 + $0x10c] sm:$0xf]
        %v3718 = vld [vmem:[#allocation14 + $0x110] sm:$0xf]
        %v3719 = vld [vmem:[#allocation14 + $0x114] sm:$0xf]
        %v3720 = vld [vmem:[#allocation14 + $0x118] sm:$0xf]
        %v3721 = vld [vmem:[#allocation14 + $0x11c] sm:$0xf]
        %v3722 = vld [vmem:[#allocation14 + $0x120] sm:$0xf]
        %v3723 = vld [vmem:[#allocation14 + $0x124] sm:$0xf]
        %v3724 = vld [vmem:[#allocation14 + $0x128] sm:$0xf]
        %v3725 = vld [vmem:[#allocation14 + $0x12c] sm:$0xf]
        %v3726 = vld [vmem:[#allocation14 + $0x130] sm:$0xf]
        %v3727 = vld [vmem:[#allocation14 + $0x134] sm:$0xf]
        %v3728 = vld [vmem:[#allocation14 + $0x138] sm:$0xf]
        %v3729 = vld [vmem:[#allocation14 + $0x13c] sm:$0xf]
        %v3730 = vld [vmem:[#allocation14 + $0x140] sm:$0xf]
        %v3731 = vld [vmem:[#allocation14 + $0x144] sm:$0xf]
        %v3732 = vld [vmem:[#allocation14 + $0x148] sm:$0xf]
        %v3733 = vld [vmem:[#allocation14 + $0x14c] sm:$0xf]
        %v3734 = vld [vmem:[#allocation14 + $0x150] sm:$0xf]
        %v3735 = vld [vmem:[#allocation14 + $0x154] sm:$0xf]
        %v3736 = vld [vmem:[#allocation14 + $0x158] sm:$0xf]
        %v3737 = vld [vmem:[#allocation14 + $0x15c] sm:$0xf]
        %v3738 = vld [vmem:[#allocation14 + $0x160] sm:$0xf]
        %v3739 = vld [vmem:[#allocation14 + $0x164] sm:$0xf]
        %v3740 = vld [vmem:[#allocation14 + $0x168] sm:$0xf]
        %v3741 = vld [vmem:[#allocation14 + $0x16c] sm:$0xf]
        %v3742 = vld [vmem:[#allocation14 + $0x170] sm:$0xf]
        %v3743 = vld [vmem:[#allocation14 + $0x174] sm:$0xf]
        %v3744 = vld [vmem:[#allocation14 + $0x178] sm:$0xf]
        %v3745 = vld [vmem:[#allocation14 + $0x17c] sm:$0xf]
        %v3746 = vld [vmem:[%s11] sm:$0x1]
        %v3748 = vlaneseq
        %v3749 = vshrl.u32 %v3748, 7
        %v3750 = vsub.s32 0, %v3749
        %v3751 = vrot.slane %v3746, %v3750
        %v3849 = vunpack.c.l.b16 %v3650
        %v3850 = vunpack.c.l.b16 %v3651
        %v3851 = vunpack.c.l.b16 %v3652
        %v3852 = vunpack.c.l.b16 %v3653
        %v3853 = vunpack.c.l.b16 %v3654
        %v3854 = vunpack.c.l.b16 %v3655
        %v3855 = vunpack.c.l.b16 %v3656
        %v3856 = vunpack.c.l.b16 %v3657
        %v3857 = vunpack.c.l.b16 %v3658
        %v3858 = vunpack.c.l.b16 %v3659
        %v3859 = vunpack.c.l.b16 %v3660
        %v3860 = vunpack.c.l.b16 %v3661
        %v3861 = vunpack.c.l.b16 %v3662
        %v3862 = vunpack.c.l.b16 %v3663
        %v3863 = vunpack.c.l.b16 %v3664
        %v3864 = vunpack.c.l.b16 %v3665
        %v3865 = vunpack.c.l.b16 %v3666
        %v3866 = vunpack.c.l.b16 %v3667
        %v3867 = vunpack.c.l.b16 %v3668
        %v3868 = vunpack.c.l.b16 %v3669
        %v3869 = vunpack.c.l.b16 %v3670
        %v3870 = vunpack.c.l.b16 %v3671
        %v3871 = vunpack.c.l.b16 %v3672
        %v3872 = vunpack.c.l.b16 %v3673
        %v3873 = vunpack.c.l.b16 %v3674
        %v3874 = vunpack.c.l.b16 %v3675
        %v3875 = vunpack.c.l.b16 %v3676
        %v3876 = vunpack.c.l.b16 %v3677
        %v3877 = vunpack.c.l.b16 %v3678
        %v3878 = vunpack.c.l.b16 %v3679
        %v3879 = vunpack.c.l.b16 %v3680
        %v3880 = vunpack.c.l.b16 %v3681
        %v3881 = vunpack.c.l.b16 %v3682
        %v3882 = vunpack.c.l.b16 %v3683
        %v3883 = vunpack.c.l.b16 %v3684
        %v3884 = vunpack.c.l.b16 %v3685
        %v3885 = vunpack.c.l.b16 %v3686
        %v3886 = vunpack.c.l.b16 %v3687
        %v3887 = vunpack.c.l.b16 %v3688
        %v3888 = vunpack.c.l.b16 %v3689
        %v3889 = vunpack.c.l.b16 %v3690
        %v3890 = vunpack.c.l.b16 %v3691
        %v3891 = vunpack.c.l.b16 %v3692
        %v3892 = vunpack.c.l.b16 %v3693
        %v3893 = vunpack.c.l.b16 %v3694
        %v3894 = vunpack.c.l.b16 %v3695
        %v3895 = vunpack.c.l.b16 %v3696
        %v3896 = vunpack.c.l.b16 %v3697
        %v3897 = vunpack.c.l.b16 %v3698
        %v3898 = vunpack.c.l.b16 %v3699
        %v3899 = vunpack.c.l.b16 %v3700
        %v3900 = vunpack.c.l.b16 %v3701
        %v3901 = vunpack.c.l.b16 %v3702
        %v3902 = vunpack.c.l.b16 %v3703
        %v3903 = vunpack.c.l.b16 %v3704
        %v3904 = vunpack.c.l.b16 %v3705
        %v3905 = vunpack.c.l.b16 %v3706
        %v3906 = vunpack.c.l.b16 %v3707
        %v3907 = vunpack.c.l.b16 %v3708
        %v3908 = vunpack.c.l.b16 %v3709
        %v3909 = vunpack.c.l.b16 %v3710
        %v3910 = vunpack.c.l.b16 %v3711
        %v3911 = vunpack.c.l.b16 %v3712
        %v3912 = vunpack.c.l.b16 %v3713
        %v3913 = vunpack.c.l.b16 %v3714
        %v3914 = vunpack.c.l.b16 %v3715
        %v3915 = vunpack.c.l.b16 %v3716
        %v3916 = vunpack.c.l.b16 %v3717
        %v3917 = vunpack.c.l.b16 %v3718
        %v3918 = vunpack.c.l.b16 %v3719
        %v3919 = vunpack.c.l.b16 %v3720
        %v3920 = vunpack.c.l.b16 %v3721
        %v3921 = vunpack.c.l.b16 %v3722
        %v3922 = vunpack.c.l.b16 %v3723
        %v3923 = vunpack.c.l.b16 %v3724
        %v3924 = vunpack.c.l.b16 %v3725
        %v3925 = vunpack.c.l.b16 %v3726
        %v3926 = vunpack.c.l.b16 %v3727
        %v3927 = vunpack.c.l.b16 %v3728
        %v3928 = vunpack.c.l.b16 %v3729
        %v3929 = vunpack.c.l.b16 %v3730
        %v3930 = vunpack.c.l.b16 %v3731
        %v3931 = vunpack.c.l.b16 %v3732
        %v3932 = vunpack.c.l.b16 %v3733
        %v3933 = vunpack.c.l.b16 %v3734
        %v3934 = vunpack.c.l.b16 %v3735
        %v3935 = vunpack.c.l.b16 %v3736
        %v3936 = vunpack.c.l.b16 %v3737
        %v3937 = vunpack.c.l.b16 %v3738
        %v3938 = vunpack.c.l.b16 %v3739
        %v3939 = vunpack.c.l.b16 %v3740
        %v3940 = vunpack.c.l.b16 %v3741
        %v3941 = vunpack.c.l.b16 %v3742
        %v3942 = vunpack.c.l.b16 %v3743
        %v3943 = vunpack.c.l.b16 %v3744
        %v3944 = vunpack.c.l.b16 %v3745
        %v3945 = vpack.c.b16 %v3850, %v3849
        %v3946 = vpack.c.b16 %v3852, %v3851
        %v3947 = vpack.c.b16 %v3854, %v3853
        %v3948 = vpack.c.b16 %v3856, %v3855
        %v3949 = vpack.c.b16 %v3858, %v3857
        %v3950 = vpack.c.b16 %v3860, %v3859
        %v3951 = vpack.c.b16 %v3862, %v3861
        %v3952 = vpack.c.b16 %v3864, %v3863
        %v3953 = vpack.c.b16 %v3866, %v3865
        %v3954 = vpack.c.b16 %v3868, %v3867
        %v3955 = vpack.c.b16 %v3870, %v3869
        %v3956 = vpack.c.b16 %v3872, %v3871
        %v3957 = vpack.c.b16 %v3874, %v3873
        %v3958 = vpack.c.b16 %v3876, %v3875
        %v3959 = vpack.c.b16 %v3878, %v3877
        %v3960 = vpack.c.b16 %v3880, %v3879
        %v3961 = vpack.c.b16 %v3882, %v3881
        %v3962 = vpack.c.b16 %v3884, %v3883
        %v3963 = vpack.c.b16 %v3886, %v3885
        %v3964 = vpack.c.b16 %v3888, %v3887
        %v3965 = vpack.c.b16 %v3890, %v3889
        %v3966 = vpack.c.b16 %v3892, %v3891
        %v3967 = vpack.c.b16 %v3894, %v3893
        %v3968 = vpack.c.b16 %v3896, %v3895
        %v3969 = vpack.c.b16 %v3898, %v3897
        %v3970 = vpack.c.b16 %v3900, %v3899
        %v3971 = vpack.c.b16 %v3902, %v3901
        %v3972 = vpack.c.b16 %v3904, %v3903
        %v3973 = vpack.c.b16 %v3906, %v3905
        %v3974 = vpack.c.b16 %v3908, %v3907
        %v3975 = vpack.c.b16 %v3910, %v3909
        %v3976 = vpack.c.b16 %v3912, %v3911
        %v3977 = vpack.c.b16 %v3914, %v3913
        %v3978 = vpack.c.b16 %v3916, %v3915
        %v3979 = vpack.c.b16 %v3918, %v3917
        %v3980 = vpack.c.b16 %v3920, %v3919
        %v3981 = vpack.c.b16 %v3922, %v3921
        %v3982 = vpack.c.b16 %v3924, %v3923
        %v3983 = vpack.c.b16 %v3926, %v3925
        %v3984 = vpack.c.b16 %v3928, %v3927
        %v3985 = vpack.c.b16 %v3930, %v3929
        %v3986 = vpack.c.b16 %v3932, %v3931
        %v3987 = vpack.c.b16 %v3934, %v3933
        %v3988 = vpack.c.b16 %v3936, %v3935
        %v3989 = vpack.c.b16 %v3938, %v3937
        %v3990 = vpack.c.b16 %v3940, %v3939
        %v3991 = vpack.c.b16 %v3942, %v3941
        %v3992 = vpack.c.b16 %v3944, %v3943
        %4041 = vmatprep.subr.bf16.mxu0 0
        %4042 = vmatpush1.bf16.msra.mxu0 %v3952
        %4043 = vmatprep.subr.bf16.mxu0 0
        %4044 = vmatpush1.bf16.msra.mxu0 %v3951
        %4045 = vmatprep.subr.bf16.mxu0 0
        %4046 = vmatpush1.bf16.msra.mxu0 %v3950
        %4047 = vmatprep.subr.bf16.mxu0 0
        %4048 = vmatpush1.bf16.msra.mxu0 %v3949
        %4049 = vmatprep.subr.bf16.mxu0 0
        %4050 = vmatpush1.bf16.msra.mxu0 %v3948
        %4051 = vmatprep.subr.bf16.mxu0 0
        %4052 = vmatpush1.bf16.msra.mxu0 %v3947
        %4053 = vmatprep.subr.bf16.mxu0 0
        %4054 = vmatpush1.bf16.msra.mxu0 %v3946
        %4055 = vmatprep.subr.bf16.mxu0 0
        %4056 = vmatpush1.bf16.msra.mxu0 %v3945
        %4057 = vmatprep.subr.bf16.mxu0 0
        %4058 = vmatpush2.bf16.msra.mxu0 %v3960
        %4059 = vmatprep.subr.bf16.mxu0 0
        %4060 = vmatpush2.bf16.msra.mxu0 %v3959
        %4061 = vmatprep.subr.bf16.mxu0 0
        %4062 = vmatpush2.bf16.msra.mxu0 %v3958
        %4063 = vmatprep.subr.bf16.mxu0 0
        %4064 = vmatpush2.bf16.msra.mxu0 %v3957
        %4065 = vmatprep.subr.bf16.mxu0 0
        %4066 = vmatpush2.bf16.msra.mxu0 %v3956
        %4067 = vmatprep.subr.bf16.mxu0 0
        %4068 = vmatpush2.bf16.msra.mxu0 %v3955
        %4069 = vmatprep.subr.bf16.mxu0 0
        %4070 = vmatpush2.bf16.msra.mxu0 %v3954
        %4071 = vmatprep.subr.bf16.mxu0 0
        %4072 = vmatpush2.bf16.msra.mxu0 %v3953
        %4073 = vmatprep.mubr.bf16.mxu0 %v3603
        %4074 = vmatmul.mubr.bf16.gmra.mxu0 %v3602
        %v4075 = vpop.f32.mrf.mxu0
        %v4076 = vadd.f32 %v3751, %v4075
        %v4077 = vpop.f32.mrf.mxu0
        %v4078 = vpop.f32.mrf.mxu0
        %v4079 = vadd.f32 %v3751, %v4078
        %v4080 = vpop.f32.mrf.mxu0
        %4081 = vmatprep.mubr.bf16.mxu0 %v3605
        %4082 = vmatmul.mubr.bf16.gmra.mxu0 %v3604
        %v4083 = vpop.f32.mrf.mxu0
        %v4084 = vadd.f32 %v3751, %v4083
        %v4085 = vpop.f32.mrf.mxu0
        %v4086 = vpop.f32.mrf.mxu0
        %v4087 = vadd.f32 %v3751, %v4086
        %v4088 = vpop.f32.mrf.mxu0
        %4089 = vmatprep.mubr.bf16.mxu0 %v3607
        %4090 = vmatmul.mubr.bf16.gmra.mxu0 %v3606
        %v4091 = vpop.f32.mrf.mxu0
        %v4092 = vadd.f32 %v3751, %v4091
        %v4093 = vpop.f32.mrf.mxu0
        %v4094 = vpop.f32.mrf.mxu0
        %v4095 = vadd.f32 %v3751, %v4094
        %v4096 = vpop.f32.mrf.mxu0
        %4097 = vmatprep.mubr.bf16.mxu0 %v3609
        %4098 = vmatmul.mubr.bf16.gmra.mxu0 %v3608
        %v4099 = vpop.f32.mrf.mxu0
        %v4100 = vadd.f32 %v3751, %v4099
        %v4101 = vpop.f32.mrf.mxu0
        %v4102 = vpop.f32.mrf.mxu0
        %v4103 = vadd.f32 %v3751, %v4102
        %v4104 = vpop.f32.mrf.mxu0
        %4105 = vmatprep.mubr.bf16.mxu0 %v3611
        %4106 = vmatmul.mubr.bf16.gmra.mxu0 %v3610
        %v4107 = vpop.f32.mrf.mxu0
        %v4108 = vadd.f32 %v3751, %v4107
        %v4109 = vpop.f32.mrf.mxu0
        %v4110 = vpop.f32.mrf.mxu0
        %v4111 = vadd.f32 %v3751, %v4110
        %v4112 = vpop.f32.mrf.mxu0
        %4113 = vmatprep.mubr.bf16.mxu0 %v3613
        %4114 = vmatmul.mubr.bf16.gmra.mxu0 %v3612
        %v4115 = vpop.f32.mrf.mxu0
        %v4116 = vadd.f32 %v3751, %v4115
        %v4117 = vpop.f32.mrf.mxu0
        %v4118 = vpop.f32.mrf.mxu0
        %v4119 = vadd.f32 %v3751, %v4118
        %v4120 = vpop.f32.mrf.mxu0
        %4121 = vmatprep.mubr.bf16.mxu0 %v3615
        %4122 = vmatmul.mubr.bf16.gmra.mxu0 %v3614
        %v4123 = vpop.f32.mrf.mxu0
        %v4124 = vadd.f32 %v3751, %v4123
        %v4125 = vpop.f32.mrf.mxu0
        %v4126 = vpop.f32.mrf.mxu0
        %v4127 = vadd.f32 %v3751, %v4126
        %v4128 = vpop.f32.mrf.mxu0
        %4129 = vmatprep.mubr.bf16.mxu0 %v3617
        %4130 = vmatmul.mubr.bf16.gmra.mxu0 %v3616
        %v4131 = vpop.f32.mrf.mxu0
        %v4132 = vadd.f32 %v3751, %v4131
        %v4133 = vpop.f32.mrf.mxu0
        %v4134 = vpop.f32.mrf.mxu0
        %v4135 = vadd.f32 %v3751, %v4134
        %v4136 = vpop.f32.mrf.mxu0
        %4137 = vdwg.mxu0
        %4138 = vmatprep.subr.bf16.mxu0 0
        %4139 = vmatpush1.bf16.msra.mxu0 %v3968
        %4140 = vmatprep.subr.bf16.mxu0 0
        %4141 = vmatpush1.bf16.msra.mxu0 %v3967
        %4142 = vmatprep.subr.bf16.mxu0 0
        %4143 = vmatpush1.bf16.msra.mxu0 %v3966
        %4144 = vmatprep.subr.bf16.mxu0 0
        %4145 = vmatpush1.bf16.msra.mxu0 %v3965
        %4146 = vmatprep.subr.bf16.mxu0 0
        %4147 = vmatpush1.bf16.msra.mxu0 %v3964
        %4148 = vmatprep.subr.bf16.mxu0 0
        %4149 = vmatpush1.bf16.msra.mxu0 %v3963
        %4150 = vmatprep.subr.bf16.mxu0 0
        %4151 = vmatpush1.bf16.msra.mxu0 %v3962
        %4152 = vmatprep.subr.bf16.mxu0 0
        %4153 = vmatpush1.bf16.msra.mxu0 %v3961
        %4154 = vmatprep.subr.bf16.mxu0 0
        %4155 = vmatpush2.bf16.msra.mxu0 %v3976
        %4156 = vmatprep.subr.bf16.mxu0 0
        %4157 = vmatpush2.bf16.msra.mxu0 %v3975
        %4158 = vmatprep.subr.bf16.mxu0 0
        %4159 = vmatpush2.bf16.msra.mxu0 %v3974
        %4160 = vmatprep.subr.bf16.mxu0 0
        %4161 = vmatpush2.bf16.msra.mxu0 %v3973
        %4162 = vmatprep.subr.bf16.mxu0 0
        %4163 = vmatpush2.bf16.msra.mxu0 %v3972
        %4164 = vmatprep.subr.bf16.mxu0 0
        %4165 = vmatpush2.bf16.msra.mxu0 %v3971
        %4166 = vmatprep.subr.bf16.mxu0 0
        %4167 = vmatpush2.bf16.msra.mxu0 %v3970
        %4168 = vmatprep.subr.bf16.mxu0 0
        %4169 = vmatpush2.bf16.msra.mxu0 %v3969
        %4170 = vmatprep.mubr.bf16.mxu0 %v3619
        %4171 = vmatmul.mubr.bf16.gmra.mxu0 %v3618
        %v4172 = vpop.f32.mrf.mxu0
        %v4173 = vadd.f32 %v4076, %v4172
        %v4174 = vpop.f32.mrf.mxu0
        %v4175 = vpop.f32.mrf.mxu0
        %v4176 = vadd.f32 %v4079, %v4175
        %v4177 = vpop.f32.mrf.mxu0
        %4178 = vmatprep.mubr.bf16.mxu0 %v3621
        %4179 = vmatmul.mubr.bf16.gmra.mxu0 %v3620
        %v4180 = vpop.f32.mrf.mxu0
        %v4181 = vadd.f32 %v4084, %v4180
        %v4182 = vpop.f32.mrf.mxu0
        %v4183 = vpop.f32.mrf.mxu0
        %v4184 = vadd.f32 %v4087, %v4183
        %v4185 = vpop.f32.mrf.mxu0
        %4186 = vmatprep.mubr.bf16.mxu0 %v3623
        %4187 = vmatmul.mubr.bf16.gmra.mxu0 %v3622
        %v4188 = vpop.f32.mrf.mxu0
        %v4189 = vadd.f32 %v4092, %v4188
        %v4190 = vpop.f32.mrf.mxu0
        %v4191 = vpop.f32.mrf.mxu0
        %v4192 = vadd.f32 %v4095, %v4191
        %v4193 = vpop.f32.mrf.mxu0
        %4194 = vmatprep.mubr.bf16.mxu0 %v3625
        %4195 = vmatmul.mubr.bf16.gmra.mxu0 %v3624
        %v4196 = vpop.f32.mrf.mxu0
        %v4197 = vadd.f32 %v4100, %v4196
        %v4198 = vpop.f32.mrf.mxu0
        %v4199 = vpop.f32.mrf.mxu0
        %v4200 = vadd.f32 %v4103, %v4199
        %v4201 = vpop.f32.mrf.mxu0
        %4202 = vmatprep.mubr.bf16.mxu0 %v3627
        %4203 = vmatmul.mubr.bf16.gmra.mxu0 %v3626
        %v4204 = vpop.f32.mrf.mxu0
        %v4205 = vadd.f32 %v4108, %v4204
        %v4206 = vpop.f32.mrf.mxu0
        %v4207 = vpop.f32.mrf.mxu0
        %v4208 = vadd.f32 %v4111, %v4207
        %v4209 = vpop.f32.mrf.mxu0
        %4210 = vmatprep.mubr.bf16.mxu0 %v3629
        %4211 = vmatmul.mubr.bf16.gmra.mxu0 %v3628
        %v4212 = vpop.f32.mrf.mxu0
        %v4213 = vadd.f32 %v4116, %v4212
        %v4214 = vpop.f32.mrf.mxu0
        %v4215 = vpop.f32.mrf.mxu0
        %v4216 = vadd.f32 %v4119, %v4215
        %v4217 = vpop.f32.mrf.mxu0
        %4218 = vmatprep.mubr.bf16.mxu0 %v3631
        %4219 = vmatmul.mubr.bf16.gmra.mxu0 %v3630
        %v4220 = vpop.f32.mrf.mxu0
        %v4221 = vadd.f32 %v4124, %v4220
        %v4222 = vpop.f32.mrf.mxu0
        %v4223 = vpop.f32.mrf.mxu0
        %v4224 = vadd.f32 %v4127, %v4223
        %v4225 = vpop.f32.mrf.mxu0
        %4226 = vmatprep.mubr.bf16.mxu0 %v3633
        %4227 = vmatmul.mubr.bf16.gmra.mxu0 %v3632
        %v4228 = vpop.f32.mrf.mxu0
        %v4229 = vadd.f32 %v4132, %v4228
        %v4230 = vpop.f32.mrf.mxu0
        %v4231 = vpop.f32.mrf.mxu0
        %v4232 = vadd.f32 %v4135, %v4231
        %v4233 = vpop.f32.mrf.mxu0
        %4234 = vdwg.mxu0
        %4235 = vmatprep.subr.bf16.mxu0 0
        %4236 = vmatpush1.bf16.msra.mxu0 %v3984
        %4237 = vmatprep.subr.bf16.mxu0 0
        %4238 = vmatpush1.bf16.msra.mxu0 %v3983
        %4239 = vmatprep.subr.bf16.mxu0 0
        %4240 = vmatpush1.bf16.msra.mxu0 %v3982
        %4241 = vmatprep.subr.bf16.mxu0 0
        %4242 = vmatpush1.bf16.msra.mxu0 %v3981
        %4243 = vmatprep.subr.bf16.mxu0 0
        %4244 = vmatpush1.bf16.msra.mxu0 %v3980
        %4245 = vmatprep.subr.bf16.mxu0 0
        %4246 = vmatpush1.bf16.msra.mxu0 %v3979
        %4247 = vmatprep.subr.bf16.mxu0 0
        %4248 = vmatpush1.bf16.msra.mxu0 %v3978
        %4249 = vmatprep.subr.bf16.mxu0 0
        %4250 = vmatpush1.bf16.msra.mxu0 %v3977
        %4251 = vmatprep.subr.bf16.mxu0 0
        %4252 = vmatpush2.bf16.msra.mxu0 %v3992
        %4253 = vmatprep.subr.bf16.mxu0 0
        %4254 = vmatpush2.bf16.msra.mxu0 %v3991
        %4255 = vmatprep.subr.bf16.mxu0 0
        %4256 = vmatpush2.bf16.msra.mxu0 %v3990
        %4257 = vmatprep.subr.bf16.mxu0 0
        %4258 = vmatpush2.bf16.msra.mxu0 %v3989
        %4259 = vmatprep.subr.bf16.mxu0 0
        %4260 = vmatpush2.bf16.msra.mxu0 %v3988
        %4261 = vmatprep.subr.bf16.mxu0 0
        %4262 = vmatpush2.bf16.msra.mxu0 %v3987
        %4263 = vmatprep.subr.bf16.mxu0 0
        %4264 = vmatpush2.bf16.msra.mxu0 %v3986
        %4265 = vmatprep.subr.bf16.mxu0 0
        %4266 = vmatpush2.bf16.msra.mxu0 %v3985
        %4267 = vmatprep.mubr.bf16.mxu0 %v3635
        %4268 = vmatmul.mubr.bf16.gmra.mxu0 %v3634
        %v4269 = vpop.f32.mrf.mxu0
        %v4270 = vadd.f32 %v4173, %v4269
        %v4271 = vpop.f32.mrf.mxu0
        %v4272 = vpop.f32.mrf.mxu0
        %v4273 = vadd.f32 %v4176, %v4272
        %v4274 = vpop.f32.mrf.mxu0
        %4275 = vmatprep.mubr.bf16.mxu0 %v3637
        %4276 = vmatmul.mubr.bf16.gmra.mxu0 %v3636
        %v4277 = vpop.f32.mrf.mxu0
        %v4278 = vadd.f32 %v4181, %v4277
        %v4279 = vpop.f32.mrf.mxu0
        %v4280 = vpop.f32.mrf.mxu0
        %v4281 = vadd.f32 %v4184, %v4280
        %v4282 = vpop.f32.mrf.mxu0
        %4283 = vmatprep.mubr.bf16.mxu0 %v3639
        %4284 = vmatmul.mubr.bf16.gmra.mxu0 %v3638
        %v4285 = vpop.f32.mrf.mxu0
        %v4286 = vadd.f32 %v4189, %v4285
        %v4287 = vpop.f32.mrf.mxu0
        %v4288 = vpop.f32.mrf.mxu0
        %v4289 = vadd.f32 %v4192, %v4288
        %v4290 = vpop.f32.mrf.mxu0
        %4291 = vmatprep.mubr.bf16.mxu0 %v3641
        %4292 = vmatmul.mubr.bf16.gmra.mxu0 %v3640
        %v4293 = vpop.f32.mrf.mxu0
        %v4294 = vadd.f32 %v4197, %v4293
        %v4295 = vpop.f32.mrf.mxu0
        %v4296 = vpop.f32.mrf.mxu0
        %v4297 = vadd.f32 %v4200, %v4296
        %v4298 = vpop.f32.mrf.mxu0
        %4299 = vmatprep.mubr.bf16.mxu0 %v3643
        %4300 = vmatmul.mubr.bf16.gmra.mxu0 %v3642
        %v4301 = vpop.f32.mrf.mxu0
        %v4302 = vadd.f32 %v4205, %v4301
        %v4303 = vpop.f32.mrf.mxu0
        %v4304 = vpop.f32.mrf.mxu0
        %v4305 = vadd.f32 %v4208, %v4304
        %v4306 = vpop.f32.mrf.mxu0
        %4307 = vmatprep.mubr.bf16.mxu0 %v3645
        %4308 = vmatmul.mubr.bf16.gmra.mxu0 %v3644
        %v4309 = vpop.f32.mrf.mxu0
        %v4310 = vadd.f32 %v4213, %v4309
        %v4311 = vpop.f32.mrf.mxu0
        %v4312 = vpop.f32.mrf.mxu0
        %v4313 = vadd.f32 %v4216, %v4312
        %v4314 = vpop.f32.mrf.mxu0
        %4315 = vmatprep.mubr.bf16.mxu0 %v3647
        %4316 = vmatmul.mubr.bf16.gmra.mxu0 %v3646
        %v4317 = vpop.f32.mrf.mxu0
        %v4318 = vadd.f32 %v4221, %v4317
        %v4319 = vpop.f32.mrf.mxu0
        %v4320 = vpop.f32.mrf.mxu0
        %v4321 = vadd.f32 %v4224, %v4320
        %v4322 = vpop.f32.mrf.mxu0
        %4323 = vmatprep.mubr.bf16.mxu0 %v3649
        %4324 = vmatmul.mubr.bf16.gmra.mxu0 %v3648
        %v4325 = vpop.f32.mrf.mxu0
        %v4326 = vadd.f32 %v4229, %v4325
        %v4327 = vpop.f32.mrf.mxu0
        %v4328 = vpop.f32.mrf.mxu0
        %v4329 = vadd.f32 %v4232, %v4328
        %v4330 = vpop.f32.mrf.mxu0
        %4331 = vdwg.mxu0
        %vm4332 = vcmp.gt.f32.partialorder %v4270, 0.0
        %vm4333 = vcmp.gt.f32.partialorder %v4273, 0.0
        %vm4334 = vcmp.gt.f32.partialorder %v4278, 0.0
        %vm4335 = vcmp.gt.f32.partialorder %v4281, 0.0
        %vm4336 = vcmp.gt.f32.partialorder %v4286, 0.0
        %vm4337 = vcmp.gt.f32.partialorder %v4289, 0.0
        %vm4338 = vcmp.gt.f32.partialorder %v4294, 0.0
        %vm4339 = vcmp.gt.f32.partialorder %v4297, 0.0
        %vm4340 = vcmp.gt.f32.partialorder %v4302, 0.0
        %vm4341 = vcmp.gt.f32.partialorder %v4305, 0.0
        %vm4342 = vcmp.gt.f32.partialorder %v4310, 0.0
        %vm4343 = vcmp.gt.f32.partialorder %v4313, 0.0
        %vm4344 = vcmp.gt.f32.partialorder %v4318, 0.0
        %vm4345 = vcmp.gt.f32.partialorder %v4321, 0.0
        %vm4346 = vcmp.gt.f32.partialorder %v4326, 0.0
        %vm4347 = vcmp.gt.f32.partialorder %v4329, 0.0
        %v4348 = vmul.f32 %v4270, 0.01
        %v4349 = vmul.f32 %v4273, 0.01
        %v4350 = vmul.f32 %v4278, 0.01
        %v4351 = vmul.f32 %v4281, 0.01
        %v4352 = vmul.f32 %v4286, 0.01
        %v4353 = vmul.f32 %v4289, 0.01
        %v4354 = vmul.f32 %v4294, 0.01
        %v4355 = vmul.f32 %v4297, 0.01
        %v4356 = vmul.f32 %v4302, 0.01
        %v4357 = vmul.f32 %v4305, 0.01
        %v4358 = vmul.f32 %v4310, 0.01
        %v4359 = vmul.f32 %v4313, 0.01
        %v4360 = vmul.f32 %v4318, 0.01
        %v4361 = vmul.f32 %v4321, 0.01
        %v4362 = vmul.f32 %v4326, 0.01
        %v4363 = vmul.f32 %v4329, 0.01
        %v4364 = vsel %vm4332, %v4270, %v4348
        %v4365 = vsel %vm4333, %v4273, %v4349
        %v4366 = vsel %vm4334, %v4278, %v4350
        %v4367 = vsel %vm4335, %v4281, %v4351
        %v4368 = vsel %vm4336, %v4286, %v4352
        %v4369 = vsel %vm4337, %v4289, %v4353
        %v4370 = vsel %vm4338, %v4294, %v4354
        %v4371 = vsel %vm4339, %v4297, %v4355
        %v4372 = vsel %vm4340, %v4302, %v4356
        %v4373 = vsel %vm4341, %v4305, %v4357
        %v4374 = vsel %vm4342, %v4310, %v4358
        %v4375 = vsel %vm4343, %v4313, %v4359
        %v4376 = vsel %vm4344, %v4318, %v4360
        %v4377 = vsel %vm4345, %v4321, %v4361
        %v4378 = vsel %vm4346, %v4326, %v4362
        %v4379 = vsel %vm4347, %v4329, %v4363
        %v4380 = vpack.c.bf16 %v4365, %v4364
        %v4381 = vpack.c.bf16 %v4367, %v4366
        %v4382 = vpack.c.bf16 %v4369, %v4368
        %v4383 = vpack.c.bf16 %v4371, %v4370
        %v4384 = vpack.c.bf16 %v4373, %v4372
        %v4385 = vpack.c.bf16 %v4375, %v4374
        %v4386 = vpack.c.bf16 %v4377, %v4376
        %v4387 = vpack.c.bf16 %v4379, %v4378
        %v4388 = vld [vmem:[#allocation16] sm:$0xf]
        %v4389 = vld [vmem:[#allocation16 + $0x4] sm:$0xf]
        %v4390 = vld [vmem:[#allocation16 + $0x8] sm:$0xf]
        %v4391 = vld [vmem:[#allocation16 + $0xc] sm:$0xf]
        %v4392 = vld [vmem:[#allocation16 + $0x10] sm:$0xf]
        %v4393 = vld [vmem:[#allocation16 + $0x14] sm:$0xf]
        %v4394 = vld [vmem:[#allocation16 + $0x18] sm:$0xf]
        %v4395 = vld [vmem:[#allocation16 + $0x1c] sm:$0xf]
        %v4396 = vld [vmem:[#allocation16 + $0x20] sm:$0xf]
        %v4397 = vld [vmem:[#allocation16 + $0x24] sm:$0xf]
        %v4398 = vld [vmem:[#allocation16 + $0x28] sm:$0xf]
        %v4399 = vld [vmem:[#allocation16 + $0x2c] sm:$0xf]
        %v4400 = vld [vmem:[#allocation16 + $0x30] sm:$0xf]
        %v4401 = vld [vmem:[#allocation16 + $0x34] sm:$0xf]
        %v4402 = vld [vmem:[#allocation16 + $0x38] sm:$0xf]
        %v4403 = vld [vmem:[#allocation16 + $0x3c] sm:$0xf]
        %v4404 = vld [vmem:[%s13] sm:$0x1]
        %v4406 = vlaneseq
        %v4407 = vshrl.u32 %v4406, 7
        %v4408 = vsub.s32 0, %v4407
        %v4409 = vrot.slane %v4404, %v4408
        %v4427 = vunpack.c.l.b16 %v4388
        %v4428 = vunpack.c.l.b16 %v4389
        %v4429 = vunpack.c.l.b16 %v4390
        %v4430 = vunpack.c.l.b16 %v4391
        %v4431 = vunpack.c.l.b16 %v4392
        %v4432 = vunpack.c.l.b16 %v4393
        %v4433 = vunpack.c.l.b16 %v4394
        %v4434 = vunpack.c.l.b16 %v4395
        %v4435 = vunpack.c.l.b16 %v4396
        %v4436 = vunpack.c.l.b16 %v4397
        %v4437 = vunpack.c.l.b16 %v4398
        %v4438 = vunpack.c.l.b16 %v4399
        %v4439 = vunpack.c.l.b16 %v4400
        %v4440 = vunpack.c.l.b16 %v4401
        %v4441 = vunpack.c.l.b16 %v4402
        %v4442 = vunpack.c.l.b16 %v4403
        %v4443 = vpack.c.b16 %v4428, %v4427
        %v4444 = vpack.c.b16 %v4430, %v4429
        %v4445 = vpack.c.b16 %v4432, %v4431
        %v4446 = vpack.c.b16 %v4434, %v4433
        %v4447 = vpack.c.b16 %v4436, %v4435
        %v4448 = vpack.c.b16 %v4438, %v4437
        %v4449 = vpack.c.b16 %v4440, %v4439
        %v4450 = vpack.c.b16 %v4442, %v4441
        %4459 = vmatprep.subr.bf16.mxu0 0
        %4460 = vmatpush1.bf16.msra.mxu0 %v4450
        %4461 = vmatprep.subr.bf16.mxu0 0
        %4462 = vmatpush1.bf16.msra.mxu0 %v4449
        %4463 = vmatprep.subr.bf16.mxu0 0
        %4464 = vmatpush1.bf16.msra.mxu0 %v4448
        %4465 = vmatprep.subr.bf16.mxu0 0
        %4466 = vmatpush1.bf16.msra.mxu0 %v4447
        %4467 = vmatprep.subr.bf16.mxu0 0
        %4468 = vmatpush1.bf16.msra.mxu0 %v4446
        %4469 = vmatprep.subr.bf16.mxu0 0
        %4470 = vmatpush1.bf16.msra.mxu0 %v4445
        %4471 = vmatprep.subr.bf16.mxu0 0
        %4472 = vmatpush1.bf16.msra.mxu0 %v4444
        %4473 = vmatprep.subr.bf16.mxu0 0
        %4474 = vmatpush1.bf16.msra.mxu0 %v4443
        %4475 = vmatprep.subr.bf16.mxu0 0
        %4476 = vmatpush2.bf16.msra.mxu0 0
        %4477 = vmatprep.subr.bf16.mxu0 0
        %4478 = vmatpush2.bf16.msra.mxu0 0
        %4479 = vmatprep.subr.bf16.mxu0 0
        %4480 = vmatpush2.bf16.msra.mxu0 0
        %4481 = vmatprep.subr.bf16.mxu0 0
        %4482 = vmatpush2.bf16.msra.mxu0 0
        %4483 = vmatprep.subr.bf16.mxu0 0
        %4484 = vmatpush2.bf16.msra.mxu0 0
        %4485 = vmatprep.subr.bf16.mxu0 0
        %4486 = vmatpush2.bf16.msra.mxu0 0
        %4487 = vmatprep.subr.bf16.mxu0 0
        %4488 = vmatpush2.bf16.msra.mxu0 0
        %4489 = vmatprep.subr.bf16.mxu0 0
        %4490 = vmatpush2.bf16.msra.mxu0 0
        %4491 = vmatprep.mubr.bf16.mxu0 0
        %4492 = vmatmul.mubr.bf16.gmra.mxu0 %v4380
        %v4493 = vpop.f32.mrf.mxu0
        %v4494 = vadd.f32 %v4409, %v4493
        %v4495 = vpop.f32.mrf.mxu0
        %v4496 = vpop.f32.mrf.mxu0
        %v4497 = vadd.f32 %v4409, %v4496
        %v4498 = vpop.f32.mrf.mxu0
        %4499 = vmatprep.mubr.bf16.mxu0 0
        %4500 = vmatmul.mubr.bf16.gmra.mxu0 %v4381
        %v4501 = vpop.f32.mrf.mxu0
        %v4502 = vadd.f32 %v4409, %v4501
        %v4503 = vpop.f32.mrf.mxu0
        %v4504 = vpop.f32.mrf.mxu0
        %v4505 = vadd.f32 %v4409, %v4504
        %v4506 = vpop.f32.mrf.mxu0
        %4507 = vmatprep.mubr.bf16.mxu0 0
        %4508 = vmatmul.mubr.bf16.gmra.mxu0 %v4382
        %v4509 = vpop.f32.mrf.mxu0
        %v4510 = vadd.f32 %v4409, %v4509
        %v4511 = vpop.f32.mrf.mxu0
        %v4512 = vpop.f32.mrf.mxu0
        %v4513 = vadd.f32 %v4409, %v4512
        %v4514 = vpop.f32.mrf.mxu0
        %4515 = vmatprep.mubr.bf16.mxu0 0
        %4516 = vmatmul.mubr.bf16.gmra.mxu0 %v4383
        %v4517 = vpop.f32.mrf.mxu0
        %v4518 = vadd.f32 %v4409, %v4517
        %v4519 = vpop.f32.mrf.mxu0
        %v4520 = vpop.f32.mrf.mxu0
        %v4521 = vadd.f32 %v4409, %v4520
        %v4522 = vpop.f32.mrf.mxu0
        %4523 = vmatprep.mubr.bf16.mxu0 0
        %4524 = vmatmul.mubr.bf16.gmra.mxu0 %v4384
        %v4525 = vpop.f32.mrf.mxu0
        %v4526 = vadd.f32 %v4409, %v4525
        %v4527 = vpop.f32.mrf.mxu0
        %v4528 = vpop.f32.mrf.mxu0
        %v4529 = vadd.f32 %v4409, %v4528
        %v4530 = vpop.f32.mrf.mxu0
        %4531 = vmatprep.mubr.bf16.mxu0 0
        %4532 = vmatmul.mubr.bf16.gmra.mxu0 %v4385
        %v4533 = vpop.f32.mrf.mxu0
        %v4534 = vadd.f32 %v4409, %v4533
        %v4535 = vpop.f32.mrf.mxu0
        %v4536 = vpop.f32.mrf.mxu0
        %v4537 = vadd.f32 %v4409, %v4536
        %v4538 = vpop.f32.mrf.mxu0
        %4539 = vmatprep.mubr.bf16.mxu0 0
        %4540 = vmatmul.mubr.bf16.gmra.mxu0 %v4386
        %v4541 = vpop.f32.mrf.mxu0
        %v4542 = vadd.f32 %v4409, %v4541
        %v4543 = vpop.f32.mrf.mxu0
        %v4544 = vpop.f32.mrf.mxu0
        %v4545 = vadd.f32 %v4409, %v4544
        %v4546 = vpop.f32.mrf.mxu0
        %4547 = vmatprep.mubr.bf16.mxu0 0
        %4548 = vmatmul.mubr.bf16.gmra.mxu0 %v4387
        %v4549 = vpop.f32.mrf.mxu0
        %v4550 = vadd.f32 %v4409, %v4549
        %v4551 = vpop.f32.mrf.mxu0
        %v4552 = vpop.f32.mrf.mxu0
        %v4553 = vadd.f32 %v4409, %v4552
        %v4554 = vpop.f32.mrf.mxu0
        %4555 = vdwg.mxu0
        %s4556 = sld [smem:[#allocation4 + %s49]]
        %v4557 = vstv %s4556
        %vm4558 = vcmp.lt.s32.totalorder %v595, %v4557
        %vm4559 = vcmp.lt.s32.totalorder %v2422, %v4557
        %vm4560 = vcmp.lt.s32.totalorder %v2423, %v4557
        %vm4561 = vcmp.lt.s32.totalorder %v2424, %v4557
        %vm4562 = vcmp.lt.s32.totalorder %v2425, %v4557
        %vm4563 = vcmp.lt.s32.totalorder %v2426, %v4557
        %vm4564 = vcmp.lt.s32.totalorder %v2427, %v4557
        %vm4565 = vcmp.lt.s32.totalorder %v2428, %v4557
        %vm4566 = vcmp.lt.s32.totalorder %v2429, %v4557
        %vm4567 = vcmp.lt.s32.totalorder %v2430, %v4557
        %vm4568 = vcmp.lt.s32.totalorder %v2431, %v4557
        %vm4569 = vcmp.lt.s32.totalorder %v2432, %v4557
        %vm4570 = vcmp.lt.s32.totalorder %v2433, %v4557
        %vm4571 = vcmp.lt.s32.totalorder %v2434, %v4557
        %vm4572 = vcmp.lt.s32.totalorder %v2435, %v4557
        %vm4573 = vcmp.lt.s32.totalorder %v2436, %v4557
        %v4574 = vsel %vm4558, 1, 0
        %v4575 = vsel %vm4559, 1, 0
        %v4576 = vsel %vm4560, 1, 0
        %v4577 = vsel %vm4561, 1, 0
        %v4578 = vsel %vm4562, 1, 0
        %v4579 = vsel %vm4563, 1, 0
        %v4580 = vsel %vm4564, 1, 0
        %v4581 = vsel %vm4565, 1, 0
        %v4582 = vsel %vm4566, 1, 0
        %v4583 = vsel %vm4567, 1, 0
        %v4584 = vsel %vm4568, 1, 0
        %v4585 = vsel %vm4569, 1, 0
        %v4586 = vsel %vm4570, 1, 0
        %v4587 = vsel %vm4571, 1, 0
        %v4588 = vsel %vm4572, 1, 0
        %v4589 = vsel %vm4573, 1, 0
        %vm4590 = vcmp.eq.s32.totalorder %v4574, 1
        %vm4591 = vcmp.eq.s32.totalorder %v4575, 1
        %vm4592 = vcmp.eq.s32.totalorder %v4576, 1
        %vm4593 = vcmp.eq.s32.totalorder %v4577, 1
        %vm4594 = vcmp.eq.s32.totalorder %v4578, 1
        %vm4595 = vcmp.eq.s32.totalorder %v4579, 1
        %vm4596 = vcmp.eq.s32.totalorder %v4580, 1
        %vm4597 = vcmp.eq.s32.totalorder %v4581, 1
        %vm4598 = vcmp.eq.s32.totalorder %v4582, 1
        %vm4599 = vcmp.eq.s32.totalorder %v4583, 1
        %vm4600 = vcmp.eq.s32.totalorder %v4584, 1
        %vm4601 = vcmp.eq.s32.totalorder %v4585, 1
        %vm4602 = vcmp.eq.s32.totalorder %v4586, 1
        %vm4603 = vcmp.eq.s32.totalorder %v4587, 1
        %vm4604 = vcmp.eq.s32.totalorder %v4588, 1
        %vm4605 = vcmp.eq.s32.totalorder %v4589, 1
        %v4606 = vsel %vm4590, %v4494, 0.0
        %v4607 = vsel %vm4591, %v4497, 0.0
        %v4608 = vsel %vm4592, %v4502, 0.0
        %v4609 = vsel %vm4593, %v4505, 0.0
        %v4610 = vsel %vm4594, %v4510, 0.0
        %v4611 = vsel %vm4595, %v4513, 0.0
        %v4612 = vsel %vm4596, %v4518, 0.0
        %v4613 = vsel %vm4597, %v4521, 0.0
        %v4614 = vsel %vm4598, %v4526, 0.0
        %v4615 = vsel %vm4599, %v4529, 0.0
        %v4616 = vsel %vm4600, %v4534, 0.0
        %v4617 = vsel %vm4601, %v4537, 0.0
        %v4618 = vsel %vm4602, %v4542, 0.0
        %v4619 = vsel %vm4603, %v4545, 0.0
        %v4620 = vsel %vm4604, %v4550, 0.0
        %v4621 = vsel %vm4605, %v4553, 0.0
        %4622 = vst [vmem:[%s589] sm:$0xff] %v4606
        %4623 = vst [vmem:[%s589 + $0x8] sm:$0xff] %v4607
        %4624 = vst [vmem:[%s589 + $0x10] sm:$0xff] %v4608
        %4625 = vst [vmem:[%s589 + $0x18] sm:$0xff] %v4609
        %4626 = vst [vmem:[%s589 + $0x20] sm:$0xff] %v4610
        %4627 = vst [vmem:[%s589 + $0x28] sm:$0xff] %v4611
        %4628 = vst [vmem:[%s589 + $0x30] sm:$0xff] %v4612
        %4629 = vst [vmem:[%s589 + $0x38] sm:$0xff] %v4613
        %4630 = vst [vmem:[%s589 + $0x40] sm:$0xff] %v4614
        %4631 = vst [vmem:[%s589 + $0x48] sm:$0xff] %v4615
        %4632 = vst [vmem:[%s589 + $0x50] sm:$0xff] %v4616
        %4633 = vst [vmem:[%s589 + $0x58] sm:$0xff] %v4617
        %4634 = vst [vmem:[%s589 + $0x60] sm:$0xff] %v4618
        %4635 = vst [vmem:[%s589 + $0x68] sm:$0xff] %v4619
        %4636 = vst [vmem:[%s589 + $0x70] sm:$0xff] %v4620
        %4637 = vst [vmem:[%s589 + $0x78] sm:$0xff] %v4621
        %s4638 = sand.u32 %s319, 1
        %s4639 = scalar_lea.sflag [#allocation7], %s4638
        %s4640 = sand.u32 %s319, 1
        %s4641 = smul.addr %s4640, 8
        %s4642 = scalar_lea.vmem [#allocation17], %s4641
        %s4643 = sand.u32 %s345, 1
        %s4644 = scalar_lea.sflag [#allocation19], %s4643
        %s4645 = sand.u32 %s345, 1
        %s4646 = smul.addr %s4645, 128
        %s4647 = scalar_lea.vmem [#allocation18], %s4646
        // Predicated region
        $region97: #{tpu_custom_call.1} parent=67 // pred_check
          %p4648 = pneg %p329
        $region98: #{tpu_custom_call.1} parent=67 // pred_check_branch
          %4650 = sbr.rel (%p4648) target = $region100
        $region99: #{tpu_custom_call.1} parent=67 // pred_region
          %s4652 = ssub.s32 128, 128
          %4653 = vsyncadd %s4639, %s4652
          %s4654 = smul.addr %s49, 128
          %s4655 = scalar_lea.hbm %s14, %s4654
          %s4657 = sshll.u32 %s4642, 4
          %s4658 = int_to_ptr.vmem [resolvable:$true] %s4657
          %4660 = dma.vmem_to_hbm [thread:$0]  %s4658, 128, %s4655, %s4639
        $region100: #{tpu_custom_call.1} parent=67 // pred_fallthru
          _
        // Predicated region
        $region101: #{tpu_custom_call.1} parent=67 // pred_check
          %p4661 = pneg %p355
        $region102: #{tpu_custom_call.1} parent=67 // pred_check_branch
          %4663 = sbr.rel (%p4661) target = $region104
        $region103: #{tpu_custom_call.1} parent=67 // pred_region
          %s4665 = ssub.s32 2048, 2048
          %4666 = vsyncadd %s4644, %s4665
          %s4667 = smul.addr %s49, 16
          %s4668 = smul.addr %s4667, 128
          %s4669 = scalar_lea.hbm %s15, %s4668
          %s4670 = sshll.u32 %s4647, 4
          %s4671 = int_to_ptr.vmem [resolvable:$true] %s4670
          %4676 = dma.vmem_to_hbm [thread:$0]  %s4671, 2048, %s4669, %s4644, 128, 128, 8
        $region104: #{tpu_custom_call.1} parent=67 // pred_fallthru
          _
      $region68: #{tpu_custom_call.1} parent=5 // pred_fallthru
        _
      %p4677 = scmp.le.s32.totalorder 2, %s44
      // Predicated region
      $region105: #{tpu_custom_call.1} parent=5 // pred_check
        %p4678 = pneg %p4677
      $region106: #{tpu_custom_call.1} parent=5 // pred_check_branch
        %4680 = sbr.rel (%p4678) target = $region108
      $region107: #{tpu_custom_call.1} parent=5 // pred_region
        %s4681 = ssub.s32 %s44, 2
        // Predicated region
        $region109: #{tpu_custom_call.1} parent=107 // pred_check
          %p4682 = pneg %p335
        $region110: #{tpu_custom_call.1} parent=107 // pred_check_branch
          %4684 = sbr.rel (%p4682) target = $region112
        $region111: #{tpu_custom_call.1} parent=107 // pred_region
          %s4685 = sand.u32 %s320, 1
          %s4686 = scalar_lea.sflag [#allocation7], %s4685
          %s4687 = sand.u32 %s320, 1
          %s4688 = smul.addr %s4687, 8
          %s4689 = scalar_lea.vmem [#allocation17], %s4688
          %4690 = dma.done %s4686, 128
        $region112: #{tpu_custom_call.1} parent=107 // pred_fallthru
          _
        // Predicated region
        $region113: #{tpu_custom_call.1} parent=107 // pred_check
          %p4691 = pneg %p361
        $region114: #{tpu_custom_call.1} parent=107 // pred_check_branch
          %4693 = sbr.rel (%p4691) target = $region116
        $region115: #{tpu_custom_call.1} parent=107 // pred_region
          %s4694 = sand.u32 %s346, 1
          %s4695 = scalar_lea.sflag [#allocation19], %s4694
          %s4696 = sand.u32 %s346, 1
          %s4697 = smul.addr %s4696, 128
          %s4698 = scalar_lea.vmem [#allocation18], %s4697
          %4699 = dma.done %s4695, 2048
        $region116: #{tpu_custom_call.1} parent=107 // pred_fallthru
          _
      $region108: #{tpu_custom_call.1} parent=5 // pred_fallthru
        _
    $region6: #{tpu_custom_call.1} parent=1 // loop_footer
      %s48 = sadd.s32 1, %s44
    $region7: #{tpu_custom_call.1} parent=1 // loop_footer_branch
      %43 = sbr.rel target = $region3
    $region8: #{tpu_custom_call.1} parent=1 // loop_exit
      _
    %4700 = vsyncpa [#allocation6], 1
    %s4701 = scalar_lea.sflag [#allocation6], 1
    %4702 = vsyncpa %s4701, 1
    %4703 = vsyncpa [#allocation9], 1
    %s4704 = scalar_lea.sflag [#allocation9], 1
    %4705 = vsyncpa %s4704, 1
    %4706 = vsyncpa [#allocation12], 1
    %4707 = vsyncpa [#allocation15], 1
    %4708 = vsyncpa [#allocation7], 1
    %s4709 = scalar_lea.sflag [#allocation7], 1
    %4710 = vsyncpa %s4709, 1
    %4711 = vsyncpa [#allocation19], 1
    %s4712 = scalar_lea.sflag [#allocation19], 1
    %4713 = vsyncpa %s4712, 1

// kernel: tpu_custom_call.1
$region0: #{tpu_custom_call.1}
  #allocation0 [shape = 'u32[]', space=smem, size = 0x4, offset = 0x4, fixed_abs, tag = 'smem constant byte address 0x4 - core index']
  #allocation1 [shape = 'u32[144,128]{1,0:T(1,128)}', space=vmem, size = 0x12000, scoped, tag = 'internal scratch']
  #allocation2 [shape = 's32[1]{0}', space=sflag, size = 0x4, scoped, tag = 'scoped memory for tpu_custom_call.1']
  #allocation3 [shape = 'u8[512]{0}', space=smem, size = 0x200, scoped, tag = 'prefetched SMEM operand 0']
  #allocation4 [shape = 'u8[512]{0}', space=smem, size = 0x200, scoped, tag = 'prefetched SMEM operand 1']
  %s0 = inlined_call_operand.hbm [shape: s32[2], index: 0, kind: input, shape index: {}]
  %s1 = inlined_call_operand.vmem [shape: s32[2], index: 1, kind: input, shape index: {}]
  %s2 = inlined_call_operand.hbm [shape: bf16[2,8,256], index: 2, kind: input, shape index: {}]
  %s3 = inlined_call_operand.hbm [shape: bf16[2,128,128], index: 3, kind: input, shape index: {}]
  %s4 = inlined_call_operand.hbm [shape: bf16[768,512], index: 4, kind: input, shape index: {}]
  %s5 = inlined_call_operand.vmem [shape: f32[1,512], index: 5, kind: input, shape index: {}]
  %s6 = inlined_call_operand.hbm [shape: bf16[512,128], index: 6, kind: input, shape index: {}]
  %s7 = inlined_call_operand.vmem [shape: f32[1,128], index: 7, kind: input, shape index: {}]
  %s8 = inlined_call_operand.hbm [shape: bf16[384,256], index: 8, kind: input, shape index: {}]
  %s9 = inlined_call_operand.vmem [shape: f32[1,256], index: 9, kind: input, shape index: {}]
  %s10 = inlined_call_operand.hbm [shape: bf16[768,128], index: 10, kind: input, shape index: {}]
  %s11 = inlined_call_operand.vmem [shape: f32[1,128], index: 11, kind: input, shape index: {}]
  %s12 = inlined_call_operand.hbm [shape: bf16[128,128], index: 12, kind: input, shape index: {}]
  %s13 = inlined_call_operand.vmem [shape: f32[1,128], index: 13, kind: input, shape index: {}]
  %s14 = inlined_call_operand.hbm [shape: f32[2,8,128], index: 14, kind: output, shape index: {0}]
  %s15 = inlined_call_operand.hbm [shape: f32[2,128,128], index: 15, kind: output, shape index: {1}]
  %16 = xla_tuple %s14, %s15
  %s17 = sld [smem:[#allocation0]]
  $region117: #{tpu_custom_call.1} parent=0
    _
  %s19 = ssub.s32 1, %s17
  %s20 = scalar_select 0, %s19, %s17
  %22 = dma.hbm_to_smem %s0, 16, [#allocation3], [#allocation2]
  %s23 = sshll.u32 %s1, 4
  %s24 = int_to_ptr.vmem [resolvable:$true] %s23
  %26 = dma.vmem_to_smem %s24, 16, [#allocation4], [#allocation2]
  %27 = dma.done [#allocation2], 32
  %28 = sfence
  $region1: #{tpu_custom_call.1} parent=0
    #allocation5 [shape = 'u8[8192]{0}', space=vmem, size = 0x2000, scoped, tag = 'input window, operand 2']
    #allocation6 [shape = 's32[2]{0}', space=sflag, size = 0x8, scoped, tag = 'scoped memory for tpu_custom_call.1']
    #allocation7 [shape = 's32[2]{0}', space=sflag, size = 0x8, scoped, tag = 'scoped memory for tpu_custom_call.1']
    #allocation8 [shape = 'u8[65536]{0}', space=vmem, size = 0x10000, scoped, tag = 'input window, operand 3']
    #allocation9 [shape = 's32[2]{0}', space=sflag, size = 0x8, scoped, tag = 'scoped memory for tpu_custom_call.1']
    #allocation10 [shape = 'u8[786432]{0}', space=vmem, size = 0xc0000, scoped, tag = 'input window, operand 4, single buffered']
    #allocation11 [shape = 'u8[131072]{0}', space=vmem, size = 0x20000, scoped, tag = 'input window, operand 6, single buffered']
    #allocation12 [shape = 's32[1]{0}', space=sflag, size = 0x4, scoped, tag = 'scoped memory for tpu_custom_call.1']
    #allocation13 [shape = 'u8[196608]{0}', space=vmem, size = 0x30000, scoped, tag = 'input window, operand 8, single buffered']
    #allocation14 [shape = 'u8[196608]{0}', space=vmem, size = 0x30000, scoped, tag = 'input window, operand 10, single buffered']
    #allocation15 [shape = 's32[1]{0}', space=sflag, size = 0x4, scoped, tag = 'scoped memory for tpu_custom_call.1']
    #allocation16 [shape = 'u8[32768]{0}', space=vmem, size = 0x8000, scoped, tag = 'input window, operand 12, single buffered']
    #allocation17 [shape = 'u8[8192]{0}', space=vmem, size = 0x2000, scoped, tag = 'output window, operand 0']
    #allocation18 [shape = 'u8[131072]{0}', space=vmem, size = 0x20000, scoped, tag = 'output window, operand 1']
    #allocation19 [shape = 's32[2]{0}', space=sflag, size = 0x8, scoped, tag = 'scoped memory for tpu_custom_call.1']
    %29 = vsyncpa [#allocation6], 0
    %s30 = scalar_lea.sflag [#allocation6], 1
    %31 = vsyncpa %s30, 0
    %32 = vsyncpa [#allocation9], 0
    %s33 = scalar_lea.sflag [#allocation9], 1
    %34 = vsyncpa %s33, 0
    %35 = vsyncpa [#allocation12], 0
    %36 = vsyncpa [#allocation15], 0
    %37 = vsyncpa [#allocation7], 0
    %s38 = scalar_lea.sflag [#allocation7], 1
    %39 = vsyncpa %s38, 0
    %40 = vsyncpa [#allocation19], 0
    %s41 = scalar_lea.sflag [#allocation19], 1
    %42 = vsyncpa %s41, 0
    loop: start=0, step=1, limit=4
    $region2: #{tpu_custom_call.1} parent=1 // loop_pre_header
      _
    $region3: #{tpu_custom_call.1} parent=1 // loop_header
      %s44 = sphi 0, %s48
      %p45 = scmp.ge.s32.totalorder %s44, 4
      %s54 = sphi 0, %s56
      %s57 = sphi 0, %s54
      %s58 = sphi 0, %s57
      %s74 = sphi 0, %s58
      %s80 = sphi 0, %s82
      %s83 = sphi 0, %s80
      %s84 = sphi 0, %s83
      %s100 = sphi 0, %s84
      %s104 = sphi 0, %s104
      %s106 = sphi 0, %s104
      %s107 = sphi 0, %s106
      %s121 = sphi 0, %s107
      %s125 = sphi 0, %s125
      %s127 = sphi 0, %s125
      %s128 = sphi 0, %s127
      %s142 = sphi 0, %s128
      %s146 = sphi 0, %s146
      %s148 = sphi 0, %s146
      %s149 = sphi 0, %s148
      %s163 = sphi 0, %s149
      %s167 = sphi 0, %s167
      %s169 = sphi 0, %s167
      %s170 = sphi 0, %s169
      %s184 = sphi 0, %s170
      %s188 = sphi 0, %s188
      %s190 = sphi 0, %s188
      %s191 = sphi 0, %s190
      %s205 = sphi 0, %s191
      %s209 = sphi 0, %s209
      %s211 = sphi 0, %s209
      %s212 = sphi 0, %s211
      %s226 = sphi 0, %s212
      %s230 = sphi 0, %s230
      %s232 = sphi 0, %s230
      %s233 = sphi 0, %s232
      %s247 = sphi 0, %s233
      %s251 = sphi 0, %s251
      %s253 = sphi 0, %s251
      %s254 = sphi 0, %s253
      %s268 = sphi 0, %s254
      %s272 = sphi 0, %s272
      %s274 = sphi 0, %s272
      %s275 = sphi 0, %s274
      %s289 = sphi 0, %s275
      %s293 = sphi 0, %s293
      %s295 = sphi 0, %s293
      %s296 = sphi 0, %s295
      %s310 = sphi 0, %s296
      %s316 = sphi 0, %s318
      %s319 = sphi 0, %s316
      %s320 = sphi 0, %s319
      %s336 = sphi 0, %s320
      %s342 = sphi 0, %s344
      %s345 = sphi 0, %s342
      %s346 = sphi 0, %s345
      %s362 = sphi 0, %s346
    $region4: #{tpu_custom_call.1} parent=1 // loop_header_branch
      %47 = sbr.rel (%p45) target = $region8
    $region5: #{tpu_custom_call.1} parent=1 // loop_body
      %s49 = ssub.s32 %s44, 1
      %s50 = ssub.s32 %s44, 2
      %s51 = sadd.s32 %s44, 1
      %s52 = ssub.s32 %s44, %s51
      %p53 = scmp.eq.s32.totalorder %s52, 0
      %s55 = sadd.s32 %s54, 1
      %s56 = scalar_select %p53, %s54, %s55
      %p59 = pneg %p53
      %p60 = scmp.eq.s32.totalorder %s44, 1
      %p61 = por %p59, %p60
      %p62 = scmp.ne.s32.totalorder %s54, %s57
      %p63 = scmp.eq.s32.totalorder %s44, 0
      %p64 = por %p62, %p63
      %p65 = scmp.ne.s32.totalorder %s54, %s57
      %p66 = scmp.eq.s32.totalorder %s49, 1
      %p67 = por %p65, %p66
      %p68 = scmp.ne.s32.totalorder %s57, %s58
      %p69 = scmp.eq.s32.totalorder %s49, 0
      %p70 = por %p68, %p69
      %p71 = scmp.ne.s32.totalorder %s57, %s58
      %p72 = scmp.eq.s32.totalorder %s50, 1
      %p73 = por %p71, %p72
      %p75 = scmp.ne.s32.totalorder %s58, %s74
      %p76 = scmp.eq.s32.totalorder %s50, 0
      %p77 = por %p75, %p76
      %s78 = ssub.s32 %s44, %s51
      %p79 = scmp.eq.s32.totalorder %s78, 0
      %s81 = sadd.s32 %s80, 1
      %s82 = scalar_select %p79, %s80, %s81
      %p85 = pneg %p79
      %p86 = scmp.eq.s32.totalorder %s44, 1
      %p87 = por %p85, %p86
      %p88 = scmp.ne.s32.totalorder %s80, %s83
      %p89 = scmp.eq.s32.totalorder %s44, 0
      %p90 = por %p88, %p89
      %p91 = scmp.ne.s32.totalorder %s80, %s83
      %p92 = scmp.eq.s32.totalorder %s49, 1
      %p93 = por %p91, %p92
      %p94 = scmp.ne.s32.totalorder %s83, %s84
      %p95 = scmp.eq.s32.totalorder %s49, 0
      %p96 = por %p94, %p95
      %p97 = scmp.ne.s32.totalorder %s83, %s84
      %p98 = scmp.eq.s32.totalorder %s50, 1
      %p99 = por %p97, %p98
      %p101 = scmp.ne.s32.totalorder %s84, %s100
      %p102 = scmp.eq.s32.totalorder %s50, 0
      %p103 = por %p101, %p102
      %s105 = sadd.s32 %s104, 1
      %p108 = scmp.eq.s32.totalorder %s44, 1
      %p109 = scmp.ne.s32.totalorder %s104, %s106
      %p110 = scmp.eq.s32.totalorder %s44, 0
      %p111 = por %p109, %p110
      %p112 = scmp.ne.s32.totalorder %s104, %s106
      %p113 = scmp.eq.s32.totalorder %s49, 1
      %p114 = por %p112, %p113
      %p115 = scmp.ne.s32.totalorder %s106, %s107
      %p116 = scmp.eq.s32.totalorder %s49, 0
      %p117 = por %p115, %p116
      %p118 = scmp.ne.s32.totalorder %s106, %s107
      %p119 = scmp.eq.s32.totalorder %s50, 1
      %p120 = por %p118, %p119
      %p122 = scmp.ne.s32.totalorder %s107, %s121
      %p123 = scmp.eq.s32.totalorder %s50, 0
      %p124 = por %p122, %p123
      %s126 = sadd.s32 %s125, 1
      %p129 = scmp.eq.s32.totalorder %s44, 1
      %p130 = scmp.ne.s32.totalorder %s125, %s127
      %p131 = scmp.eq.s32.totalorder %s44, 0
      %p132 = por %p130, %p131
      %p133 = scmp.ne.s32.totalorder %s125, %s127
      %p134 = scmp.eq.s32.totalorder %s49, 1
      %p135 = por %p133, %p134
      %p136 = scmp.ne.s32.totalorder %s127, %s128
      %p137 = scmp.eq.s32.totalorder %s49, 0
      %p138 = por %p136, %p137
      %p139 = scmp.ne.s32.totalorder %s127, %s128
      %p140 = scmp.eq.s32.totalorder %s50, 1
      %p141 = por %p139, %p140
      %p143 = scmp.ne.s32.totalorder %s128, %s142
      %p144 = scmp.eq.s32.totalorder %s50, 0
      %p145 = por %p143, %p144
      %s147 = sadd.s32 %s146, 1
      %p150 = scmp.eq.s32.totalorder %s44, 1
      %p151 = scmp.ne.s32.totalorder %s146, %s148
      %p152 = scmp.eq.s32.totalorder %s44, 0
      %p153 = por %p151, %p152
      %p154 = scmp.ne.s32.totalorder %s146, %s148
      %p155 = scmp.eq.s32.totalorder %s49, 1
      %p156 = por %p154, %p155
      %p157 = scmp.ne.s32.totalorder %s148, %s149
      %p158 = scmp.eq.s32.totalorder %s49, 0
      %p159 = por %p157, %p158
      %p160 = scmp.ne.s32.totalorder %s148, %s149
      %p161 = scmp.eq.s32.totalorder %s50, 1
      %p162 = por %p160, %p161
      %p164 = scmp.ne.s32.totalorder %s149, %s163
      %p165 = scmp.eq.s32.totalorder %s50, 0
      %p166 = por %p164, %p165
      %s168 = sadd.s32 %s167, 1
      %p171 = scmp.eq.s32.totalorder %s44, 1
      %p172 = scmp.ne.s32.totalorder %s167, %s169
      %p173 = scmp.eq.s32.totalorder %s44, 0
      %p174 = por %p172, %p173
      %p175 = scmp.ne.s32.totalorder %s167, %s169
      %p176 = scmp.eq.s32.totalorder %s49, 1
      %p177 = por %p175, %p176
      %p178 = scmp.ne.s32.totalorder %s169, %s170
      %p179 = scmp.eq.s32.totalorder %s49, 0
      %p180 = por %p178, %p179
      %p181 = scmp.ne.s32.totalorder %s169, %s170
      %p182 = scmp.eq.s32.totalorder %s50, 1
      %p183 = por %p181, %p182
      %p185 = scmp.ne.s32.totalorder %s170, %s184
      %p186 = scmp.eq.s32.totalorder %s50, 0
      %p187 = por %p185, %p186
      %s189 = sadd.s32 %s188, 1
      %p192 = scmp.eq.s32.totalorder %s44, 1
      %p193 = scmp.ne.s32.totalorder %s188, %s190
      %p194 = scmp.eq.s32.totalorder %s44, 0
      %p195 = por %p193, %p194
      %p196 = scmp.ne.s32.totalorder %s188, %s190
      %p197 = scmp.eq.s32.totalorder %s49, 1
      %p198 = por %p196, %p197
      %p199 = scmp.ne.s32.totalorder %s190, %s191
      %p200 = scmp.eq.s32.totalorder %s49, 0
      %p201 = por %p199, %p200
      %p202 = scmp.ne.s32.totalorder %s190, %s191
      %p203 = scmp.eq.s32.totalorder %s50, 1
      %p204 = por %p202, %p203
      %p206 = scmp.ne.s32.totalorder %s191, %s205
      %p207 = scmp.eq.s32.totalorder %s50, 0
      %p208 = por %p206, %p207
      %s210 = sadd.s32 %s209, 1
      %p213 = scmp.eq.s32.totalorder %s44, 1
      %p214 = scmp.ne.s32.totalorder %s209, %s211
      %p215 = scmp.eq.s32.totalorder %s44, 0
      %p216 = por %p214, %p215
      %p217 = scmp.ne.s32.totalorder %s209, %s211
      %p218 = scmp.eq.s32.totalorder %s49, 1
      %p219 = por %p217, %p218
      %p220 = scmp.ne.s32.totalorder %s211, %s212
      %p221 = scmp.eq.s32.totalorder %s49, 0
      %p222 = por %p220, %p221
      %p223 = scmp.ne.s32.totalorder %s211, %s212
      %p224 = scmp.eq.s32.totalorder %s50, 1
      %p225 = por %p223, %p224
      %p227 = scmp.ne.s32.totalorder %s212, %s226
      %p228 = scmp.eq.s32.totalorder %s50, 0
      %p229 = por %p227, %p228
      %s231 = sadd.s32 %s230, 1
      %p234 = scmp.eq.s32.totalorder %s44, 1
      %p235 = scmp.ne.s32.totalorder %s230, %s232
      %p236 = scmp.eq.s32.totalorder %s44, 0
      %p237 = por %p235, %p236
      %p238 = scmp.ne.s32.totalorder %s230, %s232
      %p239 = scmp.eq.s32.totalorder %s49, 1
      %p240 = por %p238, %p239
      %p241 = scmp.ne.s32.totalorder %s232, %s233
      %p242 = scmp.eq.s32.totalorder %s49, 0
      %p243 = por %p241, %p242
      %p244 = scmp.ne.s32.totalorder %s232, %s233
      %p245 = scmp.eq.s32.totalorder %s50, 1
      %p246 = por %p244, %p245
      %p248 = scmp.ne.s32.totalorder %s233, %s247
      %p249 = scmp.eq.s32.totalorder %s50, 0
      %p250 = por %p248, %p249
      %s252 = sadd.s32 %s251, 1
      %p255 = scmp.eq.s32.totalorder %s44, 1
      %p256 = scmp.ne.s32.totalorder %s251, %s253
      %p257 = scmp.eq.s32.totalorder %s44, 0
      %p258 = por %p256, %p257
      %p259 = scmp.ne.s32.totalorder %s251, %s253
      %p260 = scmp.eq.s32.totalorder %s49, 1
      %p261 = por %p259, %p260
      %p262 = scmp.ne.s32.totalorder %s253, %s254
      %p263 = scmp.eq.s32.totalorder %s49, 0
      %p264 = por %p262, %p263
      %p265 = scmp.ne.s32.totalorder %s253, %s254
      %p266 = scmp.eq.s32.totalorder %s50, 1
      %p267 = por %p265, %p266
      %p269 = scmp.ne.s32.totalorder %s254, %s268
      %p270 = scmp.eq.s32.totalorder %s50, 0
      %p271 = por %p269, %p270
      %s273 = sadd.s32 %s272, 1
      %p276 = scmp.eq.s32.totalorder %s44, 1
      %p277 = scmp.ne.s32.totalorder %s272, %s274
      %p278 = scmp.eq.s32.totalorder %s44, 0
      %p279 = por %p277, %p278
      %p280 = scmp.ne.s32.totalorder %s272, %s274
      %p281 = scmp.eq.s32.totalorder %s49, 1
      %p282 = por %p280, %p281
      %p283 = scmp.ne.s32.totalorder %s274, %s275
      %p284 = scmp.eq.s32.totalorder %s49, 0
      %p285 = por %p283, %p284
      %p286 = scmp.ne.s32.totalorder %s274, %s275
      %p287 = scmp.eq.s32.totalorder %s50, 1
      %p288 = por %p286, %p287
      %p290 = scmp.ne.s32.totalorder %s275, %s289
      %p291 = scmp.eq.s32.totalorder %s50, 0
      %p292 = por %p290, %p291
      %s294 = sadd.s32 %s293, 1
      %p297 = scmp.eq.s32.totalorder %s44, 1
      %p298 = scmp.ne.s32.totalorder %s293, %s295
      %p299 = scmp.eq.s32.totalorder %s44, 0
      %p300 = por %p298, %p299
      %p301 = scmp.ne.s32.totalorder %s293, %s295
      %p302 = scmp.eq.s32.totalorder %s49, 1
      %p303 = por %p301, %p302
      %p304 = scmp.ne.s32.totalorder %s295, %s296
      %p305 = scmp.eq.s32.totalorder %s49, 0
      %p306 = por %p304, %p305
      %p307 = scmp.ne.s32.totalorder %s295, %s296
      %p308 = scmp.eq.s32.totalorder %s50, 1
      %p309 = por %p307, %p308
      %p311 = scmp.ne.s32.totalorder %s296, %s310
      %p312 = scmp.eq.s32.totalorder %s50, 0
      %p313 = por %p311, %p312
      %s314 = ssub.s32 %s44, %s51
      %p315 = scmp.eq.s32.totalorder %s314, 0
      %s317 = sadd.s32 %s316, 1
      %s318 = scalar_select %p315, %s316, %s317
      %p321 = pneg %p315
      %p322 = scmp.eq.s32.totalorder %s44, 1
      %p323 = por %p321, %p322
      %p324 = scmp.ne.s32.totalorder %s316, %s319
      %p325 = scmp.eq.s32.totalorder %s44, 0
      %p326 = por %p324, %p325
      %p327 = scmp.ne.s32.totalorder %s316, %s319
      %p328 = scmp.eq.s32.totalorder %s49, 1
      %p329 = por %p327, %p328
      %p330 = scmp.ne.s32.totalorder %s319, %s320
      %p331 = scmp.eq.s32.totalorder %s49, 0
      %p332 = por %p330, %p331
      %p333 = scmp.ne.s32.totalorder %s319, %s320
      %p334 = scmp.eq.s32.totalorder %s50, 1
      %p335 = por %p333, %p334
      %p337 = scmp.ne.s32.totalorder %s320, %s336
      %p338 = scmp.eq.s32.totalorder %s50, 0
      %p339 = por %p337, %p338
      %s340 = ssub.s32 %s44, %s51
      %p341 = scmp.eq.s32.totalorder %s340, 0
      %s343 = sadd.s32 %s342, 1
      %s344 = scalar_select %p341, %s342, %s343
      %p347 = pneg %p341
      %p348 = scmp.eq.s32.totalorder %s44, 1
      %p349 = por %p347, %p348
      %p350 = scmp.ne.s32.totalorder %s342, %s345
      %p351 = scmp.eq.s32.totalorder %s44, 0
      %p352 = por %p350, %p351
      %p353 = scmp.ne.s32.totalorder %s342, %s345
      %p354 = scmp.eq.s32.totalorder %s49, 1
      %p355 = por %p353, %p354
      %p356 = scmp.ne.s32.totalorder %s345, %s346
      %p357 = scmp.eq.s32.totalorder %s49, 0
      %p358 = por %p356, %p357
      %p359 = scmp.ne.s32.totalorder %s345, %s346
      %p360 = scmp.eq.s32.totalorder %s50, 1
      %p361 = por %p359, %p360
      %p363 = scmp.ne.s32.totalorder %s346, %s362
      %p364 = scmp.eq.s32.totalorder %s50, 0
      %p365 = por %p363, %p364
      %p366 = scmp.le.s32.totalorder 1, %s44
      %p367 = scmp.lt.s32.totalorder %s44, 3
      %p368 = pnand %p366, %p367
      %p369 = pneg %p368
      // Predicated region
      $region9: #{tpu_custom_call.1} parent=5 // pred_check
        _
      $region10: #{tpu_custom_call.1} parent=5 // pred_check_branch
        %371 = sbr.rel (%p368) target = $region12
      $region11: #{tpu_custom_call.1} parent=5 // pred_region
        %s372 = ssub.s32 %s44, 1
        // Predicated region
        $region13: #{tpu_custom_call.1} parent=11 // pred_check
          %p373 = pneg %p117
        $region14: #{tpu_custom_call.1} parent=11 // pred_check_branch
          %375 = sbr.rel (%p373) target = $region16
        $region15: #{tpu_custom_call.1} parent=11 // pred_region
          %s377 = ssub.s32 24576, 24576
          %378 = vsyncadd [#allocation9], %s377
          %s379 = sshll.u32 [#allocation10], 4
          %s380 = int_to_ptr.vmem [resolvable:$true] %s379
          %385 = dma.hbm_to_vmem [thread:$0]  %s4, 24576, %s380, [#allocation9], 256, 256, 16
        $region16: #{tpu_custom_call.1} parent=11 // pred_fallthru
          _
        // Predicated region
        $region17: #{tpu_custom_call.1} parent=11 // pred_check
          %p386 = pneg %p138
        $region18: #{tpu_custom_call.1} parent=11 // pred_check_branch
          %388 = sbr.rel (%p386) target = $region20
        $region19: #{tpu_custom_call.1} parent=11 // pred_region
          _
        $region20: #{tpu_custom_call.1} parent=11 // pred_fallthru
          _
        // Predicated region
        $region21: #{tpu_custom_call.1} parent=11 // pred_check
          %p389 = pneg %p159
        $region22: #{tpu_custom_call.1} parent=11 // pred_check_branch
          %391 = sbr.rel (%p389) target = $region24
        $region23: #{tpu_custom_call.1} parent=11 // pred_region
          %s393 = ssub.s32 4096, 4096
          %394 = vsyncadd [#allocation12], %s393
          %s395 = sshll.u32 [#allocation11], 4
          %s396 = int_to_ptr.vmem [resolvable:$true] %s395
          %401 = dma.hbm_to_vmem [thread:$0]  %s6, 4096, %s396, [#allocation12], 64, 64, 4
        $region24: #{tpu_custom_call.1} parent=11 // pred_fallthru
          _
        // Predicated region
        $region25: #{tpu_custom_call.1} parent=11 // pred_check
          %p402 = pneg %p180
        $region26: #{tpu_custom_call.1} parent=11 // pred_check_branch
          %404 = sbr.rel (%p402) target = $region28
        $region27: #{tpu_custom_call.1} parent=11 // pred_region
          _
        $region28: #{tpu_custom_call.1} parent=11 // pred_fallthru
          _
        // Predicated region
        $region29: #{tpu_custom_call.1} parent=11 // pred_check
          %p405 = pneg %p201
        $region30: #{tpu_custom_call.1} parent=11 // pred_check_branch
          %407 = sbr.rel (%p405) target = $region32
        $region31: #{tpu_custom_call.1} parent=11 // pred_region
          %s409 = ssub.s32 6144, 6144
          %410 = vsyncadd [#allocation12], %s409
          %s411 = sshll.u32 [#allocation13], 4
          %s412 = int_to_ptr.vmem [resolvable:$true] %s411
          %417 = dma.hbm_to_vmem [thread:$0]  %s8, 6144, %s412, [#allocation12], 128, 128, 8
        $region32: #{tpu_custom_call.1} parent=11 // pred_fallthru
          _
        // Predicated region
        $region33: #{tpu_custom_call.1} parent=11 // pred_check
          %p418 = pneg %p222
        $region34: #{tpu_custom_call.1} parent=11 // pred_check_branch
          %420 = sbr.rel (%p418) target = $region36
        $region35: #{tpu_custom_call.1} parent=11 // pred_region
          _
        $region36: #{tpu_custom_call.1} parent=11 // pred_fallthru
          _
        // Predicated region
        $region37: #{tpu_custom_call.1} parent=11 // pred_check
          %p421 = pneg %p243
        $region38: #{tpu_custom_call.1} parent=11 // pred_check_branch
          %423 = sbr.rel (%p421) target = $region40
        $region39: #{tpu_custom_call.1} parent=11 // pred_region
          %s425 = ssub.s32 6144, 6144
          %426 = vsyncadd [#allocation15], %s425
          %s427 = sshll.u32 [#allocation14], 4
          %s428 = int_to_ptr.vmem [resolvable:$true] %s427
          %433 = dma.hbm_to_vmem [thread:$0]  %s10, 6144, %s428, [#allocation15], 64, 64, 4
        $region40: #{tpu_custom_call.1} parent=11 // pred_fallthru
          _
        // Predicated region
        $region41: #{tpu_custom_call.1} parent=11 // pred_check
          %p434 = pneg %p264
        $region42: #{tpu_custom_call.1} parent=11 // pred_check_branch
          %436 = sbr.rel (%p434) target = $region44
        $region43: #{tpu_custom_call.1} parent=11 // pred_region
          _
        $region44: #{tpu_custom_call.1} parent=11 // pred_fallthru
          _
        // Predicated region
        $region45: #{tpu_custom_call.1} parent=11 // pred_check
          %p437 = pneg %p285
        $region46: #{tpu_custom_call.1} parent=11 // pred_check_branch
          %439 = sbr.rel (%p437) target = $region48
        $region47: #{tpu_custom_call.1} parent=11 // pred_region
          %s441 = ssub.s32 1024, 1024
          %442 = vsyncadd [#allocation15], %s441
          %s443 = sshll.u32 [#allocation16], 4
          %s444 = int_to_ptr.vmem [resolvable:$true] %s443
          %449 = dma.hbm_to_vmem [thread:$0]  %s12, 1024, %s444, [#allocation15], 64, 64, 4
        $region48: #{tpu_custom_call.1} parent=11 // pred_fallthru
          _
        // Predicated region
        $region49: #{tpu_custom_call.1} parent=11 // pred_check
          %p450 = pneg %p306
        $region50: #{tpu_custom_call.1} parent=11 // pred_check_branch
          %452 = sbr.rel (%p450) target = $region52
        $region51: #{tpu_custom_call.1} parent=11 // pred_region
          _
        $region52: #{tpu_custom_call.1} parent=11 // pred_fallthru
          _
      $region12: #{tpu_custom_call.1} parent=5 // pred_fallthru
        _
      %p453 = scmp.lt.s32.totalorder %s44, 2
      // Predicated region
      $region53: #{tpu_custom_call.1} parent=5 // pred_check
        %p454 = pneg %p453
      $region54: #{tpu_custom_call.1} parent=5 // pred_check_branch
        %456 = sbr.rel (%p454) target = $region56
      $region55: #{tpu_custom_call.1} parent=5 // pred_region
        // Predicated region
        $region57: #{tpu_custom_call.1} parent=55 // pred_check
          %p457 = pneg %p64
        $region58: #{tpu_custom_call.1} parent=55 // pred_check_branch
          %459 = sbr.rel (%p457) target = $region60
        $region59: #{tpu_custom_call.1} parent=55 // pred_region
          %s460 = sand.u32 %s54, 1
          %s461 = scalar_lea.sflag [#allocation6], %s460
          %s462 = sand.u32 %s54, 1
          %s463 = smul.addr %s462, 8
          %s464 = scalar_lea.vmem [#allocation5], %s463
          %s466 = ssub.s32 128, 128
          %467 = vsyncadd %s461, %s466
          %s468 = smul.addr %s44, 2
          %s469 = smul.addr %s468, 64
          %s470 = scalar_lea.hbm %s2, %s469
          %s472 = sshll.u32 %s464, 4
          %s473 = int_to_ptr.vmem [resolvable:$true] %s472
          %475 = dma.hbm_to_vmem [thread:$0]  %s470, 128, %s473, %s461
        $region60: #{tpu_custom_call.1} parent=55 // pred_fallthru
          _
        // Predicated region
        $region61: #{tpu_custom_call.1} parent=55 // pred_check
          %p476 = pneg %p90
        $region62: #{tpu_custom_call.1} parent=55 // pred_check_branch
          %478 = sbr.rel (%p476) target = $region64
        $region63: #{tpu_custom_call.1} parent=55 // pred_region
          %s479 = sand.u32 %s44, 1
          %s480 = scalar_lea.sflag [#allocation9], %s479
          %s481 = sand.u32 %s80, 1
          %s482 = smul.addr %s481, 64
          %s483 = scalar_lea.vmem [#allocation8], %s482
          %s485 = ssub.s32 1024, 1024
          %486 = vsyncadd %s480, %s485
          %s487 = smul.addr %s44, 16
          %s488 = smul.addr %s487, 64
          %s489 = scalar_lea.hbm %s3, %s488
          %s490 = sshll.u32 %s483, 4
          %s491 = int_to_ptr.vmem [resolvable:$true] %s490
          %496 = dma.hbm_to_vmem [thread:$0]  %s489, 1024, %s491, %s480, 64, 64, 4
        $region64: #{tpu_custom_call.1} parent=55 // pred_fallthru
          _
      $region56: #{tpu_custom_call.1} parent=5 // pred_fallthru
        _
      %p497 = scmp.le.s32.totalorder 1, %s44
      %p498 = scmp.lt.s32.totalorder %s44, 3
      %p499 = pnand %p497, %p498
      %p500 = pneg %p499
      // Predicated region
      $region65: #{tpu_custom_call.1} parent=5 // pred_check
        _
      $region66: #{tpu_custom_call.1} parent=5 // pred_check_branch
        %502 = sbr.rel (%p499) target = $region68
      $region67: #{tpu_custom_call.1} parent=5 // pred_region
        %s503 = ssub.s32 %s44, 1
        %s504 = sand.u32 %s57, 1
        %s505 = scalar_lea.sflag [#allocation6], %s504
        %s506 = sand.u32 %s57, 1
        %s507 = smul.addr %s506, 8
        %s508 = scalar_lea.vmem [#allocation5], %s507
        // Predicated region
        $region69: #{tpu_custom_call.1} parent=67 // pred_check
          %p509 = pneg %p70
        $region70: #{tpu_custom_call.1} parent=67 // pred_check_branch
          %511 = sbr.rel (%p509) target = $region72
        $region71: #{tpu_custom_call.1} parent=67 // pred_region
          %512 = dma.done %s505, 128
        $region72: #{tpu_custom_call.1} parent=67 // pred_fallthru
          _
        %s513 = sand.u32 %s49, 1
        %s514 = scalar_lea.sflag [#allocation9], %s513
        %s515 = sand.u32 %s83, 1
        %s516 = smul.addr %s515, 64
        %s517 = scalar_lea.vmem [#allocation8], %s516
        // Predicated region
        $region73: #{tpu_custom_call.1} parent=67 // pred_check
          %p518 = pneg %p96
        $region74: #{tpu_custom_call.1} parent=67 // pred_check_branch
          %520 = sbr.rel (%p518) target = $region76
        $region75: #{tpu_custom_call.1} parent=67 // pred_region
          %521 = dma.done %s514, 1024
        $region76: #{tpu_custom_call.1} parent=67 // pred_fallthru
          _
        // Predicated region
        $region77: #{tpu_custom_call.1} parent=67 // pred_check
          %p522 = pneg %p117
        $region78: #{tpu_custom_call.1} parent=67 // pred_check_branch
          %524 = sbr.rel (%p522) target = $region80
        $region79: #{tpu_custom_call.1} parent=67 // pred_region
          %525 = dma.done [#allocation9], 24576
        $region80: #{tpu_custom_call.1} parent=67 // pred_fallthru
          _
        // Predicated region
        $region81: #{tpu_custom_call.1} parent=67 // pred_check
          %p526 = pneg %p159
        $region82: #{tpu_custom_call.1} parent=67 // pred_check_branch
          %528 = sbr.rel (%p526) target = $region84
        $region83: #{tpu_custom_call.1} parent=67 // pred_region
          %529 = dma.done [#allocation12], 4096
        $region84: #{tpu_custom_call.1} parent=67 // pred_fallthru
          _
        // Predicated region
        $region85: #{tpu_custom_call.1} parent=67 // pred_check
          %p530 = pneg %p201
        $region86: #{tpu_custom_call.1} parent=67 // pred_check_branch
          %532 = sbr.rel (%p530) target = $region88
        $region87: #{tpu_custom_call.1} parent=67 // pred_region
          %533 = dma.done [#allocation12], 6144
        $region88: #{tpu_custom_call.1} parent=67 // pred_fallthru
          _
        // Predicated region
        $region89: #{tpu_custom_call.1} parent=67 // pred_check
          %p534 = pneg %p243
        $region90: #{tpu_custom_call.1} parent=67 // pred_check_branch
          %536 = sbr.rel (%p534) target = $region92
        $region91: #{tpu_custom_call.1} parent=67 // pred_region
          %537 = dma.done [#allocation15], 6144
        $region92: #{tpu_custom_call.1} parent=67 // pred_fallthru
          _
        // Predicated region
        $region93: #{tpu_custom_call.1} parent=67 // pred_check
          %p538 = pneg %p285
        $region94: #{tpu_custom_call.1} parent=67 // pred_check_branch
          %540 = sbr.rel (%p538) target = $region96
        $region95: #{tpu_custom_call.1} parent=67 // pred_region
          %541 = dma.done [#allocation15], 1024
        $region96: #{tpu_custom_call.1} parent=67 // pred_fallthru
          _
        %s542 = sand.u32 %s57, 1
        %s543 = scalar_lea.sflag [#allocation6], %s542
        %s544 = sand.u32 %s57, 1
        %s545 = smul.addr %s544, 8
        %s546 = scalar_lea.vmem [#allocation5], %s545
        %p547 = pneg %p70
        %p548 = pneg %p67
        %s549 = sand.u32 %s49, 1
        %s550 = scalar_lea.sflag [#allocation9], %s549
        %s551 = sand.u32 %s83, 1
        %s552 = smul.addr %s551, 64
        %s553 = scalar_lea.vmem [#allocation8], %s552
        %p554 = pneg %p96
        %p555 = pneg %p93
        %p556 = pneg %p117
        %p557 = pneg %p114
        %p558 = pneg %p138
        %p559 = pneg %p135
        %p560 = pneg %p159
        %p561 = pneg %p156
        %p562 = pneg %p180
        %p563 = pneg %p177
        %p564 = pneg %p201
        %p565 = pneg %p198
        %p566 = pneg %p222
        %p567 = pneg %p219
        %p568 = pneg %p243
        %p569 = pneg %p240
        %p570 = pneg %p264
        %p571 = pneg %p261
        %p572 = pneg %p285
        %p573 = pneg %p282
        %p574 = pneg %p306
        %p575 = pneg %p303
        %p576 = pneg %p332
        %p577 = pneg %p329
        %s578 = sand.u32 %s319, 1
        %s579 = scalar_lea.sflag [#allocation7], %s578
        %s580 = sand.u32 %s319, 1
        %s581 = smul.addr %s580, 8
        %s582 = scalar_lea.vmem [#allocation17], %s581
        %p583 = pneg %p358
        %p584 = pneg %p355
        %s585 = sand.u32 %s345, 1
        %s586 = scalar_lea.sflag [#allocation19], %s585
        %s587 = sand.u32 %s345, 1
        %s588 = smul.addr %s587, 128
        %s589 = scalar_lea.vmem [#allocation18], %s588
        %v591 = vld [vmem:[%s508] sm:$0xff]
        %v592 = vunpack.c.l.bf16 %v591
        %v593 = vunpack.c.h.bf16 %v591
        %v594 = vlaneseq
        %v595 = vshrl.u32 %v594, 7
        %vm596 = vcmp.eq.s32.totalorder %v595, 0
        %v597 = vrot.slane %v592, 7
        %v598 = vrot.slane %v593, 7
        %v599 = vsel %vm596, 1, 0
        %vm600 = vcmp.eq.s32.totalorder %v599, 1
        %v601 = vsel %vm600, 0.0, %v597
        %v602 = vsel %vm600, 0.0, %v598
        %vm603 = vcmp.eq.s32.totalorder %v595, 7
        %v604 = vrot.slane %v592, 1
        %v605 = vrot.slane %v593, 1
        %v606 = vsel %vm603, 1, 0
        %vm607 = vcmp.eq.s32.totalorder %v606, 1
        %v608 = vsel %vm607, 0.0, %v604
        %v609 = vsel %vm607, 0.0, %v605
        %v610 = vpack.c.bf16 %v601, %v601
        %v611 = vpack.c.bf16 %v602, %v602
        %v612 = vpack.c.bf16 %v608, %v608
        %v613 = vpack.c.bf16 %v609, %v609
        %v615 = vunpack.c.l.b16 %v591
        %v616 = vunpack.c.h.b16 %v591
        %v617 = vpack.c.b16 %v615, %v615
        %v618 = vpack.c.b16 %v616, %v616
        %v621 = vld [vmem:[#allocation10] sm:$0xff]
        %v622 = vld [vmem:[#allocation10 + $0x8] sm:$0xff]
        %v623 = vld [vmem:[#allocation10 + $0x10] sm:$0xff]
        %v624 = vld [vmem:[#allocation10 + $0x18] sm:$0xff]
        %v625 = vld [vmem:[#allocation10 + $0x20] sm:$0xff]
        %v626 = vld [vmem:[#allocation10 + $0x28] sm:$0xff]
        %v627 = vld [vmem:[#allocation10 + $0x30] sm:$0xff]
        %v628 = vld [vmem:[#allocation10 + $0x38] sm:$0xff]
        %v629 = vld [vmem:[#allocation10 + $0x40] sm:$0xff]
        %v630 = vld [vmem:[#allocation10 + $0x48] sm:$0xff]
        %v631 = vld [vmem:[#allocation10 + $0x50] sm:$0xff]
        %v632 = vld [vmem:[#allocation10 + $0x58] sm:$0xff]
        %v633 = vld [vmem:[#allocation10 + $0x60] sm:$0xff]
        %v634 = vld [vmem:[#allocation10 + $0x68] sm:$0xff]
        %v635 = vld [vmem:[#allocation10 + $0x70] sm:$0xff]
        %v636 = vld [vmem:[#allocation10 + $0x78] sm:$0xff]
        %v637 = vld [vmem:[#allocation10 + $0x80] sm:$0xff]
        %v638 = vld [vmem:[#allocation10 + $0x88] sm:$0xff]
        %v639 = vld [vmem:[#allocation10 + $0x90] sm:$0xff]
        %v640 = vld [vmem:[#allocation10 + $0x98] sm:$0xff]
        %v641 = vld [vmem:[#allocation10 + $0xa0] sm:$0xff]
        %v642 = vld [vmem:[#allocation10 + $0xa8] sm:$0xff]
        %v643 = vld [vmem:[#allocation10 + $0xb0] sm:$0xff]
        %v644 = vld [vmem:[#allocation10 + $0xb8] sm:$0xff]
        %v645 = vld [vmem:[#allocation10 + $0xc0] sm:$0xff]
        %v646 = vld [vmem:[#allocation10 + $0xc8] sm:$0xff]
        %v647 = vld [vmem:[#allocation10 + $0xd0] sm:$0xff]
        %v648 = vld [vmem:[#allocation10 + $0xd8] sm:$0xff]
        %v649 = vld [vmem:[#allocation10 + $0xe0] sm:$0xff]
        %v650 = vld [vmem:[#allocation10 + $0xe8] sm:$0xff]
        %v651 = vld [vmem:[#allocation10 + $0xf0] sm:$0xff]
        %v652 = vld [vmem:[#allocation10 + $0xf8] sm:$0xff]
        %v653 = vld [vmem:[#allocation10 + $0x100] sm:$0xff]
        %v654 = vld [vmem:[#allocation10 + $0x108] sm:$0xff]
        %v655 = vld [vmem:[#allocation10 + $0x110] sm:$0xff]
        %v656 = vld [vmem:[#allocation10 + $0x118] sm:$0xff]
        %v657 = vld [vmem:[#allocation10 + $0x120] sm:$0xff]
        %v658 = vld [vmem:[#allocation10 + $0x128] sm:$0xff]
        %v659 = vld [vmem:[#allocation10 + $0x130] sm:$0xff]
        %v660 = vld [vmem:[#allocation10 + $0x138] sm:$0xff]
        %v661 = vld [vmem:[#allocation10 + $0x140] sm:$0xff]
        %v662 = vld [vmem:[#allocation10 + $0x148] sm:$0xff]
        %v663 = vld [vmem:[#allocation10 + $0x150] sm:$0xff]
        %v664 = vld [vmem:[#allocation10 + $0x158] sm:$0xff]
        %v665 = vld [vmem:[#allocation10 + $0x160] sm:$0xff]
        %v666 = vld [vmem:[#allocation10 + $0x168] sm:$0xff]
        %v667 = vld [vmem:[#allocation10 + $0x170] sm:$0xff]
        %v668 = vld [vmem:[#allocation10 + $0x178] sm:$0xff]
        %v669 = vld [vmem:[#allocation10 + $0x180] sm:$0xff]
        %v670 = vld [vmem:[#allocation10 + $0x188] sm:$0xff]
        %v671 = vld [vmem:[#allocation10 + $0x190] sm:$0xff]
        %v672 = vld [vmem:[#allocation10 + $0x198] sm:$0xff]
        %v673 = vld [vmem:[#allocation10 + $0x1a0] sm:$0xff]
        %v674 = vld [vmem:[#allocation10 + $0x1a8] sm:$0xff]
        %v675 = vld [vmem:[#allocation10 + $0x1b0] sm:$0xff]
        %v676 = vld [vmem:[#allocation10 + $0x1b8] sm:$0xff]
        %v677 = vld [vmem:[#allocation10 + $0x1c0] sm:$0xff]
        %v678 = vld [vmem:[#allocation10 + $0x1c8] sm:$0xff]
        %v679 = vld [vmem:[#allocation10 + $0x1d0] sm:$0xff]
        %v680 = vld [vmem:[#allocation10 + $0x1d8] sm:$0xff]
        %v681 = vld [vmem:[#allocation10 + $0x1e0] sm:$0xff]
        %v682 = vld [vmem:[#allocation10 + $0x1e8] sm:$0xff]
        %v683 = vld [vmem:[#allocation10 + $0x1f0] sm:$0xff]
        %v684 = vld [vmem:[#allocation10 + $0x1f8] sm:$0xff]
        %v685 = vld [vmem:[#allocation10 + $0x200] sm:$0xff]
        %v686 = vld [vmem:[#allocation10 + $0x208] sm:$0xff]
        %v687 = vld [vmem:[#allocation10 + $0x210] sm:$0xff]
        %v688 = vld [vmem:[#allocation10 + $0x218] sm:$0xff]
        %v689 = vld [vmem:[#allocation10 + $0x220] sm:$0xff]
        %v690 = vld [vmem:[#allocation10 + $0x228] sm:$0xff]
        %v691 = vld [vmem:[#allocation10 + $0x230] sm:$0xff]
        %v692 = vld [vmem:[#allocation10 + $0x238] sm:$0xff]
        %v693 = vld [vmem:[#allocation10 + $0x240] sm:$0xff]
        %v694 = vld [vmem:[#allocation10 + $0x248] sm:$0xff]
        %v695 = vld [vmem:[#allocation10 + $0x250] sm:$0xff]
        %v696 = vld [vmem:[#allocation10 + $0x258] sm:$0xff]
        %v697 = vld [vmem:[#allocation10 + $0x260] sm:$0xff]
        %v698 = vld [vmem:[#allocation10 + $0x268] sm:$0xff]
        %v699 = vld [vmem:[#allocation10 + $0x270] sm:$0xff]
        %v700 = vld [vmem:[#allocation10 + $0x278] sm:$0xff]
        %v701 = vld [vmem:[#allocation10 + $0x280] sm:$0xff]
        %v702 = vld [vmem:[#allocation10 + $0x288] sm:$0xff]
        %v703 = vld [vmem:[#allocation10 + $0x290] sm:$0xff]
        %v704 = vld [vmem:[#allocation10 + $0x298] sm:$0xff]
        %v705 = vld [vmem:[#allocation10 + $0x2a0] sm:$0xff]
        %v706 = vld [vmem:[#allocation10 + $0x2a8] sm:$0xff]
        %v707 = vld [vmem:[#allocation10 + $0x2b0] sm:$0xff]
        %v708 = vld [vmem:[#allocation10 + $0x2b8] sm:$0xff]
        %v709 = vld [vmem:[#allocation10 + $0x2c0] sm:$0xff]
        %v710 = vld [vmem:[#allocation10 + $0x2c8] sm:$0xff]
        %v711 = vld [vmem:[#allocation10 + $0x2d0] sm:$0xff]
        %v712 = vld [vmem:[#allocation10 + $0x2d8] sm:$0xff]
        %v713 = vld [vmem:[#allocation10 + $0x2e0] sm:$0xff]
        %v714 = vld [vmem:[#allocation10 + $0x2e8] sm:$0xff]
        %v715 = vld [vmem:[#allocation10 + $0x2f0] sm:$0xff]
        %v716 = vld [vmem:[#allocation10 + $0x2f8] sm:$0xff]
        %v717 = vld [vmem:[#allocation10 + $0x300] sm:$0xff]
        %v718 = vld [vmem:[#allocation10 + $0x308] sm:$0xff]
        %v719 = vld [vmem:[#allocation10 + $0x310] sm:$0xff]
        %v720 = vld [vmem:[#allocation10 + $0x318] sm:$0xff]
        %v721 = vld [vmem:[#allocation10 + $0x320] sm:$0xff]
        %v722 = vld [vmem:[#allocation10 + $0x328] sm:$0xff]
        %v723 = vld [vmem:[#allocation10 + $0x330] sm:$0xff]
        %v724 = vld [vmem:[#allocation10 + $0x338] sm:$0xff]
        %v725 = vld [vmem:[#allocation10 + $0x340] sm:$0xff]
        %v726 = vld [vmem:[#allocation10 + $0x348] sm:$0xff]
        %v727 = vld [vmem:[#allocation10 + $0x350] sm:$0xff]
        %v728 = vld [vmem:[#allocation10 + $0x358] sm:$0xff]
        %v729 = vld [vmem:[#allocation10 + $0x360] sm:$0xff]
        %v730 = vld [vmem:[#allocation10 + $0x368] sm:$0xff]
        %v731 = vld [vmem:[#allocation10 + $0x370] sm:$0xff]
        %v732 = vld [vmem:[#allocation10 + $0x378] sm:$0xff]
        %v733 = vld [vmem:[#allocation10 + $0x380] sm:$0xff]
        %v734 = vld [vmem:[#allocation10 + $0x388] sm:$0xff]
        %v735 = vld [vmem:[#allocation10 + $0x390] sm:$0xff]
        %v736 = vld [vmem:[#allocation10 + $0x398] sm:$0xff]
        %v737 = vld [vmem:[#allocation10 + $0x3a0] sm:$0xff]
        %v738 = vld [vmem:[#allocation10 + $0x3a8] sm:$0xff]
        %v739 = vld [vmem:[#allocation10 + $0x3b0] sm:$0xff]
        %v740 = vld [vmem:[#allocation10 + $0x3b8] sm:$0xff]
        %v741 = vld [vmem:[#allocation10 + $0x3c0] sm:$0xff]
        %v742 = vld [vmem:[#allocation10 + $0x3c8] sm:$0xff]
        %v743 = vld [vmem:[#allocation10 + $0x3d0] sm:$0xff]
        %v744 = vld [vmem:[#allocation10 + $0x3d8] sm:$0xff]
        %v745 = vld [vmem:[#allocation10 + $0x3e0] sm:$0xff]
        %v746 = vld [vmem:[#allocation10 + $0x3e8] sm:$0xff]
        %v747 = vld [vmem:[#allocation10 + $0x3f0] sm:$0xff]
        %v748 = vld [vmem:[#allocation10 + $0x3f8] sm:$0xff]
        %v749 = vld [vmem:[#allocation10 + $0x400] sm:$0xff]
        %v750 = vld [vmem:[#allocation10 + $0x408] sm:$0xff]
        %v751 = vld [vmem:[#allocation10 + $0x410] sm:$0xff]
        %v752 = vld [vmem:[#allocation10 + $0x418] sm:$0xff]
        %v753 = vld [vmem:[#allocation10 + $0x420] sm:$0xff]
        %v754 = vld [vmem:[#allocation10 + $0x428] sm:$0xff]
        %v755 = vld [vmem:[#allocation10 + $0x430] sm:$0xff]
        %v756 = vld [vmem:[#allocation10 + $0x438] sm:$0xff]
        %v757 = vld [vmem:[#allocation10 + $0x440] sm:$0xff]
        %v758 = vld [vmem:[#allocation10 + $0x448] sm:$0xff]
        %v759 = vld [vmem:[#allocation10 + $0x450] sm:$0xff]
        %v760 = vld [vmem:[#allocation10 + $0x458] sm:$0xff]
        %v761 = vld [vmem:[#allocation10 + $0x460] sm:$0xff]
        %v762 = vld [vmem:[#allocation10 + $0x468] sm:$0xff]
        %v763 = vld [vmem:[#allocation10 + $0x470] sm:$0xff]
        %v764 = vld [vmem:[#allocation10 + $0x478] sm:$0xff]
        %v765 = vld [vmem:[#allocation10 + $0x480] sm:$0xff]
        %v766 = vld [vmem:[#allocation10 + $0x488] sm:$0xff]
        %v767 = vld [vmem:[#allocation10 + $0x490] sm:$0xff]
        %v768 = vld [vmem:[#allocation10 + $0x498] sm:$0xff]
        %v769 = vld [vmem:[#allocation10 + $0x4a0] sm:$0xff]
        %v770 = vld [vmem:[#allocation10 + $0x4a8] sm:$0xff]
        %v771 = vld [vmem:[#allocation10 + $0x4b0] sm:$0xff]
        %v772 = vld [vmem:[#allocation10 + $0x4b8] sm:$0xff]
        %v773 = vld [vmem:[#allocation10 + $0x4c0] sm:$0xff]
        %v774 = vld [vmem:[#allocation10 + $0x4c8] sm:$0xff]
        %v775 = vld [vmem:[#allocation10 + $0x4d0] sm:$0xff]
        %v776 = vld [vmem:[#allocation10 + $0x4d8] sm:$0xff]
        %v777 = vld [vmem:[#allocation10 + $0x4e0] sm:$0xff]
        %v778 = vld [vmem:[#allocation10 + $0x4e8] sm:$0xff]
        %v779 = vld [vmem:[#allocation10 + $0x4f0] sm:$0xff]
        %v780 = vld [vmem:[#allocation10 + $0x4f8] sm:$0xff]
        %v781 = vld [vmem:[#allocation10 + $0x500] sm:$0xff]
        %v782 = vld [vmem:[#allocation10 + $0x508] sm:$0xff]
        %v783 = vld [vmem:[#allocation10 + $0x510] sm:$0xff]
        %v784 = vld [vmem:[#allocation10 + $0x518] sm:$0xff]
        %v785 = vld [vmem:[#allocation10 + $0x520] sm:$0xff]
        %v786 = vld [vmem:[#allocation10 + $0x528] sm:$0xff]
        %v787 = vld [vmem:[#allocation10 + $0x530] sm:$0xff]
        %v788 = vld [vmem:[#allocation10 + $0x538] sm:$0xff]
        %v789 = vld [vmem:[#allocation10 + $0x540] sm:$0xff]
        %v790 = vld [vmem:[#allocation10 + $0x548] sm:$0xff]
        %v791 = vld [vmem:[#allocation10 + $0x550] sm:$0xff]
        %v792 = vld [vmem:[#allocation10 + $0x558] sm:$0xff]
        %v793 = vld [vmem:[#allocation10 + $0x560] sm:$0xff]
        %v794 = vld [vmem:[#allocation10 + $0x568] sm:$0xff]
        %v795 = vld [vmem:[#allocation10 + $0x570] sm:$0xff]
        %v796 = vld [vmem:[#allocation10 + $0x578] sm:$0xff]
        %v797 = vld [vmem:[#allocation10 + $0x580] sm:$0xff]
        %v798 = vld [vmem:[#allocation10 + $0x588] sm:$0xff]
        %v799 = vld [vmem:[#allocation10 + $0x590] sm:$0xff]
        %v800 = vld [vmem:[#allocation10 + $0x598] sm:$0xff]
        %v801 = vld [vmem:[#allocation10 + $0x5a0] sm:$0xff]
        %v802 = vld [vmem:[#allocation10 + $0x5a8] sm:$0xff]
        %v803 = vld [vmem:[#allocation10 + $0x5b0] sm:$0xff]
        %v804 = vld [vmem:[#allocation10 + $0x5b8] sm:$0xff]
        %v805 = vld [vmem:[#allocation10 + $0x5c0] sm:$0xff]
        %v806 = vld [vmem:[#allocation10 + $0x5c8] sm:$0xff]
        %v807 = vld [vmem:[#allocation10 + $0x5d0] sm:$0xff]
        %v808 = vld [vmem:[#allocation10 + $0x5d8] sm:$0xff]
        %v809 = vld [vmem:[#allocation10 + $0x5e0] sm:$0xff]
        %v810 = vld [vmem:[#allocation10 + $0x5e8] sm:$0xff]
        %v811 = vld [vmem:[#allocation10 + $0x5f0] sm:$0xff]
        %v812 = vld [vmem:[#allocation10 + $0x5f8] sm:$0xff]
        %v813 = vld [vmem:[%s5] sm:$0xf]
        %v815 = vlaneseq
        %v816 = vshrl.u32 %v815, 7
        %v817 = vsub.s32 0, %v816
        %v818 = vrot.slane %v813, %v817
        %v819 = vlaneseq
        %v820 = vshrl.u32 %v819, 7
        %v821 = vsub.s32 1, %v820
        %v822 = vrot.slane %v813, %v821
        %v823 = vlaneseq
        %v824 = vshrl.u32 %v823, 7
        %v825 = vsub.s32 2, %v824
        %v826 = vrot.slane %v813, %v825
        %v827 = vlaneseq
        %v828 = vshrl.u32 %v827, 7
        %v829 = vsub.s32 3, %v828
        %v830 = vrot.slane %v813, %v829
        %v1027 = vunpack.c.l.b16 %v621
        %v1028 = vunpack.c.h.b16 %v621
        %v1029 = vunpack.c.l.b16 %v622
        %v1030 = vunpack.c.h.b16 %v622
        %v1031 = vunpack.c.l.b16 %v623
        %v1032 = vunpack.c.h.b16 %v623
        %v1033 = vunpack.c.l.b16 %v624
        %v1034 = vunpack.c.h.b16 %v624
        %v1035 = vunpack.c.l.b16 %v625
        %v1036 = vunpack.c.h.b16 %v625
        %v1037 = vunpack.c.l.b16 %v626
        %v1038 = vunpack.c.h.b16 %v626
        %v1039 = vunpack.c.l.b16 %v627
        %v1040 = vunpack.c.h.b16 %v627
        %v1041 = vunpack.c.l.b16 %v628
        %v1042 = vunpack.c.h.b16 %v628
        %v1043 = vunpack.c.l.b16 %v629
        %v1044 = vunpack.c.h.b16 %v629
        %v1045 = vunpack.c.l.b16 %v630
        %v1046 = vunpack.c.h.b16 %v630
        %v1047 = vunpack.c.l.b16 %v631
        %v1048 = vunpack.c.h.b16 %v631
        %v1049 = vunpack.c.l.b16 %v632
        %v1050 = vunpack.c.h.b16 %v632
        %v1051 = vunpack.c.l.b16 %v633
        %v1052 = vunpack.c.h.b16 %v633
        %v1053 = vunpack.c.l.b16 %v634
        %v1054 = vunpack.c.h.b16 %v634
        %v1055 = vunpack.c.l.b16 %v635
        %v1056 = vunpack.c.h.b16 %v635
        %v1057 = vunpack.c.l.b16 %v636
        %v1058 = vunpack.c.h.b16 %v636
        %v1059 = vunpack.c.l.b16 %v637
        %v1060 = vunpack.c.h.b16 %v637
        %v1061 = vunpack.c.l.b16 %v638
        %v1062 = vunpack.c.h.b16 %v638
        %v1063 = vunpack.c.l.b16 %v639
        %v1064 = vunpack.c.h.b16 %v639
        %v1065 = vunpack.c.l.b16 %v640
        %v1066 = vunpack.c.h.b16 %v640
        %v1067 = vunpack.c.l.b16 %v641
        %v1068 = vunpack.c.h.b16 %v641
        %v1069 = vunpack.c.l.b16 %v642
        %v1070 = vunpack.c.h.b16 %v642
        %v1071 = vunpack.c.l.b16 %v643
        %v1072 = vunpack.c.h.b16 %v643
        %v1073 = vunpack.c.l.b16 %v644
        %v1074 = vunpack.c.h.b16 %v644
        %v1075 = vunpack.c.l.b16 %v645
        %v1076 = vunpack.c.h.b16 %v645
        %v1077 = vunpack.c.l.b16 %v646
        %v1078 = vunpack.c.h.b16 %v646
        %v1079 = vunpack.c.l.b16 %v647
        %v1080 = vunpack.c.h.b16 %v647
        %v1081 = vunpack.c.l.b16 %v648
        %v1082 = vunpack.c.h.b16 %v648
        %v1083 = vunpack.c.l.b16 %v649
        %v1084 = vunpack.c.h.b16 %v649
        %v1085 = vunpack.c.l.b16 %v650
        %v1086 = vunpack.c.h.b16 %v650
        %v1087 = vunpack.c.l.b16 %v651
        %v1088 = vunpack.c.h.b16 %v651
        %v1089 = vunpack.c.l.b16 %v652
        %v1090 = vunpack.c.h.b16 %v652
        %v1091 = vunpack.c.l.b16 %v653
        %v1092 = vunpack.c.h.b16 %v653
        %v1093 = vunpack.c.l.b16 %v654
        %v1094 = vunpack.c.h.b16 %v654
        %v1095 = vunpack.c.l.b16 %v655
        %v1096 = vunpack.c.h.b16 %v655
        %v1097 = vunpack.c.l.b16 %v656
        %v1098 = vunpack.c.h.b16 %v656
        %v1099 = vunpack.c.l.b16 %v657
        %v1100 = vunpack.c.h.b16 %v657
        %v1101 = vunpack.c.l.b16 %v658
        %v1102 = vunpack.c.h.b16 %v658
        %v1103 = vunpack.c.l.b16 %v659
        %v1104 = vunpack.c.h.b16 %v659
        %v1105 = vunpack.c.l.b16 %v660
        %v1106 = vunpack.c.h.b16 %v660
        %v1107 = vunpack.c.l.b16 %v661
        %v1108 = vunpack.c.h.b16 %v661
        %v1109 = vunpack.c.l.b16 %v662
        %v1110 = vunpack.c.h.b16 %v662
        %v1111 = vunpack.c.l.b16 %v663
        %v1112 = vunpack.c.h.b16 %v663
        %v1113 = vunpack.c.l.b16 %v664
        %v1114 = vunpack.c.h.b16 %v664
        %v1115 = vunpack.c.l.b16 %v665
        %v1116 = vunpack.c.h.b16 %v665
        %v1117 = vunpack.c.l.b16 %v666
        %v1118 = vunpack.c.h.b16 %v666
        %v1119 = vunpack.c.l.b16 %v667
        %v1120 = vunpack.c.h.b16 %v667
        %v1121 = vunpack.c.l.b16 %v668
        %v1122 = vunpack.c.h.b16 %v668
        %v1123 = vunpack.c.l.b16 %v669
        %v1124 = vunpack.c.h.b16 %v669
        %v1125 = vunpack.c.l.b16 %v670
        %v1126 = vunpack.c.h.b16 %v670
        %v1127 = vunpack.c.l.b16 %v671
        %v1128 = vunpack.c.h.b16 %v671
        %v1129 = vunpack.c.l.b16 %v672
        %v1130 = vunpack.c.h.b16 %v672
        %v1131 = vunpack.c.l.b16 %v673
        %v1132 = vunpack.c.h.b16 %v673
        %v1133 = vunpack.c.l.b16 %v674
        %v1134 = vunpack.c.h.b16 %v674
        %v1135 = vunpack.c.l.b16 %v675
        %v1136 = vunpack.c.h.b16 %v675
        %v1137 = vunpack.c.l.b16 %v676
        %v1138 = vunpack.c.h.b16 %v676
        %v1139 = vunpack.c.l.b16 %v677
        %v1140 = vunpack.c.h.b16 %v677
        %v1141 = vunpack.c.l.b16 %v678
        %v1142 = vunpack.c.h.b16 %v678
        %v1143 = vunpack.c.l.b16 %v679
        %v1144 = vunpack.c.h.b16 %v679
        %v1145 = vunpack.c.l.b16 %v680
        %v1146 = vunpack.c.h.b16 %v680
        %v1147 = vunpack.c.l.b16 %v681
        %v1148 = vunpack.c.h.b16 %v681
        %v1149 = vunpack.c.l.b16 %v682
        %v1150 = vunpack.c.h.b16 %v682
        %v1151 = vunpack.c.l.b16 %v683
        %v1152 = vunpack.c.h.b16 %v683
        %v1153 = vunpack.c.l.b16 %v684
        %v1154 = vunpack.c.h.b16 %v684
        %v1155 = vunpack.c.l.b16 %v685
        %v1156 = vunpack.c.h.b16 %v685
        %v1157 = vunpack.c.l.b16 %v686
        %v1158 = vunpack.c.h.b16 %v686
        %v1159 = vunpack.c.l.b16 %v687
        %v1160 = vunpack.c.h.b16 %v687
        %v1161 = vunpack.c.l.b16 %v688
        %v1162 = vunpack.c.h.b16 %v688
        %v1163 = vunpack.c.l.b16 %v689
        %v1164 = vunpack.c.h.b16 %v689
        %v1165 = vunpack.c.l.b16 %v690
        %v1166 = vunpack.c.h.b16 %v690
        %v1167 = vunpack.c.l.b16 %v691
        %v1168 = vunpack.c.h.b16 %v691
        %v1169 = vunpack.c.l.b16 %v692
        %v1170 = vunpack.c.h.b16 %v692
        %v1171 = vunpack.c.l.b16 %v693
        %v1172 = vunpack.c.h.b16 %v693
        %v1173 = vunpack.c.l.b16 %v694
        %v1174 = vunpack.c.h.b16 %v694
        %v1175 = vunpack.c.l.b16 %v695
        %v1176 = vunpack.c.h.b16 %v695
        %v1177 = vunpack.c.l.b16 %v696
        %v1178 = vunpack.c.h.b16 %v696
        %v1179 = vunpack.c.l.b16 %v697
        %v1180 = vunpack.c.h.b16 %v697
        %v1181 = vunpack.c.l.b16 %v698
        %v1182 = vunpack.c.h.b16 %v698
        %v1183 = vunpack.c.l.b16 %v699
        %v1184 = vunpack.c.h.b16 %v699
        %v1185 = vunpack.c.l.b16 %v700
        %v1186 = vunpack.c.h.b16 %v700
        %v1187 = vunpack.c.l.b16 %v701
        %v1188 = vunpack.c.h.b16 %v701
        %v1189 = vunpack.c.l.b16 %v702
        %v1190 = vunpack.c.h.b16 %v702
        %v1191 = vunpack.c.l.b16 %v703
        %v1192 = vunpack.c.h.b16 %v703
        %v1193 = vunpack.c.l.b16 %v704
        %v1194 = vunpack.c.h.b16 %v704
        %v1195 = vunpack.c.l.b16 %v705
        %v1196 = vunpack.c.h.b16 %v705
        %v1197 = vunpack.c.l.b16 %v706
        %v1198 = vunpack.c.h.b16 %v706
        %v1199 = vunpack.c.l.b16 %v707
        %v1200 = vunpack.c.h.b16 %v707
        %v1201 = vunpack.c.l.b16 %v708
        %v1202 = vunpack.c.h.b16 %v708
        %v1203 = vunpack.c.l.b16 %v709
        %v1204 = vunpack.c.h.b16 %v709
        %v1205 = vunpack.c.l.b16 %v710
        %v1206 = vunpack.c.h.b16 %v710
        %v1207 = vunpack.c.l.b16 %v711
        %v1208 = vunpack.c.h.b16 %v711
        %v1209 = vunpack.c.l.b16 %v712
        %v1210 = vunpack.c.h.b16 %v712
        %v1211 = vunpack.c.l.b16 %v713
        %v1212 = vunpack.c.h.b16 %v713
        %v1213 = vunpack.c.l.b16 %v714
        %v1214 = vunpack.c.h.b16 %v714
        %v1215 = vunpack.c.l.b16 %v715
        %v1216 = vunpack.c.h.b16 %v715
        %v1217 = vunpack.c.l.b16 %v716
        %v1218 = vunpack.c.h.b16 %v716
        %v1219 = vunpack.c.l.b16 %v717
        %v1220 = vunpack.c.h.b16 %v717
        %v1221 = vunpack.c.l.b16 %v718
        %v1222 = vunpack.c.h.b16 %v718
        %v1223 = vunpack.c.l.b16 %v719
        %v1224 = vunpack.c.h.b16 %v719
        %v1225 = vunpack.c.l.b16 %v720
        %v1226 = vunpack.c.h.b16 %v720
        %v1227 = vunpack.c.l.b16 %v721
        %v1228 = vunpack.c.h.b16 %v721
        %v1229 = vunpack.c.l.b16 %v722
        %v1230 = vunpack.c.h.b16 %v722
        %v1231 = vunpack.c.l.b16 %v723
        %v1232 = vunpack.c.h.b16 %v723
        %v1233 = vunpack.c.l.b16 %v724
        %v1234 = vunpack.c.h.b16 %v724
        %v1235 = vunpack.c.l.b16 %v725
        %v1236 = vunpack.c.h.b16 %v725
        %v1237 = vunpack.c.l.b16 %v726
        %v1238 = vunpack.c.h.b16 %v726
        %v1239 = vunpack.c.l.b16 %v727
        %v1240 = vunpack.c.h.b16 %v727
        %v1241 = vunpack.c.l.b16 %v728
        %v1242 = vunpack.c.h.b16 %v728
        %v1243 = vunpack.c.l.b16 %v729
        %v1244 = vunpack.c.h.b16 %v729
        %v1245 = vunpack.c.l.b16 %v730
        %v1246 = vunpack.c.h.b16 %v730
        %v1247 = vunpack.c.l.b16 %v731
        %v1248 = vunpack.c.h.b16 %v731
        %v1249 = vunpack.c.l.b16 %v732
        %v1250 = vunpack.c.h.b16 %v732
        %v1251 = vunpack.c.l.b16 %v733
        %v1252 = vunpack.c.h.b16 %v733
        %v1253 = vunpack.c.l.b16 %v734
        %v1254 = vunpack.c.h.b16 %v734
        %v1255 = vunpack.c.l.b16 %v735
        %v1256 = vunpack.c.h.b16 %v735
        %v1257 = vunpack.c.l.b16 %v736
        %v1258 = vunpack.c.h.b16 %v736
        %v1259 = vunpack.c.l.b16 %v737
        %v1260 = vunpack.c.h.b16 %v737
        %v1261 = vunpack.c.l.b16 %v738
        %v1262 = vunpack.c.h.b16 %v738
        %v1263 = vunpack.c.l.b16 %v739
        %v1264 = vunpack.c.h.b16 %v739
        %v1265 = vunpack.c.l.b16 %v740
        %v1266 = vunpack.c.h.b16 %v740
        %v1267 = vunpack.c.l.b16 %v741
        %v1268 = vunpack.c.h.b16 %v741
        %v1269 = vunpack.c.l.b16 %v742
        %v1270 = vunpack.c.h.b16 %v742
        %v1271 = vunpack.c.l.b16 %v743
        %v1272 = vunpack.c.h.b16 %v743
        %v1273 = vunpack.c.l.b16 %v744
        %v1274 = vunpack.c.h.b16 %v744
        %v1275 = vunpack.c.l.b16 %v745
        %v1276 = vunpack.c.h.b16 %v745
        %v1277 = vunpack.c.l.b16 %v746
        %v1278 = vunpack.c.h.b16 %v746
        %v1279 = vunpack.c.l.b16 %v747
        %v1280 = vunpack.c.h.b16 %v747
        %v1281 = vunpack.c.l.b16 %v748
        %v1282 = vunpack.c.h.b16 %v748
        %v1283 = vunpack.c.l.b16 %v749
        %v1284 = vunpack.c.h.b16 %v749
        %v1285 = vunpack.c.l.b16 %v750
        %v1286 = vunpack.c.h.b16 %v750
        %v1287 = vunpack.c.l.b16 %v751
        %v1288 = vunpack.c.h.b16 %v751
        %v1289 = vunpack.c.l.b16 %v752
        %v1290 = vunpack.c.h.b16 %v752
        %v1291 = vunpack.c.l.b16 %v753
        %v1292 = vunpack.c.h.b16 %v753
        %v1293 = vunpack.c.l.b16 %v754
        %v1294 = vunpack.c.h.b16 %v754
        %v1295 = vunpack.c.l.b16 %v755
        %v1296 = vunpack.c.h.b16 %v755
        %v1297 = vunpack.c.l.b16 %v756
        %v1298 = vunpack.c.h.b16 %v756
        %v1299 = vunpack.c.l.b16 %v757
        %v1300 = vunpack.c.h.b16 %v757
        %v1301 = vunpack.c.l.b16 %v758
        %v1302 = vunpack.c.h.b16 %v758
        %v1303 = vunpack.c.l.b16 %v759
        %v1304 = vunpack.c.h.b16 %v759
        %v1305 = vunpack.c.l.b16 %v760
        %v1306 = vunpack.c.h.b16 %v760
        %v1307 = vunpack.c.l.b16 %v761
        %v1308 = vunpack.c.h.b16 %v761
        %v1309 = vunpack.c.l.b16 %v762
        %v1310 = vunpack.c.h.b16 %v762
        %v1311 = vunpack.c.l.b16 %v763
        %v1312 = vunpack.c.h.b16 %v763
        %v1313 = vunpack.c.l.b16 %v764
        %v1314 = vunpack.c.h.b16 %v764
        %v1315 = vunpack.c.l.b16 %v765
        %v1316 = vunpack.c.h.b16 %v765
        %v1317 = vunpack.c.l.b16 %v766
        %v1318 = vunpack.c.h.b16 %v766
        %v1319 = vunpack.c.l.b16 %v767
        %v1320 = vunpack.c.h.b16 %v767
        %v1321 = vunpack.c.l.b16 %v768
        %v1322 = vunpack.c.h.b16 %v768
        %v1323 = vunpack.c.l.b16 %v769
        %v1324 = vunpack.c.h.b16 %v769
        %v1325 = vunpack.c.l.b16 %v770
        %v1326 = vunpack.c.h.b16 %v770
        %v1327 = vunpack.c.l.b16 %v771
        %v1328 = vunpack.c.h.b16 %v771
        %v1329 = vunpack.c.l.b16 %v772
        %v1330 = vunpack.c.h.b16 %v772
        %v1331 = vunpack.c.l.b16 %v773
        %v1332 = vunpack.c.h.b16 %v773
        %v1333 = vunpack.c.l.b16 %v774
        %v1334 = vunpack.c.h.b16 %v774
        %v1335 = vunpack.c.l.b16 %v775
        %v1336 = vunpack.c.h.b16 %v775
        %v1337 = vunpack.c.l.b16 %v776
        %v1338 = vunpack.c.h.b16 %v776
        %v1339 = vunpack.c.l.b16 %v777
        %v1340 = vunpack.c.h.b16 %v777
        %v1341 = vunpack.c.l.b16 %v778
        %v1342 = vunpack.c.h.b16 %v778
        %v1343 = vunpack.c.l.b16 %v779
        %v1344 = vunpack.c.h.b16 %v779
        %v1345 = vunpack.c.l.b16 %v780
        %v1346 = vunpack.c.h.b16 %v780
        %v1347 = vunpack.c.l.b16 %v781
        %v1348 = vunpack.c.h.b16 %v781
        %v1349 = vunpack.c.l.b16 %v782
        %v1350 = vunpack.c.h.b16 %v782
        %v1351 = vunpack.c.l.b16 %v783
        %v1352 = vunpack.c.h.b16 %v783
        %v1353 = vunpack.c.l.b16 %v784
        %v1354 = vunpack.c.h.b16 %v784
        %v1355 = vunpack.c.l.b16 %v785
        %v1356 = vunpack.c.h.b16 %v785
        %v1357 = vunpack.c.l.b16 %v786
        %v1358 = vunpack.c.h.b16 %v786
        %v1359 = vunpack.c.l.b16 %v787
        %v1360 = vunpack.c.h.b16 %v787
        %v1361 = vunpack.c.l.b16 %v788
        %v1362 = vunpack.c.h.b16 %v788
        %v1363 = vunpack.c.l.b16 %v789
        %v1364 = vunpack.c.h.b16 %v789
        %v1365 = vunpack.c.l.b16 %v790
        %v1366 = vunpack.c.h.b16 %v790
        %v1367 = vunpack.c.l.b16 %v791
        %v1368 = vunpack.c.h.b16 %v791
        %v1369 = vunpack.c.l.b16 %v792
        %v1370 = vunpack.c.h.b16 %v792
        %v1371 = vunpack.c.l.b16 %v793
        %v1372 = vunpack.c.h.b16 %v793
        %v1373 = vunpack.c.l.b16 %v794
        %v1374 = vunpack.c.h.b16 %v794
        %v1375 = vunpack.c.l.b16 %v795
        %v1376 = vunpack.c.h.b16 %v795
        %v1377 = vunpack.c.l.b16 %v796
        %v1378 = vunpack.c.h.b16 %v796
        %v1379 = vunpack.c.l.b16 %v797
        %v1380 = vunpack.c.h.b16 %v797
        %v1381 = vunpack.c.l.b16 %v798
        %v1382 = vunpack.c.h.b16 %v798
        %v1383 = vunpack.c.l.b16 %v799
        %v1384 = vunpack.c.h.b16 %v799
        %v1385 = vunpack.c.l.b16 %v800
        %v1386 = vunpack.c.h.b16 %v800
        %v1387 = vunpack.c.l.b16 %v801
        %v1388 = vunpack.c.h.b16 %v801
        %v1389 = vunpack.c.l.b16 %v802
        %v1390 = vunpack.c.h.b16 %v802
        %v1391 = vunpack.c.l.b16 %v803
        %v1392 = vunpack.c.h.b16 %v803
        %v1393 = vunpack.c.l.b16 %v804
        %v1394 = vunpack.c.h.b16 %v804
        %v1395 = vunpack.c.l.b16 %v805
        %v1396 = vunpack.c.h.b16 %v805
        %v1397 = vunpack.c.l.b16 %v806
        %v1398 = vunpack.c.h.b16 %v806
        %v1399 = vunpack.c.l.b16 %v807
        %v1400 = vunpack.c.h.b16 %v807
        %v1401 = vunpack.c.l.b16 %v808
        %v1402 = vunpack.c.h.b16 %v808
        %v1403 = vunpack.c.l.b16 %v809
        %v1404 = vunpack.c.h.b16 %v809
        %v1405 = vunpack.c.l.b16 %v810
        %v1406 = vunpack.c.h.b16 %v810
        %v1407 = vunpack.c.l.b16 %v811
        %v1408 = vunpack.c.h.b16 %v811
        %v1409 = vunpack.c.l.b16 %v812
        %v1410 = vunpack.c.h.b16 %v812
        %v1411 = vpack.c.b16 %v1031, %v1027
        %v1412 = vpack.c.b16 %v1032, %v1028
        %v1413 = vpack.c.b16 %v1033, %v1029
        %v1414 = vpack.c.b16 %v1034, %v1030
        %v1415 = vpack.c.b16 %v1039, %v1035
        %v1416 = vpack.c.b16 %v1040, %v1036
        %v1417 = vpack.c.b16 %v1041, %v1037
        %v1418 = vpack.c.b16 %v1042, %v1038
        %v1419 = vpack.c.b16 %v1047, %v1043
        %v1420 = vpack.c.b16 %v1048, %v1044
        %v1421 = vpack.c.b16 %v1049, %v1045
        %v1422 = vpack.c.b16 %v1050, %v1046
        %v1423 = vpack.c.b16 %v1055, %v1051
        %v1424 = vpack.c.b16 %v1056, %v1052
        %v1425 = vpack.c.b16 %v1057, %v1053
        %v1426 = vpack.c.b16 %v1058, %v1054
        %v1427 = vpack.c.b16 %v1063, %v1059
        %v1428 = vpack.c.b16 %v1064, %v1060
        %v1429 = vpack.c.b16 %v1065, %v1061
        %v1430 = vpack.c.b16 %v1066, %v1062
        %v1431 = vpack.c.b16 %v1071, %v1067
        %v1432 = vpack.c.b16 %v1072, %v1068
        %v1433 = vpack.c.b16 %v1073, %v1069
        %v1434 = vpack.c.b16 %v1074, %v1070
        %v1435 = vpack.c.b16 %v1079, %v1075
        %v1436 = vpack.c.b16 %v1080, %v1076
        %v1437 = vpack.c.b16 %v1081, %v1077
        %v1438 = vpack.c.b16 %v1082, %v1078
        %v1439 = vpack.c.b16 %v1087, %v1083
        %v1440 = vpack.c.b16 %v1088, %v1084
        %v1441 = vpack.c.b16 %v1089, %v1085
        %v1442 = vpack.c.b16 %v1090, %v1086
        %v1443 = vpack.c.b16 %v1095, %v1091
        %v1444 = vpack.c.b16 %v1096, %v1092
        %v1445 = vpack.c.b16 %v1097, %v1093
        %v1446 = vpack.c.b16 %v1098, %v1094
        %v1447 = vpack.c.b16 %v1103, %v1099
        %v1448 = vpack.c.b16 %v1104, %v1100
        %v1449 = vpack.c.b16 %v1105, %v1101
        %v1450 = vpack.c.b16 %v1106, %v1102
        %v1451 = vpack.c.b16 %v1111, %v1107
        %v1452 = vpack.c.b16 %v1112, %v1108
        %v1453 = vpack.c.b16 %v1113, %v1109
        %v1454 = vpack.c.b16 %v1114, %v1110
        %v1455 = vpack.c.b16 %v1119, %v1115
        %v1456 = vpack.c.b16 %v1120, %v1116
        %v1457 = vpack.c.b16 %v1121, %v1117
        %v1458 = vpack.c.b16 %v1122, %v1118
        %v1459 = vpack.c.b16 %v1127, %v1123
        %v1460 = vpack.c.b16 %v1128, %v1124
        %v1461 = vpack.c.b16 %v1129, %v1125
        %v1462 = vpack.c.b16 %v1130, %v1126
        %v1463 = vpack.c.b16 %v1135, %v1131
        %v1464 = vpack.c.b16 %v1136, %v1132
        %v1465 = vpack.c.b16 %v1137, %v1133
        %v1466 = vpack.c.b16 %v1138, %v1134
        %v1467 = vpack.c.b16 %v1143, %v1139
        %v1468 = vpack.c.b16 %v1144, %v1140
        %v1469 = vpack.c.b16 %v1145, %v1141
        %v1470 = vpack.c.b16 %v1146, %v1142
        %v1471 = vpack.c.b16 %v1151, %v1147
        %v1472 = vpack.c.b16 %v1152, %v1148
        %v1473 = vpack.c.b16 %v1153, %v1149
        %v1474 = vpack.c.b16 %v1154, %v1150
        %v1475 = vpack.c.b16 %v1159, %v1155
        %v1476 = vpack.c.b16 %v1160, %v1156
        %v1477 = vpack.c.b16 %v1161, %v1157
        %v1478 = vpack.c.b16 %v1162, %v1158
        %v1479 = vpack.c.b16 %v1167, %v1163
        %v1480 = vpack.c.b16 %v1168, %v1164
        %v1481 = vpack.c.b16 %v1169, %v1165
        %v1482 = vpack.c.b16 %v1170, %v1166
        %v1483 = vpack.c.b16 %v1175, %v1171
        %v1484 = vpack.c.b16 %v1176, %v1172
        %v1485 = vpack.c.b16 %v1177, %v1173
        %v1486 = vpack.c.b16 %v1178, %v1174
        %v1487 = vpack.c.b16 %v1183, %v1179
        %v1488 = vpack.c.b16 %v1184, %v1180
        %v1489 = vpack.c.b16 %v1185, %v1181
        %v1490 = vpack.c.b16 %v1186, %v1182
        %v1491 = vpack.c.b16 %v1191, %v1187
        %v1492 = vpack.c.b16 %v1192, %v1188
        %v1493 = vpack.c.b16 %v1193, %v1189
        %v1494 = vpack.c.b16 %v1194, %v1190
        %v1495 = vpack.c.b16 %v1199, %v1195
        %v1496 = vpack.c.b16 %v1200, %v1196
        %v1497 = vpack.c.b16 %v1201, %v1197
        %v1498 = vpack.c.b16 %v1202, %v1198
        %v1499 = vpack.c.b16 %v1207, %v1203
        %v1500 = vpack.c.b16 %v1208, %v1204
        %v1501 = vpack.c.b16 %v1209, %v1205
        %v1502 = vpack.c.b16 %v1210, %v1206
        %v1503 = vpack.c.b16 %v1215, %v1211
        %v1504 = vpack.c.b16 %v1216, %v1212
        %v1505 = vpack.c.b16 %v1217, %v1213
        %v1506 = vpack.c.b16 %v1218, %v1214
        %v1507 = vpack.c.b16 %v1223, %v1219
        %v1508 = vpack.c.b16 %v1224, %v1220
        %v1509 = vpack.c.b16 %v1225, %v1221
        %v1510 = vpack.c.b16 %v1226, %v1222
        %v1511 = vpack.c.b16 %v1231, %v1227
        %v1512 = vpack.c.b16 %v1232, %v1228
        %v1513 = vpack.c.b16 %v1233, %v1229
        %v1514 = vpack.c.b16 %v1234, %v1230
        %v1515 = vpack.c.b16 %v1239, %v1235
        %v1516 = vpack.c.b16 %v1240, %v1236
        %v1517 = vpack.c.b16 %v1241, %v1237
        %v1518 = vpack.c.b16 %v1242, %v1238
        %v1519 = vpack.c.b16 %v1247, %v1243
        %v1520 = vpack.c.b16 %v1248, %v1244
        %v1521 = vpack.c.b16 %v1249, %v1245
        %v1522 = vpack.c.b16 %v1250, %v1246
        %v1523 = vpack.c.b16 %v1255, %v1251
        %v1524 = vpack.c.b16 %v1256, %v1252
        %v1525 = vpack.c.b16 %v1257, %v1253
        %v1526 = vpack.c.b16 %v1258, %v1254
        %v1527 = vpack.c.b16 %v1263, %v1259
        %v1528 = vpack.c.b16 %v1264, %v1260
        %v1529 = vpack.c.b16 %v1265, %v1261
        %v1530 = vpack.c.b16 %v1266, %v1262
        %v1531 = vpack.c.b16 %v1271, %v1267
        %v1532 = vpack.c.b16 %v1272, %v1268
        %v1533 = vpack.c.b16 %v1273, %v1269
        %v1534 = vpack.c.b16 %v1274, %v1270
        %v1535 = vpack.c.b16 %v1279, %v1275
        %v1536 = vpack.c.b16 %v1280, %v1276
        %v1537 = vpack.c.b16 %v1281, %v1277
        %v1538 = vpack.c.b16 %v1282, %v1278
        %v1539 = vpack.c.b16 %v1287, %v1283
        %v1540 = vpack.c.b16 %v1288, %v1284
        %v1541 = vpack.c.b16 %v1289, %v1285
        %v1542 = vpack.c.b16 %v1290, %v1286
        %v1543 = vpack.c.b16 %v1295, %v1291
        %v1544 = vpack.c.b16 %v1296, %v1292
        %v1545 = vpack.c.b16 %v1297, %v1293
        %v1546 = vpack.c.b16 %v1298, %v1294
        %v1547 = vpack.c.b16 %v1303, %v1299
        %v1548 = vpack.c.b16 %v1304, %v1300
        %v1549 = vpack.c.b16 %v1305, %v1301
        %v1550 = vpack.c.b16 %v1306, %v1302
        %v1551 = vpack.c.b16 %v1311, %v1307
        %v1552 = vpack.c.b16 %v1312, %v1308
        %v1553 = vpack.c.b16 %v1313, %v1309
        %v1554 = vpack.c.b16 %v1314, %v1310
        %v1555 = vpack.c.b16 %v1319, %v1315
        %v1556 = vpack.c.b16 %v1320, %v1316
        %v1557 = vpack.c.b16 %v1321, %v1317
        %v1558 = vpack.c.b16 %v1322, %v1318
        %v1559 = vpack.c.b16 %v1327, %v1323
        %v1560 = vpack.c.b16 %v1328, %v1324
        %v1561 = vpack.c.b16 %v1329, %v1325
        %v1562 = vpack.c.b16 %v1330, %v1326
        %v1563 = vpack.c.b16 %v1335, %v1331
        %v1564 = vpack.c.b16 %v1336, %v1332
        %v1565 = vpack.c.b16 %v1337, %v1333
        %v1566 = vpack.c.b16 %v1338, %v1334
        %v1567 = vpack.c.b16 %v1343, %v1339
        %v1568 = vpack.c.b16 %v1344, %v1340
        %v1569 = vpack.c.b16 %v1345, %v1341
        %v1570 = vpack.c.b16 %v1346, %v1342
        %v1571 = vpack.c.b16 %v1351, %v1347
        %v1572 = vpack.c.b16 %v1352, %v1348
        %v1573 = vpack.c.b16 %v1353, %v1349
        %v1574 = vpack.c.b16 %v1354, %v1350
        %v1575 = vpack.c.b16 %v1359, %v1355
        %v1576 = vpack.c.b16 %v1360, %v1356
        %v1577 = vpack.c.b16 %v1361, %v1357
        %v1578 = vpack.c.b16 %v1362, %v1358
        %v1579 = vpack.c.b16 %v1367, %v1363
        %v1580 = vpack.c.b16 %v1368, %v1364
        %v1581 = vpack.c.b16 %v1369, %v1365
        %v1582 = vpack.c.b16 %v1370, %v1366
        %v1583 = vpack.c.b16 %v1375, %v1371
        %v1584 = vpack.c.b16 %v1376, %v1372
        %v1585 = vpack.c.b16 %v1377, %v1373
        %v1586 = vpack.c.b16 %v1378, %v1374
        %v1587 = vpack.c.b16 %v1383, %v1379
        %v1588 = vpack.c.b16 %v1384, %v1380
        %v1589 = vpack.c.b16 %v1385, %v1381
        %v1590 = vpack.c.b16 %v1386, %v1382
        %v1591 = vpack.c.b16 %v1391, %v1387
        %v1592 = vpack.c.b16 %v1392, %v1388
        %v1593 = vpack.c.b16 %v1393, %v1389
        %v1594 = vpack.c.b16 %v1394, %v1390
        %v1595 = vpack.c.b16 %v1399, %v1395
        %v1596 = vpack.c.b16 %v1400, %v1396
        %v1597 = vpack.c.b16 %v1401, %v1397
        %v1598 = vpack.c.b16 %v1402, %v1398
        %v1599 = vpack.c.b16 %v1407, %v1403
        %v1600 = vpack.c.b16 %v1408, %v1404
        %v1601 = vpack.c.b16 %v1409, %v1405
        %v1602 = vpack.c.b16 %v1410, %v1406
        %1795 = vmatprep.subr.bf16.mxu0 %v1440
        %1796 = vmatpush1.bf16.msra.mxu0 %v1439
        %1797 = vmatprep.subr.bf16.mxu0 %v1436
        %1798 = vmatpush1.bf16.msra.mxu0 %v1435
        %1799 = vmatprep.subr.bf16.mxu0 %v1432
        %1800 = vmatpush1.bf16.msra.mxu0 %v1431
        %1801 = vmatprep.subr.bf16.mxu0 %v1428
        %1802 = vmatpush1.bf16.msra.mxu0 %v1427
        %1803 = vmatprep.subr.bf16.mxu0 %v1424
        %1804 = vmatpush1.bf16.msra.mxu0 %v1423
        %1805 = vmatprep.subr.bf16.mxu0 %v1420
        %1806 = vmatpush1.bf16.msra.mxu0 %v1419
        %1807 = vmatprep.subr.bf16.mxu0 %v1416
        %1808 = vmatpush1.bf16.msra.mxu0 %v1415
        %1809 = vmatprep.subr.bf16.mxu0 %v1412
        %1810 = vmatpush1.bf16.msra.mxu0 %v1411
        %1811 = vmatprep.subr.bf16.mxu0 %v1472
        %1812 = vmatpush2.bf16.msra.mxu0 %v1471
        %1813 = vmatprep.subr.bf16.mxu0 %v1468
        %1814 = vmatpush2.bf16.msra.mxu0 %v1467
        %1815 = vmatprep.subr.bf16.mxu0 %v1464
        %1816 = vmatpush2.bf16.msra.mxu0 %v1463
        %1817 = vmatprep.subr.bf16.mxu0 %v1460
        %1818 = vmatpush2.bf16.msra.mxu0 %v1459
        %1819 = vmatprep.subr.bf16.mxu0 %v1456
        %1820 = vmatpush2.bf16.msra.mxu0 %v1455
        %1821 = vmatprep.subr.bf16.mxu0 %v1452
        %1822 = vmatpush2.bf16.msra.mxu0 %v1451
        %1823 = vmatprep.subr.bf16.mxu0 %v1448
        %1824 = vmatpush2.bf16.msra.mxu0 %v1447
        %1825 = vmatprep.subr.bf16.mxu0 %v1444
        %1826 = vmatpush2.bf16.msra.mxu0 %v1443
        %1827 = vmatprep.mubr.bf16.mxu0 %v611
        %1828 = vmatmul.mubr.bf16.gmra.mxu0 %v610
        %v1829 = vpop.f32.mrf.mxu0
        %v1830 = vadd.f32 %v818, %v1829
        %v1831 = vpop.f32.mrf.mxu0
        %v1832 = vadd.f32 %v822, %v1831
        %v1833 = vpop.f32.mrf.mxu0
        %v1834 = vpop.f32.mrf.mxu0
        %1835 = vdwg.mxu0
        %1836 = vmatprep.subr.bf16.mxu0 %v1504
        %1837 = vmatpush1.bf16.msra.mxu0 %v1503
        %1838 = vmatprep.subr.bf16.mxu0 %v1500
        %1839 = vmatpush1.bf16.msra.mxu0 %v1499
        %1840 = vmatprep.subr.bf16.mxu0 %v1496
        %1841 = vmatpush1.bf16.msra.mxu0 %v1495
        %1842 = vmatprep.subr.bf16.mxu0 %v1492
        %1843 = vmatpush1.bf16.msra.mxu0 %v1491
        %1844 = vmatprep.subr.bf16.mxu0 %v1488
        %1845 = vmatpush1.bf16.msra.mxu0 %v1487
        %1846 = vmatprep.subr.bf16.mxu0 %v1484
        %1847 = vmatpush1.bf16.msra.mxu0 %v1483
        %1848 = vmatprep.subr.bf16.mxu0 %v1480
        %1849 = vmatpush1.bf16.msra.mxu0 %v1479
        %1850 = vmatprep.subr.bf16.mxu0 %v1476
        %1851 = vmatpush1.bf16.msra.mxu0 %v1475
        %1852 = vmatprep.subr.bf16.mxu0 %v1536
        %1853 = vmatpush2.bf16.msra.mxu0 %v1535
        %1854 = vmatprep.subr.bf16.mxu0 %v1532
        %1855 = vmatpush2.bf16.msra.mxu0 %v1531
        %1856 = vmatprep.subr.bf16.mxu0 %v1528
        %1857 = vmatpush2.bf16.msra.mxu0 %v1527
        %1858 = vmatprep.subr.bf16.mxu0 %v1524
        %1859 = vmatpush2.bf16.msra.mxu0 %v1523
        %1860 = vmatprep.subr.bf16.mxu0 %v1520
        %1861 = vmatpush2.bf16.msra.mxu0 %v1519
        %1862 = vmatprep.subr.bf16.mxu0 %v1516
        %1863 = vmatpush2.bf16.msra.mxu0 %v1515
        %1864 = vmatprep.subr.bf16.mxu0 %v1512
        %1865 = vmatpush2.bf16.msra.mxu0 %v1511
        %1866 = vmatprep.subr.bf16.mxu0 %v1508
        %1867 = vmatpush2.bf16.msra.mxu0 %v1507
        %1868 = vmatprep.mubr.bf16.mxu0 %v618
        %1869 = vmatmul.mubr.bf16.gmra.mxu0 %v617
        %v1870 = vpop.f32.mrf.mxu0
        %v1871 = vadd.f32 %v1830, %v1870
        %v1872 = vpop.f32.mrf.mxu0
        %v1873 = vadd.f32 %v1832, %v1872
        %v1874 = vpop.f32.mrf.mxu0
        %v1875 = vpop.f32.mrf.mxu0
        %1876 = vdwg.mxu0
        %1877 = vmatprep.subr.bf16.mxu0 %v1568
        %1878 = vmatpush1.bf16.msra.mxu0 %v1567
        %1879 = vmatprep.subr.bf16.mxu0 %v1564
        %1880 = vmatpush1.bf16.msra.mxu0 %v1563
        %1881 = vmatprep.subr.bf16.mxu0 %v1560
        %1882 = vmatpush1.bf16.msra.mxu0 %v1559
        %1883 = vmatprep.subr.bf16.mxu0 %v1556
        %1884 = vmatpush1.bf16.msra.mxu0 %v1555
        %1885 = vmatprep.subr.bf16.mxu0 %v1552
        %1886 = vmatpush1.bf16.msra.mxu0 %v1551
        %1887 = vmatprep.subr.bf16.mxu0 %v1548
        %1888 = vmatpush1.bf16.msra.mxu0 %v1547
        %1889 = vmatprep.subr.bf16.mxu0 %v1544
        %1890 = vmatpush1.bf16.msra.mxu0 %v1543
        %1891 = vmatprep.subr.bf16.mxu0 %v1540
        %1892 = vmatpush1.bf16.msra.mxu0 %v1539
        %1893 = vmatprep.subr.bf16.mxu0 %v1600
        %1894 = vmatpush2.bf16.msra.mxu0 %v1599
        %1895 = vmatprep.subr.bf16.mxu0 %v1596
        %1896 = vmatpush2.bf16.msra.mxu0 %v1595
        %1897 = vmatprep.subr.bf16.mxu0 %v1592
        %1898 = vmatpush2.bf16.msra.mxu0 %v1591
        %1899 = vmatprep.subr.bf16.mxu0 %v1588
        %1900 = vmatpush2.bf16.msra.mxu0 %v1587
        %1901 = vmatprep.subr.bf16.mxu0 %v1584
        %1902 = vmatpush2.bf16.msra.mxu0 %v1583
        %1903 = vmatprep.subr.bf16.mxu0 %v1580
        %1904 = vmatpush2.bf16.msra.mxu0 %v1579
        %1905 = vmatprep.subr.bf16.mxu0 %v1576
        %1906 = vmatpush2.bf16.msra.mxu0 %v1575
        %1907 = vmatprep.subr.bf16.mxu0 %v1572
        %1908 = vmatpush2.bf16.msra.mxu0 %v1571
        %1909 = vmatprep.mubr.bf16.mxu0 %v613
        %1910 = vmatmul.mubr.bf16.gmra.mxu0 %v612
        %v1911 = vpop.f32.mrf.mxu0
        %v1912 = vadd.f32 %v1871, %v1911
        %v1913 = vpop.f32.mrf.mxu0
        %v1914 = vadd.f32 %v1873, %v1913
        %v1915 = vpop.f32.mrf.mxu0
        %v1916 = vpop.f32.mrf.mxu0
        %1917 = vdwg.mxu0
        %1918 = vmatprep.subr.bf16.mxu0 %v1442
        %1919 = vmatpush1.bf16.msra.mxu0 %v1441
        %1920 = vmatprep.subr.bf16.mxu0 %v1438
        %1921 = vmatpush1.bf16.msra.mxu0 %v1437
        %1922 = vmatprep.subr.bf16.mxu0 %v1434
        %1923 = vmatpush1.bf16.msra.mxu0 %v1433
        %1924 = vmatprep.subr.bf16.mxu0 %v1430
        %1925 = vmatpush1.bf16.msra.mxu0 %v1429
        %1926 = vmatprep.subr.bf16.mxu0 %v1426
        %1927 = vmatpush1.bf16.msra.mxu0 %v1425
        %1928 = vmatprep.subr.bf16.mxu0 %v1422
        %1929 = vmatpush1.bf16.msra.mxu0 %v1421
        %1930 = vmatprep.subr.bf16.mxu0 %v1418
        %1931 = vmatpush1.bf16.msra.mxu0 %v1417
        %1932 = vmatprep.subr.bf16.mxu0 %v1414
        %1933 = vmatpush1.bf16.msra.mxu0 %v1413
        %1934 = vmatprep.subr.bf16.mxu0 %v1474
        %1935 = vmatpush2.bf16.msra.mxu0 %v1473
        %1936 = vmatprep.subr.bf16.mxu0 %v1470
        %1937 = vmatpush2.bf16.msra.mxu0 %v1469
        %1938 = vmatprep.subr.bf16.mxu0 %v1466
        %1939 = vmatpush2.bf16.msra.mxu0 %v1465
        %1940 = vmatprep.subr.bf16.mxu0 %v1462
        %1941 = vmatpush2.bf16.msra.mxu0 %v1461
        %1942 = vmatprep.subr.bf16.mxu0 %v1458
        %1943 = vmatpush2.bf16.msra.mxu0 %v1457
        %1944 = vmatprep.subr.bf16.mxu0 %v1454
        %1945 = vmatpush2.bf16.msra.mxu0 %v1453
        %1946 = vmatprep.subr.bf16.mxu0 %v1450
        %1947 = vmatpush2.bf16.msra.mxu0 %v1449
        %1948 = vmatprep.subr.bf16.mxu0 %v1446
        %1949 = vmatpush2.bf16.msra.mxu0 %v1445
        %1950 = vmatprep.mubr.bf16.mxu0 %v611
        %1951 = vmatmul.mubr.bf16.gmra.mxu0 %v610
        %v1952 = vpop.f32.mrf.mxu0
        %v1953 = vadd.f32 %v826, %v1952
        %v1954 = vpop.f32.mrf.mxu0
        %v1955 = vadd.f32 %v830, %v1954
        %v1956 = vpop.f32.mrf.mxu0
        %v1957 = vpop.f32.mrf.mxu0
        %1958 = vdwg.mxu0
        %1959 = vmatprep.subr.bf16.mxu0 %v1506
        %1960 = vmatpush1.bf16.msra.mxu0 %v1505
        %1961 = vmatprep.subr.bf16.mxu0 %v1502
        %1962 = vmatpush1.bf16.msra.mxu0 %v1501
        %1963 = vmatprep.subr.bf16.mxu0 %v1498
        %1964 = vmatpush1.bf16.msra.mxu0 %v1497
        %1965 = vmatprep.subr.bf16.mxu0 %v1494
        %1966 = vmatpush1.bf16.msra.mxu0 %v1493
        %1967 = vmatprep.subr.bf16.mxu0 %v1490
        %1968 = vmatpush1.bf16.msra.mxu0 %v1489
        %1969 = vmatprep.subr.bf16.mxu0 %v1486
        %1970 = vmatpush1.bf16.msra.mxu0 %v1485
        %1971 = vmatprep.subr.bf16.mxu0 %v1482
        %1972 = vmatpush1.bf16.msra.mxu0 %v1481
        %1973 = vmatprep.subr.bf16.mxu0 %v1478
        %1974 = vmatpush1.bf16.msra.mxu0 %v1477
        %1975 = vmatprep.subr.bf16.mxu0 %v1538
        %1976 = vmatpush2.bf16.msra.mxu0 %v1537
        %1977 = vmatprep.subr.bf16.mxu0 %v1534
        %1978 = vmatpush2.bf16.msra.mxu0 %v1533
        %1979 = vmatprep.subr.bf16.mxu0 %v1530
        %1980 = vmatpush2.bf16.msra.mxu0 %v1529
        %1981 = vmatprep.subr.bf16.mxu0 %v1526
        %1982 = vmatpush2.bf16.msra.mxu0 %v1525
        %1983 = vmatprep.subr.bf16.mxu0 %v1522
        %1984 = vmatpush2.bf16.msra.mxu0 %v1521
        %1985 = vmatprep.subr.bf16.mxu0 %v1518
        %1986 = vmatpush2.bf16.msra.mxu0 %v1517
        %1987 = vmatprep.subr.bf16.mxu0 %v1514
        %1988 = vmatpush2.bf16.msra.mxu0 %v1513
        %1989 = vmatprep.subr.bf16.mxu0 %v1510
        %1990 = vmatpush2.bf16.msra.mxu0 %v1509
        %1991 = vmatprep.mubr.bf16.mxu0 %v618
        %1992 = vmatmul.mubr.bf16.gmra.mxu0 %v617
        %v1993 = vpop.f32.mrf.mxu0
        %v1994 = vadd.f32 %v1953, %v1993
        %v1995 = vpop.f32.mrf.mxu0
        %v1996 = vadd.f32 %v1955, %v1995
        %v1997 = vpop.f32.mrf.mxu0
        %v1998 = vpop.f32.mrf.mxu0
        %1999 = vdwg.mxu0
        %2000 = vmatprep.subr.bf16.mxu0 %v1570
        %2001 = vmatpush1.bf16.msra.mxu0 %v1569
        %2002 = vmatprep.subr.bf16.mxu0 %v1566
        %2003 = vmatpush1.bf16.msra.mxu0 %v1565
        %2004 = vmatprep.subr.bf16.mxu0 %v1562
        %2005 = vmatpush1.bf16.msra.mxu0 %v1561
        %2006 = vmatprep.subr.bf16.mxu0 %v1558
        %2007 = vmatpush1.bf16.msra.mxu0 %v1557
        %2008 = vmatprep.subr.bf16.mxu0 %v1554
        %2009 = vmatpush1.bf16.msra.mxu0 %v1553
        %2010 = vmatprep.subr.bf16.mxu0 %v1550
        %2011 = vmatpush1.bf16.msra.mxu0 %v1549
        %2012 = vmatprep.subr.bf16.mxu0 %v1546
        %2013 = vmatpush1.bf16.msra.mxu0 %v1545
        %2014 = vmatprep.subr.bf16.mxu0 %v1542
        %2015 = vmatpush1.bf16.msra.mxu0 %v1541
        %2016 = vmatprep.subr.bf16.mxu0 %v1602
        %2017 = vmatpush2.bf16.msra.mxu0 %v1601
        %2018 = vmatprep.subr.bf16.mxu0 %v1598
        %2019 = vmatpush2.bf16.msra.mxu0 %v1597
        %2020 = vmatprep.subr.bf16.mxu0 %v1594
        %2021 = vmatpush2.bf16.msra.mxu0 %v1593
        %2022 = vmatprep.subr.bf16.mxu0 %v1590
        %2023 = vmatpush2.bf16.msra.mxu0 %v1589
        %2024 = vmatprep.subr.bf16.mxu0 %v1586
        %2025 = vmatpush2.bf16.msra.mxu0 %v1585
        %2026 = vmatprep.subr.bf16.mxu0 %v1582
        %2027 = vmatpush2.bf16.msra.mxu0 %v1581
        %2028 = vmatprep.subr.bf16.mxu0 %v1578
        %2029 = vmatpush2.bf16.msra.mxu0 %v1577
        %2030 = vmatprep.subr.bf16.mxu0 %v1574
        %2031 = vmatpush2.bf16.msra.mxu0 %v1573
        %2032 = vmatprep.mubr.bf16.mxu0 %v613
        %2033 = vmatmul.mubr.bf16.gmra.mxu0 %v612
        %v2034 = vpop.f32.mrf.mxu0
        %v2035 = vadd.f32 %v1994, %v2034
        %v2036 = vpop.f32.mrf.mxu0
        %v2037 = vadd.f32 %v1996, %v2036
        %v2038 = vpop.f32.mrf.mxu0
        %v2039 = vpop.f32.mrf.mxu0
        %2040 = vdwg.mxu0
        %v2041 = vmax.f32 %v1912, 0.0
        %v2042 = vmax.f32 %v1914, 0.0
        %v2043 = vmax.f32 %v2035, 0.0
        %v2044 = vmax.f32 %v2037, 0.0
        %v2045 = vpack.c.bf16 %v2041, %v2041
        %v2046 = vpack.c.bf16 %v2042, %v2042
        %v2047 = vpack.c.bf16 %v2043, %v2043
        %v2048 = vpack.c.bf16 %v2044, %v2044
        %v2049 = vld [vmem:[#allocation11] sm:$0xf]
        %v2050 = vld [vmem:[#allocation11 + $0x4] sm:$0xf]
        %v2051 = vld [vmem:[#allocation11 + $0x8] sm:$0xf]
        %v2052 = vld [vmem:[#allocation11 + $0xc] sm:$0xf]
        %v2053 = vld [vmem:[#allocation11 + $0x10] sm:$0xf]
        %v2054 = vld [vmem:[#allocation11 + $0x14] sm:$0xf]
        %v2055 = vld [vmem:[#allocation11 + $0x18] sm:$0xf]
        %v2056 = vld [vmem:[#allocation11 + $0x1c] sm:$0xf]
        %v2057 = vld [vmem:[#allocation11 + $0x20] sm:$0xf]
        %v2058 = vld [vmem:[#allocation11 + $0x24] sm:$0xf]
        %v2059 = vld [vmem:[#allocation11 + $0x28] sm:$0xf]
        %v2060 = vld [vmem:[#allocation11 + $0x2c] sm:$0xf]
        %v2061 = vld [vmem:[#allocation11 + $0x30] sm:$0xf]
        %v2062 = vld [vmem:[#allocation11 + $0x34] sm:$0xf]
        %v2063 = vld [vmem:[#allocation11 + $0x38] sm:$0xf]
        %v2064 = vld [vmem:[#allocation11 + $0x3c] sm:$0xf]
        %v2065 = vld [vmem:[#allocation11 + $0x40] sm:$0xf]
        %v2066 = vld [vmem:[#allocation11 + $0x44] sm:$0xf]
        %v2067 = vld [vmem:[#allocation11 + $0x48] sm:$0xf]
        %v2068 = vld [vmem:[#allocation11 + $0x4c] sm:$0xf]
        %v2069 = vld [vmem:[#allocation11 + $0x50] sm:$0xf]
        %v2070 = vld [vmem:[#allocation11 + $0x54] sm:$0xf]
        %v2071 = vld [vmem:[#allocation11 + $0x58] sm:$0xf]
        %v2072 = vld [vmem:[#allocation11 + $0x5c] sm:$0xf]
        %v2073 = vld [vmem:[#allocation11 + $0x60] sm:$0xf]
        %v2074 = vld [vmem:[#allocation11 + $0x64] sm:$0xf]
        %v2075 = vld [vmem:[#allocation11 + $0x68] sm:$0xf]
        %v2076 = vld [vmem:[#allocation11 + $0x6c] sm:$0xf]
        %v2077 = vld [vmem:[#allocation11 + $0x70] sm:$0xf]
        %v2078 = vld [vmem:[#allocation11 + $0x74] sm:$0xf]
        %v2079 = vld [vmem:[#allocation11 + $0x78] sm:$0xf]
        %v2080 = vld [vmem:[#allocation11 + $0x7c] sm:$0xf]
        %v2081 = vld [vmem:[#allocation11 + $0x80] sm:$0xf]
        %v2082 = vld [vmem:[#allocation11 + $0x84] sm:$0xf]
        %v2083 = vld [vmem:[#allocation11 + $0x88] sm:$0xf]
        %v2084 = vld [vmem:[#allocation11 + $0x8c] sm:$0xf]
        %v2085 = vld [vmem:[#allocation11 + $0x90] sm:$0xf]
        %v2086 = vld [vmem:[#allocation11 + $0x94] sm:$0xf]
        %v2087 = vld [vmem:[#allocation11 + $0x98] sm:$0xf]
        %v2088 = vld [vmem:[#allocation11 + $0x9c] sm:$0xf]
        %v2089 = vld [vmem:[#allocation11 + $0xa0] sm:$0xf]
        %v2090 = vld [vmem:[#allocation11 + $0xa4] sm:$0xf]
        %v2091 = vld [vmem:[#allocation11 + $0xa8] sm:$0xf]
        %v2092 = vld [vmem:[#allocation11 + $0xac] sm:$0xf]
        %v2093 = vld [vmem:[#allocation11 + $0xb0] sm:$0xf]
        %v2094 = vld [vmem:[#allocation11 + $0xb4] sm:$0xf]
        %v2095 = vld [vmem:[#allocation11 + $0xb8] sm:$0xf]
        %v2096 = vld [vmem:[#allocation11 + $0xbc] sm:$0xf]
        %v2097 = vld [vmem:[#allocation11 + $0xc0] sm:$0xf]
        %v2098 = vld [vmem:[#allocation11 + $0xc4] sm:$0xf]
        %v2099 = vld [vmem:[#allocation11 + $0xc8] sm:$0xf]
        %v2100 = vld [vmem:[#allocation11 + $0xcc] sm:$0xf]
        %v2101 = vld [vmem:[#allocation11 + $0xd0] sm:$0xf]
        %v2102 = vld [vmem:[#allocation11 + $0xd4] sm:$0xf]
        %v2103 = vld [vmem:[#allocation11 + $0xd8] sm:$0xf]
        %v2104 = vld [vmem:[#allocation11 + $0xdc] sm:$0xf]
        %v2105 = vld [vmem:[#allocation11 + $0xe0] sm:$0xf]
        %v2106 = vld [vmem:[#allocation11 + $0xe4] sm:$0xf]
        %v2107 = vld [vmem:[#allocation11 + $0xe8] sm:$0xf]
        %v2108 = vld [vmem:[#allocation11 + $0xec] sm:$0xf]
        %v2109 = vld [vmem:[#allocation11 + $0xf0] sm:$0xf]
        %v2110 = vld [vmem:[#allocation11 + $0xf4] sm:$0xf]
        %v2111 = vld [vmem:[#allocation11 + $0xf8] sm:$0xf]
        %v2112 = vld [vmem:[#allocation11 + $0xfc] sm:$0xf]
        %v2113 = vld [vmem:[%s7] sm:$0x1]
        %v2115 = vlaneseq
        %v2116 = vshrl.u32 %v2115, 7
        %v2117 = vsub.s32 0, %v2116
        %v2118 = vrot.slane %v2113, %v2117
        %v2184 = vunpack.c.l.b16 %v2049
        %v2185 = vunpack.c.l.b16 %v2050
        %v2186 = vunpack.c.l.b16 %v2051
        %v2187 = vunpack.c.l.b16 %v2052
        %v2188 = vunpack.c.l.b16 %v2053
        %v2189 = vunpack.c.l.b16 %v2054
        %v2190 = vunpack.c.l.b16 %v2055
        %v2191 = vunpack.c.l.b16 %v2056
        %v2192 = vunpack.c.l.b16 %v2057
        %v2193 = vunpack.c.l.b16 %v2058
        %v2194 = vunpack.c.l.b16 %v2059
        %v2195 = vunpack.c.l.b16 %v2060
        %v2196 = vunpack.c.l.b16 %v2061
        %v2197 = vunpack.c.l.b16 %v2062
        %v2198 = vunpack.c.l.b16 %v2063
        %v2199 = vunpack.c.l.b16 %v2064
        %v2200 = vunpack.c.l.b16 %v2065
        %v2201 = vunpack.c.l.b16 %v2066
        %v2202 = vunpack.c.l.b16 %v2067
        %v2203 = vunpack.c.l.b16 %v2068
        %v2204 = vunpack.c.l.b16 %v2069
        %v2205 = vunpack.c.l.b16 %v2070
        %v2206 = vunpack.c.l.b16 %v2071
        %v2207 = vunpack.c.l.b16 %v2072
        %v2208 = vunpack.c.l.b16 %v2073
        %v2209 = vunpack.c.l.b16 %v2074
        %v2210 = vunpack.c.l.b16 %v2075
        %v2211 = vunpack.c.l.b16 %v2076
        %v2212 = vunpack.c.l.b16 %v2077
        %v2213 = vunpack.c.l.b16 %v2078
        %v2214 = vunpack.c.l.b16 %v2079
        %v2215 = vunpack.c.l.b16 %v2080
        %v2216 = vunpack.c.l.b16 %v2081
        %v2217 = vunpack.c.l.b16 %v2082
        %v2218 = vunpack.c.l.b16 %v2083
        %v2219 = vunpack.c.l.b16 %v2084
        %v2220 = vunpack.c.l.b16 %v2085
        %v2221 = vunpack.c.l.b16 %v2086
        %v2222 = vunpack.c.l.b16 %v2087
        %v2223 = vunpack.c.l.b16 %v2088
        %v2224 = vunpack.c.l.b16 %v2089
        %v2225 = vunpack.c.l.b16 %v2090
        %v2226 = vunpack.c.l.b16 %v2091
        %v2227 = vunpack.c.l.b16 %v2092
        %v2228 = vunpack.c.l.b16 %v2093
        %v2229 = vunpack.c.l.b16 %v2094
        %v2230 = vunpack.c.l.b16 %v2095
        %v2231 = vunpack.c.l.b16 %v2096
        %v2232 = vunpack.c.l.b16 %v2097
        %v2233 = vunpack.c.l.b16 %v2098
        %v2234 = vunpack.c.l.b16 %v2099
        %v2235 = vunpack.c.l.b16 %v2100
        %v2236 = vunpack.c.l.b16 %v2101
        %v2237 = vunpack.c.l.b16 %v2102
        %v2238 = vunpack.c.l.b16 %v2103
        %v2239 = vunpack.c.l.b16 %v2104
        %v2240 = vunpack.c.l.b16 %v2105
        %v2241 = vunpack.c.l.b16 %v2106
        %v2242 = vunpack.c.l.b16 %v2107
        %v2243 = vunpack.c.l.b16 %v2108
        %v2244 = vunpack.c.l.b16 %v2109
        %v2245 = vunpack.c.l.b16 %v2110
        %v2246 = vunpack.c.l.b16 %v2111
        %v2247 = vunpack.c.l.b16 %v2112
        %v2248 = vpack.c.b16 %v2185, %v2184
        %v2249 = vpack.c.b16 %v2187, %v2186
        %v2250 = vpack.c.b16 %v2189, %v2188
        %v2251 = vpack.c.b16 %v2191, %v2190
        %v2252 = vpack.c.b16 %v2193, %v2192
        %v2253 = vpack.c.b16 %v2195, %v2194
        %v2254 = vpack.c.b16 %v2197, %v2196
        %v2255 = vpack.c.b16 %v2199, %v2198
        %v2256 = vpack.c.b16 %v2201, %v2200
        %v2257 = vpack.c.b16 %v2203, %v2202
        %v2258 = vpack.c.b16 %v2205, %v2204
        %v2259 = vpack.c.b16 %v2207, %v2206
        %v2260 = vpack.c.b16 %v2209, %v2208
        %v2261 = vpack.c.b16 %v2211, %v2210
        %v2262 = vpack.c.b16 %v2213, %v2212
        %v2263 = vpack.c.b16 %v2215, %v2214
        %v2264 = vpack.c.b16 %v2217, %v2216
        %v2265 = vpack.c.b16 %v2219, %v2218
        %v2266 = vpack.c.b16 %v2221, %v2220
        %v2267 = vpack.c.b16 %v2223, %v2222
        %v2268 = vpack.c.b16 %v2225, %v2224
        %v2269 = vpack.c.b16 %v2227, %v2226
        %v2270 = vpack.c.b16 %v2229, %v2228
        %v2271 = vpack.c.b16 %v2231, %v2230
        %v2272 = vpack.c.b16 %v2233, %v2232
        %v2273 = vpack.c.b16 %v2235, %v2234
        %v2274 = vpack.c.b16 %v2237, %v2236
        %v2275 = vpack.c.b16 %v2239, %v2238
        %v2276 = vpack.c.b16 %v2241, %v2240
        %v2277 = vpack.c.b16 %v2243, %v2242
        %v2278 = vpack.c.b16 %v2245, %v2244
        %v2279 = vpack.c.b16 %v2247, %v2246
        %2312 = vmatprep.subr.bf16.mxu0 0
        %2313 = vmatpush1.bf16.msra.mxu0 %v2255
        %2314 = vmatprep.subr.bf16.mxu0 0
        %2315 = vmatpush1.bf16.msra.mxu0 %v2254
        %2316 = vmatprep.subr.bf16.mxu0 0
        %2317 = vmatpush1.bf16.msra.mxu0 %v2253
        %2318 = vmatprep.subr.bf16.mxu0 0
        %2319 = vmatpush1.bf16.msra.mxu0 %v2252
        %2320 = vmatprep.subr.bf16.mxu0 0
        %2321 = vmatpush1.bf16.msra.mxu0 %v2251
        %2322 = vmatprep.subr.bf16.mxu0 0
        %2323 = vmatpush1.bf16.msra.mxu0 %v2250
        %2324 = vmatprep.subr.bf16.mxu0 0
        %2325 = vmatpush1.bf16.msra.mxu0 %v2249
        %2326 = vmatprep.subr.bf16.mxu0 0
        %2327 = vmatpush1.bf16.msra.mxu0 %v2248
        %2328 = vmatprep.subr.bf16.mxu0 0
        %2329 = vmatpush2.bf16.msra.mxu0 %v2263
        %2330 = vmatprep.subr.bf16.mxu0 0
        %2331 = vmatpush2.bf16.msra.mxu0 %v2262
        %2332 = vmatprep.subr.bf16.mxu0 0
        %2333 = vmatpush2.bf16.msra.mxu0 %v2261
        %2334 = vmatprep.subr.bf16.mxu0 0
        %2335 = vmatpush2.bf16.msra.mxu0 %v2260
        %2336 = vmatprep.subr.bf16.mxu0 0
        %2337 = vmatpush2.bf16.msra.mxu0 %v2259
        %2338 = vmatprep.subr.bf16.mxu0 0
        %2339 = vmatpush2.bf16.msra.mxu0 %v2258
        %2340 = vmatprep.subr.bf16.mxu0 0
        %2341 = vmatpush2.bf16.msra.mxu0 %v2257
        %2342 = vmatprep.subr.bf16.mxu0 0
        %2343 = vmatpush2.bf16.msra.mxu0 %v2256
        %2344 = vmatprep.mubr.bf16.mxu0 %v2046
        %2345 = vmatmul.mubr.bf16.gmra.mxu0 %v2045
        %v2346 = vpop.f32.mrf.mxu0
        %v2347 = vadd.f32 %v2118, %v2346
        %v2348 = vpop.f32.mrf.mxu0
        %v2349 = vpop.f32.mrf.mxu0
        %v2350 = vpop.f32.mrf.mxu0
        %2351 = vdwg.mxu0
        %2352 = vmatprep.subr.bf16.mxu0 0
        %2353 = vmatpush1.bf16.msra.mxu0 %v2271
        %2354 = vmatprep.subr.bf16.mxu0 0
        %2355 = vmatpush1.bf16.msra.mxu0 %v2270
        %2356 = vmatprep.subr.bf16.mxu0 0
        %2357 = vmatpush1.bf16.msra.mxu0 %v2269
        %2358 = vmatprep.subr.bf16.mxu0 0
        %2359 = vmatpush1.bf16.msra.mxu0 %v2268
        %2360 = vmatprep.subr.bf16.mxu0 0
        %2361 = vmatpush1.bf16.msra.mxu0 %v2267
        %2362 = vmatprep.subr.bf16.mxu0 0
        %2363 = vmatpush1.bf16.msra.mxu0 %v2266
        %2364 = vmatprep.subr.bf16.mxu0 0
        %2365 = vmatpush1.bf16.msra.mxu0 %v2265
        %2366 = vmatprep.subr.bf16.mxu0 0
        %2367 = vmatpush1.bf16.msra.mxu0 %v2264
        %2368 = vmatprep.subr.bf16.mxu0 0
        %2369 = vmatpush2.bf16.msra.mxu0 %v2279
        %2370 = vmatprep.subr.bf16.mxu0 0
        %2371 = vmatpush2.bf16.msra.mxu0 %v2278
        %2372 = vmatprep.subr.bf16.mxu0 0
        %2373 = vmatpush2.bf16.msra.mxu0 %v2277
        %2374 = vmatprep.subr.bf16.mxu0 0
        %2375 = vmatpush2.bf16.msra.mxu0 %v2276
        %2376 = vmatprep.subr.bf16.mxu0 0
        %2377 = vmatpush2.bf16.msra.mxu0 %v2275
        %2378 = vmatprep.subr.bf16.mxu0 0
        %2379 = vmatpush2.bf16.msra.mxu0 %v2274
        %2380 = vmatprep.subr.bf16.mxu0 0
        %2381 = vmatpush2.bf16.msra.mxu0 %v2273
        %2382 = vmatprep.subr.bf16.mxu0 0
        %2383 = vmatpush2.bf16.msra.mxu0 %v2272
        %2384 = vmatprep.mubr.bf16.mxu0 %v2048
        %2385 = vmatmul.mubr.bf16.gmra.mxu0 %v2047
        %v2386 = vpop.f32.mrf.mxu0
        %v2387 = vadd.f32 %v2347, %v2386
        %v2388 = vpop.f32.mrf.mxu0
        %v2389 = vpop.f32.mrf.mxu0
        %v2390 = vpop.f32.mrf.mxu0
        %2391 = vdwg.mxu0
        %s2392 = sld [smem:[#allocation3 + %s49]]
        %v2393 = vstv %s2392
        %vm2394 = vcmp.lt.s32.totalorder %v595, %v2393
        %v2395 = vsel %vm2394, 1, 0
        %vm2396 = vcmp.eq.s32.totalorder %v2395, 1
        %v2397 = vsel %vm2396, %v2387, 0.0
        %v2398 = vmul.f32 %v2397, %v2397
        %2399 = vadd.xlane.f32.xlu0 %v2398
        %v2400 = vpop.xlane.xlu0 %2399
        %v2401 = vlaneseq
        %v2402 = vand.u32 %v2401, 127
        %vm2403 = vcmp.eq.s32.totalorder %v2402, 127
        %v2404 = vsel %vm2403, %v2400, %v2397
        %2405 = vst [vmem:[%s582] sm:$0xff] %v2404
        %v2406 = vld [vmem:[%s517] sm:$0xf]
        %v2407 = vld [vmem:[%s517 + $0x4] sm:$0xf]
        %v2408 = vld [vmem:[%s517 + $0x8] sm:$0xf]
        %v2409 = vld [vmem:[%s517 + $0xc] sm:$0xf]
        %v2410 = vld [vmem:[%s517 + $0x10] sm:$0xf]
        %v2411 = vld [vmem:[%s517 + $0x14] sm:$0xf]
        %v2412 = vld [vmem:[%s517 + $0x18] sm:$0xf]
        %v2413 = vld [vmem:[%s517 + $0x1c] sm:$0xf]
        %v2414 = vld [vmem:[%s517 + $0x20] sm:$0xf]
        %v2415 = vld [vmem:[%s517 + $0x24] sm:$0xf]
        %v2416 = vld [vmem:[%s517 + $0x28] sm:$0xf]
        %v2417 = vld [vmem:[%s517 + $0x2c] sm:$0xf]
        %v2418 = vld [vmem:[%s517 + $0x30] sm:$0xf]
        %v2419 = vld [vmem:[%s517 + $0x34] sm:$0xf]
        %v2420 = vld [vmem:[%s517 + $0x38] sm:$0xf]
        %v2421 = vld [vmem:[%s517 + $0x3c] sm:$0xf]
        %v2422 = vadd.s32 %v595, 8
        %v2423 = vadd.s32 %v595, 16
        %v2424 = vadd.s32 %v595, 24
        %v2425 = vadd.s32 %v595, 32
        %v2426 = vadd.s32 %v595, 40
        %v2427 = vadd.s32 %v595, 48
        %v2428 = vadd.s32 %v595, 56
        %v2429 = vadd.s32 %v595, 64
        %v2430 = vadd.s32 %v595, 72
        %v2431 = vadd.s32 %v595, 80
        %v2432 = vadd.s32 %v595, 88
        %v2433 = vadd.s32 %v595, 96
        %v2434 = vadd.s32 %v595, 104
        %v2435 = vadd.s32 %v595, 112
        %v2436 = vadd.s32 %v595, 120
        %v2437 = vunpack.c.l.bf16 %v2406
        %v2438 = vunpack.c.l.bf16 %v2407
        %v2439 = vunpack.c.l.bf16 %v2408
        %v2440 = vunpack.c.l.bf16 %v2409
        %v2441 = vunpack.c.l.bf16 %v2410
        %v2442 = vunpack.c.l.bf16 %v2411
        %v2443 = vunpack.c.l.bf16 %v2412
        %v2444 = vunpack.c.l.bf16 %v2413
        %v2445 = vunpack.c.l.bf16 %v2414
        %v2446 = vunpack.c.l.bf16 %v2415
        %v2447 = vunpack.c.l.bf16 %v2416
        %v2448 = vunpack.c.l.bf16 %v2417
        %v2449 = vunpack.c.l.bf16 %v2418
        %v2450 = vunpack.c.l.bf16 %v2419
        %v2451 = vunpack.c.l.bf16 %v2420
        %v2452 = vunpack.c.l.bf16 %v2421
        %vm2453 = vcmp.eq.s32.totalorder %v2422, 0
        %vm2454 = vcmp.eq.s32.totalorder %v2423, 0
        %vm2455 = vcmp.eq.s32.totalorder %v2424, 0
        %vm2456 = vcmp.eq.s32.totalorder %v2425, 0
        %vm2457 = vcmp.eq.s32.totalorder %v2426, 0
        %vm2458 = vcmp.eq.s32.totalorder %v2427, 0
        %vm2459 = vcmp.eq.s32.totalorder %v2428, 0
        %vm2460 = vcmp.eq.s32.totalorder %v2429, 0
        %vm2461 = vcmp.eq.s32.totalorder %v2430, 0
        %vm2462 = vcmp.eq.s32.totalorder %v2431, 0
        %vm2463 = vcmp.eq.s32.totalorder %v2432, 0
        %vm2464 = vcmp.eq.s32.totalorder %v2433, 0
        %vm2465 = vcmp.eq.s32.totalorder %v2434, 0
        %vm2466 = vcmp.eq.s32.totalorder %v2435, 0
        %vm2467 = vcmp.eq.s32.totalorder %v2436, 0
        %v2468 = vrot.slane %v2437, 7
        %v2469 = vrot.slane %v2438, 7
        %v2470 = vrot.slane %v2439, 7
        %v2471 = vrot.slane %v2440, 7
        %v2472 = vrot.slane %v2441, 7
        %v2473 = vrot.slane %v2442, 7
        %v2474 = vrot.slane %v2443, 7
        %v2475 = vrot.slane %v2444, 7
        %v2476 = vrot.slane %v2445, 7
        %v2477 = vrot.slane %v2446, 7
        %v2478 = vrot.slane %v2447, 7
        %v2479 = vrot.slane %v2448, 7
        %v2480 = vrot.slane %v2449, 7
        %v2481 = vrot.slane %v2450, 7
        %v2482 = vrot.slane %v2451, 7
        %v2483 = vrot.slane %v2452, 7
        %vm2484 = vcmp.lt.s32.totalorder %v595, 1
        %v2485 = vsel %vm2484, %v2482, %v2483
        %v2486 = vsel %vm2484, %v2481, %v2482
        %v2487 = vsel %vm2484, %v2480, %v2481
        %v2488 = vsel %vm2484, %v2479, %v2480
        %v2489 = vsel %vm2484, %v2478, %v2479
        %v2490 = vsel %vm2484, %v2477, %v2478
        %v2491 = vsel %vm2484, %v2476, %v2477
        %v2492 = vsel %vm2484, %v2475, %v2476
        %v2493 = vsel %vm2484, %v2474, %v2475
        %v2494 = vsel %vm2484, %v2473, %v2474
        %v2495 = vsel %vm2484, %v2472, %v2473
        %v2496 = vsel %vm2484, %v2471, %v2472
        %v2497 = vsel %vm2484, %v2470, %v2471
        %v2498 = vsel %vm2484, %v2469, %v2470
        %v2499 = vsel %vm2484, %v2468, %v2469
        %v2500 = vsel %vm2484, %v2483, %v2468
        %v2501 = vsel %vm2453, 1, 0
        %v2502 = vsel %vm2454, 1, 0
        %v2503 = vsel %vm2455, 1, 0
        %v2504 = vsel %vm2456, 1, 0
        %v2505 = vsel %vm2457, 1, 0
        %v2506 = vsel %vm2458, 1, 0
        %v2507 = vsel %vm2459, 1, 0
        %v2508 = vsel %vm2460, 1, 0
        %v2509 = vsel %vm2461, 1, 0
        %v2510 = vsel %vm2462, 1, 0
        %v2511 = vsel %vm2463, 1, 0
        %v2512 = vsel %vm2464, 1, 0
        %v2513 = vsel %vm2465, 1, 0
        %v2514 = vsel %vm2466, 1, 0
        %v2515 = vsel %vm2467, 1, 0
        %vm2516 = vcmp.eq.s32.totalorder %v2501, 1
        %vm2517 = vcmp.eq.s32.totalorder %v2502, 1
        %vm2518 = vcmp.eq.s32.totalorder %v2503, 1
        %vm2519 = vcmp.eq.s32.totalorder %v2504, 1
        %vm2520 = vcmp.eq.s32.totalorder %v2505, 1
        %vm2521 = vcmp.eq.s32.totalorder %v2506, 1
        %vm2522 = vcmp.eq.s32.totalorder %v2507, 1
        %vm2523 = vcmp.eq.s32.totalorder %v2508, 1
        %vm2524 = vcmp.eq.s32.totalorder %v2509, 1
        %vm2525 = vcmp.eq.s32.totalorder %v2510, 1
        %vm2526 = vcmp.eq.s32.totalorder %v2511, 1
        %vm2527 = vcmp.eq.s32.totalorder %v2512, 1
        %vm2528 = vcmp.eq.s32.totalorder %v2513, 1
        %vm2529 = vcmp.eq.s32.totalorder %v2514, 1
        %vm2530 = vcmp.eq.s32.totalorder %v2515, 1
        %v2531 = vsel %vm600, 0.0, %v2500
        %v2532 = vsel %vm2516, 0.0, %v2499
        %v2533 = vsel %vm2517, 0.0, %v2498
        %v2534 = vsel %vm2518, 0.0, %v2497
        %v2535 = vsel %vm2519, 0.0, %v2496
        %v2536 = vsel %vm2520, 0.0, %v2495
        %v2537 = vsel %vm2521, 0.0, %v2494
        %v2538 = vsel %vm2522, 0.0, %v2493
        %v2539 = vsel %vm2523, 0.0, %v2492
        %v2540 = vsel %vm2524, 0.0, %v2491
        %v2541 = vsel %vm2525, 0.0, %v2490
        %v2542 = vsel %vm2526, 0.0, %v2489
        %v2543 = vsel %vm2527, 0.0, %v2488
        %v2544 = vsel %vm2528, 0.0, %v2487
        %v2545 = vsel %vm2529, 0.0, %v2486
        %v2546 = vsel %vm2530, 0.0, %v2485
        %vm2547 = vcmp.eq.s32.totalorder %v595, 127
        %vm2548 = vcmp.eq.s32.totalorder %v2422, 127
        %vm2549 = vcmp.eq.s32.totalorder %v2423, 127
        %vm2550 = vcmp.eq.s32.totalorder %v2424, 127
        %vm2551 = vcmp.eq.s32.totalorder %v2425, 127
        %vm2552 = vcmp.eq.s32.totalorder %v2426, 127
        %vm2553 = vcmp.eq.s32.totalorder %v2427, 127
        %vm2554 = vcmp.eq.s32.totalorder %v2428, 127
        %vm2555 = vcmp.eq.s32.totalorder %v2429, 127
        %vm2556 = vcmp.eq.s32.totalorder %v2430, 127
        %vm2557 = vcmp.eq.s32.totalorder %v2431, 127
        %vm2558 = vcmp.eq.s32.totalorder %v2432, 127
        %vm2559 = vcmp.eq.s32.totalorder %v2433, 127
        %vm2560 = vcmp.eq.s32.totalorder %v2434, 127
        %vm2561 = vcmp.eq.s32.totalorder %v2435, 127
        %vm2562 = vcmp.eq.s32.totalorder %v2436, 127
        %v2563 = vrot.slane %v2437, 1
        %v2564 = vrot.slane %v2438, 1
        %v2565 = vrot.slane %v2439, 1
        %v2566 = vrot.slane %v2440, 1
        %v2567 = vrot.slane %v2441, 1
        %v2568 = vrot.slane %v2442, 1
        %v2569 = vrot.slane %v2443, 1
        %v2570 = vrot.slane %v2444, 1
        %v2571 = vrot.slane %v2445, 1
        %v2572 = vrot.slane %v2446, 1
        %v2573 = vrot.slane %v2447, 1
        %v2574 = vrot.slane %v2448, 1
        %v2575 = vrot.slane %v2449, 1
        %v2576 = vrot.slane %v2450, 1
        %v2577 = vrot.slane %v2451, 1
        %v2578 = vrot.slane %v2452, 1
        %vm2579 = vcmp.lt.s32.totalorder %v595, 7
        %v2580 = vsel %vm2579, %v2577, %v2578
        %v2581 = vsel %vm2579, %v2576, %v2577
        %v2582 = vsel %vm2579, %v2575, %v2576
        %v2583 = vsel %vm2579, %v2574, %v2575
        %v2584 = vsel %vm2579, %v2573, %v2574
        %v2585 = vsel %vm2579, %v2572, %v2573
        %v2586 = vsel %vm2579, %v2571, %v2572
        %v2587 = vsel %vm2579, %v2570, %v2571
        %v2588 = vsel %vm2579, %v2569, %v2570
        %v2589 = vsel %vm2579, %v2568, %v2569
        %v2590 = vsel %vm2579, %v2567, %v2568
        %v2591 = vsel %vm2579, %v2566, %v2567
        %v2592 = vsel %vm2579, %v2565, %v2566
        %v2593 = vsel %vm2579, %v2564, %v2565
        %v2594 = vsel %vm2579, %v2563, %v2564
        %v2595 = vsel %vm2579, %v2578, %v2563
        %v2596 = vsel %vm2547, 1, 0
        %v2597 = vsel %vm2548, 1, 0
        %v2598 = vsel %vm2549, 1, 0
        %v2599 = vsel %vm2550, 1, 0
        %v2600 = vsel %vm2551, 1, 0
        %v2601 = vsel %vm2552, 1, 0
        %v2602 = vsel %vm2553, 1, 0
        %v2603 = vsel %vm2554, 1, 0
        %v2604 = vsel %vm2555, 1, 0
        %v2605 = vsel %vm2556, 1, 0
        %v2606 = vsel %vm2557, 1, 0
        %v2607 = vsel %vm2558, 1, 0
        %v2608 = vsel %vm2559, 1, 0
        %v2609 = vsel %vm2560, 1, 0
        %v2610 = vsel %vm2561, 1, 0
        %v2611 = vsel %vm2562, 1, 0
        %vm2612 = vcmp.eq.s32.totalorder %v2596, 1
        %vm2613 = vcmp.eq.s32.totalorder %v2597, 1
        %vm2614 = vcmp.eq.s32.totalorder %v2598, 1
        %vm2615 = vcmp.eq.s32.totalorder %v2599, 1
        %vm2616 = vcmp.eq.s32.totalorder %v2600, 1
        %vm2617 = vcmp.eq.s32.totalorder %v2601, 1
        %vm2618 = vcmp.eq.s32.totalorder %v2602, 1
        %vm2619 = vcmp.eq.s32.totalorder %v2603, 1
        %vm2620 = vcmp.eq.s32.totalorder %v2604, 1
        %vm2621 = vcmp.eq.s32.totalorder %v2605, 1
        %vm2622 = vcmp.eq.s32.totalorder %v2606, 1
        %vm2623 = vcmp.eq.s32.totalorder %v2607, 1
        %vm2624 = vcmp.eq.s32.totalorder %v2608, 1
        %vm2625 = vcmp.eq.s32.totalorder %v2609, 1
        %vm2626 = vcmp.eq.s32.totalorder %v2610, 1
        %vm2627 = vcmp.eq.s32.totalorder %v2611, 1
        %v2628 = vsel %vm2612, 0.0, %v2594
        %v2629 = vsel %vm2613, 0.0, %v2593
        %v2630 = vsel %vm2614, 0.0, %v2592
        %v2631 = vsel %vm2615, 0.0, %v2591
        %v2632 = vsel %vm2616, 0.0, %v2590
        %v2633 = vsel %vm2617, 0.0, %v2589
        %v2634 = vsel %vm2618, 0.0, %v2588
        %v2635 = vsel %vm2619, 0.0, %v2587
        %v2636 = vsel %vm2620, 0.0, %v2586
        %v2637 = vsel %vm2621, 0.0, %v2585
        %v2638 = vsel %vm2622, 0.0, %v2584
        %v2639 = vsel %vm2623, 0.0, %v2583
        %v2640 = vsel %vm2624, 0.0, %v2582
        %v2641 = vsel %vm2625, 0.0, %v2581
        %v2642 = vsel %vm2626, 0.0, %v2580
        %v2643 = vsel %vm2627, 0.0, %v2595
        %v2644 = vpack.c.bf16 %v2532, %v2531
        %v2645 = vpack.c.bf16 %v2534, %v2533
        %v2646 = vpack.c.bf16 %v2536, %v2535
        %v2647 = vpack.c.bf16 %v2538, %v2537
        %v2648 = vpack.c.bf16 %v2540, %v2539
        %v2649 = vpack.c.bf16 %v2542, %v2541
        %v2650 = vpack.c.bf16 %v2544, %v2543
        %v2651 = vpack.c.bf16 %v2546, %v2545
        %v2652 = vpack.c.bf16 %v2629, %v2628
        %v2653 = vpack.c.bf16 %v2631, %v2630
        %v2654 = vpack.c.bf16 %v2633, %v2632
        %v2655 = vpack.c.bf16 %v2635, %v2634
        %v2656 = vpack.c.bf16 %v2637, %v2636
        %v2657 = vpack.c.bf16 %v2639, %v2638
        %v2658 = vpack.c.bf16 %v2641, %v2640
        %v2659 = vpack.c.bf16 %v2643, %v2642
        %v2676 = vunpack.c.l.b16 %v2406
        %v2677 = vunpack.c.l.b16 %v2407
        %v2678 = vunpack.c.l.b16 %v2408
        %v2679 = vunpack.c.l.b16 %v2409
        %v2680 = vunpack.c.l.b16 %v2410
        %v2681 = vunpack.c.l.b16 %v2411
        %v2682 = vunpack.c.l.b16 %v2412
        %v2683 = vunpack.c.l.b16 %v2413
        %v2684 = vunpack.c.l.b16 %v2414
        %v2685 = vunpack.c.l.b16 %v2415
        %v2686 = vunpack.c.l.b16 %v2416
        %v2687 = vunpack.c.l.b16 %v2417
        %v2688 = vunpack.c.l.b16 %v2418
        %v2689 = vunpack.c.l.b16 %v2419
        %v2690 = vunpack.c.l.b16 %v2420
        %v2691 = vunpack.c.l.b16 %v2421
        %v2692 = vpack.c.b16 %v2677, %v2676
        %v2693 = vpack.c.b16 %v2679, %v2678
        %v2694 = vpack.c.b16 %v2681, %v2680
        %v2695 = vpack.c.b16 %v2683, %v2682
        %v2696 = vpack.c.b16 %v2685, %v2684
        %v2697 = vpack.c.b16 %v2687, %v2686
        %v2698 = vpack.c.b16 %v2689, %v2688
        %v2699 = vpack.c.b16 %v2691, %v2690
        %v2708 = vld [vmem:[#allocation13] sm:$0xff]
        %v2709 = vld [vmem:[#allocation13 + $0x8] sm:$0xff]
        %v2710 = vld [vmem:[#allocation13 + $0x10] sm:$0xff]
        %v2711 = vld [vmem:[#allocation13 + $0x18] sm:$0xff]
        %v2712 = vld [vmem:[#allocation13 + $0x20] sm:$0xff]
        %v2713 = vld [vmem:[#allocation13 + $0x28] sm:$0xff]
        %v2714 = vld [vmem:[#allocation13 + $0x30] sm:$0xff]
        %v2715 = vld [vmem:[#allocation13 + $0x38] sm:$0xff]
        %v2716 = vld [vmem:[#allocation13 + $0x40] sm:$0xff]
        %v2717 = vld [vmem:[#allocation13 + $0x48] sm:$0xff]
        %v2718 = vld [vmem:[#allocation13 + $0x50] sm:$0xff]
        %v2719 = vld [vmem:[#allocation13 + $0x58] sm:$0xff]
        %v2720 = vld [vmem:[#allocation13 + $0x60] sm:$0xff]
        %v2721 = vld [vmem:[#allocation13 + $0x68] sm:$0xff]
        %v2722 = vld [vmem:[#allocation13 + $0x70] sm:$0xff]
        %v2723 = vld [vmem:[#allocation13 + $0x78] sm:$0xff]
        %v2724 = vld [vmem:[#allocation13 + $0x80] sm:$0xff]
        %v2725 = vld [vmem:[#allocation13 + $0x88] sm:$0xff]
        %v2726 = vld [vmem:[#allocation13 + $0x90] sm:$0xff]
        %v2727 = vld [vmem:[#allocation13 + $0x98] sm:$0xff]
        %v2728 = vld [vmem:[#allocation13 + $0xa0] sm:$0xff]
        %v2729 = vld [vmem:[#allocation13 + $0xa8] sm:$0xff]
        %v2730 = vld [vmem:[#allocation13 + $0xb0] sm:$0xff]
        %v2731 = vld [vmem:[#allocation13 + $0xb8] sm:$0xff]
        %v2732 = vld [vmem:[#allocation13 + $0xc0] sm:$0xff]
        %v2733 = vld [vmem:[#allocation13 + $0xc8] sm:$0xff]
        %v2734 = vld [vmem:[#allocation13 + $0xd0] sm:$0xff]
        %v2735 = vld [vmem:[#allocation13 + $0xd8] sm:$0xff]
        %v2736 = vld [vmem:[#allocation13 + $0xe0] sm:$0xff]
        %v2737 = vld [vmem:[#allocation13 + $0xe8] sm:$0xff]
        %v2738 = vld [vmem:[#allocation13 + $0xf0] sm:$0xff]
        %v2739 = vld [vmem:[#allocation13 + $0xf8] sm:$0xff]
        %v2740 = vld [vmem:[#allocation13 + $0x100] sm:$0xff]
        %v2741 = vld [vmem:[#allocation13 + $0x108] sm:$0xff]
        %v2742 = vld [vmem:[#allocation13 + $0x110] sm:$0xff]
        %v2743 = vld [vmem:[#allocation13 + $0x118] sm:$0xff]
        %v2744 = vld [vmem:[#allocation13 + $0x120] sm:$0xff]
        %v2745 = vld [vmem:[#allocation13 + $0x128] sm:$0xff]
        %v2746 = vld [vmem:[#allocation13 + $0x130] sm:$0xff]
        %v2747 = vld [vmem:[#allocation13 + $0x138] sm:$0xff]
        %v2748 = vld [vmem:[#allocation13 + $0x140] sm:$0xff]
        %v2749 = vld [vmem:[#allocation13 + $0x148] sm:$0xff]
        %v2750 = vld [vmem:[#allocation13 + $0x150] sm:$0xff]
        %v2751 = vld [vmem:[#allocation13 + $0x158] sm:$0xff]
        %v2752 = vld [vmem:[#allocation13 + $0x160] sm:$0xff]
        %v2753 = vld [vmem:[#allocation13 + $0x168] sm:$0xff]
        %v2754 = vld [vmem:[#allocation13 + $0x170] sm:$0xff]
        %v2755 = vld [vmem:[#allocation13 + $0x178] sm:$0xff]
        %v2756 = vld [vmem:[%s9] sm:$0x3]
        %v2758 = vlaneseq
        %v2759 = vshrl.u32 %v2758, 7
        %v2760 = vsub.s32 0, %v2759
        %v2761 = vrot.slane %v2756, %v2760
        %v2762 = vlaneseq
        %v2763 = vshrl.u32 %v2762, 7
        %v2764 = vsub.s32 1, %v2763
        %v2765 = vrot.slane %v2756, %v2764
        %v2816 = vunpack.c.l.b16 %v2708
        %v2817 = vunpack.c.h.b16 %v2708
        %v2818 = vunpack.c.l.b16 %v2709
        %v2819 = vunpack.c.h.b16 %v2709
        %v2820 = vunpack.c.l.b16 %v2710
        %v2821 = vunpack.c.h.b16 %v2710
        %v2822 = vunpack.c.l.b16 %v2711
        %v2823 = vunpack.c.h.b16 %v2711
        %v2824 = vunpack.c.l.b16 %v2712
        %v2825 = vunpack.c.h.b16 %v2712
        %v2826 = vunpack.c.l.b16 %v2713
        %v2827 = vunpack.c.h.b16 %v2713
        %v2828 = vunpack.c.l.b16 %v2714
        %v2829 = vunpack.c.h.b16 %v2714
        %v2830 = vunpack.c.l.b16 %v2715
        %v2831 = vunpack.c.h.b16 %v2715
        %v2832 = vunpack.c.l.b16 %v2716
        %v2833 = vunpack.c.h.b16 %v2716
        %v2834 = vunpack.c.l.b16 %v2717
        %v2835 = vunpack.c.h.b16 %v2717
        %v2836 = vunpack.c.l.b16 %v2718
        %v2837 = vunpack.c.h.b16 %v2718
        %v2838 = vunpack.c.l.b16 %v2719
        %v2839 = vunpack.c.h.b16 %v2719
        %v2840 = vunpack.c.l.b16 %v2720
        %v2841 = vunpack.c.h.b16 %v2720
        %v2842 = vunpack.c.l.b16 %v2721
        %v2843 = vunpack.c.h.b16 %v2721
        %v2844 = vunpack.c.l.b16 %v2722
        %v2845 = vunpack.c.h.b16 %v2722
        %v2846 = vunpack.c.l.b16 %v2723
        %v2847 = vunpack.c.h.b16 %v2723
        %v2848 = vunpack.c.l.b16 %v2724
        %v2849 = vunpack.c.h.b16 %v2724
        %v2850 = vunpack.c.l.b16 %v2725
        %v2851 = vunpack.c.h.b16 %v2725
        %v2852 = vunpack.c.l.b16 %v2726
        %v2853 = vunpack.c.h.b16 %v2726
        %v2854 = vunpack.c.l.b16 %v2727
        %v2855 = vunpack.c.h.b16 %v2727
        %v2856 = vunpack.c.l.b16 %v2728
        %v2857 = vunpack.c.h.b16 %v2728
        %v2858 = vunpack.c.l.b16 %v2729
        %v2859 = vunpack.c.h.b16 %v2729
        %v2860 = vunpack.c.l.b16 %v2730
        %v2861 = vunpack.c.h.b16 %v2730
        %v2862 = vunpack.c.l.b16 %v2731
        %v2863 = vunpack.c.h.b16 %v2731
        %v2864 = vunpack.c.l.b16 %v2732
        %v2865 = vunpack.c.h.b16 %v2732
        %v2866 = vunpack.c.l.b16 %v2733
        %v2867 = vunpack.c.h.b16 %v2733
        %v2868 = vunpack.c.l.b16 %v2734
        %v2869 = vunpack.c.h.b16 %v2734
        %v2870 = vunpack.c.l.b16 %v2735
        %v2871 = vunpack.c.h.b16 %v2735
        %v2872 = vunpack.c.l.b16 %v2736
        %v2873 = vunpack.c.h.b16 %v2736
        %v2874 = vunpack.c.l.b16 %v2737
        %v2875 = vunpack.c.h.b16 %v2737
        %v2876 = vunpack.c.l.b16 %v2738
        %v2877 = vunpack.c.h.b16 %v2738
        %v2878 = vunpack.c.l.b16 %v2739
        %v2879 = vunpack.c.h.b16 %v2739
        %v2880 = vunpack.c.l.b16 %v2740
        %v2881 = vunpack.c.h.b16 %v2740
        %v2882 = vunpack.c.l.b16 %v2741
        %v2883 = vunpack.c.h.b16 %v2741
        %v2884 = vunpack.c.l.b16 %v2742
        %v2885 = vunpack.c.h.b16 %v2742
        %v2886 = vunpack.c.l.b16 %v2743
        %v2887 = vunpack.c.h.b16 %v2743
        %v2888 = vunpack.c.l.b16 %v2744
        %v2889 = vunpack.c.h.b16 %v2744
        %v2890 = vunpack.c.l.b16 %v2745
        %v2891 = vunpack.c.h.b16 %v2745
        %v2892 = vunpack.c.l.b16 %v2746
        %v2893 = vunpack.c.h.b16 %v2746
        %v2894 = vunpack.c.l.b16 %v2747
        %v2895 = vunpack.c.h.b16 %v2747
        %v2896 = vunpack.c.l.b16 %v2748
        %v2897 = vunpack.c.h.b16 %v2748
        %v2898 = vunpack.c.l.b16 %v2749
        %v2899 = vunpack.c.h.b16 %v2749
        %v2900 = vunpack.c.l.b16 %v2750
        %v2901 = vunpack.c.h.b16 %v2750
        %v2902 = vunpack.c.l.b16 %v2751
        %v2903 = vunpack.c.h.b16 %v2751
        %v2904 = vunpack.c.l.b16 %v2752
        %v2905 = vunpack.c.h.b16 %v2752
        %v2906 = vunpack.c.l.b16 %v2753
        %v2907 = vunpack.c.h.b16 %v2753
        %v2908 = vunpack.c.l.b16 %v2754
        %v2909 = vunpack.c.h.b16 %v2754
        %v2910 = vunpack.c.l.b16 %v2755
        %v2911 = vunpack.c.h.b16 %v2755
        %v2912 = vpack.c.b16 %v2818, %v2816
        %v2913 = vpack.c.b16 %v2819, %v2817
        %v2914 = vpack.c.b16 %v2822, %v2820
        %v2915 = vpack.c.b16 %v2823, %v2821
        %v2916 = vpack.c.b16 %v2826, %v2824
        %v2917 = vpack.c.b16 %v2827, %v2825
        %v2918 = vpack.c.b16 %v2830, %v2828
        %v2919 = vpack.c.b16 %v2831, %v2829
        %v2920 = vpack.c.b16 %v2834, %v2832
        %v2921 = vpack.c.b16 %v2835, %v2833
        %v2922 = vpack.c.b16 %v2838, %v2836
        %v2923 = vpack.c.b16 %v2839, %v2837
        %v2924 = vpack.c.b16 %v2842, %v2840
        %v2925 = vpack.c.b16 %v2843, %v2841
        %v2926 = vpack.c.b16 %v2846, %v2844
        %v2927 = vpack.c.b16 %v2847, %v2845
        %v2928 = vpack.c.b16 %v2850, %v2848
        %v2929 = vpack.c.b16 %v2851, %v2849
        %v2930 = vpack.c.b16 %v2854, %v2852
        %v2931 = vpack.c.b16 %v2855, %v2853
        %v2932 = vpack.c.b16 %v2858, %v2856
        %v2933 = vpack.c.b16 %v2859, %v2857
        %v2934 = vpack.c.b16 %v2862, %v2860
        %v2935 = vpack.c.b16 %v2863, %v2861
        %v2936 = vpack.c.b16 %v2866, %v2864
        %v2937 = vpack.c.b16 %v2867, %v2865
        %v2938 = vpack.c.b16 %v2870, %v2868
        %v2939 = vpack.c.b16 %v2871, %v2869
        %v2940 = vpack.c.b16 %v2874, %v2872
        %v2941 = vpack.c.b16 %v2875, %v2873
        %v2942 = vpack.c.b16 %v2878, %v2876
        %v2943 = vpack.c.b16 %v2879, %v2877
        %v2944 = vpack.c.b16 %v2882, %v2880
        %v2945 = vpack.c.b16 %v2883, %v2881
        %v2946 = vpack.c.b16 %v2886, %v2884
        %v2947 = vpack.c.b16 %v2887, %v2885
        %v2948 = vpack.c.b16 %v2890, %v2888
        %v2949 = vpack.c.b16 %v2891, %v2889
        %v2950 = vpack.c.b16 %v2894, %v2892
        %v2951 = vpack.c.b16 %v2895, %v2893
        %v2952 = vpack.c.b16 %v2898, %v2896
        %v2953 = vpack.c.b16 %v2899, %v2897
        %v2954 = vpack.c.b16 %v2902, %v2900
        %v2955 = vpack.c.b16 %v2903, %v2901
        %v2956 = vpack.c.b16 %v2906, %v2904
        %v2957 = vpack.c.b16 %v2907, %v2905
        %v2958 = vpack.c.b16 %v2910, %v2908
        %v2959 = vpack.c.b16 %v2911, %v2909
        %3008 = vmatprep.subr.bf16.mxu0 %v2927
        %3009 = vmatpush1.bf16.msra.mxu0 %v2926
        %3010 = vmatprep.subr.bf16.mxu0 %v2925
        %3011 = vmatpush1.bf16.msra.mxu0 %v2924
        %3012 = vmatprep.subr.bf16.mxu0 %v2923
        %3013 = vmatpush1.bf16.msra.mxu0 %v2922
        %3014 = vmatprep.subr.bf16.mxu0 %v2921
        %3015 = vmatpush1.bf16.msra.mxu0 %v2920
        %3016 = vmatprep.subr.bf16.mxu0 %v2919
        %3017 = vmatpush1.bf16.msra.mxu0 %v2918
        %3018 = vmatprep.subr.bf16.mxu0 %v2917
        %3019 = vmatpush1.bf16.msra.mxu0 %v2916
        %3020 = vmatprep.subr.bf16.mxu0 %v2915
        %3021 = vmatpush1.bf16.msra.mxu0 %v2914
        %3022 = vmatprep.subr.bf16.mxu0 %v2913
        %3023 = vmatpush1.bf16.msra.mxu0 %v2912
        %3024 = vmatprep.subr.bf16.mxu0 %v2943
        %3025 = vmatpush2.bf16.msra.mxu0 %v2942
        %3026 = vmatprep.subr.bf16.mxu0 %v2941
        %3027 = vmatpush2.bf16.msra.mxu0 %v2940
        %3028 = vmatprep.subr.bf16.mxu0 %v2939
        %3029 = vmatpush2.bf16.msra.mxu0 %v2938
        %3030 = vmatprep.subr.bf16.mxu0 %v2937
        %3031 = vmatpush2.bf16.msra.mxu0 %v2936
        %3032 = vmatprep.subr.bf16.mxu0 %v2935
        %3033 = vmatpush2.bf16.msra.mxu0 %v2934
        %3034 = vmatprep.subr.bf16.mxu0 %v2933
        %3035 = vmatpush2.bf16.msra.mxu0 %v2932
        %3036 = vmatprep.subr.bf16.mxu0 %v2931
        %3037 = vmatpush2.bf16.msra.mxu0 %v2930
        %3038 = vmatprep.subr.bf16.mxu0 %v2929
        %3039 = vmatpush2.bf16.msra.mxu0 %v2928
        %3040 = vmatprep.mubr.bf16.mxu0 %v2692
        %3041 = vmatmul.mubr.bf16.gmra.mxu0 %v2644
        %v3042 = vpop.f32.mrf.mxu0
        %v3043 = vadd.f32 %v2761, %v3042
        %v3044 = vpop.f32.mrf.mxu0
        %v3045 = vadd.f32 %v2765, %v3044
        %v3046 = vpop.f32.mrf.mxu0
        %v3047 = vadd.f32 %v2761, %v3046
        %v3048 = vpop.f32.mrf.mxu0
        %v3049 = vadd.f32 %v2765, %v3048
        %3050 = vmatprep.mubr.bf16.mxu0 %v2693
        %3051 = vmatmul.mubr.bf16.gmra.mxu0 %v2645
        %v3052 = vpop.f32.mrf.mxu0
        %v3053 = vadd.f32 %v2761, %v3052
        %v3054 = vpop.f32.mrf.mxu0
        %v3055 = vadd.f32 %v2765, %v3054
        %v3056 = vpop.f32.mrf.mxu0
        %v3057 = vadd.f32 %v2761, %v3056
        %v3058 = vpop.f32.mrf.mxu0
        %v3059 = vadd.f32 %v2765, %v3058
        %3060 = vmatprep.mubr.bf16.mxu0 %v2694
        %3061 = vmatmul.mubr.bf16.gmra.mxu0 %v2646
        %v3062 = vpop.f32.mrf.mxu0
        %v3063 = vadd.f32 %v2761, %v3062
        %v3064 = vpop.f32.mrf.mxu0
        %v3065 = vadd.f32 %v2765, %v3064
        %v3066 = vpop.f32.mrf.mxu0
        %v3067 = vadd.f32 %v2761, %v3066
        %v3068 = vpop.f32.mrf.mxu0
        %v3069 = vadd.f32 %v2765, %v3068
        %3070 = vmatprep.mubr.bf16.mxu0 %v2695
        %3071 = vmatmul.mubr.bf16.gmra.mxu0 %v2647
        %v3072 = vpop.f32.mrf.mxu0
        %v3073 = vadd.f32 %v2761, %v3072
        %v3074 = vpop.f32.mrf.mxu0
        %v3075 = vadd.f32 %v2765, %v3074
        %v3076 = vpop.f32.mrf.mxu0
        %v3077 = vadd.f32 %v2761, %v3076
        %v3078 = vpop.f32.mrf.mxu0
        %v3079 = vadd.f32 %v2765, %v3078
        %3080 = vmatprep.mubr.bf16.mxu0 %v2696
        %3081 = vmatmul.mubr.bf16.gmra.mxu0 %v2648
        %v3082 = vpop.f32.mrf.mxu0
        %v3083 = vadd.f32 %v2761, %v3082
        %v3084 = vpop.f32.mrf.mxu0
        %v3085 = vadd.f32 %v2765, %v3084
        %v3086 = vpop.f32.mrf.mxu0
        %v3087 = vadd.f32 %v2761, %v3086
        %v3088 = vpop.f32.mrf.mxu0
        %v3089 = vadd.f32 %v2765, %v3088
        %3090 = vmatprep.mubr.bf16.mxu0 %v2697
        %3091 = vmatmul.mubr.bf16.gmra.mxu0 %v2649
        %v3092 = vpop.f32.mrf.mxu0
        %v3093 = vadd.f32 %v2761, %v3092
        %v3094 = vpop.f32.mrf.mxu0
        %v3095 = vadd.f32 %v2765, %v3094
        %v3096 = vpop.f32.mrf.mxu0
        %v3097 = vadd.f32 %v2761, %v3096
        %v3098 = vpop.f32.mrf.mxu0
        %v3099 = vadd.f32 %v2765, %v3098
        %3100 = vmatprep.mubr.bf16.mxu0 %v2698
        %3101 = vmatmul.mubr.bf16.gmra.mxu0 %v2650
        %v3102 = vpop.f32.mrf.mxu0
        %v3103 = vadd.f32 %v2761, %v3102
        %v3104 = vpop.f32.mrf.mxu0
        %v3105 = vadd.f32 %v2765, %v3104
        %v3106 = vpop.f32.mrf.mxu0
        %v3107 = vadd.f32 %v2761, %v3106
        %v3108 = vpop.f32.mrf.mxu0
        %v3109 = vadd.f32 %v2765, %v3108
        %3110 = vmatprep.mubr.bf16.mxu0 %v2699
        %3111 = vmatmul.mubr.bf16.gmra.mxu0 %v2651
        %v3112 = vpop.f32.mrf.mxu0
        %v3113 = vadd.f32 %v2761, %v3112
        %v3114 = vpop.f32.mrf.mxu0
        %v3115 = vadd.f32 %v2765, %v3114
        %v3116 = vpop.f32.mrf.mxu0
        %v3117 = vadd.f32 %v2761, %v3116
        %v3118 = vpop.f32.mrf.mxu0
        %v3119 = vadd.f32 %v2765, %v3118
        %3120 = vdwg.mxu0
        %3121 = vmatprep.subr.bf16.mxu0 %v2959
        %3122 = vmatpush1.bf16.msra.mxu0 %v2958
        %3123 = vmatprep.subr.bf16.mxu0 %v2957
        %3124 = vmatpush1.bf16.msra.mxu0 %v2956
        %3125 = vmatprep.subr.bf16.mxu0 %v2955
        %3126 = vmatpush1.bf16.msra.mxu0 %v2954
        %3127 = vmatprep.subr.bf16.mxu0 %v2953
        %3128 = vmatpush1.bf16.msra.mxu0 %v2952
        %3129 = vmatprep.subr.bf16.mxu0 %v2951
        %3130 = vmatpush1.bf16.msra.mxu0 %v2950
        %3131 = vmatprep.subr.bf16.mxu0 %v2949
        %3132 = vmatpush1.bf16.msra.mxu0 %v2948
        %3133 = vmatprep.subr.bf16.mxu0 %v2947
        %3134 = vmatpush1.bf16.msra.mxu0 %v2946
        %3135 = vmatprep.subr.bf16.mxu0 %v2945
        %3136 = vmatpush1.bf16.msra.mxu0 %v2944
        %3137 = vmatprep.subr.bf16.mxu0 0
        %3138 = vmatpush2.bf16.msra.mxu0 0
        %3139 = vmatprep.subr.bf16.mxu0 0
        %3140 = vmatpush2.bf16.msra.mxu0 0
        %3141 = vmatprep.subr.bf16.mxu0 0
        %3142 = vmatpush2.bf16.msra.mxu0 0
        %3143 = vmatprep.subr.bf16.mxu0 0
        %3144 = vmatpush2.bf16.msra.mxu0 0
        %3145 = vmatprep.subr.bf16.mxu0 0
        %3146 = vmatpush2.bf16.msra.mxu0 0
        %3147 = vmatprep.subr.bf16.mxu0 0
        %3148 = vmatpush2.bf16.msra.mxu0 0
        %3149 = vmatprep.subr.bf16.mxu0 0
        %3150 = vmatpush2.bf16.msra.mxu0 0
        %3151 = vmatprep.subr.bf16.mxu0 0
        %3152 = vmatpush2.bf16.msra.mxu0 0
        %3153 = vmatprep.mubr.bf16.mxu0 0
        %3154 = vmatmul.mubr.bf16.gmra.mxu0 %v2652
        %v3155 = vpop.f32.mrf.mxu0
        %v3156 = vadd.f32 %v3043, %v3155
        %v3157 = vpop.f32.mrf.mxu0
        %v3158 = vadd.f32 %v3045, %v3157
        %v3159 = vpop.f32.mrf.mxu0
        %v3160 = vadd.f32 %v3047, %v3159
        %v3161 = vpop.f32.mrf.mxu0
        %v3162 = vadd.f32 %v3049, %v3161
        %3163 = vmatprep.mubr.bf16.mxu0 0
        %3164 = vmatmul.mubr.bf16.gmra.mxu0 %v2653
        %v3165 = vpop.f32.mrf.mxu0
        %v3166 = vadd.f32 %v3053, %v3165
        %v3167 = vpop.f32.mrf.mxu0
        %v3168 = vadd.f32 %v3055, %v3167
        %v3169 = vpop.f32.mrf.mxu0
        %v3170 = vadd.f32 %v3057, %v3169
        %v3171 = vpop.f32.mrf.mxu0
        %v3172 = vadd.f32 %v3059, %v3171
        %3173 = vmatprep.mubr.bf16.mxu0 0
        %3174 = vmatmul.mubr.bf16.gmra.mxu0 %v2654
        %v3175 = vpop.f32.mrf.mxu0
        %v3176 = vadd.f32 %v3063, %v3175
        %v3177 = vpop.f32.mrf.mxu0
        %v3178 = vadd.f32 %v3065, %v3177
        %v3179 = vpop.f32.mrf.mxu0
        %v3180 = vadd.f32 %v3067, %v3179
        %v3181 = vpop.f32.mrf.mxu0
        %v3182 = vadd.f32 %v3069, %v3181
        %3183 = vmatprep.mubr.bf16.mxu0 0
        %3184 = vmatmul.mubr.bf16.gmra.mxu0 %v2655
        %v3185 = vpop.f32.mrf.mxu0
        %v3186 = vadd.f32 %v3073, %v3185
        %v3187 = vpop.f32.mrf.mxu0
        %v3188 = vadd.f32 %v3075, %v3187
        %v3189 = vpop.f32.mrf.mxu0
        %v3190 = vadd.f32 %v3077, %v3189
        %v3191 = vpop.f32.mrf.mxu0
        %v3192 = vadd.f32 %v3079, %v3191
        %3193 = vmatprep.mubr.bf16.mxu0 0
        %3194 = vmatmul.mubr.bf16.gmra.mxu0 %v2656
        %v3195 = vpop.f32.mrf.mxu0
        %v3196 = vadd.f32 %v3083, %v3195
        %v3197 = vpop.f32.mrf.mxu0
        %v3198 = vadd.f32 %v3085, %v3197
        %v3199 = vpop.f32.mrf.mxu0
        %v3200 = vadd.f32 %v3087, %v3199
        %v3201 = vpop.f32.mrf.mxu0
        %v3202 = vadd.f32 %v3089, %v3201
        %3203 = vmatprep.mubr.bf16.mxu0 0
        %3204 = vmatmul.mubr.bf16.gmra.mxu0 %v2657
        %v3205 = vpop.f32.mrf.mxu0
        %v3206 = vadd.f32 %v3093, %v3205
        %v3207 = vpop.f32.mrf.mxu0
        %v3208 = vadd.f32 %v3095, %v3207
        %v3209 = vpop.f32.mrf.mxu0
        %v3210 = vadd.f32 %v3097, %v3209
        %v3211 = vpop.f32.mrf.mxu0
        %v3212 = vadd.f32 %v3099, %v3211
        %3213 = vmatprep.mubr.bf16.mxu0 0
        %3214 = vmatmul.mubr.bf16.gmra.mxu0 %v2658
        %v3215 = vpop.f32.mrf.mxu0
        %v3216 = vadd.f32 %v3103, %v3215
        %v3217 = vpop.f32.mrf.mxu0
        %v3218 = vadd.f32 %v3105, %v3217
        %v3219 = vpop.f32.mrf.mxu0
        %v3220 = vadd.f32 %v3107, %v3219
        %v3221 = vpop.f32.mrf.mxu0
        %v3222 = vadd.f32 %v3109, %v3221
        %3223 = vmatprep.mubr.bf16.mxu0 0
        %3224 = vmatmul.mubr.bf16.gmra.mxu0 %v2659
        %v3225 = vpop.f32.mrf.mxu0
        %v3226 = vadd.f32 %v3113, %v3225
        %v3227 = vpop.f32.mrf.mxu0
        %v3228 = vadd.f32 %v3115, %v3227
        %v3229 = vpop.f32.mrf.mxu0
        %v3230 = vadd.f32 %v3117, %v3229
        %v3231 = vpop.f32.mrf.mxu0
        %v3232 = vadd.f32 %v3119, %v3231
        %3233 = vdwg.mxu0
        %vm3234 = vcmp.gt.f32.partialorder %v3156, 0.0
        %vm3235 = vcmp.gt.f32.partialorder %v3158, 0.0
        %vm3236 = vcmp.gt.f32.partialorder %v3160, 0.0
        %vm3237 = vcmp.gt.f32.partialorder %v3162, 0.0
        %vm3238 = vcmp.gt.f32.partialorder %v3166, 0.0
        %vm3239 = vcmp.gt.f32.partialorder %v3168, 0.0
        %vm3240 = vcmp.gt.f32.partialorder %v3170, 0.0
        %vm3241 = vcmp.gt.f32.partialorder %v3172, 0.0
        %vm3242 = vcmp.gt.f32.partialorder %v3176, 0.0
        %vm3243 = vcmp.gt.f32.partialorder %v3178, 0.0
        %vm3244 = vcmp.gt.f32.partialorder %v3180, 0.0
        %vm3245 = vcmp.gt.f32.partialorder %v3182, 0.0
        %vm3246 = vcmp.gt.f32.partialorder %v3186, 0.0
        %vm3247 = vcmp.gt.f32.partialorder %v3188, 0.0
        %vm3248 = vcmp.gt.f32.partialorder %v3190, 0.0
        %vm3249 = vcmp.gt.f32.partialorder %v3192, 0.0
        %vm3250 = vcmp.gt.f32.partialorder %v3196, 0.0
        %vm3251 = vcmp.gt.f32.partialorder %v3198, 0.0
        %vm3252 = vcmp.gt.f32.partialorder %v3200, 0.0
        %vm3253 = vcmp.gt.f32.partialorder %v3202, 0.0
        %vm3254 = vcmp.gt.f32.partialorder %v3206, 0.0
        %vm3255 = vcmp.gt.f32.partialorder %v3208, 0.0
        %vm3256 = vcmp.gt.f32.partialorder %v3210, 0.0
        %vm3257 = vcmp.gt.f32.partialorder %v3212, 0.0
        %vm3258 = vcmp.gt.f32.partialorder %v3216, 0.0
        %vm3259 = vcmp.gt.f32.partialorder %v3218, 0.0
        %vm3260 = vcmp.gt.f32.partialorder %v3220, 0.0
        %vm3261 = vcmp.gt.f32.partialorder %v3222, 0.0
        %vm3262 = vcmp.gt.f32.partialorder %v3226, 0.0
        %vm3263 = vcmp.gt.f32.partialorder %v3228, 0.0
        %vm3264 = vcmp.gt.f32.partialorder %v3230, 0.0
        %vm3265 = vcmp.gt.f32.partialorder %v3232, 0.0
        %v3266 = vmul.f32 %v3156, 0.01
        %v3267 = vmul.f32 %v3158, 0.01
        %v3268 = vmul.f32 %v3160, 0.01
        %v3269 = vmul.f32 %v3162, 0.01
        %v3270 = vmul.f32 %v3166, 0.01
        %v3271 = vmul.f32 %v3168, 0.01
        %v3272 = vmul.f32 %v3170, 0.01
        %v3273 = vmul.f32 %v3172, 0.01
        %v3274 = vmul.f32 %v3176, 0.01
        %v3275 = vmul.f32 %v3178, 0.01
        %v3276 = vmul.f32 %v3180, 0.01
        %v3277 = vmul.f32 %v3182, 0.01
        %v3278 = vmul.f32 %v3186, 0.01
        %v3279 = vmul.f32 %v3188, 0.01
        %v3280 = vmul.f32 %v3190, 0.01
        %v3281 = vmul.f32 %v3192, 0.01
        %v3282 = vmul.f32 %v3196, 0.01
        %v3283 = vmul.f32 %v3198, 0.01
        %v3284 = vmul.f32 %v3200, 0.01
        %v3285 = vmul.f32 %v3202, 0.01
        %v3286 = vmul.f32 %v3206, 0.01
        %v3287 = vmul.f32 %v3208, 0.01
        %v3288 = vmul.f32 %v3210, 0.01
        %v3289 = vmul.f32 %v3212, 0.01
        %v3290 = vmul.f32 %v3216, 0.01
        %v3291 = vmul.f32 %v3218, 0.01
        %v3292 = vmul.f32 %v3220, 0.01
        %v3293 = vmul.f32 %v3222, 0.01
        %v3294 = vmul.f32 %v3226, 0.01
        %v3295 = vmul.f32 %v3228, 0.01
        %v3296 = vmul.f32 %v3230, 0.01
        %v3297 = vmul.f32 %v3232, 0.01
        %v3298 = vsel %vm3234, %v3156, %v3266
        %v3299 = vsel %vm3235, %v3158, %v3267
        %v3300 = vsel %vm3236, %v3160, %v3268
        %v3301 = vsel %vm3237, %v3162, %v3269
        %v3302 = vsel %vm3238, %v3166, %v3270
        %v3303 = vsel %vm3239, %v3168, %v3271
        %v3304 = vsel %vm3240, %v3170, %v3272
        %v3305 = vsel %vm3241, %v3172, %v3273
        %v3306 = vsel %vm3242, %v3176, %v3274
        %v3307 = vsel %vm3243, %v3178, %v3275
        %v3308 = vsel %vm3244, %v3180, %v3276
        %v3309 = vsel %vm3245, %v3182, %v3277
        %v3310 = vsel %vm3246, %v3186, %v3278
        %v3311 = vsel %vm3247, %v3188, %v3279
        %v3312 = vsel %vm3248, %v3190, %v3280
        %v3313 = vsel %vm3249, %v3192, %v3281
        %v3314 = vsel %vm3250, %v3196, %v3282
        %v3315 = vsel %vm3251, %v3198, %v3283
        %v3316 = vsel %vm3252, %v3200, %v3284
        %v3317 = vsel %vm3253, %v3202, %v3285
        %v3318 = vsel %vm3254, %v3206, %v3286
        %v3319 = vsel %vm3255, %v3208, %v3287
        %v3320 = vsel %vm3256, %v3210, %v3288
        %v3321 = vsel %vm3257, %v3212, %v3289
        %v3322 = vsel %vm3258, %v3216, %v3290
        %v3323 = vsel %vm3259, %v3218, %v3291
        %v3324 = vsel %vm3260, %v3220, %v3292
        %v3325 = vsel %vm3261, %v3222, %v3293
        %v3326 = vsel %vm3262, %v3226, %v3294
        %v3327 = vsel %vm3263, %v3228, %v3295
        %v3328 = vsel %vm3264, %v3230, %v3296
        %v3329 = vsel %vm3265, %v3232, %v3297
        %vm3330 = vcmp.lt.s32.totalorder %v595, 16
        %vm3331 = vcmp.lt.s32.totalorder %v2422, 16
        %vm3332 = vcmp.lt.s32.totalorder %v2423, 16
        %vm3333 = vcmp.lt.s32.totalorder %v2424, 16
        %vm3334 = vcmp.lt.s32.totalorder %v2425, 16
        %vm3335 = vcmp.lt.s32.totalorder %v2426, 16
        %vm3336 = vcmp.lt.s32.totalorder %v2427, 16
        %vm3337 = vcmp.lt.s32.totalorder %v2428, 16
        %vm3338 = vcmp.lt.s32.totalorder %v2429, 16
        %vm3339 = vcmp.lt.s32.totalorder %v2430, 16
        %vm3340 = vcmp.lt.s32.totalorder %v2431, 16
        %vm3341 = vcmp.lt.s32.totalorder %v2432, 16
        %vm3342 = vcmp.lt.s32.totalorder %v2433, 16
        %vm3343 = vcmp.lt.s32.totalorder %v2434, 16
        %vm3344 = vcmp.lt.s32.totalorder %v2435, 16
        %vm3345 = vcmp.lt.s32.totalorder %v2436, 16
        %v3346 = vsel %vm3330, 1, 0
        %v3347 = vsel %vm3331, 1, 0
        %v3348 = vsel %vm3332, 1, 0
        %v3349 = vsel %vm3333, 1, 0
        %v3350 = vsel %vm3334, 1, 0
        %v3351 = vsel %vm3335, 1, 0
        %v3352 = vsel %vm3336, 1, 0
        %v3353 = vsel %vm3337, 1, 0
        %v3354 = vsel %vm3338, 1, 0
        %v3355 = vsel %vm3339, 1, 0
        %v3356 = vsel %vm3340, 1, 0
        %v3357 = vsel %vm3341, 1, 0
        %v3358 = vsel %vm3342, 1, 0
        %v3359 = vsel %vm3343, 1, 0
        %v3360 = vsel %vm3344, 1, 0
        %v3361 = vsel %vm3345, 1, 0
        %vm3362 = vcmp.eq.s32.totalorder %v3346, 1
        %vm3363 = vcmp.eq.s32.totalorder %v3347, 1
        %vm3364 = vcmp.eq.s32.totalorder %v3348, 1
        %vm3365 = vcmp.eq.s32.totalorder %v3349, 1
        %vm3366 = vcmp.eq.s32.totalorder %v3350, 1
        %vm3367 = vcmp.eq.s32.totalorder %v3351, 1
        %vm3368 = vcmp.eq.s32.totalorder %v3352, 1
        %vm3369 = vcmp.eq.s32.totalorder %v3353, 1
        %vm3370 = vcmp.eq.s32.totalorder %v3354, 1
        %vm3371 = vcmp.eq.s32.totalorder %v3355, 1
        %vm3372 = vcmp.eq.s32.totalorder %v3356, 1
        %vm3373 = vcmp.eq.s32.totalorder %v3357, 1
        %vm3374 = vcmp.eq.s32.totalorder %v3358, 1
        %vm3375 = vcmp.eq.s32.totalorder %v3359, 1
        %vm3376 = vcmp.eq.s32.totalorder %v3360, 1
        %vm3377 = vcmp.eq.s32.totalorder %v3361, 1
        %v3378 = vsel %vm3362, %v3298, 0.0
        %v3379 = vsel %vm3362, %v3299, 0.0
        %v3380 = vsel %vm3363, %v3300, 0.0
        %v3381 = vsel %vm3363, %v3301, 0.0
        %v3382 = vsel %vm3364, %v3302, 0.0
        %v3383 = vsel %vm3364, %v3303, 0.0
        %v3384 = vsel %vm3365, %v3304, 0.0
        %v3385 = vsel %vm3365, %v3305, 0.0
        %v3386 = vsel %vm3366, %v3306, 0.0
        %v3387 = vsel %vm3366, %v3307, 0.0
        %v3388 = vsel %vm3367, %v3308, 0.0
        %v3389 = vsel %vm3367, %v3309, 0.0
        %v3390 = vsel %vm3368, %v3310, 0.0
        %v3391 = vsel %vm3368, %v3311, 0.0
        %v3392 = vsel %vm3369, %v3312, 0.0
        %v3393 = vsel %vm3369, %v3313, 0.0
        %v3394 = vsel %vm3370, %v3314, 0.0
        %v3395 = vsel %vm3370, %v3315, 0.0
        %v3396 = vsel %vm3371, %v3316, 0.0
        %v3397 = vsel %vm3371, %v3317, 0.0
        %v3398 = vsel %vm3372, %v3318, 0.0
        %v3399 = vsel %vm3372, %v3319, 0.0
        %v3400 = vsel %vm3373, %v3320, 0.0
        %v3401 = vsel %vm3373, %v3321, 0.0
        %v3402 = vsel %vm3374, %v3322, 0.0
        %v3403 = vsel %vm3374, %v3323, 0.0
        %v3404 = vsel %vm3375, %v3324, 0.0
        %v3405 = vsel %vm3375, %v3325, 0.0
        %v3406 = vsel %vm3376, %v3326, 0.0
        %v3407 = vsel %vm3376, %v3327, 0.0
        %v3408 = vsel %vm3377, %v3328, 0.0
        %v3409 = vsel %vm3377, %v3329, 0.0
        %v3410 = vrot.slane %v3378, 7
        %v3411 = vrot.slane %v3379, 7
        %v3412 = vrot.slane %v3380, 7
        %v3413 = vrot.slane %v3381, 7
        %v3414 = vrot.slane %v3382, 7
        %v3415 = vrot.slane %v3383, 7
        %v3416 = vrot.slane %v3384, 7
        %v3417 = vrot.slane %v3385, 7
        %v3418 = vrot.slane %v3386, 7
        %v3419 = vrot.slane %v3387, 7
        %v3420 = vrot.slane %v3388, 7
        %v3421 = vrot.slane %v3389, 7
        %v3422 = vrot.slane %v3390, 7
        %v3423 = vrot.slane %v3391, 7
        %v3424 = vrot.slane %v3392, 7
        %v3425 = vrot.slane %v3393, 7
        %v3426 = vrot.slane %v3394, 7
        %v3427 = vrot.slane %v3395, 7
        %v3428 = vrot.slane %v3396, 7
        %v3429 = vrot.slane %v3397, 7
        %v3430 = vrot.slane %v3398, 7
        %v3431 = vrot.slane %v3399, 7
        %v3432 = vrot.slane %v3400, 7
        %v3433 = vrot.slane %v3401, 7
        %v3434 = vrot.slane %v3402, 7
        %v3435 = vrot.slane %v3403, 7
        %v3436 = vrot.slane %v3404, 7
        %v3437 = vrot.slane %v3405, 7
        %v3438 = vrot.slane %v3406, 7
        %v3439 = vrot.slane %v3407, 7
        %v3440 = vrot.slane %v3408, 7
        %v3441 = vrot.slane %v3409, 7
        %v3442 = vsel %vm2484, %v3438, %v3440
        %v3443 = vsel %vm2484, %v3439, %v3441
        %v3444 = vsel %vm2484, %v3436, %v3438
        %v3445 = vsel %vm2484, %v3437, %v3439
        %v3446 = vsel %vm2484, %v3434, %v3436
        %v3447 = vsel %vm2484, %v3435, %v3437
        %v3448 = vsel %vm2484, %v3432, %v3434
        %v3449 = vsel %vm2484, %v3433, %v3435
        %v3450 = vsel %vm2484, %v3430, %v3432
        %v3451 = vsel %vm2484, %v3431, %v3433
        %v3452 = vsel %vm2484, %v3428, %v3430
        %v3453 = vsel %vm2484, %v3429, %v3431
        %v3454 = vsel %vm2484, %v3426, %v3428
        %v3455 = vsel %vm2484, %v3427, %v3429
        %v3456 = vsel %vm2484, %v3424, %v3426
        %v3457 = vsel %vm2484, %v3425, %v3427
        %v3458 = vsel %vm2484, %v3422, %v3424
        %v3459 = vsel %vm2484, %v3423, %v3425
        %v3460 = vsel %vm2484, %v3420, %v3422
        %v3461 = vsel %vm2484, %v3421, %v3423
        %v3462 = vsel %vm2484, %v3418, %v3420
        %v3463 = vsel %vm2484, %v3419, %v3421
        %v3464 = vsel %vm2484, %v3416, %v3418
        %v3465 = vsel %vm2484, %v3417, %v3419
        %v3466 = vsel %vm2484, %v3414, %v3416
        %v3467 = vsel %vm2484, %v3415, %v3417
        %v3468 = vsel %vm2484, %v3412, %v3414
        %v3469 = vsel %vm2484, %v3413, %v3415
        %v3470 = vsel %vm2484, %v3410, %v3412
        %v3471 = vsel %vm2484, %v3411, %v3413
        %v3472 = vsel %vm2484, %v3440, %v3410
        %v3473 = vsel %vm2484, %v3441, %v3411
        %v3474 = vsel %vm600, 0.0, %v3472
        %v3475 = vsel %vm600, 0.0, %v3473
        %v3476 = vsel %vm2516, 0.0, %v3470
        %v3477 = vsel %vm2516, 0.0, %v3471
        %v3478 = vsel %vm2517, 0.0, %v3468
        %v3479 = vsel %vm2517, 0.0, %v3469
        %v3480 = vsel %vm2518, 0.0, %v3466
        %v3481 = vsel %vm2518, 0.0, %v3467
        %v3482 = vsel %vm2519, 0.0, %v3464
        %v3483 = vsel %vm2519, 0.0, %v3465
        %v3484 = vsel %vm2520, 0.0, %v3462
        %v3485 = vsel %vm2520, 0.0, %v3463
        %v3486 = vsel %vm2521, 0.0, %v3460
        %v3487 = vsel %vm2521, 0.0, %v3461
        %v3488 = vsel %vm2522, 0.0, %v3458
        %v3489 = vsel %vm2522, 0.0, %v3459
        %v3490 = vsel %vm2523, 0.0, %v3456
        %v3491 = vsel %vm2523, 0.0, %v3457
        %v3492 = vsel %vm2524, 0.0, %v3454
        %v3493 = vsel %vm2524, 0.0, %v3455
        %v3494 = vsel %vm2525, 0.0, %v3452
        %v3495 = vsel %vm2525, 0.0, %v3453
        %v3496 = vsel %vm2526, 0.0, %v3450
        %v3497 = vsel %vm2526, 0.0, %v3451
        %v3498 = vsel %vm2527, 0.0, %v3448
        %v3499 = vsel %vm2527, 0.0, %v3449
        %v3500 = vsel %vm2528, 0.0, %v3446
        %v3501 = vsel %vm2528, 0.0, %v3447
        %v3502 = vsel %vm2529, 0.0, %v3444
        %v3503 = vsel %vm2529, 0.0, %v3445
        %v3504 = vsel %vm2530, 0.0, %v3442
        %v3505 = vsel %vm2530, 0.0, %v3443
        %v3506 = vrot.slane %v3378, 1
        %v3507 = vrot.slane %v3379, 1
        %v3508 = vrot.slane %v3380, 1
        %v3509 = vrot.slane %v3381, 1
        %v3510 = vrot.slane %v3382, 1
        %v3511 = vrot.slane %v3383, 1
        %v3512 = vrot.slane %v3384, 1
        %v3513 = vrot.slane %v3385, 1
        %v3514 = vrot.slane %v3386, 1
        %v3515 = vrot.slane %v3387, 1
        %v3516 = vrot.slane %v3388, 1
        %v3517 = vrot.slane %v3389, 1
        %v3518 = vrot.slane %v3390, 1
        %v3519 = vrot.slane %v3391, 1
        %v3520 = vrot.slane %v3392, 1
        %v3521 = vrot.slane %v3393, 1
        %v3522 = vrot.slane %v3394, 1
        %v3523 = vrot.slane %v3395, 1
        %v3524 = vrot.slane %v3396, 1
        %v3525 = vrot.slane %v3397, 1
        %v3526 = vrot.slane %v3398, 1
        %v3527 = vrot.slane %v3399, 1
        %v3528 = vrot.slane %v3400, 1
        %v3529 = vrot.slane %v3401, 1
        %v3530 = vrot.slane %v3402, 1
        %v3531 = vrot.slane %v3403, 1
        %v3532 = vrot.slane %v3404, 1
        %v3533 = vrot.slane %v3405, 1
        %v3534 = vrot.slane %v3406, 1
        %v3535 = vrot.slane %v3407, 1
        %v3536 = vrot.slane %v3408, 1
        %v3537 = vrot.slane %v3409, 1
        %v3538 = vsel %vm2579, %v3534, %v3536
        %v3539 = vsel %vm2579, %v3535, %v3537
        %v3540 = vsel %vm2579, %v3532, %v3534
        %v3541 = vsel %vm2579, %v3533, %v3535
        %v3542 = vsel %vm2579, %v3530, %v3532
        %v3543 = vsel %vm2579, %v3531, %v3533
        %v3544 = vsel %vm2579, %v3528, %v3530
        %v3545 = vsel %vm2579, %v3529, %v3531
        %v3546 = vsel %vm2579, %v3526, %v3528
        %v3547 = vsel %vm2579, %v3527, %v3529
        %v3548 = vsel %vm2579, %v3524, %v3526
        %v3549 = vsel %vm2579, %v3525, %v3527
        %v3550 = vsel %vm2579, %v3522, %v3524
        %v3551 = vsel %vm2579, %v3523, %v3525
        %v3552 = vsel %vm2579, %v3520, %v3522
        %v3553 = vsel %vm2579, %v3521, %v3523
        %v3554 = vsel %vm2579, %v3518, %v3520
        %v3555 = vsel %vm2579, %v3519, %v3521
        %v3556 = vsel %vm2579, %v3516, %v3518
        %v3557 = vsel %vm2579, %v3517, %v3519
        %v3558 = vsel %vm2579, %v3514, %v3516
        %v3559 = vsel %vm2579, %v3515, %v3517
        %v3560 = vsel %vm2579, %v3512, %v3514
        %v3561 = vsel %vm2579, %v3513, %v3515
        %v3562 = vsel %vm2579, %v3510, %v3512
        %v3563 = vsel %vm2579, %v3511, %v3513
        %v3564 = vsel %vm2579, %v3508, %v3510
        %v3565 = vsel %vm2579, %v3509, %v3511
        %v3566 = vsel %vm2579, %v3506, %v3508
        %v3567 = vsel %vm2579, %v3507, %v3509
        %v3568 = vsel %vm2579, %v3536, %v3506
        %v3569 = vsel %vm2579, %v3537, %v3507
        %v3570 = vsel %vm2612, 0.0, %v3566
        %v3571 = vsel %vm2612, 0.0, %v3567
        %v3572 = vsel %vm2613, 0.0, %v3564
        %v3573 = vsel %vm2613, 0.0, %v3565
        %v3574 = vsel %vm2614, 0.0, %v3562
        %v3575 = vsel %vm2614, 0.0, %v3563
        %v3576 = vsel %vm2615, 0.0, %v3560
        %v3577 = vsel %vm2615, 0.0, %v3561
        %v3578 = vsel %vm2616, 0.0, %v3558
        %v3579 = vsel %vm2616, 0.0, %v3559
        %v3580 = vsel %vm2617, 0.0, %v3556
        %v3581 = vsel %vm2617, 0.0, %v3557
        %v3582 = vsel %vm2618, 0.0, %v3554
        %v3583 = vsel %vm2618, 0.0, %v3555
        %v3584 = vsel %vm2619, 0.0, %v3552
        %v3585 = vsel %vm2619, 0.0, %v3553
        %v3586 = vsel %vm2620, 0.0, %v3550
        %v3587 = vsel %vm2620, 0.0, %v3551
        %v3588 = vsel %vm2621, 0.0, %v3548
        %v3589 = vsel %vm2621, 0.0, %v3549
        %v3590 = vsel %vm2622, 0.0, %v3546
        %v3591 = vsel %vm2622, 0.0, %v3547
        %v3592 = vsel %vm2623, 0.0, %v3544
        %v3593 = vsel %vm2623, 0.0, %v3545
        %v3594 = vsel %vm2624, 0.0, %v3542
        %v3595 = vsel %vm2624, 0.0, %v3543
        %v3596 = vsel %vm2625, 0.0, %v3540
        %v3597 = vsel %vm2625, 0.0, %v3541
        %v3598 = vsel %vm2626, 0.0, %v3538
        %v3599 = vsel %vm2626, 0.0, %v3539
        %v3600 = vsel %vm2627, 0.0, %v3568
        %v3601 = vsel %vm2627, 0.0, %v3569
        %v3602 = vpack.c.bf16 %v3476, %v3474
        %v3603 = vpack.c.bf16 %v3477, %v3475
        %v3604 = vpack.c.bf16 %v3480, %v3478
        %v3605 = vpack.c.bf16 %v3481, %v3479
        %v3606 = vpack.c.bf16 %v3484, %v3482
        %v3607 = vpack.c.bf16 %v3485, %v3483
        %v3608 = vpack.c.bf16 %v3488, %v3486
        %v3609 = vpack.c.bf16 %v3489, %v3487
        %v3610 = vpack.c.bf16 %v3492, %v3490
        %v3611 = vpack.c.bf16 %v3493, %v3491
        %v3612 = vpack.c.bf16 %v3496, %v3494
        %v3613 = vpack.c.bf16 %v3497, %v3495
        %v3614 = vpack.c.bf16 %v3500, %v3498
        %v3615 = vpack.c.bf16 %v3501, %v3499
        %v3616 = vpack.c.bf16 %v3504, %v3502
        %v3617 = vpack.c.bf16 %v3505, %v3503
        %v3618 = vpack.c.bf16 %v3380, %v3378
        %v3619 = vpack.c.bf16 %v3381, %v3379
        %v3620 = vpack.c.bf16 %v3384, %v3382
        %v3621 = vpack.c.bf16 %v3385, %v3383
        %v3622 = vpack.c.bf16 %v3388, %v3386
        %v3623 = vpack.c.bf16 %v3389, %v3387
        %v3624 = vpack.c.bf16 %v3392, %v3390
        %v3625 = vpack.c.bf16 %v3393, %v3391
        %v3626 = vpack.c.bf16 %v3396, %v3394
        %v3627 = vpack.c.bf16 %v3397, %v3395
        %v3628 = vpack.c.bf16 %v3400, %v3398
        %v3629 = vpack.c.bf16 %v3401, %v3399
        %v3630 = vpack.c.bf16 %v3404, %v3402
        %v3631 = vpack.c.bf16 %v3405, %v3403
        %v3632 = vpack.c.bf16 %v3408, %v3406
        %v3633 = vpack.c.bf16 %v3409, %v3407
        %v3634 = vpack.c.bf16 %v3572, %v3570
        %v3635 = vpack.c.bf16 %v3573, %v3571
        %v3636 = vpack.c.bf16 %v3576, %v3574
        %v3637 = vpack.c.bf16 %v3577, %v3575
        %v3638 = vpack.c.bf16 %v3580, %v3578
        %v3639 = vpack.c.bf16 %v3581, %v3579
        %v3640 = vpack.c.bf16 %v3584, %v3582
        %v3641 = vpack.c.bf16 %v3585, %v3583
        %v3642 = vpack.c.bf16 %v3588, %v3586
        %v3643 = vpack.c.bf16 %v3589, %v3587
        %v3644 = vpack.c.bf16 %v3592, %v3590
        %v3645 = vpack.c.bf16 %v3593, %v3591
        %v3646 = vpack.c.bf16 %v3596, %v3594
        %v3647 = vpack.c.bf16 %v3597, %v3595
        %v3648 = vpack.c.bf16 %v3600, %v3598
        %v3649 = vpack.c.bf16 %v3601, %v3599
        %v3650 = vld [vmem:[#allocation14] sm:$0xf]
        %v3651 = vld [vmem:[#allocation14 + $0x4] sm:$0xf]
        %v3652 = vld [vmem:[#allocation14 + $0x8] sm:$0xf]
        %v3653 = vld [vmem:[#allocation14 + $0xc] sm:$0xf]
        %v3654 = vld [vmem:[#allocation14 + $0x10] sm:$0xf]
        %v3655 = vld [vmem:[#allocation14 + $0x14] sm:$0xf]
        %v3656 = vld [vmem:[#allocation14 + $0x18] sm:$0xf]
        %v3657 = vld [vmem:[#allocation14 + $0x1c] sm:$0xf]
        %v3658 = vld [vmem:[#allocation14 + $0x20] sm:$0xf]
        %v3659 = vld [vmem:[#allocation14 + $0x24] sm:$0xf]
        %v3660 = vld [vmem:[#allocation14 + $0x28] sm:$0xf]
        %v3661 = vld [vmem:[#allocation14 + $0x2c] sm:$0xf]
        %v3662 = vld [vmem:[#allocation14 + $0x30] sm:$0xf]
        %v3663 = vld [vmem:[#allocation14 + $0x34] sm:$0xf]
        %v3664 = vld [vmem:[#allocation14 + $0x38] sm:$0xf]
        %v3665 = vld [vmem:[#allocation14 + $0x3c] sm:$0xf]
        %v3666 = vld [vmem:[#allocation14 + $0x40] sm:$0xf]
        %v3667 = vld [vmem:[#allocation14 + $0x44] sm:$0xf]
        %v3668 = vld [vmem:[#allocation14 + $0x48] sm:$0xf]
        %v3669 = vld [vmem:[#allocation14 + $0x4c] sm:$0xf]
        %v3670 = vld [vmem:[#allocation14 + $0x50] sm:$0xf]
        %v3671 = vld [vmem:[#allocation14 + $0x54] sm:$0xf]
        %v3672 = vld [vmem:[#allocation14 + $0x58] sm:$0xf]
        %v3673 = vld [vmem:[#allocation14 + $0x5c] sm:$0xf]
        %v3674 = vld [vmem:[#allocation14 + $0x60] sm:$0xf]
        %v3675 = vld [vmem:[#allocation14 + $0x64] sm:$0xf]
        %v3676 = vld [vmem:[#allocation14 + $0x68] sm:$0xf]
        %v3677 = vld [vmem:[#allocation14 + $0x6c] sm:$0xf]
        %v3678 = vld [vmem:[#allocation14 + $0x70] sm:$0xf]
        %v3679 = vld [vmem:[#allocation14 + $0x74] sm:$0xf]
        %v3680 = vld [vmem:[#allocation14 + $0x78] sm:$0xf]
        %v3681 = vld [vmem:[#allocation14 + $0x7c] sm:$0xf]
        %v3682 = vld [vmem:[#allocation14 + $0x80] sm:$0xf]
        %v3683 = vld [vmem:[#allocation14 + $0x84] sm:$0xf]
        %v3684 = vld [vmem:[#allocation14 + $0x88] sm:$0xf]
        %v3685 = vld [vmem:[#allocation14 + $0x8c] sm:$0xf]
        %v3686 = vld [vmem:[#allocation14 + $0x90] sm:$0xf]
        %v3687 = vld [vmem:[#allocation14 + $0x94] sm:$0xf]
        %v3688 = vld [vmem:[#allocation14 + $0x98] sm:$0xf]
        %v3689 = vld [vmem:[#allocation14 + $0x9c] sm:$0xf]
        %v3690 = vld [vmem:[#allocation14 + $0xa0] sm:$0xf]
        %v3691 = vld [vmem:[#allocation14 + $0xa4] sm:$0xf]
        %v3692 = vld [vmem:[#allocation14 + $0xa8] sm:$0xf]
        %v3693 = vld [vmem:[#allocation14 + $0xac] sm:$0xf]
        %v3694 = vld [vmem:[#allocation14 + $0xb0] sm:$0xf]
        %v3695 = vld [vmem:[#allocation14 + $0xb4] sm:$0xf]
        %v3696 = vld [vmem:[#allocation14 + $0xb8] sm:$0xf]
        %v3697 = vld [vmem:[#allocation14 + $0xbc] sm:$0xf]
        %v3698 = vld [vmem:[#allocation14 + $0xc0] sm:$0xf]
        %v3699 = vld [vmem:[#allocation14 + $0xc4] sm:$0xf]
        %v3700 = vld [vmem:[#allocation14 + $0xc8] sm:$0xf]
        %v3701 = vld [vmem:[#allocation14 + $0xcc] sm:$0xf]
        %v3702 = vld [vmem:[#allocation14 + $0xd0] sm:$0xf]
        %v3703 = vld [vmem:[#allocation14 + $0xd4] sm:$0xf]
        %v3704 = vld [vmem:[#allocation14 + $0xd8] sm:$0xf]
        %v3705 = vld [vmem:[#allocation14 + $0xdc] sm:$0xf]
        %v3706 = vld [vmem:[#allocation14 + $0xe0] sm:$0xf]
        %v3707 = vld [vmem:[#allocation14 + $0xe4] sm:$0xf]
        %v3708 = vld [vmem:[#allocation14 + $0xe8] sm:$0xf]
        %v3709 = vld [vmem:[#allocation14 + $0xec] sm:$0xf]
        %v3710 = vld [vmem:[#allocation14 + $0xf0] sm:$0xf]
        %v3711 = vld [vmem:[#allocation14 + $0xf4] sm:$0xf]
        %v3712 = vld [vmem:[#allocation14 + $0xf8] sm:$0xf]
        %v3713 = vld [vmem:[#allocation14 + $0xfc] sm:$0xf]
        %v3714 = vld [vmem:[#allocation14 + $0x100] sm:$0xf]
        %v3715 = vld [vmem:[#allocation14 + $0x104] sm:$0xf]
        %v3716 = vld [vmem:[#allocation14 + $0x108] sm:$0xf]
        %v3717 = vld [vmem:[#allocation14 + $0x10c] sm:$0xf]
        %v3718 = vld [vmem:[#allocation14 + $0x110] sm:$0xf]
        %v3719 = vld [vmem:[#allocation14 + $0x114] sm:$0xf]
        %v3720 = vld [vmem:[#allocation14 + $0x118] sm:$0xf]
        %v3721 = vld [vmem:[#allocation14 + $0x11c] sm:$0xf]
        %v3722 = vld [vmem:[#allocation14 + $0x120] sm:$0xf]
        %v3723 = vld [vmem:[#allocation14 + $0x124] sm:$0xf]
        %v3724 = vld [vmem:[#allocation14 + $0x128] sm:$0xf]
        %v3725 = vld [vmem:[#allocation14 + $0x12c] sm:$0xf]
        %v3726 = vld [vmem:[#allocation14 + $0x130] sm:$0xf]
        %v3727 = vld [vmem:[#allocation14 + $0x134] sm:$0xf]
        %v3728 = vld [vmem:[#allocation14 + $0x138] sm:$0xf]
        %v3729 = vld [vmem:[#allocation14 + $0x13c] sm:$0xf]
        %v3730 = vld [vmem:[#allocation14 + $0x140] sm:$0xf]
        %v3731 = vld [vmem:[#allocation14 + $0x144] sm:$0xf]
        %v3732 = vld [vmem:[#allocation14 + $0x148] sm:$0xf]
        %v3733 = vld [vmem:[#allocation14 + $0x14c] sm:$0xf]
        %v3734 = vld [vmem:[#allocation14 + $0x150] sm:$0xf]
        %v3735 = vld [vmem:[#allocation14 + $0x154] sm:$0xf]
        %v3736 = vld [vmem:[#allocation14 + $0x158] sm:$0xf]
        %v3737 = vld [vmem:[#allocation14 + $0x15c] sm:$0xf]
        %v3738 = vld [vmem:[#allocation14 + $0x160] sm:$0xf]
        %v3739 = vld [vmem:[#allocation14 + $0x164] sm:$0xf]
        %v3740 = vld [vmem:[#allocation14 + $0x168] sm:$0xf]
        %v3741 = vld [vmem:[#allocation14 + $0x16c] sm:$0xf]
        %v3742 = vld [vmem:[#allocation14 + $0x170] sm:$0xf]
        %v3743 = vld [vmem:[#allocation14 + $0x174] sm:$0xf]
        %v3744 = vld [vmem:[#allocation14 + $0x178] sm:$0xf]
        %v3745 = vld [vmem:[#allocation14 + $0x17c] sm:$0xf]
        %v3746 = vld [vmem:[%s11] sm:$0x1]
        %v3748 = vlaneseq
        %v3749 = vshrl.u32 %v3748, 7
        %v3750 = vsub.s32 0, %v3749
        %v3751 = vrot.slane %v3746, %v3750
        %v3849 = vunpack.c.l.b16 %v3650
        %v3850 = vunpack.c.l.b16 %v3651
        %v3851 = vunpack.c.l.b16 %v3652
        %v3852 = vunpack.c.l.b16 %v3653
        %v3853 = vunpack.c.l.b16 %v3654
        %v3854 = vunpack.c.l.b16 %v3655
        %v3855 = vunpack.c.l.b16 %v3656
        %v3856 = vunpack.c.l.b16 %v3657
        %v3857 = vunpack.c.l.b16 %v3658
        %v3858 = vunpack.c.l.b16 %v3659
        %v3859 = vunpack.c.l.b16 %v3660
        %v3860 = vunpack.c.l.b16 %v3661
        %v3861 = vunpack.c.l.b16 %v3662
        %v3862 = vunpack.c.l.b16 %v3663
        %v3863 = vunpack.c.l.b16 %v3664
        %v3864 = vunpack.c.l.b16 %v3665
        %v3865 = vunpack.c.l.b16 %v3666
        %v3866 = vunpack.c.l.b16 %v3667
        %v3867 = vunpack.c.l.b16 %v3668
        %v3868 = vunpack.c.l.b16 %v3669
        %v3869 = vunpack.c.l.b16 %v3670
        %v3870 = vunpack.c.l.b16 %v3671
        %v3871 = vunpack.c.l.b16 %v3672
        %v3872 = vunpack.c.l.b16 %v3673
        %v3873 = vunpack.c.l.b16 %v3674
        %v3874 = vunpack.c.l.b16 %v3675
        %v3875 = vunpack.c.l.b16 %v3676
        %v3876 = vunpack.c.l.b16 %v3677
        %v3877 = vunpack.c.l.b16 %v3678
        %v3878 = vunpack.c.l.b16 %v3679
        %v3879 = vunpack.c.l.b16 %v3680
        %v3880 = vunpack.c.l.b16 %v3681
        %v3881 = vunpack.c.l.b16 %v3682
        %v3882 = vunpack.c.l.b16 %v3683
        %v3883 = vunpack.c.l.b16 %v3684
        %v3884 = vunpack.c.l.b16 %v3685
        %v3885 = vunpack.c.l.b16 %v3686
        %v3886 = vunpack.c.l.b16 %v3687
        %v3887 = vunpack.c.l.b16 %v3688
        %v3888 = vunpack.c.l.b16 %v3689
        %v3889 = vunpack.c.l.b16 %v3690
        %v3890 = vunpack.c.l.b16 %v3691
        %v3891 = vunpack.c.l.b16 %v3692
        %v3892 = vunpack.c.l.b16 %v3693
        %v3893 = vunpack.c.l.b16 %v3694
        %v3894 = vunpack.c.l.b16 %v3695
        %v3895 = vunpack.c.l.b16 %v3696
        %v3896 = vunpack.c.l.b16 %v3697
        %v3897 = vunpack.c.l.b16 %v3698
        %v3898 = vunpack.c.l.b16 %v3699
        %v3899 = vunpack.c.l.b16 %v3700
        %v3900 = vunpack.c.l.b16 %v3701
        %v3901 = vunpack.c.l.b16 %v3702
        %v3902 = vunpack.c.l.b16 %v3703
        %v3903 = vunpack.c.l.b16 %v3704
        %v3904 = vunpack.c.l.b16 %v3705
        %v3905 = vunpack.c.l.b16 %v3706
        %v3906 = vunpack.c.l.b16 %v3707
        %v3907 = vunpack.c.l.b16 %v3708
        %v3908 = vunpack.c.l.b16 %v3709
        %v3909 = vunpack.c.l.b16 %v3710
        %v3910 = vunpack.c.l.b16 %v3711
        %v3911 = vunpack.c.l.b16 %v3712
        %v3912 = vunpack.c.l.b16 %v3713
        %v3913 = vunpack.c.l.b16 %v3714
        %v3914 = vunpack.c.l.b16 %v3715
        %v3915 = vunpack.c.l.b16 %v3716
        %v3916 = vunpack.c.l.b16 %v3717
        %v3917 = vunpack.c.l.b16 %v3718
        %v3918 = vunpack.c.l.b16 %v3719
        %v3919 = vunpack.c.l.b16 %v3720
        %v3920 = vunpack.c.l.b16 %v3721
        %v3921 = vunpack.c.l.b16 %v3722
        %v3922 = vunpack.c.l.b16 %v3723
        %v3923 = vunpack.c.l.b16 %v3724
        %v3924 = vunpack.c.l.b16 %v3725
        %v3925 = vunpack.c.l.b16 %v3726
        %v3926 = vunpack.c.l.b16 %v3727
        %v3927 = vunpack.c.l.b16 %v3728
        %v3928 = vunpack.c.l.b16 %v3729
        %v3929 = vunpack.c.l.b16 %v3730
        %v3930 = vunpack.c.l.b16 %v3731
        %v3931 = vunpack.c.l.b16 %v3732
        %v3932 = vunpack.c.l.b16 %v3733
        %v3933 = vunpack.c.l.b16 %v3734
        %v3934 = vunpack.c.l.b16 %v3735
        %v3935 = vunpack.c.l.b16 %v3736
        %v3936 = vunpack.c.l.b16 %v3737
        %v3937 = vunpack.c.l.b16 %v3738
        %v3938 = vunpack.c.l.b16 %v3739
        %v3939 = vunpack.c.l.b16 %v3740
        %v3940 = vunpack.c.l.b16 %v3741
        %v3941 = vunpack.c.l.b16 %v3742
        %v3942 = vunpack.c.l.b16 %v3743
        %v3943 = vunpack.c.l.b16 %v3744
        %v3944 = vunpack.c.l.b16 %v3745
        %v3945 = vpack.c.b16 %v3850, %v3849
        %v3946 = vpack.c.b16 %v3852, %v3851
        %v3947 = vpack.c.b16 %v3854, %v3853
        %v3948 = vpack.c.b16 %v3856, %v3855
        %v3949 = vpack.c.b16 %v3858, %v3857
        %v3950 = vpack.c.b16 %v3860, %v3859
        %v3951 = vpack.c.b16 %v3862, %v3861
        %v3952 = vpack.c.b16 %v3864, %v3863
        %v3953 = vpack.c.b16 %v3866, %v3865
        %v3954 = vpack.c.b16 %v3868, %v3867
        %v3955 = vpack.c.b16 %v3870, %v3869
        %v3956 = vpack.c.b16 %v3872, %v3871
        %v3957 = vpack.c.b16 %v3874, %v3873
        %v3958 = vpack.c.b16 %v3876, %v3875
        %v3959 = vpack.c.b16 %v3878, %v3877
        %v3960 = vpack.c.b16 %v3880, %v3879
        %v3961 = vpack.c.b16 %v3882, %v3881
        %v3962 = vpack.c.b16 %v3884, %v3883
        %v3963 = vpack.c.b16 %v3886, %v3885
        %v3964 = vpack.c.b16 %v3888, %v3887
        %v3965 = vpack.c.b16 %v3890, %v3889
        %v3966 = vpack.c.b16 %v3892, %v3891
        %v3967 = vpack.c.b16 %v3894, %v3893
        %v3968 = vpack.c.b16 %v3896, %v3895
        %v3969 = vpack.c.b16 %v3898, %v3897
        %v3970 = vpack.c.b16 %v3900, %v3899
        %v3971 = vpack.c.b16 %v3902, %v3901
        %v3972 = vpack.c.b16 %v3904, %v3903
        %v3973 = vpack.c.b16 %v3906, %v3905
        %v3974 = vpack.c.b16 %v3908, %v3907
        %v3975 = vpack.c.b16 %v3910, %v3909
        %v3976 = vpack.c.b16 %v3912, %v3911
        %v3977 = vpack.c.b16 %v3914, %v3913
        %v3978 = vpack.c.b16 %v3916, %v3915
        %v3979 = vpack.c.b16 %v3918, %v3917
        %v3980 = vpack.c.b16 %v3920, %v3919
        %v3981 = vpack.c.b16 %v3922, %v3921
        %v3982 = vpack.c.b16 %v3924, %v3923
        %v3983 = vpack.c.b16 %v3926, %v3925
        %v3984 = vpack.c.b16 %v3928, %v3927
        %v3985 = vpack.c.b16 %v3930, %v3929
        %v3986 = vpack.c.b16 %v3932, %v3931
        %v3987 = vpack.c.b16 %v3934, %v3933
        %v3988 = vpack.c.b16 %v3936, %v3935
        %v3989 = vpack.c.b16 %v3938, %v3937
        %v3990 = vpack.c.b16 %v3940, %v3939
        %v3991 = vpack.c.b16 %v3942, %v3941
        %v3992 = vpack.c.b16 %v3944, %v3943
        %4041 = vmatprep.subr.bf16.mxu0 0
        %4042 = vmatpush1.bf16.msra.mxu0 %v3952
        %4043 = vmatprep.subr.bf16.mxu0 0
        %4044 = vmatpush1.bf16.msra.mxu0 %v3951
        %4045 = vmatprep.subr.bf16.mxu0 0
        %4046 = vmatpush1.bf16.msra.mxu0 %v3950
        %4047 = vmatprep.subr.bf16.mxu0 0
        %4048 = vmatpush1.bf16.msra.mxu0 %v3949
        %4049 = vmatprep.subr.bf16.mxu0 0
        %4050 = vmatpush1.bf16.msra.mxu0 %v3948
        %4051 = vmatprep.subr.bf16.mxu0 0
        %4052 = vmatpush1.bf16.msra.mxu0 %v3947
        %4053 = vmatprep.subr.bf16.mxu0 0
        %4054 = vmatpush1.bf16.msra.mxu0 %v3946
        %4055 = vmatprep.subr.bf16.mxu0 0
        %4056 = vmatpush1.bf16.msra.mxu0 %v3945
        %4057 = vmatprep.subr.bf16.mxu0 0
        %4058 = vmatpush2.bf16.msra.mxu0 %v3960
        %4059 = vmatprep.subr.bf16.mxu0 0
        %4060 = vmatpush2.bf16.msra.mxu0 %v3959
        %4061 = vmatprep.subr.bf16.mxu0 0
        %4062 = vmatpush2.bf16.msra.mxu0 %v3958
        %4063 = vmatprep.subr.bf16.mxu0 0
        %4064 = vmatpush2.bf16.msra.mxu0 %v3957
        %4065 = vmatprep.subr.bf16.mxu0 0
        %4066 = vmatpush2.bf16.msra.mxu0 %v3956
        %4067 = vmatprep.subr.bf16.mxu0 0
        %4068 = vmatpush2.bf16.msra.mxu0 %v3955
        %4069 = vmatprep.subr.bf16.mxu0 0
        %4070 = vmatpush2.bf16.msra.mxu0 %v3954
        %4071 = vmatprep.subr.bf16.mxu0 0
        %4072 = vmatpush2.bf16.msra.mxu0 %v3953
        %4073 = vmatprep.mubr.bf16.mxu0 %v3603
        %4074 = vmatmul.mubr.bf16.gmra.mxu0 %v3602
        %v4075 = vpop.f32.mrf.mxu0
        %v4076 = vadd.f32 %v3751, %v4075
        %v4077 = vpop.f32.mrf.mxu0
        %v4078 = vpop.f32.mrf.mxu0
        %v4079 = vadd.f32 %v3751, %v4078
        %v4080 = vpop.f32.mrf.mxu0
        %4081 = vmatprep.mubr.bf16.mxu0 %v3605
        %4082 = vmatmul.mubr.bf16.gmra.mxu0 %v3604
        %v4083 = vpop.f32.mrf.mxu0
        %v4084 = vadd.f32 %v3751, %v4083
        %v4085 = vpop.f32.mrf.mxu0
        %v4086 = vpop.f32.mrf.mxu0
        %v4087 = vadd.f32 %v3751, %v4086
        %v4088 = vpop.f32.mrf.mxu0
        %4089 = vmatprep.mubr.bf16.mxu0 %v3607
        %4090 = vmatmul.mubr.bf16.gmra.mxu0 %v3606
        %v4091 = vpop.f32.mrf.mxu0
        %v4092 = vadd.f32 %v3751, %v4091
        %v4093 = vpop.f32.mrf.mxu0
        %v4094 = vpop.f32.mrf.mxu0
        %v4095 = vadd.f32 %v3751, %v4094
        %v4096 = vpop.f32.mrf.mxu0
        %4097 = vmatprep.mubr.bf16.mxu0 %v3609
        %4098 = vmatmul.mubr.bf16.gmra.mxu0 %v3608
        %v4099 = vpop.f32.mrf.mxu0
        %v4100 = vadd.f32 %v3751, %v4099
        %v4101 = vpop.f32.mrf.mxu0
        %v4102 = vpop.f32.mrf.mxu0
        %v4103 = vadd.f32 %v3751, %v4102
        %v4104 = vpop.f32.mrf.mxu0
        %4105 = vmatprep.mubr.bf16.mxu0 %v3611
        %4106 = vmatmul.mubr.bf16.gmra.mxu0 %v3610
        %v4107 = vpop.f32.mrf.mxu0
        %v4108 = vadd.f32 %v3751, %v4107
        %v4109 = vpop.f32.mrf.mxu0
        %v4110 = vpop.f32.mrf.mxu0
        %v4111 = vadd.f32 %v3751, %v4110
        %v4112 = vpop.f32.mrf.mxu0
        %4113 = vmatprep.mubr.bf16.mxu0 %v3613
        %4114 = vmatmul.mubr.bf16.gmra.mxu0 %v3612
        %v4115 = vpop.f32.mrf.mxu0
        %v4116 = vadd.f32 %v3751, %v4115
        %v4117 = vpop.f32.mrf.mxu0
        %v4118 = vpop.f32.mrf.mxu0
        %v4119 = vadd.f32 %v3751, %v4118
        %v4120 = vpop.f32.mrf.mxu0
        %4121 = vmatprep.mubr.bf16.mxu0 %v3615
        %4122 = vmatmul.mubr.bf16.gmra.mxu0 %v3614
        %v4123 = vpop.f32.mrf.mxu0
        %v4124 = vadd.f32 %v3751, %v4123
        %v4125 = vpop.f32.mrf.mxu0
        %v4126 = vpop.f32.mrf.mxu0
        %v4127 = vadd.f32 %v3751, %v4126
        %v4128 = vpop.f32.mrf.mxu0
        %4129 = vmatprep.mubr.bf16.mxu0 %v3617
        %4130 = vmatmul.mubr.bf16.gmra.mxu0 %v3616
        %v4131 = vpop.f32.mrf.mxu0
        %v4132 = vadd.f32 %v3751, %v4131
        %v4133 = vpop.f32.mrf.mxu0
        %v4134 = vpop.f32.mrf.mxu0
        %v4135 = vadd.f32 %v3751, %v4134
        %v4136 = vpop.f32.mrf.mxu0
        %4137 = vdwg.mxu0
        %4138 = vmatprep.subr.bf16.mxu0 0
        %4139 = vmatpush1.bf16.msra.mxu0 %v3968
        %4140 = vmatprep.subr.bf16.mxu0 0
        %4141 = vmatpush1.bf16.msra.mxu0 %v3967
        %4142 = vmatprep.subr.bf16.mxu0 0
        %4143 = vmatpush1.bf16.msra.mxu0 %v3966
        %4144 = vmatprep.subr.bf16.mxu0 0
        %4145 = vmatpush1.bf16.msra.mxu0 %v3965
        %4146 = vmatprep.subr.bf16.mxu0 0
        %4147 = vmatpush1.bf16.msra.mxu0 %v3964
        %4148 = vmatprep.subr.bf16.mxu0 0
        %4149 = vmatpush1.bf16.msra.mxu0 %v3963
        %4150 = vmatprep.subr.bf16.mxu0 0
        %4151 = vmatpush1.bf16.msra.mxu0 %v3962
        %4152 = vmatprep.subr.bf16.mxu0 0
        %4153 = vmatpush1.bf16.msra.mxu0 %v3961
        %4154 = vmatprep.subr.bf16.mxu0 0
        %4155 = vmatpush2.bf16.msra.mxu0 %v3976
        %4156 = vmatprep.subr.bf16.mxu0 0
        %4157 = vmatpush2.bf16.msra.mxu0 %v3975
        %4158 = vmatprep.subr.bf16.mxu0 0
        %4159 = vmatpush2.bf16.msra.mxu0 %v3974
        %4160 = vmatprep.subr.bf16.mxu0 0
        %4161 = vmatpush2.bf16.msra.mxu0 %v3973
        %4162 = vmatprep.subr.bf16.mxu0 0
        %4163 = vmatpush2.bf16.msra.mxu0 %v3972
        %4164 = vmatprep.subr.bf16.mxu0 0
        %4165 = vmatpush2.bf16.msra.mxu0 %v3971
        %4166 = vmatprep.subr.bf16.mxu0 0
        %4167 = vmatpush2.bf16.msra.mxu0 %v3970
        %4168 = vmatprep.subr.bf16.mxu0 0
        %4169 = vmatpush2.bf16.msra.mxu0 %v3969
        %4170 = vmatprep.mubr.bf16.mxu0 %v3619
        %4171 = vmatmul.mubr.bf16.gmra.mxu0 %v3618
        %v4172 = vpop.f32.mrf.mxu0
        %v4173 = vadd.f32 %v4076, %v4172
        %v4174 = vpop.f32.mrf.mxu0
        %v4175 = vpop.f32.mrf.mxu0
        %v4176 = vadd.f32 %v4079, %v4175
        %v4177 = vpop.f32.mrf.mxu0
        %4178 = vmatprep.mubr.bf16.mxu0 %v3621
        %4179 = vmatmul.mubr.bf16.gmra.mxu0 %v3620
        %v4180 = vpop.f32.mrf.mxu0
        %v4181 = vadd.f32 %v4084, %v4180
        %v4182 = vpop.f32.mrf.mxu0
        %v4183 = vpop.f32.mrf.mxu0
        %v4184 = vadd.f32 %v4087, %v4183
        %v4185 = vpop.f32.mrf.mxu0
        %4186 = vmatprep.mubr.bf16.mxu0 %v3623
        %4187 = vmatmul.mubr.bf16.gmra.mxu0 %v3622
        %v4188 = vpop.f32.mrf.mxu0
        %v4189 = vadd.f32 %v4092, %v4188
        %v4190 = vpop.f32.mrf.mxu0
        %v4191 = vpop.f32.mrf.mxu0
        %v4192 = vadd.f32 %v4095, %v4191
        %v4193 = vpop.f32.mrf.mxu0
        %4194 = vmatprep.mubr.bf16.mxu0 %v3625
        %4195 = vmatmul.mubr.bf16.gmra.mxu0 %v3624
        %v4196 = vpop.f32.mrf.mxu0
        %v4197 = vadd.f32 %v4100, %v4196
        %v4198 = vpop.f32.mrf.mxu0
        %v4199 = vpop.f32.mrf.mxu0
        %v4200 = vadd.f32 %v4103, %v4199
        %v4201 = vpop.f32.mrf.mxu0
        %4202 = vmatprep.mubr.bf16.mxu0 %v3627
        %4203 = vmatmul.mubr.bf16.gmra.mxu0 %v3626
        %v4204 = vpop.f32.mrf.mxu0
        %v4205 = vadd.f32 %v4108, %v4204
        %v4206 = vpop.f32.mrf.mxu0
        %v4207 = vpop.f32.mrf.mxu0
        %v4208 = vadd.f32 %v4111, %v4207
        %v4209 = vpop.f32.mrf.mxu0
        %4210 = vmatprep.mubr.bf16.mxu0 %v3629
        %4211 = vmatmul.mubr.bf16.gmra.mxu0 %v3628
        %v4212 = vpop.f32.mrf.mxu0
        %v4213 = vadd.f32 %v4116, %v4212
        %v4214 = vpop.f32.mrf.mxu0
        %v4215 = vpop.f32.mrf.mxu0
        %v4216 = vadd.f32 %v4119, %v4215
        %v4217 = vpop.f32.mrf.mxu0
        %4218 = vmatprep.mubr.bf16.mxu0 %v3631
        %4219 = vmatmul.mubr.bf16.gmra.mxu0 %v3630
        %v4220 = vpop.f32.mrf.mxu0
        %v4221 = vadd.f32 %v4124, %v4220
        %v4222 = vpop.f32.mrf.mxu0
        %v4223 = vpop.f32.mrf.mxu0
        %v4224 = vadd.f32 %v4127, %v4223
        %v4225 = vpop.f32.mrf.mxu0
        %4226 = vmatprep.mubr.bf16.mxu0 %v3633
        %4227 = vmatmul.mubr.bf16.gmra.mxu0 %v3632
        %v4228 = vpop.f32.mrf.mxu0
        %v4229 = vadd.f32 %v4132, %v4228
        %v4230 = vpop.f32.mrf.mxu0
        %v4231 = vpop.f32.mrf.mxu0
        %v4232 = vadd.f32 %v4135, %v4231
        %v4233 = vpop.f32.mrf.mxu0
        %4234 = vdwg.mxu0
        %4235 = vmatprep.subr.bf16.mxu0 0
        %4236 = vmatpush1.bf16.msra.mxu0 %v3984
        %4237 = vmatprep.subr.bf16.mxu0 0
        %4238 = vmatpush1.bf16.msra.mxu0 %v3983
        %4239 = vmatprep.subr.bf16.mxu0 0
        %4240 = vmatpush1.bf16.msra.mxu0 %v3982
        %4241 = vmatprep.subr.bf16.mxu0 0
        %4242 = vmatpush1.bf16.msra.mxu0 %v3981
        %4243 = vmatprep.subr.bf16.mxu0 0
        %4244 = vmatpush1.bf16.msra.mxu0 %v3980
        %4245 = vmatprep.subr.bf16.mxu0 0
        %4246 = vmatpush1.bf16.msra.mxu0 %v3979
        %4247 = vmatprep.subr.bf16.mxu0 0
        %4248 = vmatpush1.bf16.msra.mxu0 %v3978
        %4249 = vmatprep.subr.bf16.mxu0 0
        %4250 = vmatpush1.bf16.msra.mxu0 %v3977
        %4251 = vmatprep.subr.bf16.mxu0 0
        %4252 = vmatpush2.bf16.msra.mxu0 %v3992
        %4253 = vmatprep.subr.bf16.mxu0 0
        %4254 = vmatpush2.bf16.msra.mxu0 %v3991
        %4255 = vmatprep.subr.bf16.mxu0 0
        %4256 = vmatpush2.bf16.msra.mxu0 %v3990
        %4257 = vmatprep.subr.bf16.mxu0 0
        %4258 = vmatpush2.bf16.msra.mxu0 %v3989
        %4259 = vmatprep.subr.bf16.mxu0 0
        %4260 = vmatpush2.bf16.msra.mxu0 %v3988
        %4261 = vmatprep.subr.bf16.mxu0 0
        %4262 = vmatpush2.bf16.msra.mxu0 %v3987
        %4263 = vmatprep.subr.bf16.mxu0 0
        %4264 = vmatpush2.bf16.msra.mxu0 %v3986
        %4265 = vmatprep.subr.bf16.mxu0 0
        %4266 = vmatpush2.bf16.msra.mxu0 %v3985
        %4267 = vmatprep.mubr.bf16.mxu0 %v3635
        %4268 = vmatmul.mubr.bf16.gmra.mxu0 %v3634
        %v4269 = vpop.f32.mrf.mxu0
        %v4270 = vadd.f32 %v4173, %v4269
        %v4271 = vpop.f32.mrf.mxu0
        %v4272 = vpop.f32.mrf.mxu0
        %v4273 = vadd.f32 %v4176, %v4272
        %v4274 = vpop.f32.mrf.mxu0
        %4275 = vmatprep.mubr.bf16.mxu0 %v3637
        %4276 = vmatmul.mubr.bf16.gmra.mxu0 %v3636
        %v4277 = vpop.f32.mrf.mxu0
        %v4278 = vadd.f32 %v4181, %v4277
        %v4279 = vpop.f32.mrf.mxu0
        %v4280 = vpop.f32.mrf.mxu0
        %v4281 = vadd.f32 %v4184, %v4280
        %v4282 = vpop.f32.mrf.mxu0
        %4283 = vmatprep.mubr.bf16.mxu0 %v3639
        %4284 = vmatmul.mubr.bf16.gmra.mxu0 %v3638
        %v4285 = vpop.f32.mrf.mxu0
        %v4286 = vadd.f32 %v4189, %v4285
        %v4287 = vpop.f32.mrf.mxu0
        %v4288 = vpop.f32.mrf.mxu0
        %v4289 = vadd.f32 %v4192, %v4288
        %v4290 = vpop.f32.mrf.mxu0
        %4291 = vmatprep.mubr.bf16.mxu0 %v3641
        %4292 = vmatmul.mubr.bf16.gmra.mxu0 %v3640
        %v4293 = vpop.f32.mrf.mxu0
        %v4294 = vadd.f32 %v4197, %v4293
        %v4295 = vpop.f32.mrf.mxu0
        %v4296 = vpop.f32.mrf.mxu0
        %v4297 = vadd.f32 %v4200, %v4296
        %v4298 = vpop.f32.mrf.mxu0
        %4299 = vmatprep.mubr.bf16.mxu0 %v3643
        %4300 = vmatmul.mubr.bf16.gmra.mxu0 %v3642
        %v4301 = vpop.f32.mrf.mxu0
        %v4302 = vadd.f32 %v4205, %v4301
        %v4303 = vpop.f32.mrf.mxu0
        %v4304 = vpop.f32.mrf.mxu0
        %v4305 = vadd.f32 %v4208, %v4304
        %v4306 = vpop.f32.mrf.mxu0
        %4307 = vmatprep.mubr.bf16.mxu0 %v3645
        %4308 = vmatmul.mubr.bf16.gmra.mxu0 %v3644
        %v4309 = vpop.f32.mrf.mxu0
        %v4310 = vadd.f32 %v4213, %v4309
        %v4311 = vpop.f32.mrf.mxu0
        %v4312 = vpop.f32.mrf.mxu0
        %v4313 = vadd.f32 %v4216, %v4312
        %v4314 = vpop.f32.mrf.mxu0
        %4315 = vmatprep.mubr.bf16.mxu0 %v3647
        %4316 = vmatmul.mubr.bf16.gmra.mxu0 %v3646
        %v4317 = vpop.f32.mrf.mxu0
        %v4318 = vadd.f32 %v4221, %v4317
        %v4319 = vpop.f32.mrf.mxu0
        %v4320 = vpop.f32.mrf.mxu0
        %v4321 = vadd.f32 %v4224, %v4320
        %v4322 = vpop.f32.mrf.mxu0
        %4323 = vmatprep.mubr.bf16.mxu0 %v3649
        %4324 = vmatmul.mubr.bf16.gmra.mxu0 %v3648
        %v4325 = vpop.f32.mrf.mxu0
        %v4326 = vadd.f32 %v4229, %v4325
        %v4327 = vpop.f32.mrf.mxu0
        %v4328 = vpop.f32.mrf.mxu0
        %v4329 = vadd.f32 %v4232, %v4328
        %v4330 = vpop.f32.mrf.mxu0
        %4331 = vdwg.mxu0
        %vm4332 = vcmp.gt.f32.partialorder %v4270, 0.0
        %vm4333 = vcmp.gt.f32.partialorder %v4273, 0.0
        %vm4334 = vcmp.gt.f32.partialorder %v4278, 0.0
        %vm4335 = vcmp.gt.f32.partialorder %v4281, 0.0
        %vm4336 = vcmp.gt.f32.partialorder %v4286, 0.0
        %vm4337 = vcmp.gt.f32.partialorder %v4289, 0.0
        %vm4338 = vcmp.gt.f32.partialorder %v4294, 0.0
        %vm4339 = vcmp.gt.f32.partialorder %v4297, 0.0
        %vm4340 = vcmp.gt.f32.partialorder %v4302, 0.0
        %vm4341 = vcmp.gt.f32.partialorder %v4305, 0.0
        %vm4342 = vcmp.gt.f32.partialorder %v4310, 0.0
        %vm4343 = vcmp.gt.f32.partialorder %v4313, 0.0
        %vm4344 = vcmp.gt.f32.partialorder %v4318, 0.0
        %vm4345 = vcmp.gt.f32.partialorder %v4321, 0.0
        %vm4346 = vcmp.gt.f32.partialorder %v4326, 0.0
        %vm4347 = vcmp.gt.f32.partialorder %v4329, 0.0
        %v4348 = vmul.f32 %v4270, 0.01
        %v4349 = vmul.f32 %v4273, 0.01
        %v4350 = vmul.f32 %v4278, 0.01
        %v4351 = vmul.f32 %v4281, 0.01
        %v4352 = vmul.f32 %v4286, 0.01
        %v4353 = vmul.f32 %v4289, 0.01
        %v4354 = vmul.f32 %v4294, 0.01
        %v4355 = vmul.f32 %v4297, 0.01
        %v4356 = vmul.f32 %v4302, 0.01
        %v4357 = vmul.f32 %v4305, 0.01
        %v4358 = vmul.f32 %v4310, 0.01
        %v4359 = vmul.f32 %v4313, 0.01
        %v4360 = vmul.f32 %v4318, 0.01
        %v4361 = vmul.f32 %v4321, 0.01
        %v4362 = vmul.f32 %v4326, 0.01
        %v4363 = vmul.f32 %v4329, 0.01
        %v4364 = vsel %vm4332, %v4270, %v4348
        %v4365 = vsel %vm4333, %v4273, %v4349
        %v4366 = vsel %vm4334, %v4278, %v4350
        %v4367 = vsel %vm4335, %v4281, %v4351
        %v4368 = vsel %vm4336, %v4286, %v4352
        %v4369 = vsel %vm4337, %v4289, %v4353
        %v4370 = vsel %vm4338, %v4294, %v4354
        %v4371 = vsel %vm4339, %v4297, %v4355
        %v4372 = vsel %vm4340, %v4302, %v4356
        %v4373 = vsel %vm4341, %v4305, %v4357
        %v4374 = vsel %vm4342, %v4310, %v4358
        %v4375 = vsel %vm4343, %v4313, %v4359
        %v4376 = vsel %vm4344, %v4318, %v4360
        %v4377 = vsel %vm4345, %v4321, %v4361
        %v4378 = vsel %vm4346, %v4326, %v4362
        %v4379 = vsel %vm4347, %v4329, %v4363
        %v4380 = vpack.c.bf16 %v4365, %v4364
        %v4381 = vpack.c.bf16 %v4367, %v4366
        %v4382 = vpack.c.bf16 %v4369, %v4368
        %v4383 = vpack.c.bf16 %v4371, %v4370
        %v4384 = vpack.c.bf16 %v4373, %v4372
        %v4385 = vpack.c.bf16 %v4375, %v4374
        %v4386 = vpack.c.bf16 %v4377, %v4376
        %v4387 = vpack.c.bf16 %v4379, %v4378
        %v4388 = vld [vmem:[#allocation16] sm:$0xf]
        %v4389 = vld [vmem:[#allocation16 + $0x4] sm:$0xf]
        %v4390 = vld [vmem:[#allocation16 + $0x8] sm:$0xf]
        %v4391 = vld [vmem:[#allocation16 + $0xc] sm:$0xf]
        %v4392 = vld [vmem:[#allocation16 + $0x10] sm:$0xf]
        %v4393 = vld [vmem:[#allocation16 + $0x14] sm:$0xf]
        %v4394 = vld [vmem:[#allocation16 + $0x18] sm:$0xf]
        %v4395 = vld [vmem:[#allocation16 + $0x1c] sm:$0xf]
        %v4396 = vld [vmem:[#allocation16 + $0x20] sm:$0xf]
        %v4397 = vld [vmem:[#allocation16 + $0x24] sm:$0xf]
        %v4398 = vld [vmem:[#allocation16 + $0x28] sm:$0xf]
        %v4399 = vld [vmem:[#allocation16 + $0x2c] sm:$0xf]
        %v4400 = vld [vmem:[#allocation16 + $0x30] sm:$0xf]
        %v4401 = vld [vmem:[#allocation16 + $0x34] sm:$0xf]
        %v4402 = vld [vmem:[#allocation16 + $0x38] sm:$0xf]
        %v4403 = vld [vmem:[#allocation16 + $0x3c] sm:$0xf]
        %v4404 = vld [vmem:[%s13] sm:$0x1]
        %v4406 = vlaneseq
        %v4407 = vshrl.u32 %v4406, 7
        %v4408 = vsub.s32 0, %v4407
        %v4409 = vrot.slane %v4404, %v4408
        %v4427 = vunpack.c.l.b16 %v4388
        %v4428 = vunpack.c.l.b16 %v4389
        %v4429 = vunpack.c.l.b16 %v4390
        %v4430 = vunpack.c.l.b16 %v4391
        %v4431 = vunpack.c.l.b16 %v4392
        %v4432 = vunpack.c.l.b16 %v4393
        %v4433 = vunpack.c.l.b16 %v4394
        %v4434 = vunpack.c.l.b16 %v4395
        %v4435 = vunpack.c.l.b16 %v4396
        %v4436 = vunpack.c.l.b16 %v4397
        %v4437 = vunpack.c.l.b16 %v4398
        %v4438 = vunpack.c.l.b16 %v4399
        %v4439 = vunpack.c.l.b16 %v4400
        %v4440 = vunpack.c.l.b16 %v4401
        %v4441 = vunpack.c.l.b16 %v4402
        %v4442 = vunpack.c.l.b16 %v4403
        %v4443 = vpack.c.b16 %v4428, %v4427
        %v4444 = vpack.c.b16 %v4430, %v4429
        %v4445 = vpack.c.b16 %v4432, %v4431
        %v4446 = vpack.c.b16 %v4434, %v4433
        %v4447 = vpack.c.b16 %v4436, %v4435
        %v4448 = vpack.c.b16 %v4438, %v4437
        %v4449 = vpack.c.b16 %v4440, %v4439
        %v4450 = vpack.c.b16 %v4442, %v4441
        %4459 = vmatprep.subr.bf16.mxu0 0
        %4460 = vmatpush1.bf16.msra.mxu0 %v4450
        %4461 = vmatprep.subr.bf16.mxu0 0
        %4462 = vmatpush1.bf16.msra.mxu0 %v4449
        %4463 = vmatprep.subr.bf16.mxu0 0
        %4464 = vmatpush1.bf16.msra.mxu0 %v4448
        %4465 = vmatprep.subr.bf16.mxu0 0
        %4466 = vmatpush1.bf16.msra.mxu0 %v4447
        %4467 = vmatprep.subr.bf16.mxu0 0
        %4468 = vmatpush1.bf16.msra.mxu0 %v4446
        %4469 = vmatprep.subr.bf16.mxu0 0
        %4470 = vmatpush1.bf16.msra.mxu0 %v4445
        %4471 = vmatprep.subr.bf16.mxu0 0
        %4472 = vmatpush1.bf16.msra.mxu0 %v4444
        %4473 = vmatprep.subr.bf16.mxu0 0
        %4474 = vmatpush1.bf16.msra.mxu0 %v4443
        %4475 = vmatprep.subr.bf16.mxu0 0
        %4476 = vmatpush2.bf16.msra.mxu0 0
        %4477 = vmatprep.subr.bf16.mxu0 0
        %4478 = vmatpush2.bf16.msra.mxu0 0
        %4479 = vmatprep.subr.bf16.mxu0 0
        %4480 = vmatpush2.bf16.msra.mxu0 0
        %4481 = vmatprep.subr.bf16.mxu0 0
        %4482 = vmatpush2.bf16.msra.mxu0 0
        %4483 = vmatprep.subr.bf16.mxu0 0
        %4484 = vmatpush2.bf16.msra.mxu0 0
        %4485 = vmatprep.subr.bf16.mxu0 0
        %4486 = vmatpush2.bf16.msra.mxu0 0
        %4487 = vmatprep.subr.bf16.mxu0 0
        %4488 = vmatpush2.bf16.msra.mxu0 0
        %4489 = vmatprep.subr.bf16.mxu0 0
        %4490 = vmatpush2.bf16.msra.mxu0 0
        %4491 = vmatprep.mubr.bf16.mxu0 0
        %4492 = vmatmul.mubr.bf16.gmra.mxu0 %v4380
        %v4493 = vpop.f32.mrf.mxu0
        %v4494 = vadd.f32 %v4409, %v4493
        %v4495 = vpop.f32.mrf.mxu0
        %v4496 = vpop.f32.mrf.mxu0
        %v4497 = vadd.f32 %v4409, %v4496
        %v4498 = vpop.f32.mrf.mxu0
        %4499 = vmatprep.mubr.bf16.mxu0 0
        %4500 = vmatmul.mubr.bf16.gmra.mxu0 %v4381
        %v4501 = vpop.f32.mrf.mxu0
        %v4502 = vadd.f32 %v4409, %v4501
        %v4503 = vpop.f32.mrf.mxu0
        %v4504 = vpop.f32.mrf.mxu0
        %v4505 = vadd.f32 %v4409, %v4504
        %v4506 = vpop.f32.mrf.mxu0
        %4507 = vmatprep.mubr.bf16.mxu0 0
        %4508 = vmatmul.mubr.bf16.gmra.mxu0 %v4382
        %v4509 = vpop.f32.mrf.mxu0
        %v4510 = vadd.f32 %v4409, %v4509
        %v4511 = vpop.f32.mrf.mxu0
        %v4512 = vpop.f32.mrf.mxu0
        %v4513 = vadd.f32 %v4409, %v4512
        %v4514 = vpop.f32.mrf.mxu0
        %4515 = vmatprep.mubr.bf16.mxu0 0
        %4516 = vmatmul.mubr.bf16.gmra.mxu0 %v4383
        %v4517 = vpop.f32.mrf.mxu0
        %v4518 = vadd.f32 %v4409, %v4517
        %v4519 = vpop.f32.mrf.mxu0
        %v4520 = vpop.f32.mrf.mxu0
        %v4521 = vadd.f32 %v4409, %v4520
        %v4522 = vpop.f32.mrf.mxu0
        %4523 = vmatprep.mubr.bf16.mxu0 0
        %4524 = vmatmul.mubr.bf16.gmra.mxu0 %v4384
        %v4525 = vpop.f32.mrf.mxu0
        %v4526 = vadd.f32 %v4409, %v4525
        %v4527 = vpop.f32.mrf.mxu0
        %v4528 = vpop.f32.mrf.mxu0
        %v4529 = vadd.f32 %v4409, %v4528
        %v4530 = vpop.f32.mrf.mxu0
        %4531 = vmatprep.mubr.bf16.mxu0 0
        %4532 = vmatmul.mubr.bf16.gmra.mxu0 %v4385
        %v4533 = vpop.f32.mrf.mxu0
        %v4534 = vadd.f32 %v4409, %v4533
        %v4535 = vpop.f32.mrf.mxu0
        %v4536 = vpop.f32.mrf.mxu0
        %v4537 = vadd.f32 %v4409, %v4536
        %v4538 = vpop.f32.mrf.mxu0
        %4539 = vmatprep.mubr.bf16.mxu0 0
        %4540 = vmatmul.mubr.bf16.gmra.mxu0 %v4386
        %v4541 = vpop.f32.mrf.mxu0
        %v4542 = vadd.f32 %v4409, %v4541
        %v4543 = vpop.f32.mrf.mxu0
        %v4544 = vpop.f32.mrf.mxu0
        %v4545 = vadd.f32 %v4409, %v4544
        %v4546 = vpop.f32.mrf.mxu0
        %4547 = vmatprep.mubr.bf16.mxu0 0
        %4548 = vmatmul.mubr.bf16.gmra.mxu0 %v4387
        %v4549 = vpop.f32.mrf.mxu0
        %v4550 = vadd.f32 %v4409, %v4549
        %v4551 = vpop.f32.mrf.mxu0
        %v4552 = vpop.f32.mrf.mxu0
        %v4553 = vadd.f32 %v4409, %v4552
        %v4554 = vpop.f32.mrf.mxu0
        %4555 = vdwg.mxu0
        %s4556 = sld [smem:[#allocation4 + %s49]]
        %v4557 = vstv %s4556
        %vm4558 = vcmp.lt.s32.totalorder %v595, %v4557
        %vm4559 = vcmp.lt.s32.totalorder %v2422, %v4557
        %vm4560 = vcmp.lt.s32.totalorder %v2423, %v4557
        %vm4561 = vcmp.lt.s32.totalorder %v2424, %v4557
        %vm4562 = vcmp.lt.s32.totalorder %v2425, %v4557
        %vm4563 = vcmp.lt.s32.totalorder %v2426, %v4557
        %vm4564 = vcmp.lt.s32.totalorder %v2427, %v4557
        %vm4565 = vcmp.lt.s32.totalorder %v2428, %v4557
        %vm4566 = vcmp.lt.s32.totalorder %v2429, %v4557
        %vm4567 = vcmp.lt.s32.totalorder %v2430, %v4557
        %vm4568 = vcmp.lt.s32.totalorder %v2431, %v4557
        %vm4569 = vcmp.lt.s32.totalorder %v2432, %v4557
        %vm4570 = vcmp.lt.s32.totalorder %v2433, %v4557
        %vm4571 = vcmp.lt.s32.totalorder %v2434, %v4557
        %vm4572 = vcmp.lt.s32.totalorder %v2435, %v4557
        %vm4573 = vcmp.lt.s32.totalorder %v2436, %v4557
        %v4574 = vsel %vm4558, 1, 0
        %v4575 = vsel %vm4559, 1, 0
        %v4576 = vsel %vm4560, 1, 0
        %v4577 = vsel %vm4561, 1, 0
        %v4578 = vsel %vm4562, 1, 0
        %v4579 = vsel %vm4563, 1, 0
        %v4580 = vsel %vm4564, 1, 0
        %v4581 = vsel %vm4565, 1, 0
        %v4582 = vsel %vm4566, 1, 0
        %v4583 = vsel %vm4567, 1, 0
        %v4584 = vsel %vm4568, 1, 0
        %v4585 = vsel %vm4569, 1, 0
        %v4586 = vsel %vm4570, 1, 0
        %v4587 = vsel %vm4571, 1, 0
        %v4588 = vsel %vm4572, 1, 0
        %v4589 = vsel %vm4573, 1, 0
        %vm4590 = vcmp.eq.s32.totalorder %v4574, 1
        %vm4591 = vcmp.eq.s32.totalorder %v4575, 1
        %vm4592 = vcmp.eq.s32.totalorder %v4576, 1
        %vm4593 = vcmp.eq.s32.totalorder %v4577, 1
        %vm4594 = vcmp.eq.s32.totalorder %v4578, 1
        %vm4595 = vcmp.eq.s32.totalorder %v4579, 1
        %vm4596 = vcmp.eq.s32.totalorder %v4580, 1
        %vm4597 = vcmp.eq.s32.totalorder %v4581, 1
        %vm4598 = vcmp.eq.s32.totalorder %v4582, 1
        %vm4599 = vcmp.eq.s32.totalorder %v4583, 1
        %vm4600 = vcmp.eq.s32.totalorder %v4584, 1
        %vm4601 = vcmp.eq.s32.totalorder %v4585, 1
        %vm4602 = vcmp.eq.s32.totalorder %v4586, 1
        %vm4603 = vcmp.eq.s32.totalorder %v4587, 1
        %vm4604 = vcmp.eq.s32.totalorder %v4588, 1
        %vm4605 = vcmp.eq.s32.totalorder %v4589, 1
        %v4606 = vsel %vm4590, %v4494, 0.0
        %v4607 = vsel %vm4591, %v4497, 0.0
        %v4608 = vsel %vm4592, %v4502, 0.0
        %v4609 = vsel %vm4593, %v4505, 0.0
        %v4610 = vsel %vm4594, %v4510, 0.0
        %v4611 = vsel %vm4595, %v4513, 0.0
        %v4612 = vsel %vm4596, %v4518, 0.0
        %v4613 = vsel %vm4597, %v4521, 0.0
        %v4614 = vsel %vm4598, %v4526, 0.0
        %v4615 = vsel %vm4599, %v4529, 0.0
        %v4616 = vsel %vm4600, %v4534, 0.0
        %v4617 = vsel %vm4601, %v4537, 0.0
        %v4618 = vsel %vm4602, %v4542, 0.0
        %v4619 = vsel %vm4603, %v4545, 0.0
        %v4620 = vsel %vm4604, %v4550, 0.0
        %v4621 = vsel %vm4605, %v4553, 0.0
        %4622 = vst [vmem:[%s589] sm:$0xff] %v4606
        %4623 = vst [vmem:[%s589 + $0x8] sm:$0xff] %v4607
        %4624 = vst [vmem:[%s589 + $0x10] sm:$0xff] %v4608
        %4625 = vst [vmem:[%s589 + $0x18] sm:$0xff] %v4609
        %4626 = vst [vmem:[%s589 + $0x20] sm:$0xff] %v4610
        %4627 = vst [vmem:[%s589 + $0x28] sm:$0xff] %v4611
        %4628 = vst [vmem:[%s589 + $0x30] sm:$0xff] %v4612
        %4629 = vst [vmem:[%s589 + $0x38] sm:$0xff] %v4613
        %4630 = vst [vmem:[%s589 + $0x40] sm:$0xff] %v4614
        %4631 = vst [vmem:[%s589 + $0x48] sm:$0xff] %v4615
        %4632 = vst [vmem:[%s589 + $0x50] sm:$0xff] %v4616
        %4633 = vst [vmem:[%s589 + $0x58] sm:$0xff] %v4617
        %4634 = vst [vmem:[%s589 + $0x60] sm:$0xff] %v4618
        %4635 = vst [vmem:[%s589 + $0x68] sm:$0xff] %v4619
        %4636 = vst [vmem:[%s589 + $0x70] sm:$0xff] %v4620
        %4637 = vst [vmem:[%s589 + $0x78] sm:$0xff] %v4621
        %s4638 = sand.u32 %s319, 1
        %s4639 = scalar_lea.sflag [#allocation7], %s4638
        %s4640 = sand.u32 %s319, 1
        %s4641 = smul.addr %s4640, 8
        %s4642 = scalar_lea.vmem [#allocation17], %s4641
        %s4643 = sand.u32 %s345, 1
        %s4644 = scalar_lea.sflag [#allocation19], %s4643
        %s4645 = sand.u32 %s345, 1
        %s4646 = smul.addr %s4645, 128
        %s4647 = scalar_lea.vmem [#allocation18], %s4646
        // Predicated region
        $region97: #{tpu_custom_call.1} parent=67 // pred_check
          %p4648 = pneg %p329
        $region98: #{tpu_custom_call.1} parent=67 // pred_check_branch
          %4650 = sbr.rel (%p4648) target = $region100
        $region99: #{tpu_custom_call.1} parent=67 // pred_region
          %s4652 = ssub.s32 128, 128
          %4653 = vsyncadd %s4639, %s4652
          %s4654 = smul.addr %s49, 128
          %s4655 = scalar_lea.hbm %s14, %s4654
          %s4657 = sshll.u32 %s4642, 4
          %s4658 = int_to_ptr.vmem [resolvable:$true] %s4657
          %4660 = dma.vmem_to_hbm [thread:$0]  %s4658, 128, %s4655, %s4639
        $region100: #{tpu_custom_call.1} parent=67 // pred_fallthru
          _
        // Predicated region
        $region101: #{tpu_custom_call.1} parent=67 // pred_check
          %p4661 = pneg %p355
        $region102: #{tpu_custom_call.1} parent=67 // pred_check_branch
          %4663 = sbr.rel (%p4661) target = $region104
        $region103: #{tpu_custom_call.1} parent=67 // pred_region
          %s4665 = ssub.s32 2048, 2048
          %4666 = vsyncadd %s4644, %s4665
          %s4667 = smul.addr %s49, 16
          %s4668 = smul.addr %s4667, 128
          %s4669 = scalar_lea.hbm %s15, %s4668
          %s4670 = sshll.u32 %s4647, 4
          %s4671 = int_to_ptr.vmem [resolvable:$true] %s4670
          %4676 = dma.vmem_to_hbm [thread:$0]  %s4671, 2048, %s4669, %s4644, 128, 128, 8
        $region104: #{tpu_custom_call.1} parent=67 // pred_fallthru
          _
      $region68: #{tpu_custom_call.1} parent=5 // pred_fallthru
        _
      %p4677 = scmp.le.s32.totalorder 2, %s44
      // Predicated region
      $region105: #{tpu_custom_call.1} parent=5 // pred_check
        %p4678 = pneg %p4677
      $region106: #{tpu_custom_call.1} parent=5 // pred_check_branch
        %4680 = sbr.rel (%p4678) target = $region108
      $region107: #{tpu_custom_call.1} parent=5 // pred_region
        %s4681 = ssub.s32 %s44, 2
        // Predicated region
        $region109: #{tpu_custom_call.1} parent=107 // pred_check
          %p4682 = pneg %p335
        $region110: #{tpu_custom_call.1} parent=107 // pred_check_branch
          %4684 = sbr.rel (%p4682) target = $region112
        $region111: #{tpu_custom_call.1} parent=107 // pred_region
          %s4685 = sand.u32 %s320, 1
          %s4686 = scalar_lea.sflag [#allocation7], %s4685
          %s4687 = sand.u32 %s320, 1
          %s4688 = smul.addr %s4687, 8
          %s4689 = scalar_lea.vmem [#allocation17], %s4688
          %4690 = dma.done %s4686, 128
        $region112: #{tpu_custom_call.1} parent=107 // pred_fallthru
          _
        // Predicated region
        $region113: #{tpu_custom_call.1} parent=107 // pred_check
          %p4691 = pneg %p361
        $region114: #{tpu_custom_call.1} parent=107 // pred_check_branch
          %4693 = sbr.rel (%p4691) target = $region116
        $region115: #{tpu_custom_call.1} parent=107 // pred_region
          %s4694 = sand.u32 %s346, 1
          %s4695 = scalar_lea.sflag [#allocation19], %s4694
          %s4696 = sand.u32 %s346, 1
          %s4697 = smul.addr %s4696, 128
          %s4698 = scalar_lea.vmem [#allocation18], %s4697
          %4699 = dma.done %s4695, 2048
        $region116: #{tpu_custom_call.1} parent=107 // pred_fallthru
          _
      $region108: #{tpu_custom_call.1} parent=5 // pred_fallthru
        _
    $region6: #{tpu_custom_call.1} parent=1 // loop_footer
      %s48 = sadd.s32 1, %s44
    $region7: #{tpu_custom_call.1} parent=1 // loop_footer_branch
      %43 = sbr.rel target = $region3
    $region8: #{tpu_custom_call.1} parent=1 // loop_exit
      _
    %4700 = vsyncpa [#allocation6], 1
    %s4701 = scalar_lea.sflag [#allocation6], 1
    %4702 = vsyncpa %s4701, 1
    %4703 = vsyncpa [#allocation9], 1
    %s4704 = scalar_lea.sflag [#allocation9], 1
    %4705 = vsyncpa %s4704, 1
    %4706 = vsyncpa [#allocation12], 1
    %4707 = vsyncpa [#allocation15], 1
    %4708 = vsyncpa [#allocation7], 1
    %s4709 = scalar_lea.sflag [#allocation7], 1
    %4710 = vsyncpa %s4709, 1
    %4711 = vsyncpa [#allocation19], 1
    %s4712 = scalar_lea.sflag [#allocation19], 1
    %4713 = vsyncpa %s4712, 1

</llo_original>
